<compile_context>
chip_gen: v6e
topology: v6e:2x2x1
jax: 0.10.0
libtpu: 0.0.40
codegen_flags: <defaults>
</compile_context>

<pallas_src>
import math
from functools import partial

import jax
import jax.numpy as jnp
from jax import lax
from jax.experimental import pallas as pl
from jax.experimental.pallas import tpu as pltpu

# ----------------------------- model hyper-parameters ------------------------
DIM_IN = 20
DIM_OUT = 8
HEAD_DIM = 5
NUM_HEADS = 8
EMBED_DIM = HEAD_DIM * NUM_HEADS        # 40
FFN_DIM = 4 * EMBED_DIM                 # 160
NUM_LAYERS = 4
HEAD_DIM_PAD = 8                        # pad 5 -> 8 for lane alignment
EP = NUM_HEADS * HEAD_DIM_PAD           # 64 (padded q/k/v width)
QKV_SEG = 128                           # lane stride between q/k/v segments (vreg aligned)
QKV_W = 3 * QKV_SEG                     # 384
WIN_W = QKV_W + FFN_DIM                 # 544  (qkv | fc1)
WOUT_R = EP + FFN_DIM                   # 224  (out_proj ; fc2)


def _const_layout(seq, batch):
    """Row layout of the packed constant slab (lane width = max(EMBED_DIM, seq*batch))."""
    SB = seq * batch
    spec = (("conv", DIM_IN), ("pos", SB), ("p1w", EMBED_DIM), ("p2w", EMBED_DIM),
            ("outw", EMBED_DIM), ("lnfw", 1), ("lnfb", 1), ("p1b", 1), ("p2b", 1),
            ("outb", 1), ("mask", NUM_HEADS * SB))
    off, r = {}, 0
    for name, rows in spec:
        off[name] = (r, r + rows)
        r += (rows + 7) // 8 * 8          # keep every section 8-sublane aligned
    return off, r, max(EMBED_DIM, SB)


# ---------------------------------------------------------------------------
# Fused Pallas kernel: the entire forward pass on VMEM-resident data
# ---------------------------------------------------------------------------
def _fused_forward_kernel(
    x_ref, w_in_ref, w_out_ref, vec_ref, const_ref,   # inputs (5 packed operands)
    o_ref,                                            # output (batch, DIM_OUT)
    s_scr, ctx_scr,                                   # VMEM scratch
    *, num_layers, num_heads, head_dim_pad, seq, batch,
):
    f32 = jnp.float32
    E, ffn = EMBED_DIM, FFN_DIM
    SB = seq * batch
    ep = num_heads * head_dim_pad
    off, _, _ = _const_layout(seq, batch)

    def ln(x, w, b):
        mu = jnp.mean(x, axis=-1, keepdims=True)
        xc = x - mu
        var = jnp.mean(xc * xc, axis=-1, keepdims=True)
        return xc * lax.rsqrt(var + 1e-5) * w + b

    def mm(a, b):
        return jnp.dot(a, b, preferred_element_type=f32)

    def cvec(name, width=E):          # single packed row -> (1, width)
        r0, _ = off[name]
        return const_ref[r0:r0 + 1, 0:width]

    def cmat(name, width=E):          # packed matrix block
        r0, r1 = off[name]
        return const_ref[r0:r1, 0:width]

    # Conv1d(k=1, bias=False) == per-token linear (embed_scale folded into the weight),
    # plus the pre-broadcast sinusoidal positions (batch-major rows r = b*seq + s).
    h = mm(x_ref[...], cmat("conv")) + cmat("pos")             # (SB, E)
    mask = cmat("mask", SB)                                    # (H*SB, SB) additive mask

    for li in range(num_layers):
        # -------- per-layer packed weights (static, vreg-aligned slices) --------
        qkvw = w_in_ref[li, :, 0:QKV_W]                        # (E, 384)
        fc1w = w_in_ref[li, :, QKV_W:QKV_W + ffn]              # (E, 160)
        opw = w_out_ref[li, 0:ep, :]                           # (64, E)
        fc2w = w_out_ref[li, ep:ep + ffn, :]                   # (160, E)
        vb = vec_ref[li]                                       # (8, 384)
        qkvb = vb[0:1, :]
        fc1b = vb[1:2, 0:ffn]
        ln0w, ln0b = vb[2:3, 0:E], vb[3:4, 0:E]
        ln1w, ln1b = vb[4:5, 0:E], vb[5:6, 0:E]
        opb = vb[6:7, 0:E]
        fc2b = vb[7:8, 0:E]

        # ---------------- self-attention block (pre-norm) ----------------
        res = h
        hn = ln(h, ln0w, ln0b)
        qkv = mm(hn, qkvw) + qkvb                              # (SB, 384)
        q = qkv[:, 0:ep]                                       # lane 0   (vreg aligned)
        k = qkv[:, QKV_SEG:QKV_SEG + ep]                       # lane 128 (vreg aligned)
        v = qkv[:, 2 * QKV_SEG:2 * QKV_SEG + ep]               # lane 256 (vreg aligned)

        # Per-head score tiles stacked along sublanes -> single softmax pass.
        for hh in range(num_heads):
            a = hh * head_dim_pad
            s_scr[hh * SB:(hh + 1) * SB, :] = lax.dot_general(
                q[:, a:a + head_dim_pad], k[:, a:a + head_dim_pad],
                (((1,), (1,)), ((), ())), preferred_element_type=f32)
        s_all = s_scr[...] + mask                              # (H*SB, SB)
        mx = jnp.max(s_all, axis=-1, keepdims=True)
        e = jnp.exp(s_all - mx)
        p_all = e * pl.reciprocal(jnp.sum(e, axis=-1, keepdims=True), approx=True)

        # Per-head context assembled to (SB, 64); ONE fused out-projection matmul.
        for hh in range(num_heads):
            a = hh * head_dim_pad
            ctx_scr[:, a:a + head_dim_pad] = mm(
                p_all[hh * SB:(hh + 1) * SB, :], v[:, a:a + head_dim_pad])
        h = res + opb + mm(ctx_scr[...], opw)

        # ---------------- feed-forward block (pre-norm) ------------------
        res = h
        hn = ln(h, ln1w, ln1b)
        ff = jnp.maximum(mm(hn, fc1w) + fc1b, 0.0)
        h = mm(ff, fc2w) + fc2b + res

    # Final encoder LayerNorm (per-token, so slicing afterwards is equivalent).
    h = ln(h, cvec("lnfw"), cvec("lnfb"))

    # Output head. All ops are per-row, so compute on all SB rows and emit only the
    # last time step of each batch element (batch-major rows: b*seq + seq-1).
    # TODO(synk): head dropout (p=0.1) is treated as inference-mode identity.
    h1 = jnp.maximum(mm(h, cmat("p1w")) + cvec("p1b"), 0.0)
    h2 = mm(h1, cmat("p2w")) + cvec("p2b") + h
    out_all = mm(h2, cmat("outw", DIM_OUT)) + cvec("outb", DIM_OUT)   # (SB, DIM_OUT)
    for b in range(batch):
        o_ref[b:b + 1, :] = out_all[(b + 1) * seq - 1:(b + 1) * seq, :]


# ---------------------------------------------------------------------------
# Parameter init (torch conventions) and one-time packing / weight folding
# ---------------------------------------------------------------------------
def _xavier(key, shape):
    fan_out, fan_in = shape
    bound = math.sqrt(6.0 / (fan_in + fan_out))
    return jax.random.uniform(key, shape, jnp.float32, -bound, bound)


def init_params(key, dim_in=DIM_IN, dim_out=DIM_OUT):
    E, ffn = EMBED_DIM, FFN_DIM
    k_conv, k_layers, k_p1, k_p2, k_out = jax.random.split(key, 5)
    params = {
        "conv_w": _xavier(k_conv, (E, dim_in)),   # Conv1d(dim_in, 40, k=1, bias=False)
        "layers": [],
        "ln_f_w": jnp.ones((E,), jnp.float32),
        "ln_f_b": jnp.zeros((E,), jnp.float32),
        "proj1_w": _xavier(k_p1, (E, E)), "proj1_b": jnp.zeros((E,), jnp.float32),
        "proj2_w": _xavier(k_p2, (E, E)), "proj2_b": jnp.zeros((E,), jnp.float32),
        "out_w": _xavier(k_out, (dim_out, E)), "out_b": jnp.zeros((dim_out,), jnp.float32),
    }
    for lkey in jax.random.split(k_layers, NUM_LAYERS):
        kq, ko, k1, k2 = jax.random.split(lkey, 4)
        params["layers"].append(dict(
            ln0_w=jnp.ones((E,), jnp.float32), ln0_b=jnp.zeros((E,), jnp.float32),
            ln1_w=jnp.ones((E,), jnp.float32), ln1_b=jnp.zeros((E,), jnp.float32),
            in_proj_w=_xavier(kq, (3 * E, E)), in_proj_b=jnp.zeros((3 * E,), jnp.float32),
            out_proj_w=_xavier(ko, (E, E)), out_proj_b=jnp.zeros((E,), jnp.float32),
            fc1_w=_xavier(k1, (ffn, E)), fc1_b=jnp.zeros((ffn,), jnp.float32),
            fc2_w=_xavier(k2, (E, ffn)), fc2_b=jnp.zeros((E,), jnp.float32),
        ))
    return params


def sinusoidal_pos_emb(seq_len, dim):
    # fairseq-style sinusoidal embedding; positions 1..seq_len (padding_idx=0).
    # TODO(synk): the reference derives positions from zero-valued padding tokens
    # (make_positions); we assume the input contains no padding tokens.
    half = dim // 2
    freq = jnp.exp(jnp.arange(half, dtype=jnp.float32) * -(math.log(10000.0) / (half - 1)))
    pos = jnp.arange(1, seq_len + 1, dtype=jnp.float32)[:, None]
    ang = pos * freq[None, :]
    emb = jnp.concatenate([jnp.sin(ang), jnp.cos(ang)], axis=1)
    if dim % 2 == 1:
        emb = jnp.concatenate([emb, jnp.zeros((seq_len, 1), jnp.float32)], axis=1)
    return emb  # (seq_len, dim)


def pack_params(params, seq, batch):
    """One-time host-side packing: transpose, pad heads 5->8, fold scales, pack slabs."""
    E, H, Dh, Dp = EMBED_DIM, NUM_HEADS, HEAD_DIM, HEAD_DIM_PAD
    ep, ffn = EP, FFN_DIM
    SB = seq * batch
    scaling = Dh ** -0.5

    def pad_head_cols(w_t, b):
        w4 = jnp.pad(w_t.reshape(E, H, Dh), ((0, 0), (0, 0), (0, Dp - Dh)))
        b4 = jnp.pad(b.reshape(H, Dh), ((0, 0), (0, Dp - Dh)))
        return w4.reshape(E, ep), b4.reshape(ep)

    w_in_l, w_out_l, vec_l = [], [], []
    for lp in params["layers"]:
        W, bvec = lp["in_proj_w"], lp["in_proj_b"]                 # (3E, E), (3E,)
        wq, wk, wv = W[:E], W[E:2 * E], W[2 * E:]
        bq, bk, bv = bvec[:E], bvec[E:2 * E], bvec[2 * E:]
        wq_t, bq = pad_head_cols(wq.T * scaling, bq * scaling)     # fold q-scaling
        wk_t, bk = pad_head_cols(wk.T, bk)
        wv_t, bv = pad_head_cols(wv.T, bv)

        # q/k/v segments at 128-lane stride so in-kernel slices are vreg-aligned.
        qkv_w = jnp.zeros((E, QKV_W), jnp.float32)
        qkv_w = qkv_w.at[:, 0:ep].set(wq_t)
        qkv_w = qkv_w.at[:, QKV_SEG:QKV_SEG + ep].set(wk_t)
        qkv_w = qkv_w.at[:, 2 * QKV_SEG:2 * QKV_SEG + ep].set(wv_t)
        qkv_b = jnp.zeros((QKV_W,), jnp.float32)
        qkv_b = qkv_b.at[0:ep].set(bq)
        qkv_b = qkv_b.at[QKV_SEG:QKV_SEG + ep].set(bk)
        qkv_b = qkv_b.at[2 * QKV_SEG:2 * QKV_SEG + ep].set(bv)

        w_in_l.append(jnp.concatenate([qkv_w, lp["fc1_w"].T], axis=1))      # (E, 544)

        wo_t = jnp.pad(lp["out_proj_w"].T.reshape(H, Dh, E),
                       ((0, 0), (0, Dp - Dh), (0, 0))).reshape(ep, E)       # padded rows = 0
        w_out_l.append(jnp.concatenate([wo_t, lp["fc2_w"].T], axis=0))      # (224, E)

        vec = jnp.zeros((8, QKV_W), jnp.float32)                            # biases / LN params
        vec = vec.at[0, :].set(qkv_b)
        vec = vec.at[1, 0:ffn].set(lp["fc1_b"])
        vec = vec.at[2, 0:E].set(lp["ln0_w"])
        vec = vec.at[3, 0:E].set(lp["ln0_b"])
        vec = vec.at[4, 0:E].set(lp["ln1_w"])
        vec = vec.at[5, 0:E].set(lp["ln1_b"])
        vec = vec.at[6, 0:E].set(lp["out_proj_b"])
        vec = vec.at[7, 0:E].set(lp["fc2_b"])
        vec_l.append(vec)

    off, nrows, width = _const_layout(seq, batch)
    const = jnp.zeros((nrows, width), jnp.float32)

    def put(name, val2d):
        r0, r1 = off[name]
        return const.at[r0:r1, 0:val2d.shape[1]].set(val2d)

    const = put("conv", params["conv_w"].T * math.sqrt(E))      # embed_scale folded in
    const = put("pos", jnp.tile(sinusoidal_pos_emb(seq, E), (batch, 1)))   # batch-major rows
    const = put("p1w", params["proj1_w"].T)
    const = put("p2w", params["proj2_w"].T)
    const = put("outw", params["out_w"].T)
    const = put("lnfw", params["ln_f_w"][None, :])
    const = put("lnfb", params["ln_f_b"][None, :])
    const = put("p1b", params["proj1_b"][None, :])
    const = put("p2b", params["proj2_b"][None, :])
    const = put("outb", params["out_b"][None, :])

    # Combined additive mask over batch-major rows (r = b*seq + s): valid iff same batch
    # element AND key position <= query position (causal); pre-tiled over heads so it is
    # added once per layer to the stacked (H*SB, SB) scores.
    r_idx = jnp.arange(SB)
    b_idx, s_idx = r_idx // seq, r_idx % seq
    valid = (b_idx[None, :] == b_idx[:, None]) & (s_idx[None, :] <= s_idx[:, None])
    mask = jnp.where(valid, 0.0, -1e30).astype(jnp.float32)
    const = put("mask", jnp.tile(mask, (H, 1)))

    return dict(w_in=jnp.stack(w_in_l), w_out=jnp.stack(w_out_l),
                vecs=jnp.stack(vec_l), const=const)


# ---------------------------------------------------------------------------
# Forward wrapper: ONE pallas_call, 5 packed operands, no host transpose
# ---------------------------------------------------------------------------
def forward(packed, x):
    # x: (B, S, dim_in). Contiguous batch-major flatten is a free (bitcast) reshape.
    batch, seq, dim_in = x.shape
    x2d = x.astype(jnp.float32).reshape(batch * seq, dim_in)

    kernel = partial(
        _fused_forward_kernel,
        num_layers=NUM_LAYERS, num_heads=NUM_HEADS,
        head_dim_pad=HEAD_DIM_PAD, seq=seq, batch=batch)

    SB = seq * batch
    cost = pl.CostEstimate(flops=4_400_000, transcendentals=9_000, bytes_accessed=620_000)

    return pl.pallas_call(
        kernel,
        out_shape=jax.ShapeDtypeStruct((batch, DIM_OUT), jnp.float32),
        scratch_shapes=[
            pltpu.VMEM((NUM_HEADS * SB, SB), jnp.float32),   # stacked score tiles
            pltpu.VMEM((SB, EP), jnp.float32),               # assembled per-head contexts
        ],
        cost_estimate=cost,
    )(
        x2d,
        packed["w_in"],    # (L, 40, 544)  [qkv | fc1]
        packed["w_out"],   # (L, 224, 40)  [out_proj ; fc2]
        packed["vecs"],    # (L, 8, 384)   biases + LN params
        packed["const"],   # (328, 40)     conv/pos/head weights + tiled mask
    )


if __name__ == "__main__":
    # Small shapes consistent with the module: dim_in=20, dim_out=8,
    # head_dim=5, num_heads=8 (embed_dim=40), layers=4, batch=2, seq=8.
    B, S = 2, 8

    key = jax.random.PRNGKey(0)
    k_x, k_p = jax.random.split(key)
    x = jax.random.normal(k_x, (B, S, DIM_IN), jnp.float32)

    params = init_params(k_p, DIM_IN, DIM_OUT)
    packed = pack_params(params, seq=S, batch=B)   # one-time weight folding / slab packing

    fwd = jax.jit(forward)
    out = jax.block_until_ready(fwd(packed, x))

    assert out.shape == (B, DIM_OUT)
    assert bool(jnp.all(jnp.isfinite(out)))
    print("KERNEL_OK")
</pallas_src>

<mosaic_0001>
module attributes {stable_mosaic.version = 11 : i64} {
  func.func @_fused_forward_kernel(%arg0: memref<16x20xf32, #tpu.memory_space<vmem>>, %arg1: memref<4x40x544xf32, #tpu.memory_space<vmem>>, %arg2: memref<4x224x40xf32, #tpu.memory_space<vmem>>, %arg3: memref<4x8x384xf32, #tpu.memory_space<vmem>>, %arg4: memref<328x40xf32, #tpu.memory_space<vmem>>, %arg5: memref<2x8xf32, #tpu.memory_space<vmem>>, %arg6: memref<128x16xf32, #tpu.memory_space<vmem>>, %arg7: memref<16x64xf32, #tpu.memory_space<vmem>>) attributes {dimension_semantics = [], scalar_prefetch = 0 : i64, scratch_operands = 2 : i64, tpu.core_type = #tpu.core_type<tc>} {
    %c0 = arith.constant 0 : index
    %c0_0 = arith.constant 0 : index
    %0 = vector.load %arg0[%c0, %c0_0] : memref<16x20xf32, #tpu.memory_space<vmem>>, vector<16x20xf32>
    %c0_1 = arith.constant 0 : index
    %c0_2 = arith.constant 0 : index
    %1 = vector.load %arg4[%c0_1, %c0_2] : memref<328x40xf32, #tpu.memory_space<vmem>>, vector<20x40xf32>
    %cst = arith.constant dense<0.000000e+00> : vector<16x40xf32>
    %2 = tpu.matmul %0, %1, %cst {dimension_numbers = #tpu.dot_dimension_numbers<[1], [0], [0], [1], [0, 0, 1, 1], [], []>} : vector<16x20xf32>, vector<20x40xf32>, vector<16x40xf32> -> vector<16x40xf32>
    %c24 = arith.constant 24 : index
    %c0_3 = arith.constant 0 : index
    %3 = vector.load %arg4[%c24, %c0_3] : memref<328x40xf32, #tpu.memory_space<vmem>>, vector<16x40xf32>
    %4 = arith.addf %2, %3 : vector<16x40xf32>
    %c200 = arith.constant 200 : index
    %c0_4 = arith.constant 0 : index
    %5 = vector.load %arg4[%c200, %c0_4] : memref<328x40xf32, #tpu.memory_space<vmem>>, vector<128x16xf32>
    %c0_5 = arith.constant 0 : index
    %c0_6 = arith.constant 0 : index
    %c0_7 = arith.constant 0 : index
    %6 = vector.load %arg1[%c0_5, %c0_6, %c0_7] : memref<4x40x544xf32, #tpu.memory_space<vmem>>, vector<1x40x384xf32>
    %7 = vector.shape_cast %6 : vector<1x40x384xf32> to vector<40x384xf32>
    %c0_8 = arith.constant 0 : index
    %c0_9 = arith.constant 0 : index
    %c384 = arith.constant 384 : index
    %8 = vector.load %arg1[%c0_8, %c0_9, %c384] : memref<4x40x544xf32, #tpu.memory_space<vmem>>, vector<1x40x160xf32>
    %9 = vector.shape_cast %8 : vector<1x40x160xf32> to vector<40x160xf32>
    %c0_10 = arith.constant 0 : index
    %c0_11 = arith.constant 0 : index
    %c0_12 = arith.constant 0 : index
    %10 = vector.load %arg2[%c0_10, %c0_11, %c0_12] : memref<4x224x40xf32, #tpu.memory_space<vmem>>, vector<1x64x40xf32>
    %11 = vector.shape_cast %10 : vector<1x64x40xf32> to vector<64x40xf32>
    %c0_13 = arith.constant 0 : index
    %c64 = arith.constant 64 : index
    %c0_14 = arith.constant 0 : index
    %12 = vector.load %arg2[%c0_13, %c64, %c0_14] : memref<4x224x40xf32, #tpu.memory_space<vmem>>, vector<1x160x40xf32>
    %13 = vector.shape_cast %12 : vector<1x160x40xf32> to vector<160x40xf32>
    %c0_15 = arith.constant 0 : index
    %c0_16 = arith.constant 0 : index
    %c0_17 = arith.constant 0 : index
    %14 = vector.load %arg3[%c0_15, %c0_16, %c0_17] : memref<4x8x384xf32, #tpu.memory_space<vmem>>, vector<1x8x384xf32>
    %15 = vector.shape_cast %14 : vector<1x8x384xf32> to vector<8x384xf32>
    %16 = vector.extract_strided_slice %15 {offsets = [0, 0], sizes = [1, 384], strides = [1, 1]} : vector<8x384xf32> to vector<1x384xf32>
    %17 = vector.extract_strided_slice %15 {offsets = [1, 0], sizes = [1, 160], strides = [1, 1]} : vector<8x384xf32> to vector<1x160xf32>
    %18 = vector.extract_strided_slice %15 {offsets = [2, 0], sizes = [1, 40], strides = [1, 1]} : vector<8x384xf32> to vector<1x40xf32>
    %19 = vector.extract_strided_slice %15 {offsets = [3, 0], sizes = [1, 40], strides = [1, 1]} : vector<8x384xf32> to vector<1x40xf32>
    %20 = vector.extract_strided_slice %15 {offsets = [4, 0], sizes = [1, 40], strides = [1, 1]} : vector<8x384xf32> to vector<1x40xf32>
    %21 = vector.extract_strided_slice %15 {offsets = [5, 0], sizes = [1, 40], strides = [1, 1]} : vector<8x384xf32> to vector<1x40xf32>
    %22 = vector.extract_strided_slice %15 {offsets = [6, 0], sizes = [1, 40], strides = [1, 1]} : vector<8x384xf32> to vector<1x40xf32>
    %23 = vector.extract_strided_slice %15 {offsets = [7, 0], sizes = [1, 40], strides = [1, 1]} : vector<8x384xf32> to vector<1x40xf32>
    %cst_18 = arith.constant dense<0.000000e+00> : vector<16xf32>
    %24 = vector.multi_reduction <add>, %4, %cst_18 [1] : vector<16x40xf32> to vector<16xf32>
    %25 = vector.shape_cast %24 : vector<16xf32> to vector<16x1xf32>
    %cst_19 = arith.constant 4.000000e+01 : f32
    %26 = vector.broadcast %cst_19 : f32 to vector<16x1xf32>
    %27 = arith.divf %25, %26 : vector<16x1xf32>
    %28 = vector.broadcast %27 : vector<16x1xf32> to vector<16x40xf32>
    %29 = arith.subf %4, %28 : vector<16x40xf32>
    %30 = arith.mulf %29, %29 : vector<16x40xf32>
    %cst_20 = arith.constant dense<0.000000e+00> : vector<16xf32>
    %31 = vector.multi_reduction <add>, %30, %cst_20 [1] : vector<16x40xf32> to vector<16xf32>
    %32 = vector.shape_cast %31 : vector<16xf32> to vector<16x1xf32>
    %cst_21 = arith.constant 4.000000e+01 : f32
    %33 = vector.broadcast %cst_21 : f32 to vector<16x1xf32>
    %34 = arith.divf %32, %33 : vector<16x1xf32>
    %cst_22 = arith.constant 9.99999974E-6 : f32
    %35 = vector.broadcast %cst_22 : f32 to vector<16x1xf32>
    %36 = arith.addf %34, %35 : vector<16x1xf32>
    %37 = math.rsqrt %36 : vector<16x1xf32>
    %38 = vector.broadcast %37 : vector<16x1xf32> to vector<16x40xf32>
    %39 = arith.mulf %29, %38 : vector<16x40xf32>
    %40 = vector.broadcast %18 : vector<1x40xf32> to vector<16x40xf32>
    %41 = arith.mulf %39, %40 : vector<16x40xf32>
    %42 = vector.broadcast %19 : vector<1x40xf32> to vector<16x40xf32>
    %43 = arith.addf %41, %42 : vector<16x40xf32>
    %cst_23 = arith.constant dense<0.000000e+00> : vector<16x384xf32>
    %44 = tpu.matmul %43, %7, %cst_23 {dimension_numbers = #tpu.dot_dimension_numbers<[1], [0], [0], [1], [0, 0, 1, 1], [], []>} : vector<16x40xf32>, vector<40x384xf32>, vector<16x384xf32> -> vector<16x384xf32>
    %45 = vector.broadcast %16 : vector<1x384xf32> to vector<16x384xf32>
    %46 = arith.addf %44, %45 : vector<16x384xf32>
    %47 = vector.extract_strided_slice %46 {offsets = [0, 0], sizes = [16, 64], strides = [1, 1]} : vector<16x384xf32> to vector<16x64xf32>
    %48 = vector.extract_strided_slice %46 {offsets = [0, 128], sizes = [16, 64], strides = [1, 1]} : vector<16x384xf32> to vector<16x64xf32>
    %49 = vector.extract_strided_slice %46 {offsets = [0, 256], sizes = [16, 64], strides = [1, 1]} : vector<16x384xf32> to vector<16x64xf32>
    %50 = vector.extract_strided_slice %47 {offsets = [0, 0], sizes = [16, 8], strides = [1, 1]} : vector<16x64xf32> to vector<16x8xf32>
    %51 = vector.extract_strided_slice %48 {offsets = [0, 0], sizes = [16, 8], strides = [1, 1]} : vector<16x64xf32> to vector<16x8xf32>
    %cst_24 = arith.constant dense<0.000000e+00> : vector<16x16xf32>
    %52 = tpu.matmul %50, %51, %cst_24 {dimension_numbers = #tpu.dot_dimension_numbers<[1], [1], [0], [0], [0, 0, 1, 0], [], []>} : vector<16x8xf32>, vector<16x8xf32>, vector<16x16xf32> -> vector<16x16xf32>
    %c0_25 = arith.constant 0 : index
    %c0_26 = arith.constant 0 : index
    %53 = vector.load %arg6[%c0_25, %c0_26] : memref<128x16xf32, #tpu.memory_space<vmem>>, vector<16x16xf32>
    tpu.vector_store %arg6[%c0_25, %c0_26], %52 {strides = array<i32>} : memref<128x16xf32, #tpu.memory_space<vmem>>, vector<16x16xf32>,
    %54 = vector.extract_strided_slice %47 {offsets = [0, 8], sizes = [16, 8], strides = [1, 1]} : vector<16x64xf32> to vector<16x8xf32>
    %55 = vector.extract_strided_slice %48 {offsets = [0, 8], sizes = [16, 8], strides = [1, 1]} : vector<16x64xf32> to vector<16x8xf32>
    %cst_27 = arith.constant dense<0.000000e+00> : vector<16x16xf32>
    %56 = tpu.matmul %54, %55, %cst_27 {dimension_numbers = #tpu.dot_dimension_numbers<[1], [1], [0], [0], [0, 0, 1, 0], [], []>} : vector<16x8xf32>, vector<16x8xf32>, vector<16x16xf32> -> vector<16x16xf32>
    %c16 = arith.constant 16 : index
    %c0_28 = arith.constant 0 : index
    %57 = vector.load %arg6[%c16, %c0_28] : memref<128x16xf32, #tpu.memory_space<vmem>>, vector<16x16xf32>
    tpu.vector_store %arg6[%c16, %c0_28], %56 {strides = array<i32>} : memref<128x16xf32, #tpu.memory_space<vmem>>, vector<16x16xf32>,
    %58 = vector.extract_strided_slice %47 {offsets = [0, 16], sizes = [16, 8], strides = [1, 1]} : vector<16x64xf32> to vector<16x8xf32>
    %59 = vector.extract_strided_slice %48 {offsets = [0, 16], sizes = [16, 8], strides = [1, 1]} : vector<16x64xf32> to vector<16x8xf32>
    %cst_29 = arith.constant dense<0.000000e+00> : vector<16x16xf32>
    %60 = tpu.matmul %58, %59, %cst_29 {dimension_numbers = #tpu.dot_dimension_numbers<[1], [1], [0], [0], [0, 0, 1, 0], [], []>} : vector<16x8xf32>, vector<16x8xf32>, vector<16x16xf32> -> vector<16x16xf32>
    %c32 = arith.constant 32 : index
    %c0_30 = arith.constant 0 : index
    %61 = vector.load %arg6[%c32, %c0_30] : memref<128x16xf32, #tpu.memory_space<vmem>>, vector<16x16xf32>
    tpu.vector_store %arg6[%c32, %c0_30], %60 {strides = array<i32>} : memref<128x16xf32, #tpu.memory_space<vmem>>, vector<16x16xf32>,
    %62 = vector.extract_strided_slice %47 {offsets = [0, 24], sizes = [16, 8], strides = [1, 1]} : vector<16x64xf32> to vector<16x8xf32>
    %63 = vector.extract_strided_slice %48 {offsets = [0, 24], sizes = [16, 8], strides = [1, 1]} : vector<16x64xf32> to vector<16x8xf32>
    %cst_31 = arith.constant dense<0.000000e+00> : vector<16x16xf32>
    %64 = tpu.matmul %62, %63, %cst_31 {dimension_numbers = #tpu.dot_dimension_numbers<[1], [1], [0], [0], [0, 0, 1, 0], [], []>} : vector<16x8xf32>, vector<16x8xf32>, vector<16x16xf32> -> vector<16x16xf32>
    %c48 = arith.constant 48 : index
    %c0_32 = arith.constant 0 : index
    %65 = vector.load %arg6[%c48, %c0_32] : memref<128x16xf32, #tpu.memory_space<vmem>>, vector<16x16xf32>
    tpu.vector_store %arg6[%c48, %c0_32], %64 {strides = array<i32>} : memref<128x16xf32, #tpu.memory_space<vmem>>, vector<16x16xf32>,
    %66 = vector.extract_strided_slice %47 {offsets = [0, 32], sizes = [16, 8], strides = [1, 1]} : vector<16x64xf32> to vector<16x8xf32>
    %67 = vector.extract_strided_slice %48 {offsets = [0, 32], sizes = [16, 8], strides = [1, 1]} : vector<16x64xf32> to vector<16x8xf32>
    %cst_33 = arith.constant dense<0.000000e+00> : vector<16x16xf32>
    %68 = tpu.matmul %66, %67, %cst_33 {dimension_numbers = #tpu.dot_dimension_numbers<[1], [1], [0], [0], [0, 0, 1, 0], [], []>} : vector<16x8xf32>, vector<16x8xf32>, vector<16x16xf32> -> vector<16x16xf32>
    %c64_34 = arith.constant 64 : index
    %c0_35 = arith.constant 0 : index
    %69 = vector.load %arg6[%c64_34, %c0_35] : memref<128x16xf32, #tpu.memory_space<vmem>>, vector<16x16xf32>
    tpu.vector_store %arg6[%c64_34, %c0_35], %68 {strides = array<i32>} : memref<128x16xf32, #tpu.memory_space<vmem>>, vector<16x16xf32>,
    %70 = vector.extract_strided_slice %47 {offsets = [0, 40], sizes = [16, 8], strides = [1, 1]} : vector<16x64xf32> to vector<16x8xf32>
    %71 = vector.extract_strided_slice %48 {offsets = [0, 40], sizes = [16, 8], strides = [1, 1]} : vector<16x64xf32> to vector<16x8xf32>
    %cst_36 = arith.constant dense<0.000000e+00> : vector<16x16xf32>
    %72 = tpu.matmul %70, %71, %cst_36 {dimension_numbers = #tpu.dot_dimension_numbers<[1], [1], [0], [0], [0, 0, 1, 0], [], []>} : vector<16x8xf32>, vector<16x8xf32>, vector<16x16xf32> -> vector<16x16xf32>
    %c80 = arith.constant 80 : index
    %c0_37 = arith.constant 0 : index
    %73 = vector.load %arg6[%c80, %c0_37] : memref<128x16xf32, #tpu.memory_space<vmem>>, vector<16x16xf32>
    tpu.vector_store %arg6[%c80, %c0_37], %72 {strides = array<i32>} : memref<128x16xf32, #tpu.memory_space<vmem>>, vector<16x16xf32>,
    %74 = vector.extract_strided_slice %47 {offsets = [0, 48], sizes = [16, 8], strides = [1, 1]} : vector<16x64xf32> to vector<16x8xf32>
    %75 = vector.extract_strided_slice %48 {offsets = [0, 48], sizes = [16, 8], strides = [1, 1]} : vector<16x64xf32> to vector<16x8xf32>
    %cst_38 = arith.constant dense<0.000000e+00> : vector<16x16xf32>
    %76 = tpu.matmul %74, %75, %cst_38 {dimension_numbers = #tpu.dot_dimension_numbers<[1], [1], [0], [0], [0, 0, 1, 0], [], []>} : vector<16x8xf32>, vector<16x8xf32>, vector<16x16xf32> -> vector<16x16xf32>
    %c96 = arith.constant 96 : index
    %c0_39 = arith.constant 0 : index
    %77 = vector.load %arg6[%c96, %c0_39] : memref<128x16xf32, #tpu.memory_space<vmem>>, vector<16x16xf32>
    tpu.vector_store %arg6[%c96, %c0_39], %76 {strides = array<i32>} : memref<128x16xf32, #tpu.memory_space<vmem>>, vector<16x16xf32>,
    %78 = vector.extract_strided_slice %47 {offsets = [0, 56], sizes = [16, 8], strides = [1, 1]} : vector<16x64xf32> to vector<16x8xf32>
    %79 = vector.extract_strided_slice %48 {offsets = [0, 56], sizes = [16, 8], strides = [1, 1]} : vector<16x64xf32> to vector<16x8xf32>
    %cst_40 = arith.constant dense<0.000000e+00> : vector<16x16xf32>
    %80 = tpu.matmul %78, %79, %cst_40 {dimension_numbers = #tpu.dot_dimension_numbers<[1], [1], [0], [0], [0, 0, 1, 0], [], []>} : vector<16x8xf32>, vector<16x8xf32>, vector<16x16xf32> -> vector<16x16xf32>
    %c112 = arith.constant 112 : index
    %c0_41 = arith.constant 0 : index
    %81 = vector.load %arg6[%c112, %c0_41] : memref<128x16xf32, #tpu.memory_space<vmem>>, vector<16x16xf32>
    tpu.vector_store %arg6[%c112, %c0_41], %80 {strides = array<i32>} : memref<128x16xf32, #tpu.memory_space<vmem>>, vector<16x16xf32>,
    %c0_42 = arith.constant 0 : index
    %c0_43 = arith.constant 0 : index
    %82 = vector.load %arg6[%c0_42, %c0_43] : memref<128x16xf32, #tpu.memory_space<vmem>>, vector<128x16xf32>
    %83 = arith.addf %82, %5 : vector<128x16xf32>
    %cst_44 = arith.constant dense<0xFF800000> : vector<128xf32>
    %84 = vector.multi_reduction <maximumf>, %83, %cst_44 [1] : vector<128x16xf32> to vector<128xf32>
    %85 = vector.shape_cast %84 : vector<128xf32> to vector<128x1xf32>
    %86 = vector.broadcast %85 : vector<128x1xf32> to vector<128x16xf32>
    %87 = arith.subf %83, %86 : vector<128x16xf32>
    %88 = math.exp %87 : vector<128x16xf32>
    %cst_45 = arith.constant dense<0.000000e+00> : vector<128xf32>
    %89 = vector.multi_reduction <add>, %88, %cst_45 [1] : vector<128x16xf32> to vector<128xf32>
    %90 = vector.shape_cast %89 : vector<128xf32> to vector<128x1xf32>
    %91 = tpu.reciprocal %90 {approx = true} : vector<128x1xf32> -> vector<128x1xf32>
    %92 = vector.broadcast %91 : vector<128x1xf32> to vector<128x16xf32>
    %93 = arith.mulf %88, %92 : vector<128x16xf32>
    %94 = vector.extract_strided_slice %93 {offsets = [0, 0], sizes = [16, 16], strides = [1, 1]} : vector<128x16xf32> to vector<16x16xf32>
    %95 = vector.extract_strided_slice %49 {offsets = [0, 0], sizes = [16, 8], strides = [1, 1]} : vector<16x64xf32> to vector<16x8xf32>
    %cst_46 = arith.constant dense<0.000000e+00> : vector<16x8xf32>
    %96 = tpu.matmul %94, %95, %cst_46 {dimension_numbers = #tpu.dot_dimension_numbers<[1], [0], [0], [1], [0, 0, 1, 1], [], []>} : vector<16x16xf32>, vector<16x8xf32>, vector<16x8xf32> -> vector<16x8xf32>
    %c0_47 = arith.constant 0 : index
    %c0_48 = arith.constant 0 : index
    %97 = vector.load %arg7[%c0_47, %c0_48] : memref<16x64xf32, #tpu.memory_space<vmem>>, vector<16x8xf32>
    tpu.vector_store %arg7[%c0_47, %c0_48], %96 {strides = array<i32>} : memref<16x64xf32, #tpu.memory_space<vmem>>, vector<16x8xf32>,
    %98 = vector.extract_strided_slice %93 {offsets = [16, 0], sizes = [16, 16], strides = [1, 1]} : vector<128x16xf32> to vector<16x16xf32>
    %99 = vector.extract_strided_slice %49 {offsets = [0, 8], sizes = [16, 8], strides = [1, 1]} : vector<16x64xf32> to vector<16x8xf32>
    %cst_49 = arith.constant dense<0.000000e+00> : vector<16x8xf32>
    %100 = tpu.matmul %98, %99, %cst_49 {dimension_numbers = #tpu.dot_dimension_numbers<[1], [0], [0], [1], [0, 0, 1, 1], [], []>} : vector<16x16xf32>, vector<16x8xf32>, vector<16x8xf32> -> vector<16x8xf32>
    %c0_50 = arith.constant 0 : index
    %c8 = arith.constant 8 : index
    %101 = vector.load %arg7[%c0_50, %c8] : memref<16x64xf32, #tpu.memory_space<vmem>>, vector<16x8xf32>
    tpu.vector_store %arg7[%c0_50, %c8], %100 {strides = array<i32>} : memref<16x64xf32, #tpu.memory_space<vmem>>, vector<16x8xf32>,
    %102 = vector.extract_strided_slice %93 {offsets = [32, 0], sizes = [16, 16], strides = [1, 1]} : vector<128x16xf32> to vector<16x16xf32>
    %103 = vector.extract_strided_slice %49 {offsets = [0, 16], sizes = [16, 8], strides = [1, 1]} : vector<16x64xf32> to vector<16x8xf32>
    %cst_51 = arith.constant dense<0.000000e+00> : vector<16x8xf32>
    %104 = tpu.matmul %102, %103, %cst_51 {dimension_numbers = #tpu.dot_dimension_numbers<[1], [0], [0], [1], [0, 0, 1, 1], [], []>} : vector<16x16xf32>, vector<16x8xf32>, vector<16x8xf32> -> vector<16x8xf32>
    %c0_52 = arith.constant 0 : index
    %c16_53 = arith.constant 16 : index
    %105 = vector.load %arg7[%c0_52, %c16_53] : memref<16x64xf32, #tpu.memory_space<vmem>>, vector<16x8xf32>
    tpu.vector_store %arg7[%c0_52, %c16_53], %104 {strides = array<i32>} : memref<16x64xf32, #tpu.memory_space<vmem>>, vector<16x8xf32>,
    %106 = vector.extract_strided_slice %93 {offsets = [48, 0], sizes = [16, 16], strides = [1, 1]} : vector<128x16xf32> to vector<16x16xf32>
    %107 = vector.extract_strided_slice %49 {offsets = [0, 24], sizes = [16, 8], strides = [1, 1]} : vector<16x64xf32> to vector<16x8xf32>
    %cst_54 = arith.constant dense<0.000000e+00> : vector<16x8xf32>
    %108 = tpu.matmul %106, %107, %cst_54 {dimension_numbers = #tpu.dot_dimension_numbers<[1], [0], [0], [1], [0, 0, 1, 1], [], []>} : vector<16x16xf32>, vector<16x8xf32>, vector<16x8xf32> -> vector<16x8xf32>
    %c0_55 = arith.constant 0 : index
    %c24_56 = arith.constant 24 : index
    %109 = vector.load %arg7[%c0_55, %c24_56] : memref<16x64xf32, #tpu.memory_space<vmem>>, vector<16x8xf32>
    tpu.vector_store %arg7[%c0_55, %c24_56], %108 {strides = array<i32>} : memref<16x64xf32, #tpu.memory_space<vmem>>, vector<16x8xf32>,
    %110 = vector.extract_strided_slice %93 {offsets = [64, 0], sizes = [16, 16], strides = [1, 1]} : vector<128x16xf32> to vector<16x16xf32>
    %111 = vector.extract_strided_slice %49 {offsets = [0, 32], sizes = [16, 8], strides = [1, 1]} : vector<16x64xf32> to vector<16x8xf32>
    %cst_57 = arith.constant dense<0.000000e+00> : vector<16x8xf32>
    %112 = tpu.matmul %110, %111, %cst_57 {dimension_numbers = #tpu.dot_dimension_numbers<[1], [0], [0], [1], [0, 0, 1, 1], [], []>} : vector<16x16xf32>, vector<16x8xf32>, vector<16x8xf32> -> vector<16x8xf32>
    %c0_58 = arith.constant 0 : index
    %c32_59 = arith.constant 32 : index
    %113 = vector.load %arg7[%c0_58, %c32_59] : memref<16x64xf32, #tpu.memory_space<vmem>>, vector<16x8xf32>
    tpu.vector_store %arg7[%c0_58, %c32_59], %112 {strides = array<i32>} : memref<16x64xf32, #tpu.memory_space<vmem>>, vector<16x8xf32>,
    %114 = vector.extract_strided_slice %93 {offsets = [80, 0], sizes = [16, 16], strides = [1, 1]} : vector<128x16xf32> to vector<16x16xf32>
    %115 = vector.extract_strided_slice %49 {offsets = [0, 40], sizes = [16, 8], strides = [1, 1]} : vector<16x64xf32> to vector<16x8xf32>
    %cst_60 = arith.constant dense<0.000000e+00> : vector<16x8xf32>
    %116 = tpu.matmul %114, %115, %cst_60 {dimension_numbers = #tpu.dot_dimension_numbers<[1], [0], [0], [1], [0, 0, 1, 1], [], []>} : vector<16x16xf32>, vector<16x8xf32>, vector<16x8xf32> -> vector<16x8xf32>
    %c0_61 = arith.constant 0 : index
    %c40 = arith.constant 40 : index
    %117 = vector.load %arg7[%c0_61, %c40] : memref<16x64xf32, #tpu.memory_space<vmem>>, vector<16x8xf32>
    tpu.vector_store %arg7[%c0_61, %c40], %116 {strides = array<i32>} : memref<16x64xf32, #tpu.memory_space<vmem>>, vector<16x8xf32>,
    %118 = vector.extract_strided_slice %93 {offsets = [96, 0], sizes = [16, 16], strides = [1, 1]} : vector<128x16xf32> to vector<16x16xf32>
    %119 = vector.extract_strided_slice %49 {offsets = [0, 48], sizes = [16, 8], strides = [1, 1]} : vector<16x64xf32> to vector<16x8xf32>
    %cst_62 = arith.constant dense<0.000000e+00> : vector<16x8xf32>
    %120 = tpu.matmul %118, %119, %cst_62 {dimension_numbers = #tpu.dot_dimension_numbers<[1], [0], [0], [1], [0, 0, 1, 1], [], []>} : vector<16x16xf32>, vector<16x8xf32>, vector<16x8xf32> -> vector<16x8xf32>
    %c0_63 = arith.constant 0 : index
    %c48_64 = arith.constant 48 : index
    %121 = vector.load %arg7[%c0_63, %c48_64] : memref<16x64xf32, #tpu.memory_space<vmem>>, vector<16x8xf32>
    tpu.vector_store %arg7[%c0_63, %c48_64], %120 {strides = array<i32>} : memref<16x64xf32, #tpu.memory_space<vmem>>, vector<16x8xf32>,
    %122 = vector.extract_strided_slice %93 {offsets = [112, 0], sizes = [16, 16], strides = [1, 1]} : vector<128x16xf32> to vector<16x16xf32>
    %123 = vector.extract_strided_slice %49 {offsets = [0, 56], sizes = [16, 8], strides = [1, 1]} : vector<16x64xf32> to vector<16x8xf32>
    %cst_65 = arith.constant dense<0.000000e+00> : vector<16x8xf32>
    %124 = tpu.matmul %122, %123, %cst_65 {dimension_numbers = #tpu.dot_dimension_numbers<[1], [0], [0], [1], [0, 0, 1, 1], [], []>} : vector<16x16xf32>, vector<16x8xf32>, vector<16x8xf32> -> vector<16x8xf32>
    %c0_66 = arith.constant 0 : index
    %c56 = arith.constant 56 : index
    %125 = vector.load %arg7[%c0_66, %c56] : memref<16x64xf32, #tpu.memory_space<vmem>>, vector<16x8xf32>
    tpu.vector_store %arg7[%c0_66, %c56], %124 {strides = array<i32>} : memref<16x64xf32, #tpu.memory_space<vmem>>, vector<16x8xf32>,
    %126 = vector.broadcast %22 : vector<1x40xf32> to vector<16x40xf32>
    %127 = arith.addf %4, %126 : vector<16x40xf32>
    %c0_67 = arith.constant 0 : index
    %c0_68 = arith.constant 0 : index
    %128 = vector.load %arg7[%c0_67, %c0_68] : memref<16x64xf32, #tpu.memory_space<vmem>>, vector<16x64xf32>
    %cst_69 = arith.constant dense<0.000000e+00> : vector<16x40xf32>
    %129 = tpu.matmul %128, %11, %cst_69 {dimension_numbers = #tpu.dot_dimension_numbers<[1], [0], [0], [1], [0, 0, 1, 1], [], []>} : vector<16x64xf32>, vector<64x40xf32>, vector<16x40xf32> -> vector<16x40xf32>
    %130 = arith.addf %127, %129 : vector<16x40xf32>
    %cst_70 = arith.constant dense<0.000000e+00> : vector<16xf32>
    %131 = vector.multi_reduction <add>, %130, %cst_70 [1] : vector<16x40xf32> to vector<16xf32>
    %132 = vector.shape_cast %131 : vector<16xf32> to vector<16x1xf32>
    %cst_71 = arith.constant 4.000000e+01 : f32
    %133 = vector.broadcast %cst_71 : f32 to vector<16x1xf32>
    %134 = arith.divf %132, %133 : vector<16x1xf32>
    %135 = vector.broadcast %134 : vector<16x1xf32> to vector<16x40xf32>
    %136 = arith.subf %130, %135 : vector<16x40xf32>
    %137 = arith.mulf %136, %136 : vector<16x40xf32>
    %cst_72 = arith.constant dense<0.000000e+00> : vector<16xf32>
    %138 = vector.multi_reduction <add>, %137, %cst_72 [1] : vector<16x40xf32> to vector<16xf32>
    %139 = vector.shape_cast %138 : vector<16xf32> to vector<16x1xf32>
    %cst_73 = arith.constant 4.000000e+01 : f32
    %140 = vector.broadcast %cst_73 : f32 to vector<16x1xf32>
    %141 = arith.divf %139, %140 : vector<16x1xf32>
    %cst_74 = arith.constant 9.99999974E-6 : f32
    %142 = vector.broadcast %cst_74 : f32 to vector<16x1xf32>
    %143 = arith.addf %141, %142 : vector<16x1xf32>
    %144 = math.rsqrt %143 : vector<16x1xf32>
    %145 = vector.broadcast %144 : vector<16x1xf32> to vector<16x40xf32>
    %146 = arith.mulf %136, %145 : vector<16x40xf32>
    %147 = vector.broadcast %20 : vector<1x40xf32> to vector<16x40xf32>
    %148 = arith.mulf %146, %147 : vector<16x40xf32>
    %149 = vector.broadcast %21 : vector<1x40xf32> to vector<16x40xf32>
    %150 = arith.addf %148, %149 : vector<16x40xf32>
    %cst_75 = arith.constant dense<0.000000e+00> : vector<16x160xf32>
    %151 = tpu.matmul %150, %9, %cst_75 {dimension_numbers = #tpu.dot_dimension_numbers<[1], [0], [0], [1], [0, 0, 1, 1], [], []>} : vector<16x40xf32>, vector<40x160xf32>, vector<16x160xf32> -> vector<16x160xf32>
    %152 = vector.broadcast %17 : vector<1x160xf32> to vector<16x160xf32>
    %153 = arith.addf %151, %152 : vector<16x160xf32>
    %cst_76 = arith.constant 0.000000e+00 : f32
    %154 = vector.broadcast %cst_76 : f32 to vector<16x160xf32>
    %155 = arith.maximumf %153, %154 : vector<16x160xf32>
    %cst_77 = arith.constant dense<0.000000e+00> : vector<16x40xf32>
    %156 = tpu.matmul %155, %13, %cst_77 {dimension_numbers = #tpu.dot_dimension_numbers<[1], [0], [0], [1], [0, 0, 1, 1], [], []>} : vector<16x160xf32>, vector<160x40xf32>, vector<16x40xf32> -> vector<16x40xf32>
    %157 = vector.broadcast %23 : vector<1x40xf32> to vector<16x40xf32>
    %158 = arith.addf %156, %157 : vector<16x40xf32>
    %159 = arith.addf %158, %130 : vector<16x40xf32>
    %c1 = arith.constant 1 : index
    %c0_78 = arith.constant 0 : index
    %c0_79 = arith.constant 0 : index
    %160 = vector.load %arg1[%c1, %c0_78, %c0_79] : memref<4x40x544xf32, #tpu.memory_space<vmem>>, vector<1x40x384xf32>
    %161 = vector.shape_cast %160 : vector<1x40x384xf32> to vector<40x384xf32>
    %c1_80 = arith.constant 1 : index
    %c0_81 = arith.constant 0 : index
    %c384_82 = arith.constant 384 : index
    %162 = vector.load %arg1[%c1_80, %c0_81, %c384_82] : memref<4x40x544xf32, #tpu.memory_space<vmem>>, vector<1x40x160xf32>
    %163 = vector.shape_cast %162 : vector<1x40x160xf32> to vector<40x160xf32>
    %c1_83 = arith.constant 1 : index
    %c0_84 = arith.constant 0 : index
    %c0_85 = arith.constant 0 : index
    %164 = vector.load %arg2[%c1_83, %c0_84, %c0_85] : memref<4x224x40xf32, #tpu.memory_space<vmem>>, vector<1x64x40xf32>
    %165 = vector.shape_cast %164 : vector<1x64x40xf32> to vector<64x40xf32>
    %c1_86 = arith.constant 1 : index
    %c64_87 = arith.constant 64 : index
    %c0_88 = arith.constant 0 : index
    %166 = vector.load %arg2[%c1_86, %c64_87, %c0_88] : memref<4x224x40xf32, #tpu.memory_space<vmem>>, vector<1x160x40xf32>
    %167 = vector.shape_cast %166 : vector<1x160x40xf32> to vector<160x40xf32>
    %c1_89 = arith.constant 1 : index
    %c0_90 = arith.constant 0 : index
    %c0_91 = arith.constant 0 : index
    %168 = vector.load %arg3[%c1_89, %c0_90, %c0_91] : memref<4x8x384xf32, #tpu.memory_space<vmem>>, vector<1x8x384xf32>
    %169 = vector.shape_cast %168 : vector<1x8x384xf32> to vector<8x384xf32>
    %170 = vector.extract_strided_slice %169 {offsets = [0, 0], sizes = [1, 384], strides = [1, 1]} : vector<8x384xf32> to vector<1x384xf32>
    %171 = vector.extract_strided_slice %169 {offsets = [1, 0], sizes = [1, 160], strides = [1, 1]} : vector<8x384xf32> to vector<1x160xf32>
    %172 = vector.extract_strided_slice %169 {offsets = [2, 0], sizes = [1, 40], strides = [1, 1]} : vector<8x384xf32> to vector<1x40xf32>
    %173 = vector.extract_strided_slice %169 {offsets = [3, 0], sizes = [1, 40], strides = [1, 1]} : vector<8x384xf32> to vector<1x40xf32>
    %174 = vector.extract_strided_slice %169 {offsets = [4, 0], sizes = [1, 40], strides = [1, 1]} : vector<8x384xf32> to vector<1x40xf32>
    %175 = vector.extract_strided_slice %169 {offsets = [5, 0], sizes = [1, 40], strides = [1, 1]} : vector<8x384xf32> to vector<1x40xf32>
    %176 = vector.extract_strided_slice %169 {offsets = [6, 0], sizes = [1, 40], strides = [1, 1]} : vector<8x384xf32> to vector<1x40xf32>
    %177 = vector.extract_strided_slice %169 {offsets = [7, 0], sizes = [1, 40], strides = [1, 1]} : vector<8x384xf32> to vector<1x40xf32>
    %cst_92 = arith.constant dense<0.000000e+00> : vector<16xf32>
    %178 = vector.multi_reduction <add>, %159, %cst_92 [1] : vector<16x40xf32> to vector<16xf32>
    %179 = vector.shape_cast %178 : vector<16xf32> to vector<16x1xf32>
    %cst_93 = arith.constant 4.000000e+01 : f32
    %180 = vector.broadcast %cst_93 : f32 to vector<16x1xf32>
    %181 = arith.divf %179, %180 : vector<16x1xf32>
    %182 = vector.broadcast %181 : vector<16x1xf32> to vector<16x40xf32>
    %183 = arith.subf %159, %182 : vector<16x40xf32>
    %184 = arith.mulf %183, %183 : vector<16x40xf32>
    %cst_94 = arith.constant dense<0.000000e+00> : vector<16xf32>
    %185 = vector.multi_reduction <add>, %184, %cst_94 [1] : vector<16x40xf32> to vector<16xf32>
    %186 = vector.shape_cast %185 : vector<16xf32> to vector<16x1xf32>
    %cst_95 = arith.constant 4.000000e+01 : f32
    %187 = vector.broadcast %cst_95 : f32 to vector<16x1xf32>
    %188 = arith.divf %186, %187 : vector<16x1xf32>
    %cst_96 = arith.constant 9.99999974E-6 : f32
    %189 = vector.broadcast %cst_96 : f32 to vector<16x1xf32>
    %190 = arith.addf %188, %189 : vector<16x1xf32>
    %191 = math.rsqrt %190 : vector<16x1xf32>
    %192 = vector.broadcast %191 : vector<16x1xf32> to vector<16x40xf32>
    %193 = arith.mulf %183, %192 : vector<16x40xf32>
    %194 = vector.broadcast %172 : vector<1x40xf32> to vector<16x40xf32>
    %195 = arith.mulf %193, %194 : vector<16x40xf32>
    %196 = vector.broadcast %173 : vector<1x40xf32> to vector<16x40xf32>
    %197 = arith.addf %195, %196 : vector<16x40xf32>
    %cst_97 = arith.constant dense<0.000000e+00> : vector<16x384xf32>
    %198 = tpu.matmul %197, %161, %cst_97 {dimension_numbers = #tpu.dot_dimension_numbers<[1], [0], [0], [1], [0, 0, 1, 1], [], []>} : vector<16x40xf32>, vector<40x384xf32>, vector<16x384xf32> -> vector<16x384xf32>
    %199 = vector.broadcast %170 : vector<1x384xf32> to vector<16x384xf32>
    %200 = arith.addf %198, %199 : vector<16x384xf32>
    %201 = vector.extract_strided_slice %200 {offsets = [0, 0], sizes = [16, 64], strides = [1, 1]} : vector<16x384xf32> to vector<16x64xf32>
    %202 = vector.extract_strided_slice %200 {offsets = [0, 128], sizes = [16, 64], strides = [1, 1]} : vector<16x384xf32> to vector<16x64xf32>
    %203 = vector.extract_strided_slice %200 {offsets = [0, 256], sizes = [16, 64], strides = [1, 1]} : vector<16x384xf32> to vector<16x64xf32>
    %204 = vector.extract_strided_slice %201 {offsets = [0, 0], sizes = [16, 8], strides = [1, 1]} : vector<16x64xf32> to vector<16x8xf32>
    %205 = vector.extract_strided_slice %202 {offsets = [0, 0], sizes = [16, 8], strides = [1, 1]} : vector<16x64xf32> to vector<16x8xf32>
    %cst_98 = arith.constant dense<0.000000e+00> : vector<16x16xf32>
    %206 = tpu.matmul %204, %205, %cst_98 {dimension_numbers = #tpu.dot_dimension_numbers<[1], [1], [0], [0], [0, 0, 1, 0], [], []>} : vector<16x8xf32>, vector<16x8xf32>, vector<16x16xf32> -> vector<16x16xf32>
    %c0_99 = arith.constant 0 : index
    %c0_100 = arith.constant 0 : index
    %207 = vector.load %arg6[%c0_99, %c0_100] : memref<128x16xf32, #tpu.memory_space<vmem>>, vector<16x16xf32>
    tpu.vector_store %arg6[%c0_99, %c0_100], %206 {strides = array<i32>} : memref<128x16xf32, #tpu.memory_space<vmem>>, vector<16x16xf32>,
    %208 = vector.extract_strided_slice %201 {offsets = [0, 8], sizes = [16, 8], strides = [1, 1]} : vector<16x64xf32> to vector<16x8xf32>
    %209 = vector.extract_strided_slice %202 {offsets = [0, 8], sizes = [16, 8], strides = [1, 1]} : vector<16x64xf32> to vector<16x8xf32>
    %cst_101 = arith.constant dense<0.000000e+00> : vector<16x16xf32>
    %210 = tpu.matmul %208, %209, %cst_101 {dimension_numbers = #tpu.dot_dimension_numbers<[1], [1], [0], [0], [0, 0, 1, 0], [], []>} : vector<16x8xf32>, vector<16x8xf32>, vector<16x16xf32> -> vector<16x16xf32>
    %c16_102 = arith.constant 16 : index
    %c0_103 = arith.constant 0 : index
    %211 = vector.load %arg6[%c16_102, %c0_103] : memref<128x16xf32, #tpu.memory_space<vmem>>, vector<16x16xf32>
    tpu.vector_store %arg6[%c16_102, %c0_103], %210 {strides = array<i32>} : memref<128x16xf32, #tpu.memory_space<vmem>>, vector<16x16xf32>,
    %212 = vector.extract_strided_slice %201 {offsets = [0, 16], sizes = [16, 8], strides = [1, 1]} : vector<16x64xf32> to vector<16x8xf32>
    %213 = vector.extract_strided_slice %202 {offsets = [0, 16], sizes = [16, 8], strides = [1, 1]} : vector<16x64xf32> to vector<16x8xf32>
    %cst_104 = arith.constant dense<0.000000e+00> : vector<16x16xf32>
    %214 = tpu.matmul %212, %213, %cst_104 {dimension_numbers = #tpu.dot_dimension_numbers<[1], [1], [0], [0], [0, 0, 1, 0], [], []>} : vector<16x8xf32>, vector<16x8xf32>, vector<16x16xf32> -> vector<16x16xf32>
    %c32_105 = arith.constant 32 : index
    %c0_106 = arith.constant 0 : index
    %215 = vector.load %arg6[%c32_105, %c0_106] : memref<128x16xf32, #tpu.memory_space<vmem>>, vector<16x16xf32>
    tpu.vector_store %arg6[%c32_105, %c0_106], %214 {strides = array<i32>} : memref<128x16xf32, #tpu.memory_space<vmem>>, vector<16x16xf32>,
    %216 = vector.extract_strided_slice %201 {offsets = [0, 24], sizes = [16, 8], strides = [1, 1]} : vector<16x64xf32> to vector<16x8xf32>
    %217 = vector.extract_strided_slice %202 {offsets = [0, 24], sizes = [16, 8], strides = [1, 1]} : vector<16x64xf32> to vector<16x8xf32>
    %cst_107 = arith.constant dense<0.000000e+00> : vector<16x16xf32>
    %218 = tpu.matmul %216, %217, %cst_107 {dimension_numbers = #tpu.dot_dimension_numbers<[1], [1], [0], [0], [0, 0, 1, 0], [], []>} : vector<16x8xf32>, vector<16x8xf32>, vector<16x16xf32> -> vector<16x16xf32>
    %c48_108 = arith.constant 48 : index
    %c0_109 = arith.constant 0 : index
    %219 = vector.load %arg6[%c48_108, %c0_109] : memref<128x16xf32, #tpu.memory_space<vmem>>, vector<16x16xf32>
    tpu.vector_store %arg6[%c48_108, %c0_109], %218 {strides = array<i32>} : memref<128x16xf32, #tpu.memory_space<vmem>>, vector<16x16xf32>,
    %220 = vector.extract_strided_slice %201 {offsets = [0, 32], sizes = [16, 8], strides = [1, 1]} : vector<16x64xf32> to vector<16x8xf32>
    %221 = vector.extract_strided_slice %202 {offsets = [0, 32], sizes = [16, 8], strides = [1, 1]} : vector<16x64xf32> to vector<16x8xf32>
    %cst_110 = arith.constant dense<0.000000e+00> : vector<16x16xf32>
    %222 = tpu.matmul %220, %221, %cst_110 {dimension_numbers = #tpu.dot_dimension_numbers<[1], [1], [0], [0], [0, 0, 1, 0], [], []>} : vector<16x8xf32>, vector<16x8xf32>, vector<16x16xf32> -> vector<16x16xf32>
    %c64_111 = arith.constant 64 : index
    %c0_112 = arith.constant 0 : index
    %223 = vector.load %arg6[%c64_111, %c0_112] : memref<128x16xf32, #tpu.memory_space<vmem>>, vector<16x16xf32>
    tpu.vector_store %arg6[%c64_111, %c0_112], %222 {strides = array<i32>} : memref<128x16xf32, #tpu.memory_space<vmem>>, vector<16x16xf32>,
    %224 = vector.extract_strided_slice %201 {offsets = [0, 40], sizes = [16, 8], strides = [1, 1]} : vector<16x64xf32> to vector<16x8xf32>
    %225 = vector.extract_strided_slice %202 {offsets = [0, 40], sizes = [16, 8], strides = [1, 1]} : vector<16x64xf32> to vector<16x8xf32>
    %cst_113 = arith.constant dense<0.000000e+00> : vector<16x16xf32>
    %226 = tpu.matmul %224, %225, %cst_113 {dimension_numbers = #tpu.dot_dimension_numbers<[1], [1], [0], [0], [0, 0, 1, 0], [], []>} : vector<16x8xf32>, vector<16x8xf32>, vector<16x16xf32> -> vector<16x16xf32>
    %c80_114 = arith.constant 80 : index
    %c0_115 = arith.constant 0 : index
    %227 = vector.load %arg6[%c80_114, %c0_115] : memref<128x16xf32, #tpu.memory_space<vmem>>, vector<16x16xf32>
    tpu.vector_store %arg6[%c80_114, %c0_115], %226 {strides = array<i32>} : memref<128x16xf32, #tpu.memory_space<vmem>>, vector<16x16xf32>,
    %228 = vector.extract_strided_slice %201 {offsets = [0, 48], sizes = [16, 8], strides = [1, 1]} : vector<16x64xf32> to vector<16x8xf32>
    %229 = vector.extract_strided_slice %202 {offsets = [0, 48], sizes = [16, 8], strides = [1, 1]} : vector<16x64xf32> to vector<16x8xf32>
    %cst_116 = arith.constant dense<0.000000e+00> : vector<16x16xf32>
    %230 = tpu.matmul %228, %229, %cst_116 {dimension_numbers = #tpu.dot_dimension_numbers<[1], [1], [0], [0], [0, 0, 1, 0], [], []>} : vector<16x8xf32>, vector<16x8xf32>, vector<16x16xf32> -> vector<16x16xf32>
    %c96_117 = arith.constant 96 : index
    %c0_118 = arith.constant 0 : index
    %231 = vector.load %arg6[%c96_117, %c0_118] : memref<128x16xf32, #tpu.memory_space<vmem>>, vector<16x16xf32>
    tpu.vector_store %arg6[%c96_117, %c0_118], %230 {strides = array<i32>} : memref<128x16xf32, #tpu.memory_space<vmem>>, vector<16x16xf32>,
    %232 = vector.extract_strided_slice %201 {offsets = [0, 56], sizes = [16, 8], strides = [1, 1]} : vector<16x64xf32> to vector<16x8xf32>
    %233 = vector.extract_strided_slice %202 {offsets = [0, 56], sizes = [16, 8], strides = [1, 1]} : vector<16x64xf32> to vector<16x8xf32>
    %cst_119 = arith.constant dense<0.000000e+00> : vector<16x16xf32>
    %234 = tpu.matmul %232, %233, %cst_119 {dimension_numbers = #tpu.dot_dimension_numbers<[1], [1], [0], [0], [0, 0, 1, 0], [], []>} : vector<16x8xf32>, vector<16x8xf32>, vector<16x16xf32> -> vector<16x16xf32>
    %c112_120 = arith.constant 112 : index
    %c0_121 = arith.constant 0 : index
    %235 = vector.load %arg6[%c112_120, %c0_121] : memref<128x16xf32, #tpu.memory_space<vmem>>, vector<16x16xf32>
    tpu.vector_store %arg6[%c112_120, %c0_121], %234 {strides = array<i32>} : memref<128x16xf32, #tpu.memory_space<vmem>>, vector<16x16xf32>,
    %c0_122 = arith.constant 0 : index
    %c0_123 = arith.constant 0 : index
    %236 = vector.load %arg6[%c0_122, %c0_123] : memref<128x16xf32, #tpu.memory_space<vmem>>, vector<128x16xf32>
    %237 = arith.addf %236, %5 : vector<128x16xf32>
    %cst_124 = arith.constant dense<0xFF800000> : vector<128xf32>
    %238 = vector.multi_reduction <maximumf>, %237, %cst_124 [1] : vector<128x16xf32> to vector<128xf32>
    %239 = vector.shape_cast %238 : vector<128xf32> to vector<128x1xf32>
    %240 = vector.broadcast %239 : vector<128x1xf32> to vector<128x16xf32>
    %241 = arith.subf %237, %240 : vector<128x16xf32>
    %242 = math.exp %241 : vector<128x16xf32>
    %cst_125 = arith.constant dense<0.000000e+00> : vector<128xf32>
    %243 = vector.multi_reduction <add>, %242, %cst_125 [1] : vector<128x16xf32> to vector<128xf32>
    %244 = vector.shape_cast %243 : vector<128xf32> to vector<128x1xf32>
    %245 = tpu.reciprocal %244 {approx = true} : vector<128x1xf32> -> vector<128x1xf32>
    %246 = vector.broadcast %245 : vector<128x1xf32> to vector<128x16xf32>
    %247 = arith.mulf %242, %246 : vector<128x16xf32>
    %248 = vector.extract_strided_slice %247 {offsets = [0, 0], sizes = [16, 16], strides = [1, 1]} : vector<128x16xf32> to vector<16x16xf32>
    %249 = vector.extract_strided_slice %203 {offsets = [0, 0], sizes = [16, 8], strides = [1, 1]} : vector<16x64xf32> to vector<16x8xf32>
    %cst_126 = arith.constant dense<0.000000e+00> : vector<16x8xf32>
    %250 = tpu.matmul %248, %249, %cst_126 {dimension_numbers = #tpu.dot_dimension_numbers<[1], [0], [0], [1], [0, 0, 1, 1], [], []>} : vector<16x16xf32>, vector<16x8xf32>, vector<16x8xf32> -> vector<16x8xf32>
    %c0_127 = arith.constant 0 : index
    %c0_128 = arith.constant 0 : index
    %251 = vector.load %arg7[%c0_127, %c0_128] : memref<16x64xf32, #tpu.memory_space<vmem>>, vector<16x8xf32>
    tpu.vector_store %arg7[%c0_127, %c0_128], %250 {strides = array<i32>} : memref<16x64xf32, #tpu.memory_space<vmem>>, vector<16x8xf32>,
    %252 = vector.extract_strided_slice %247 {offsets = [16, 0], sizes = [16, 16], strides = [1, 1]} : vector<128x16xf32> to vector<16x16xf32>
    %253 = vector.extract_strided_slice %203 {offsets = [0, 8], sizes = [16, 8], strides = [1, 1]} : vector<16x64xf32> to vector<16x8xf32>
    %cst_129 = arith.constant dense<0.000000e+00> : vector<16x8xf32>
    %254 = tpu.matmul %252, %253, %cst_129 {dimension_numbers = #tpu.dot_dimension_numbers<[1], [0], [0], [1], [0, 0, 1, 1], [], []>} : vector<16x16xf32>, vector<16x8xf32>, vector<16x8xf32> -> vector<16x8xf32>
    %c0_130 = arith.constant 0 : index
    %c8_131 = arith.constant 8 : index
    %255 = vector.load %arg7[%c0_130, %c8_131] : memref<16x64xf32, #tpu.memory_space<vmem>>, vector<16x8xf32>
    tpu.vector_store %arg7[%c0_130, %c8_131], %254 {strides = array<i32>} : memref<16x64xf32, #tpu.memory_space<vmem>>, vector<16x8xf32>,
    %256 = vector.extract_strided_slice %247 {offsets = [32, 0], sizes = [16, 16], strides = [1, 1]} : vector<128x16xf32> to vector<16x16xf32>
    %257 = vector.extract_strided_slice %203 {offsets = [0, 16], sizes = [16, 8], strides = [1, 1]} : vector<16x64xf32> to vector<16x8xf32>
    %cst_132 = arith.constant dense<0.000000e+00> : vector<16x8xf32>
    %258 = tpu.matmul %256, %257, %cst_132 {dimension_numbers = #tpu.dot_dimension_numbers<[1], [0], [0], [1], [0, 0, 1, 1], [], []>} : vector<16x16xf32>, vector<16x8xf32>, vector<16x8xf32> -> vector<16x8xf32>
    %c0_133 = arith.constant 0 : index
    %c16_134 = arith.constant 16 : index
    %259 = vector.load %arg7[%c0_133, %c16_134] : memref<16x64xf32, #tpu.memory_space<vmem>>, vector<16x8xf32>
    tpu.vector_store %arg7[%c0_133, %c16_134], %258 {strides = array<i32>} : memref<16x64xf32, #tpu.memory_space<vmem>>, vector<16x8xf32>,
    %260 = vector.extract_strided_slice %247 {offsets = [48, 0], sizes = [16, 16], strides = [1, 1]} : vector<128x16xf32> to vector<16x16xf32>
    %261 = vector.extract_strided_slice %203 {offsets = [0, 24], sizes = [16, 8], strides = [1, 1]} : vector<16x64xf32> to vector<16x8xf32>
    %cst_135 = arith.constant dense<0.000000e+00> : vector<16x8xf32>
    %262 = tpu.matmul %260, %261, %cst_135 {dimension_numbers = #tpu.dot_dimension_numbers<[1], [0], [0], [1], [0, 0, 1, 1], [], []>} : vector<16x16xf32>, vector<16x8xf32>, vector<16x8xf32> -> vector<16x8xf32>
    %c0_136 = arith.constant 0 : index
    %c24_137 = arith.constant 24 : index
    %263 = vector.load %arg7[%c0_136, %c24_137] : memref<16x64xf32, #tpu.memory_space<vmem>>, vector<16x8xf32>
    tpu.vector_store %arg7[%c0_136, %c24_137], %262 {strides = array<i32>} : memref<16x64xf32, #tpu.memory_space<vmem>>, vector<16x8xf32>,
    %264 = vector.extract_strided_slice %247 {offsets = [64, 0], sizes = [16, 16], strides = [1, 1]} : vector<128x16xf32> to vector<16x16xf32>
    %265 = vector.extract_strided_slice %203 {offsets = [0, 32], sizes = [16, 8], strides = [1, 1]} : vector<16x64xf32> to vector<16x8xf32>
    %cst_138 = arith.constant dense<0.000000e+00> : vector<16x8xf32>
    %266 = tpu.matmul %264, %265, %cst_138 {dimension_numbers = #tpu.dot_dimension_numbers<[1], [0], [0], [1], [0, 0, 1, 1], [], []>} : vector<16x16xf32>, vector<16x8xf32>, vector<16x8xf32> -> vector<16x8xf32>
    %c0_139 = arith.constant 0 : index
    %c32_140 = arith.constant 32 : index
    %267 = vector.load %arg7[%c0_139, %c32_140] : memref<16x64xf32, #tpu.memory_space<vmem>>, vector<16x8xf32>
    tpu.vector_store %arg7[%c0_139, %c32_140], %266 {strides = array<i32>} : memref<16x64xf32, #tpu.memory_space<vmem>>, vector<16x8xf32>,
    %268 = vector.extract_strided_slice %247 {offsets = [80, 0], sizes = [16, 16], strides = [1, 1]} : vector<128x16xf32> to vector<16x16xf32>
    %269 = vector.extract_strided_slice %203 {offsets = [0, 40], sizes = [16, 8], strides = [1, 1]} : vector<16x64xf32> to vector<16x8xf32>
    %cst_141 = arith.constant dense<0.000000e+00> : vector<16x8xf32>
    %270 = tpu.matmul %268, %269, %cst_141 {dimension_numbers = #tpu.dot_dimension_numbers<[1], [0], [0], [1], [0, 0, 1, 1], [], []>} : vector<16x16xf32>, vector<16x8xf32>, vector<16x8xf32> -> vector<16x8xf32>
    %c0_142 = arith.constant 0 : index
    %c40_143 = arith.constant 40 : index
    %271 = vector.load %arg7[%c0_142, %c40_143] : memref<16x64xf32, #tpu.memory_space<vmem>>, vector<16x8xf32>
    tpu.vector_store %arg7[%c0_142, %c40_143], %270 {strides = array<i32>} : memref<16x64xf32, #tpu.memory_space<vmem>>, vector<16x8xf32>,
    %272 = vector.extract_strided_slice %247 {offsets = [96, 0], sizes = [16, 16], strides = [1, 1]} : vector<128x16xf32> to vector<16x16xf32>
    %273 = vector.extract_strided_slice %203 {offsets = [0, 48], sizes = [16, 8], strides = [1, 1]} : vector<16x64xf32> to vector<16x8xf32>
    %cst_144 = arith.constant dense<0.000000e+00> : vector<16x8xf32>
    %274 = tpu.matmul %272, %273, %cst_144 {dimension_numbers = #tpu.dot_dimension_numbers<[1], [0], [0], [1], [0, 0, 1, 1], [], []>} : vector<16x16xf32>, vector<16x8xf32>, vector<16x8xf32> -> vector<16x8xf32>
    %c0_145 = arith.constant 0 : index
    %c48_146 = arith.constant 48 : index
    %275 = vector.load %arg7[%c0_145, %c48_146] : memref<16x64xf32, #tpu.memory_space<vmem>>, vector<16x8xf32>
    tpu.vector_store %arg7[%c0_145, %c48_146], %274 {strides = array<i32>} : memref<16x64xf32, #tpu.memory_space<vmem>>, vector<16x8xf32>,
    %276 = vector.extract_strided_slice %247 {offsets = [112, 0], sizes = [16, 16], strides = [1, 1]} : vector<128x16xf32> to vector<16x16xf32>
    %277 = vector.extract_strided_slice %203 {offsets = [0, 56], sizes = [16, 8], strides = [1, 1]} : vector<16x64xf32> to vector<16x8xf32>
    %cst_147 = arith.constant dense<0.000000e+00> : vector<16x8xf32>
    %278 = tpu.matmul %276, %277, %cst_147 {dimension_numbers = #tpu.dot_dimension_numbers<[1], [0], [0], [1], [0, 0, 1, 1], [], []>} : vector<16x16xf32>, vector<16x8xf32>, vector<16x8xf32> -> vector<16x8xf32>
    %c0_148 = arith.constant 0 : index
    %c56_149 = arith.constant 56 : index
    %279 = vector.load %arg7[%c0_148, %c56_149] : memref<16x64xf32, #tpu.memory_space<vmem>>, vector<16x8xf32>
    tpu.vector_store %arg7[%c0_148, %c56_149], %278 {strides = array<i32>} : memref<16x64xf32, #tpu.memory_space<vmem>>, vector<16x8xf32>,
    %280 = vector.broadcast %176 : vector<1x40xf32> to vector<16x40xf32>
    %281 = arith.addf %159, %280 : vector<16x40xf32>
    %c0_150 = arith.constant 0 : index
    %c0_151 = arith.constant 0 : index
    %282 = vector.load %arg7[%c0_150, %c0_151] : memref<16x64xf32, #tpu.memory_space<vmem>>, vector<16x64xf32>
    %cst_152 = arith.constant dense<0.000000e+00> : vector<16x40xf32>
    %283 = tpu.matmul %282, %165, %cst_152 {dimension_numbers = #tpu.dot_dimension_numbers<[1], [0], [0], [1], [0, 0, 1, 1], [], []>} : vector<16x64xf32>, vector<64x40xf32>, vector<16x40xf32> -> vector<16x40xf32>
    %284 = arith.addf %281, %283 : vector<16x40xf32>
    %cst_153 = arith.constant dense<0.000000e+00> : vector<16xf32>
    %285 = vector.multi_reduction <add>, %284, %cst_153 [1] : vector<16x40xf32> to vector<16xf32>
    %286 = vector.shape_cast %285 : vector<16xf32> to vector<16x1xf32>
    %cst_154 = arith.constant 4.000000e+01 : f32
    %287 = vector.broadcast %cst_154 : f32 to vector<16x1xf32>
    %288 = arith.divf %286, %287 : vector<16x1xf32>
    %289 = vector.broadcast %288 : vector<16x1xf32> to vector<16x40xf32>
    %290 = arith.subf %284, %289 : vector<16x40xf32>
    %291 = arith.mulf %290, %290 : vector<16x40xf32>
    %cst_155 = arith.constant dense<0.000000e+00> : vector<16xf32>
    %292 = vector.multi_reduction <add>, %291, %cst_155 [1] : vector<16x40xf32> to vector<16xf32>
    %293 = vector.shape_cast %292 : vector<16xf32> to vector<16x1xf32>
    %cst_156 = arith.constant 4.000000e+01 : f32
    %294 = vector.broadcast %cst_156 : f32 to vector<16x1xf32>
    %295 = arith.divf %293, %294 : vector<16x1xf32>
    %cst_157 = arith.constant 9.99999974E-6 : f32
    %296 = vector.broadcast %cst_157 : f32 to vector<16x1xf32>
    %297 = arith.addf %295, %296 : vector<16x1xf32>
    %298 = math.rsqrt %297 : vector<16x1xf32>
    %299 = vector.broadcast %298 : vector<16x1xf32> to vector<16x40xf32>
    %300 = arith.mulf %290, %299 : vector<16x40xf32>
    %301 = vector.broadcast %174 : vector<1x40xf32> to vector<16x40xf32>
    %302 = arith.mulf %300, %301 : vector<16x40xf32>
    %303 = vector.broadcast %175 : vector<1x40xf32> to vector<16x40xf32>
    %304 = arith.addf %302, %303 : vector<16x40xf32>
    %cst_158 = arith.constant dense<0.000000e+00> : vector<16x160xf32>
    %305 = tpu.matmul %304, %163, %cst_158 {dimension_numbers = #tpu.dot_dimension_numbers<[1], [0], [0], [1], [0, 0, 1, 1], [], []>} : vector<16x40xf32>, vector<40x160xf32>, vector<16x160xf32> -> vector<16x160xf32>
    %306 = vector.broadcast %171 : vector<1x160xf32> to vector<16x160xf32>
    %307 = arith.addf %305, %306 : vector<16x160xf32>
    %cst_159 = arith.constant 0.000000e+00 : f32
    %308 = vector.broadcast %cst_159 : f32 to vector<16x160xf32>
    %309 = arith.maximumf %307, %308 : vector<16x160xf32>
    %cst_160 = arith.constant dense<0.000000e+00> : vector<16x40xf32>
    %310 = tpu.matmul %309, %167, %cst_160 {dimension_numbers = #tpu.dot_dimension_numbers<[1], [0], [0], [1], [0, 0, 1, 1], [], []>} : vector<16x160xf32>, vector<160x40xf32>, vector<16x40xf32> -> vector<16x40xf32>
    %311 = vector.broadcast %177 : vector<1x40xf32> to vector<16x40xf32>
    %312 = arith.addf %310, %311 : vector<16x40xf32>
    %313 = arith.addf %312, %284 : vector<16x40xf32>
    %c2 = arith.constant 2 : index
    %c0_161 = arith.constant 0 : index
    %c0_162 = arith.constant 0 : index
    %314 = vector.load %arg1[%c2, %c0_161, %c0_162] : memref<4x40x544xf32, #tpu.memory_space<vmem>>, vector<1x40x384xf32>
    %315 = vector.shape_cast %314 : vector<1x40x384xf32> to vector<40x384xf32>
    %c2_163 = arith.constant 2 : index
    %c0_164 = arith.constant 0 : index
    %c384_165 = arith.constant 384 : index
    %316 = vector.load %arg1[%c2_163, %c0_164, %c384_165] : memref<4x40x544xf32, #tpu.memory_space<vmem>>, vector<1x40x160xf32>
    %317 = vector.shape_cast %316 : vector<1x40x160xf32> to vector<40x160xf32>
    %c2_166 = arith.constant 2 : index
    %c0_167 = arith.constant 0 : index
    %c0_168 = arith.constant 0 : index
    %318 = vector.load %arg2[%c2_166, %c0_167, %c0_168] : memref<4x224x40xf32, #tpu.memory_space<vmem>>, vector<1x64x40xf32>
    %319 = vector.shape_cast %318 : vector<1x64x40xf32> to vector<64x40xf32>
    %c2_169 = arith.constant 2 : index
    %c64_170 = arith.constant 64 : index
    %c0_171 = arith.constant 0 : index
    %320 = vector.load %arg2[%c2_169, %c64_170, %c0_171] : memref<4x224x40xf32, #tpu.memory_space<vmem>>, vector<1x160x40xf32>
    %321 = vector.shape_cast %320 : vector<1x160x40xf32> to vector<160x40xf32>
    %c2_172 = arith.constant 2 : index
    %c0_173 = arith.constant 0 : index
    %c0_174 = arith.constant 0 : index
    %322 = vector.load %arg3[%c2_172, %c0_173, %c0_174] : memref<4x8x384xf32, #tpu.memory_space<vmem>>, vector<1x8x384xf32>
    %323 = vector.shape_cast %322 : vector<1x8x384xf32> to vector<8x384xf32>
    %324 = vector.extract_strided_slice %323 {offsets = [0, 0], sizes = [1, 384], strides = [1, 1]} : vector<8x384xf32> to vector<1x384xf32>
    %325 = vector.extract_strided_slice %323 {offsets = [1, 0], sizes = [1, 160], strides = [1, 1]} : vector<8x384xf32> to vector<1x160xf32>
    %326 = vector.extract_strided_slice %323 {offsets = [2, 0], sizes = [1, 40], strides = [1, 1]} : vector<8x384xf32> to vector<1x40xf32>
    %327 = vector.extract_strided_slice %323 {offsets = [3, 0], sizes = [1, 40], strides = [1, 1]} : vector<8x384xf32> to vector<1x40xf32>
    %328 = vector.extract_strided_slice %323 {offsets = [4, 0], sizes = [1, 40], strides = [1, 1]} : vector<8x384xf32> to vector<1x40xf32>
    %329 = vector.extract_strided_slice %323 {offsets = [5, 0], sizes = [1, 40], strides = [1, 1]} : vector<8x384xf32> to vector<1x40xf32>
    %330 = vector.extract_strided_slice %323 {offsets = [6, 0], sizes = [1, 40], strides = [1, 1]} : vector<8x384xf32> to vector<1x40xf32>
    %331 = vector.extract_strided_slice %323 {offsets = [7, 0], sizes = [1, 40], strides = [1, 1]} : vector<8x384xf32> to vector<1x40xf32>
    %cst_175 = arith.constant dense<0.000000e+00> : vector<16xf32>
    %332 = vector.multi_reduction <add>, %313, %cst_175 [1] : vector<16x40xf32> to vector<16xf32>
    %333 = vector.shape_cast %332 : vector<16xf32> to vector<16x1xf32>
    %cst_176 = arith.constant 4.000000e+01 : f32
    %334 = vector.broadcast %cst_176 : f32 to vector<16x1xf32>
    %335 = arith.divf %333, %334 : vector<16x1xf32>
    %336 = vector.broadcast %335 : vector<16x1xf32> to vector<16x40xf32>
    %337 = arith.subf %313, %336 : vector<16x40xf32>
    %338 = arith.mulf %337, %337 : vector<16x40xf32>
    %cst_177 = arith.constant dense<0.000000e+00> : vector<16xf32>
    %339 = vector.multi_reduction <add>, %338, %cst_177 [1] : vector<16x40xf32> to vector<16xf32>
    %340 = vector.shape_cast %339 : vector<16xf32> to vector<16x1xf32>
    %cst_178 = arith.constant 4.000000e+01 : f32
    %341 = vector.broadcast %cst_178 : f32 to vector<16x1xf32>
    %342 = arith.divf %340, %341 : vector<16x1xf32>
    %cst_179 = arith.constant 9.99999974E-6 : f32
    %343 = vector.broadcast %cst_179 : f32 to vector<16x1xf32>
    %344 = arith.addf %342, %343 : vector<16x1xf32>
    %345 = math.rsqrt %344 : vector<16x1xf32>
    %346 = vector.broadcast %345 : vector<16x1xf32> to vector<16x40xf32>
    %347 = arith.mulf %337, %346 : vector<16x40xf32>
    %348 = vector.broadcast %326 : vector<1x40xf32> to vector<16x40xf32>
    %349 = arith.mulf %347, %348 : vector<16x40xf32>
    %350 = vector.broadcast %327 : vector<1x40xf32> to vector<16x40xf32>
    %351 = arith.addf %349, %350 : vector<16x40xf32>
    %cst_180 = arith.constant dense<0.000000e+00> : vector<16x384xf32>
    %352 = tpu.matmul %351, %315, %cst_180 {dimension_numbers = #tpu.dot_dimension_numbers<[1], [0], [0], [1], [0, 0, 1, 1], [], []>} : vector<16x40xf32>, vector<40x384xf32>, vector<16x384xf32> -> vector<16x384xf32>
    %353 = vector.broadcast %324 : vector<1x384xf32> to vector<16x384xf32>
    %354 = arith.addf %352, %353 : vector<16x384xf32>
    %355 = vector.extract_strided_slice %354 {offsets = [0, 0], sizes = [16, 64], strides = [1, 1]} : vector<16x384xf32> to vector<16x64xf32>
    %356 = vector.extract_strided_slice %354 {offsets = [0, 128], sizes = [16, 64], strides = [1, 1]} : vector<16x384xf32> to vector<16x64xf32>
    %357 = vector.extract_strided_slice %354 {offsets = [0, 256], sizes = [16, 64], strides = [1, 1]} : vector<16x384xf32> to vector<16x64xf32>
    %358 = vector.extract_strided_slice %355 {offsets = [0, 0], sizes = [16, 8], strides = [1, 1]} : vector<16x64xf32> to vector<16x8xf32>
    %359 = vector.extract_strided_slice %356 {offsets = [0, 0], sizes = [16, 8], strides = [1, 1]} : vector<16x64xf32> to vector<16x8xf32>
    %cst_181 = arith.constant dense<0.000000e+00> : vector<16x16xf32>
    %360 = tpu.matmul %358, %359, %cst_181 {dimension_numbers = #tpu.dot_dimension_numbers<[1], [1], [0], [0], [0, 0, 1, 0], [], []>} : vector<16x8xf32>, vector<16x8xf32>, vector<16x16xf32> -> vector<16x16xf32>
    %c0_182 = arith.constant 0 : index
    %c0_183 = arith.constant 0 : index
    %361 = vector.load %arg6[%c0_182, %c0_183] : memref<128x16xf32, #tpu.memory_space<vmem>>, vector<16x16xf32>
    tpu.vector_store %arg6[%c0_182, %c0_183], %360 {strides = array<i32>} : memref<128x16xf32, #tpu.memory_space<vmem>>, vector<16x16xf32>,
    %362 = vector.extract_strided_slice %355 {offsets = [0, 8], sizes = [16, 8], strides = [1, 1]} : vector<16x64xf32> to vector<16x8xf32>
    %363 = vector.extract_strided_slice %356 {offsets = [0, 8], sizes = [16, 8], strides = [1, 1]} : vector<16x64xf32> to vector<16x8xf32>
    %cst_184 = arith.constant dense<0.000000e+00> : vector<16x16xf32>
    %364 = tpu.matmul %362, %363, %cst_184 {dimension_numbers = #tpu.dot_dimension_numbers<[1], [1], [0], [0], [0, 0, 1, 0], [], []>} : vector<16x8xf32>, vector<16x8xf32>, vector<16x16xf32> -> vector<16x16xf32>
    %c16_185 = arith.constant 16 : index
    %c0_186 = arith.constant 0 : index
    %365 = vector.load %arg6[%c16_185, %c0_186] : memref<128x16xf32, #tpu.memory_space<vmem>>, vector<16x16xf32>
    tpu.vector_store %arg6[%c16_185, %c0_186], %364 {strides = array<i32>} : memref<128x16xf32, #tpu.memory_space<vmem>>, vector<16x16xf32>,
    %366 = vector.extract_strided_slice %355 {offsets = [0, 16], sizes = [16, 8], strides = [1, 1]} : vector<16x64xf32> to vector<16x8xf32>
    %367 = vector.extract_strided_slice %356 {offsets = [0, 16], sizes = [16, 8], strides = [1, 1]} : vector<16x64xf32> to vector<16x8xf32>
    %cst_187 = arith.constant dense<0.000000e+00> : vector<16x16xf32>
    %368 = tpu.matmul %366, %367, %cst_187 {dimension_numbers = #tpu.dot_dimension_numbers<[1], [1], [0], [0], [0, 0, 1, 0], [], []>} : vector<16x8xf32>, vector<16x8xf32>, vector<16x16xf32> -> vector<16x16xf32>
    %c32_188 = arith.constant 32 : index
    %c0_189 = arith.constant 0 : index
    %369 = vector.load %arg6[%c32_188, %c0_189] : memref<128x16xf32, #tpu.memory_space<vmem>>, vector<16x16xf32>
    tpu.vector_store %arg6[%c32_188, %c0_189], %368 {strides = array<i32>} : memref<128x16xf32, #tpu.memory_space<vmem>>, vector<16x16xf32>,
    %370 = vector.extract_strided_slice %355 {offsets = [0, 24], sizes = [16, 8], strides = [1, 1]} : vector<16x64xf32> to vector<16x8xf32>
    %371 = vector.extract_strided_slice %356 {offsets = [0, 24], sizes = [16, 8], strides = [1, 1]} : vector<16x64xf32> to vector<16x8xf32>
    %cst_190 = arith.constant dense<0.000000e+00> : vector<16x16xf32>
    %372 = tpu.matmul %370, %371, %cst_190 {dimension_numbers = #tpu.dot_dimension_numbers<[1], [1], [0], [0], [0, 0, 1, 0], [], []>} : vector<16x8xf32>, vector<16x8xf32>, vector<16x16xf32> -> vector<16x16xf32>
    %c48_191 = arith.constant 48 : index
    %c0_192 = arith.constant 0 : index
    %373 = vector.load %arg6[%c48_191, %c0_192] : memref<128x16xf32, #tpu.memory_space<vmem>>, vector<16x16xf32>
    tpu.vector_store %arg6[%c48_191, %c0_192], %372 {strides = array<i32>} : memref<128x16xf32, #tpu.memory_space<vmem>>, vector<16x16xf32>,
    %374 = vector.extract_strided_slice %355 {offsets = [0, 32], sizes = [16, 8], strides = [1, 1]} : vector<16x64xf32> to vector<16x8xf32>
    %375 = vector.extract_strided_slice %356 {offsets = [0, 32], sizes = [16, 8], strides = [1, 1]} : vector<16x64xf32> to vector<16x8xf32>
    %cst_193 = arith.constant dense<0.000000e+00> : vector<16x16xf32>
    %376 = tpu.matmul %374, %375, %cst_193 {dimension_numbers = #tpu.dot_dimension_numbers<[1], [1], [0], [0], [0, 0, 1, 0], [], []>} : vector<16x8xf32>, vector<16x8xf32>, vector<16x16xf32> -> vector<16x16xf32>
    %c64_194 = arith.constant 64 : index
    %c0_195 = arith.constant 0 : index
    %377 = vector.load %arg6[%c64_194, %c0_195] : memref<128x16xf32, #tpu.memory_space<vmem>>, vector<16x16xf32>
    tpu.vector_store %arg6[%c64_194, %c0_195], %376 {strides = array<i32>} : memref<128x16xf32, #tpu.memory_space<vmem>>, vector<16x16xf32>,
    %378 = vector.extract_strided_slice %355 {offsets = [0, 40], sizes = [16, 8], strides = [1, 1]} : vector<16x64xf32> to vector<16x8xf32>
    %379 = vector.extract_strided_slice %356 {offsets = [0, 40], sizes = [16, 8], strides = [1, 1]} : vector<16x64xf32> to vector<16x8xf32>
    %cst_196 = arith.constant dense<0.000000e+00> : vector<16x16xf32>
    %380 = tpu.matmul %378, %379, %cst_196 {dimension_numbers = #tpu.dot_dimension_numbers<[1], [1], [0], [0], [0, 0, 1, 0], [], []>} : vector<16x8xf32>, vector<16x8xf32>, vector<16x16xf32> -> vector<16x16xf32>
    %c80_197 = arith.constant 80 : index
    %c0_198 = arith.constant 0 : index
    %381 = vector.load %arg6[%c80_197, %c0_198] : memref<128x16xf32, #tpu.memory_space<vmem>>, vector<16x16xf32>
    tpu.vector_store %arg6[%c80_197, %c0_198], %380 {strides = array<i32>} : memref<128x16xf32, #tpu.memory_space<vmem>>, vector<16x16xf32>,
    %382 = vector.extract_strided_slice %355 {offsets = [0, 48], sizes = [16, 8], strides = [1, 1]} : vector<16x64xf32> to vector<16x8xf32>
    %383 = vector.extract_strided_slice %356 {offsets = [0, 48], sizes = [16, 8], strides = [1, 1]} : vector<16x64xf32> to vector<16x8xf32>
    %cst_199 = arith.constant dense<0.000000e+00> : vector<16x16xf32>
    %384 = tpu.matmul %382, %383, %cst_199 {dimension_numbers = #tpu.dot_dimension_numbers<[1], [1], [0], [0], [0, 0, 1, 0], [], []>} : vector<16x8xf32>, vector<16x8xf32>, vector<16x16xf32> -> vector<16x16xf32>
    %c96_200 = arith.constant 96 : index
    %c0_201 = arith.constant 0 : index
    %385 = vector.load %arg6[%c96_200, %c0_201] : memref<128x16xf32, #tpu.memory_space<vmem>>, vector<16x16xf32>
    tpu.vector_store %arg6[%c96_200, %c0_201], %384 {strides = array<i32>} : memref<128x16xf32, #tpu.memory_space<vmem>>, vector<16x16xf32>,
    %386 = vector.extract_strided_slice %355 {offsets = [0, 56], sizes = [16, 8], strides = [1, 1]} : vector<16x64xf32> to vector<16x8xf32>
    %387 = vector.extract_strided_slice %356 {offsets = [0, 56], sizes = [16, 8], strides = [1, 1]} : vector<16x64xf32> to vector<16x8xf32>
    %cst_202 = arith.constant dense<0.000000e+00> : vector<16x16xf32>
    %388 = tpu.matmul %386, %387, %cst_202 {dimension_numbers = #tpu.dot_dimension_numbers<[1], [1], [0], [0], [0, 0, 1, 0], [], []>} : vector<16x8xf32>, vector<16x8xf32>, vector<16x16xf32> -> vector<16x16xf32>
    %c112_203 = arith.constant 112 : index
    %c0_204 = arith.constant 0 : index
    %389 = vector.load %arg6[%c112_203, %c0_204] : memref<128x16xf32, #tpu.memory_space<vmem>>, vector<16x16xf32>
    tpu.vector_store %arg6[%c112_203, %c0_204], %388 {strides = array<i32>} : memref<128x16xf32, #tpu.memory_space<vmem>>, vector<16x16xf32>,
    %c0_205 = arith.constant 0 : index
    %c0_206 = arith.constant 0 : index
    %390 = vector.load %arg6[%c0_205, %c0_206] : memref<128x16xf32, #tpu.memory_space<vmem>>, vector<128x16xf32>
    %391 = arith.addf %390, %5 : vector<128x16xf32>
    %cst_207 = arith.constant dense<0xFF800000> : vector<128xf32>
    %392 = vector.multi_reduction <maximumf>, %391, %cst_207 [1] : vector<128x16xf32> to vector<128xf32>
    %393 = vector.shape_cast %392 : vector<128xf32> to vector<128x1xf32>
    %394 = vector.broadcast %393 : vector<128x1xf32> to vector<128x16xf32>
    %395 = arith.subf %391, %394 : vector<128x16xf32>
    %396 = math.exp %395 : vector<128x16xf32>
    %cst_208 = arith.constant dense<0.000000e+00> : vector<128xf32>
    %397 = vector.multi_reduction <add>, %396, %cst_208 [1] : vector<128x16xf32> to vector<128xf32>
    %398 = vector.shape_cast %397 : vector<128xf32> to vector<128x1xf32>
    %399 = tpu.reciprocal %398 {approx = true} : vector<128x1xf32> -> vector<128x1xf32>
    %400 = vector.broadcast %399 : vector<128x1xf32> to vector<128x16xf32>
    %401 = arith.mulf %396, %400 : vector<128x16xf32>
    %402 = vector.extract_strided_slice %401 {offsets = [0, 0], sizes = [16, 16], strides = [1, 1]} : vector<128x16xf32> to vector<16x16xf32>
    %403 = vector.extract_strided_slice %357 {offsets = [0, 0], sizes = [16, 8], strides = [1, 1]} : vector<16x64xf32> to vector<16x8xf32>
    %cst_209 = arith.constant dense<0.000000e+00> : vector<16x8xf32>
    %404 = tpu.matmul %402, %403, %cst_209 {dimension_numbers = #tpu.dot_dimension_numbers<[1], [0], [0], [1], [0, 0, 1, 1], [], []>} : vector<16x16xf32>, vector<16x8xf32>, vector<16x8xf32> -> vector<16x8xf32>
    %c0_210 = arith.constant 0 : index
    %c0_211 = arith.constant 0 : index
    %405 = vector.load %arg7[%c0_210, %c0_211] : memref<16x64xf32, #tpu.memory_space<vmem>>, vector<16x8xf32>
    tpu.vector_store %arg7[%c0_210, %c0_211], %404 {strides = array<i32>} : memref<16x64xf32, #tpu.memory_space<vmem>>, vector<16x8xf32>,
    %406 = vector.extract_strided_slice %401 {offsets = [16, 0], sizes = [16, 16], strides = [1, 1]} : vector<128x16xf32> to vector<16x16xf32>
    %407 = vector.extract_strided_slice %357 {offsets = [0, 8], sizes = [16, 8], strides = [1, 1]} : vector<16x64xf32> to vector<16x8xf32>
    %cst_212 = arith.constant dense<0.000000e+00> : vector<16x8xf32>
    %408 = tpu.matmul %406, %407, %cst_212 {dimension_numbers = #tpu.dot_dimension_numbers<[1], [0], [0], [1], [0, 0, 1, 1], [], []>} : vector<16x16xf32>, vector<16x8xf32>, vector<16x8xf32> -> vector<16x8xf32>
    %c0_213 = arith.constant 0 : index
    %c8_214 = arith.constant 8 : index
    %409 = vector.load %arg7[%c0_213, %c8_214] : memref<16x64xf32, #tpu.memory_space<vmem>>, vector<16x8xf32>
    tpu.vector_store %arg7[%c0_213, %c8_214], %408 {strides = array<i32>} : memref<16x64xf32, #tpu.memory_space<vmem>>, vector<16x8xf32>,
    %410 = vector.extract_strided_slice %401 {offsets = [32, 0], sizes = [16, 16], strides = [1, 1]} : vector<128x16xf32> to vector<16x16xf32>
    %411 = vector.extract_strided_slice %357 {offsets = [0, 16], sizes = [16, 8], strides = [1, 1]} : vector<16x64xf32> to vector<16x8xf32>
    %cst_215 = arith.constant dense<0.000000e+00> : vector<16x8xf32>
    %412 = tpu.matmul %410, %411, %cst_215 {dimension_numbers = #tpu.dot_dimension_numbers<[1], [0], [0], [1], [0, 0, 1, 1], [], []>} : vector<16x16xf32>, vector<16x8xf32>, vector<16x8xf32> -> vector<16x8xf32>
    %c0_216 = arith.constant 0 : index
    %c16_217 = arith.constant 16 : index
    %413 = vector.load %arg7[%c0_216, %c16_217] : memref<16x64xf32, #tpu.memory_space<vmem>>, vector<16x8xf32>
    tpu.vector_store %arg7[%c0_216, %c16_217], %412 {strides = array<i32>} : memref<16x64xf32, #tpu.memory_space<vmem>>, vector<16x8xf32>,
    %414 = vector.extract_strided_slice %401 {offsets = [48, 0], sizes = [16, 16], strides = [1, 1]} : vector<128x16xf32> to vector<16x16xf32>
    %415 = vector.extract_strided_slice %357 {offsets = [0, 24], sizes = [16, 8], strides = [1, 1]} : vector<16x64xf32> to vector<16x8xf32>
    %cst_218 = arith.constant dense<0.000000e+00> : vector<16x8xf32>
    %416 = tpu.matmul %414, %415, %cst_218 {dimension_numbers = #tpu.dot_dimension_numbers<[1], [0], [0], [1], [0, 0, 1, 1], [], []>} : vector<16x16xf32>, vector<16x8xf32>, vector<16x8xf32> -> vector<16x8xf32>
    %c0_219 = arith.constant 0 : index
    %c24_220 = arith.constant 24 : index
    %417 = vector.load %arg7[%c0_219, %c24_220] : memref<16x64xf32, #tpu.memory_space<vmem>>, vector<16x8xf32>
    tpu.vector_store %arg7[%c0_219, %c24_220], %416 {strides = array<i32>} : memref<16x64xf32, #tpu.memory_space<vmem>>, vector<16x8xf32>,
    %418 = vector.extract_strided_slice %401 {offsets = [64, 0], sizes = [16, 16], strides = [1, 1]} : vector<128x16xf32> to vector<16x16xf32>
    %419 = vector.extract_strided_slice %357 {offsets = [0, 32], sizes = [16, 8], strides = [1, 1]} : vector<16x64xf32> to vector<16x8xf32>
    %cst_221 = arith.constant dense<0.000000e+00> : vector<16x8xf32>
    %420 = tpu.matmul %418, %419, %cst_221 {dimension_numbers = #tpu.dot_dimension_numbers<[1], [0], [0], [1], [0, 0, 1, 1], [], []>} : vector<16x16xf32>, vector<16x8xf32>, vector<16x8xf32> -> vector<16x8xf32>
    %c0_222 = arith.constant 0 : index
    %c32_223 = arith.constant 32 : index
    %421 = vector.load %arg7[%c0_222, %c32_223] : memref<16x64xf32, #tpu.memory_space<vmem>>, vector<16x8xf32>
    tpu.vector_store %arg7[%c0_222, %c32_223], %420 {strides = array<i32>} : memref<16x64xf32, #tpu.memory_space<vmem>>, vector<16x8xf32>,
    %422 = vector.extract_strided_slice %401 {offsets = [80, 0], sizes = [16, 16], strides = [1, 1]} : vector<128x16xf32> to vector<16x16xf32>
    %423 = vector.extract_strided_slice %357 {offsets = [0, 40], sizes = [16, 8], strides = [1, 1]} : vector<16x64xf32> to vector<16x8xf32>
    %cst_224 = arith.constant dense<0.000000e+00> : vector<16x8xf32>
    %424 = tpu.matmul %422, %423, %cst_224 {dimension_numbers = #tpu.dot_dimension_numbers<[1], [0], [0], [1], [0, 0, 1, 1], [], []>} : vector<16x16xf32>, vector<16x8xf32>, vector<16x8xf32> -> vector<16x8xf32>
    %c0_225 = arith.constant 0 : index
    %c40_226 = arith.constant 40 : index
    %425 = vector.load %arg7[%c0_225, %c40_226] : memref<16x64xf32, #tpu.memory_space<vmem>>, vector<16x8xf32>
    tpu.vector_store %arg7[%c0_225, %c40_226], %424 {strides = array<i32>} : memref<16x64xf32, #tpu.memory_space<vmem>>, vector<16x8xf32>,
    %426 = vector.extract_strided_slice %401 {offsets = [96, 0], sizes = [16, 16], strides = [1, 1]} : vector<128x16xf32> to vector<16x16xf32>
    %427 = vector.extract_strided_slice %357 {offsets = [0, 48], sizes = [16, 8], strides = [1, 1]} : vector<16x64xf32> to vector<16x8xf32>
    %cst_227 = arith.constant dense<0.000000e+00> : vector<16x8xf32>
    %428 = tpu.matmul %426, %427, %cst_227 {dimension_numbers = #tpu.dot_dimension_numbers<[1], [0], [0], [1], [0, 0, 1, 1], [], []>} : vector<16x16xf32>, vector<16x8xf32>, vector<16x8xf32> -> vector<16x8xf32>
    %c0_228 = arith.constant 0 : index
    %c48_229 = arith.constant 48 : index
    %429 = vector.load %arg7[%c0_228, %c48_229] : memref<16x64xf32, #tpu.memory_space<vmem>>, vector<16x8xf32>
    tpu.vector_store %arg7[%c0_228, %c48_229], %428 {strides = array<i32>} : memref<16x64xf32, #tpu.memory_space<vmem>>, vector<16x8xf32>,
    %430 = vector.extract_strided_slice %401 {offsets = [112, 0], sizes = [16, 16], strides = [1, 1]} : vector<128x16xf32> to vector<16x16xf32>
    %431 = vector.extract_strided_slice %357 {offsets = [0, 56], sizes = [16, 8], strides = [1, 1]} : vector<16x64xf32> to vector<16x8xf32>
    %cst_230 = arith.constant dense<0.000000e+00> : vector<16x8xf32>
    %432 = tpu.matmul %430, %431, %cst_230 {dimension_numbers = #tpu.dot_dimension_numbers<[1], [0], [0], [1], [0, 0, 1, 1], [], []>} : vector<16x16xf32>, vector<16x8xf32>, vector<16x8xf32> -> vector<16x8xf32>
    %c0_231 = arith.constant 0 : index
    %c56_232 = arith.constant 56 : index
    %433 = vector.load %arg7[%c0_231, %c56_232] : memref<16x64xf32, #tpu.memory_space<vmem>>, vector<16x8xf32>
    tpu.vector_store %arg7[%c0_231, %c56_232], %432 {strides = array<i32>} : memref<16x64xf32, #tpu.memory_space<vmem>>, vector<16x8xf32>,
    %434 = vector.broadcast %330 : vector<1x40xf32> to vector<16x40xf32>
    %435 = arith.addf %313, %434 : vector<16x40xf32>
    %c0_233 = arith.constant 0 : index
    %c0_234 = arith.constant 0 : index
    %436 = vector.load %arg7[%c0_233, %c0_234] : memref<16x64xf32, #tpu.memory_space<vmem>>, vector<16x64xf32>
    %cst_235 = arith.constant dense<0.000000e+00> : vector<16x40xf32>
    %437 = tpu.matmul %436, %319, %cst_235 {dimension_numbers = #tpu.dot_dimension_numbers<[1], [0], [0], [1], [0, 0, 1, 1], [], []>} : vector<16x64xf32>, vector<64x40xf32>, vector<16x40xf32> -> vector<16x40xf32>
    %438 = arith.addf %435, %437 : vector<16x40xf32>
    %cst_236 = arith.constant dense<0.000000e+00> : vector<16xf32>
    %439 = vector.multi_reduction <add>, %438, %cst_236 [1] : vector<16x40xf32> to vector<16xf32>
    %440 = vector.shape_cast %439 : vector<16xf32> to vector<16x1xf32>
    %cst_237 = arith.constant 4.000000e+01 : f32
    %441 = vector.broadcast %cst_237 : f32 to vector<16x1xf32>
    %442 = arith.divf %440, %441 : vector<16x1xf32>
    %443 = vector.broadcast %442 : vector<16x1xf32> to vector<16x40xf32>
    %444 = arith.subf %438, %443 : vector<16x40xf32>
    %445 = arith.mulf %444, %444 : vector<16x40xf32>
    %cst_238 = arith.constant dense<0.000000e+00> : vector<16xf32>
    %446 = vector.multi_reduction <add>, %445, %cst_238 [1] : vector<16x40xf32> to vector<16xf32>
    %447 = vector.shape_cast %446 : vector<16xf32> to vector<16x1xf32>
    %cst_239 = arith.constant 4.000000e+01 : f32
    %448 = vector.broadcast %cst_239 : f32 to vector<16x1xf32>
    %449 = arith.divf %447, %448 : vector<16x1xf32>
    %cst_240 = arith.constant 9.99999974E-6 : f32
    %450 = vector.broadcast %cst_240 : f32 to vector<16x1xf32>
    %451 = arith.addf %449, %450 : vector<16x1xf32>
    %452 = math.rsqrt %451 : vector<16x1xf32>
    %453 = vector.broadcast %452 : vector<16x1xf32> to vector<16x40xf32>
    %454 = arith.mulf %444, %453 : vector<16x40xf32>
    %455 = vector.broadcast %328 : vector<1x40xf32> to vector<16x40xf32>
    %456 = arith.mulf %454, %455 : vector<16x40xf32>
    %457 = vector.broadcast %329 : vector<1x40xf32> to vector<16x40xf32>
    %458 = arith.addf %456, %457 : vector<16x40xf32>
    %cst_241 = arith.constant dense<0.000000e+00> : vector<16x160xf32>
    %459 = tpu.matmul %458, %317, %cst_241 {dimension_numbers = #tpu.dot_dimension_numbers<[1], [0], [0], [1], [0, 0, 1, 1], [], []>} : vector<16x40xf32>, vector<40x160xf32>, vector<16x160xf32> -> vector<16x160xf32>
    %460 = vector.broadcast %325 : vector<1x160xf32> to vector<16x160xf32>
    %461 = arith.addf %459, %460 : vector<16x160xf32>
    %cst_242 = arith.constant 0.000000e+00 : f32
    %462 = vector.broadcast %cst_242 : f32 to vector<16x160xf32>
    %463 = arith.maximumf %461, %462 : vector<16x160xf32>
    %cst_243 = arith.constant dense<0.000000e+00> : vector<16x40xf32>
    %464 = tpu.matmul %463, %321, %cst_243 {dimension_numbers = #tpu.dot_dimension_numbers<[1], [0], [0], [1], [0, 0, 1, 1], [], []>} : vector<16x160xf32>, vector<160x40xf32>, vector<16x40xf32> -> vector<16x40xf32>
    %465 = vector.broadcast %331 : vector<1x40xf32> to vector<16x40xf32>
    %466 = arith.addf %464, %465 : vector<16x40xf32>
    %467 = arith.addf %466, %438 : vector<16x40xf32>
    %c3 = arith.constant 3 : index
    %c0_244 = arith.constant 0 : index
    %c0_245 = arith.constant 0 : index
    %468 = vector.load %arg1[%c3, %c0_244, %c0_245] : memref<4x40x544xf32, #tpu.memory_space<vmem>>, vector<1x40x384xf32>
    %469 = vector.shape_cast %468 : vector<1x40x384xf32> to vector<40x384xf32>
    %c3_246 = arith.constant 3 : index
    %c0_247 = arith.constant 0 : index
    %c384_248 = arith.constant 384 : index
    %470 = vector.load %arg1[%c3_246, %c0_247, %c384_248] : memref<4x40x544xf32, #tpu.memory_space<vmem>>, vector<1x40x160xf32>
    %471 = vector.shape_cast %470 : vector<1x40x160xf32> to vector<40x160xf32>
    %c3_249 = arith.constant 3 : index
    %c0_250 = arith.constant 0 : index
    %c0_251 = arith.constant 0 : index
    %472 = vector.load %arg2[%c3_249, %c0_250, %c0_251] : memref<4x224x40xf32, #tpu.memory_space<vmem>>, vector<1x64x40xf32>
    %473 = vector.shape_cast %472 : vector<1x64x40xf32> to vector<64x40xf32>
    %c3_252 = arith.constant 3 : index
    %c64_253 = arith.constant 64 : index
    %c0_254 = arith.constant 0 : index
    %474 = vector.load %arg2[%c3_252, %c64_253, %c0_254] : memref<4x224x40xf32, #tpu.memory_space<vmem>>, vector<1x160x40xf32>
    %475 = vector.shape_cast %474 : vector<1x160x40xf32> to vector<160x40xf32>
    %c3_255 = arith.constant 3 : index
    %c0_256 = arith.constant 0 : index
    %c0_257 = arith.constant 0 : index
    %476 = vector.load %arg3[%c3_255, %c0_256, %c0_257] : memref<4x8x384xf32, #tpu.memory_space<vmem>>, vector<1x8x384xf32>
    %477 = vector.shape_cast %476 : vector<1x8x384xf32> to vector<8x384xf32>
    %478 = vector.extract_strided_slice %477 {offsets = [0, 0], sizes = [1, 384], strides = [1, 1]} : vector<8x384xf32> to vector<1x384xf32>
    %479 = vector.extract_strided_slice %477 {offsets = [1, 0], sizes = [1, 160], strides = [1, 1]} : vector<8x384xf32> to vector<1x160xf32>
    %480 = vector.extract_strided_slice %477 {offsets = [2, 0], sizes = [1, 40], strides = [1, 1]} : vector<8x384xf32> to vector<1x40xf32>
    %481 = vector.extract_strided_slice %477 {offsets = [3, 0], sizes = [1, 40], strides = [1, 1]} : vector<8x384xf32> to vector<1x40xf32>
    %482 = vector.extract_strided_slice %477 {offsets = [4, 0], sizes = [1, 40], strides = [1, 1]} : vector<8x384xf32> to vector<1x40xf32>
    %483 = vector.extract_strided_slice %477 {offsets = [5, 0], sizes = [1, 40], strides = [1, 1]} : vector<8x384xf32> to vector<1x40xf32>
    %484 = vector.extract_strided_slice %477 {offsets = [6, 0], sizes = [1, 40], strides = [1, 1]} : vector<8x384xf32> to vector<1x40xf32>
    %485 = vector.extract_strided_slice %477 {offsets = [7, 0], sizes = [1, 40], strides = [1, 1]} : vector<8x384xf32> to vector<1x40xf32>
    %cst_258 = arith.constant dense<0.000000e+00> : vector<16xf32>
    %486 = vector.multi_reduction <add>, %467, %cst_258 [1] : vector<16x40xf32> to vector<16xf32>
    %487 = vector.shape_cast %486 : vector<16xf32> to vector<16x1xf32>
    %cst_259 = arith.constant 4.000000e+01 : f32
    %488 = vector.broadcast %cst_259 : f32 to vector<16x1xf32>
    %489 = arith.divf %487, %488 : vector<16x1xf32>
    %490 = vector.broadcast %489 : vector<16x1xf32> to vector<16x40xf32>
    %491 = arith.subf %467, %490 : vector<16x40xf32>
    %492 = arith.mulf %491, %491 : vector<16x40xf32>
    %cst_260 = arith.constant dense<0.000000e+00> : vector<16xf32>
    %493 = vector.multi_reduction <add>, %492, %cst_260 [1] : vector<16x40xf32> to vector<16xf32>
    %494 = vector.shape_cast %493 : vector<16xf32> to vector<16x1xf32>
    %cst_261 = arith.constant 4.000000e+01 : f32
    %495 = vector.broadcast %cst_261 : f32 to vector<16x1xf32>
    %496 = arith.divf %494, %495 : vector<16x1xf32>
    %cst_262 = arith.constant 9.99999974E-6 : f32
    %497 = vector.broadcast %cst_262 : f32 to vector<16x1xf32>
    %498 = arith.addf %496, %497 : vector<16x1xf32>
    %499 = math.rsqrt %498 : vector<16x1xf32>
    %500 = vector.broadcast %499 : vector<16x1xf32> to vector<16x40xf32>
    %501 = arith.mulf %491, %500 : vector<16x40xf32>
    %502 = vector.broadcast %480 : vector<1x40xf32> to vector<16x40xf32>
    %503 = arith.mulf %501, %502 : vector<16x40xf32>
    %504 = vector.broadcast %481 : vector<1x40xf32> to vector<16x40xf32>
    %505 = arith.addf %503, %504 : vector<16x40xf32>
    %cst_263 = arith.constant dense<0.000000e+00> : vector<16x384xf32>
    %506 = tpu.matmul %505, %469, %cst_263 {dimension_numbers = #tpu.dot_dimension_numbers<[1], [0], [0], [1], [0, 0, 1, 1], [], []>} : vector<16x40xf32>, vector<40x384xf32>, vector<16x384xf32> -> vector<16x384xf32>
    %507 = vector.broadcast %478 : vector<1x384xf32> to vector<16x384xf32>
    %508 = arith.addf %506, %507 : vector<16x384xf32>
    %509 = vector.extract_strided_slice %508 {offsets = [0, 0], sizes = [16, 64], strides = [1, 1]} : vector<16x384xf32> to vector<16x64xf32>
    %510 = vector.extract_strided_slice %508 {offsets = [0, 128], sizes = [16, 64], strides = [1, 1]} : vector<16x384xf32> to vector<16x64xf32>
    %511 = vector.extract_strided_slice %508 {offsets = [0, 256], sizes = [16, 64], strides = [1, 1]} : vector<16x384xf32> to vector<16x64xf32>
    %512 = vector.extract_strided_slice %509 {offsets = [0, 0], sizes = [16, 8], strides = [1, 1]} : vector<16x64xf32> to vector<16x8xf32>
    %513 = vector.extract_strided_slice %510 {offsets = [0, 0], sizes = [16, 8], strides = [1, 1]} : vector<16x64xf32> to vector<16x8xf32>
    %cst_264 = arith.constant dense<0.000000e+00> : vector<16x16xf32>
    %514 = tpu.matmul %512, %513, %cst_264 {dimension_numbers = #tpu.dot_dimension_numbers<[1], [1], [0], [0], [0, 0, 1, 0], [], []>} : vector<16x8xf32>, vector<16x8xf32>, vector<16x16xf32> -> vector<16x16xf32>
    %c0_265 = arith.constant 0 : index
    %c0_266 = arith.constant 0 : index
    %515 = vector.load %arg6[%c0_265, %c0_266] : memref<128x16xf32, #tpu.memory_space<vmem>>, vector<16x16xf32>
    tpu.vector_store %arg6[%c0_265, %c0_266], %514 {strides = array<i32>} : memref<128x16xf32, #tpu.memory_space<vmem>>, vector<16x16xf32>,
    %516 = vector.extract_strided_slice %509 {offsets = [0, 8], sizes = [16, 8], strides = [1, 1]} : vector<16x64xf32> to vector<16x8xf32>
    %517 = vector.extract_strided_slice %510 {offsets = [0, 8], sizes = [16, 8], strides = [1, 1]} : vector<16x64xf32> to vector<16x8xf32>
    %cst_267 = arith.constant dense<0.000000e+00> : vector<16x16xf32>
    %518 = tpu.matmul %516, %517, %cst_267 {dimension_numbers = #tpu.dot_dimension_numbers<[1], [1], [0], [0], [0, 0, 1, 0], [], []>} : vector<16x8xf32>, vector<16x8xf32>, vector<16x16xf32> -> vector<16x16xf32>
    %c16_268 = arith.constant 16 : index
    %c0_269 = arith.constant 0 : index
    %519 = vector.load %arg6[%c16_268, %c0_269] : memref<128x16xf32, #tpu.memory_space<vmem>>, vector<16x16xf32>
    tpu.vector_store %arg6[%c16_268, %c0_269], %518 {strides = array<i32>} : memref<128x16xf32, #tpu.memory_space<vmem>>, vector<16x16xf32>,
    %520 = vector.extract_strided_slice %509 {offsets = [0, 16], sizes = [16, 8], strides = [1, 1]} : vector<16x64xf32> to vector<16x8xf32>
    %521 = vector.extract_strided_slice %510 {offsets = [0, 16], sizes = [16, 8], strides = [1, 1]} : vector<16x64xf32> to vector<16x8xf32>
    %cst_270 = arith.constant dense<0.000000e+00> : vector<16x16xf32>
    %522 = tpu.matmul %520, %521, %cst_270 {dimension_numbers = #tpu.dot_dimension_numbers<[1], [1], [0], [0], [0, 0, 1, 0], [], []>} : vector<16x8xf32>, vector<16x8xf32>, vector<16x16xf32> -> vector<16x16xf32>
    %c32_271 = arith.constant 32 : index
    %c0_272 = arith.constant 0 : index
    %523 = vector.load %arg6[%c32_271, %c0_272] : memref<128x16xf32, #tpu.memory_space<vmem>>, vector<16x16xf32>
    tpu.vector_store %arg6[%c32_271, %c0_272], %522 {strides = array<i32>} : memref<128x16xf32, #tpu.memory_space<vmem>>, vector<16x16xf32>,
    %524 = vector.extract_strided_slice %509 {offsets = [0, 24], sizes = [16, 8], strides = [1, 1]} : vector<16x64xf32> to vector<16x8xf32>
    %525 = vector.extract_strided_slice %510 {offsets = [0, 24], sizes = [16, 8], strides = [1, 1]} : vector<16x64xf32> to vector<16x8xf32>
    %cst_273 = arith.constant dense<0.000000e+00> : vector<16x16xf32>
    %526 = tpu.matmul %524, %525, %cst_273 {dimension_numbers = #tpu.dot_dimension_numbers<[1], [1], [0], [0], [0, 0, 1, 0], [], []>} : vector<16x8xf32>, vector<16x8xf32>, vector<16x16xf32> -> vector<16x16xf32>
    %c48_274 = arith.constant 48 : index
    %c0_275 = arith.constant 0 : index
    %527 = vector.load %arg6[%c48_274, %c0_275] : memref<128x16xf32, #tpu.memory_space<vmem>>, vector<16x16xf32>
    tpu.vector_store %arg6[%c48_274, %c0_275], %526 {strides = array<i32>} : memref<128x16xf32, #tpu.memory_space<vmem>>, vector<16x16xf32>,
    %528 = vector.extract_strided_slice %509 {offsets = [0, 32], sizes = [16, 8], strides = [1, 1]} : vector<16x64xf32> to vector<16x8xf32>
    %529 = vector.extract_strided_slice %510 {offsets = [0, 32], sizes = [16, 8], strides = [1, 1]} : vector<16x64xf32> to vector<16x8xf32>
    %cst_276 = arith.constant dense<0.000000e+00> : vector<16x16xf32>
    %530 = tpu.matmul %528, %529, %cst_276 {dimension_numbers = #tpu.dot_dimension_numbers<[1], [1], [0], [0], [0, 0, 1, 0], [], []>} : vector<16x8xf32>, vector<16x8xf32>, vector<16x16xf32> -> vector<16x16xf32>
    %c64_277 = arith.constant 64 : index
    %c0_278 = arith.constant 0 : index
    %531 = vector.load %arg6[%c64_277, %c0_278] : memref<128x16xf32, #tpu.memory_space<vmem>>, vector<16x16xf32>
    tpu.vector_store %arg6[%c64_277, %c0_278], %530 {strides = array<i32>} : memref<128x16xf32, #tpu.memory_space<vmem>>, vector<16x16xf32>,
    %532 = vector.extract_strided_slice %509 {offsets = [0, 40], sizes = [16, 8], strides = [1, 1]} : vector<16x64xf32> to vector<16x8xf32>
    %533 = vector.extract_strided_slice %510 {offsets = [0, 40], sizes = [16, 8], strides = [1, 1]} : vector<16x64xf32> to vector<16x8xf32>
    %cst_279 = arith.constant dense<0.000000e+00> : vector<16x16xf32>
    %534 = tpu.matmul %532, %533, %cst_279 {dimension_numbers = #tpu.dot_dimension_numbers<[1], [1], [0], [0], [0, 0, 1, 0], [], []>} : vector<16x8xf32>, vector<16x8xf32>, vector<16x16xf32> -> vector<16x16xf32>
    %c80_280 = arith.constant 80 : index
    %c0_281 = arith.constant 0 : index
    %535 = vector.load %arg6[%c80_280, %c0_281] : memref<128x16xf32, #tpu.memory_space<vmem>>, vector<16x16xf32>
    tpu.vector_store %arg6[%c80_280, %c0_281], %534 {strides = array<i32>} : memref<128x16xf32, #tpu.memory_space<vmem>>, vector<16x16xf32>,
    %536 = vector.extract_strided_slice %509 {offsets = [0, 48], sizes = [16, 8], strides = [1, 1]} : vector<16x64xf32> to vector<16x8xf32>
    %537 = vector.extract_strided_slice %510 {offsets = [0, 48], sizes = [16, 8], strides = [1, 1]} : vector<16x64xf32> to vector<16x8xf32>
    %cst_282 = arith.constant dense<0.000000e+00> : vector<16x16xf32>
    %538 = tpu.matmul %536, %537, %cst_282 {dimension_numbers = #tpu.dot_dimension_numbers<[1], [1], [0], [0], [0, 0, 1, 0], [], []>} : vector<16x8xf32>, vector<16x8xf32>, vector<16x16xf32> -> vector<16x16xf32>
    %c96_283 = arith.constant 96 : index
    %c0_284 = arith.constant 0 : index
    %539 = vector.load %arg6[%c96_283, %c0_284] : memref<128x16xf32, #tpu.memory_space<vmem>>, vector<16x16xf32>
    tpu.vector_store %arg6[%c96_283, %c0_284], %538 {strides = array<i32>} : memref<128x16xf32, #tpu.memory_space<vmem>>, vector<16x16xf32>,
    %540 = vector.extract_strided_slice %509 {offsets = [0, 56], sizes = [16, 8], strides = [1, 1]} : vector<16x64xf32> to vector<16x8xf32>
    %541 = vector.extract_strided_slice %510 {offsets = [0, 56], sizes = [16, 8], strides = [1, 1]} : vector<16x64xf32> to vector<16x8xf32>
    %cst_285 = arith.constant dense<0.000000e+00> : vector<16x16xf32>
    %542 = tpu.matmul %540, %541, %cst_285 {dimension_numbers = #tpu.dot_dimension_numbers<[1], [1], [0], [0], [0, 0, 1, 0], [], []>} : vector<16x8xf32>, vector<16x8xf32>, vector<16x16xf32> -> vector<16x16xf32>
    %c112_286 = arith.constant 112 : index
    %c0_287 = arith.constant 0 : index
    %543 = vector.load %arg6[%c112_286, %c0_287] : memref<128x16xf32, #tpu.memory_space<vmem>>, vector<16x16xf32>
    tpu.vector_store %arg6[%c112_286, %c0_287], %542 {strides = array<i32>} : memref<128x16xf32, #tpu.memory_space<vmem>>, vector<16x16xf32>,
    %c0_288 = arith.constant 0 : index
    %c0_289 = arith.constant 0 : index
    %544 = vector.load %arg6[%c0_288, %c0_289] : memref<128x16xf32, #tpu.memory_space<vmem>>, vector<128x16xf32>
    %545 = arith.addf %544, %5 : vector<128x16xf32>
    %cst_290 = arith.constant dense<0xFF800000> : vector<128xf32>
    %546 = vector.multi_reduction <maximumf>, %545, %cst_290 [1] : vector<128x16xf32> to vector<128xf32>
    %547 = vector.shape_cast %546 : vector<128xf32> to vector<128x1xf32>
    %548 = vector.broadcast %547 : vector<128x1xf32> to vector<128x16xf32>
    %549 = arith.subf %545, %548 : vector<128x16xf32>
    %550 = math.exp %549 : vector<128x16xf32>
    %cst_291 = arith.constant dense<0.000000e+00> : vector<128xf32>
    %551 = vector.multi_reduction <add>, %550, %cst_291 [1] : vector<128x16xf32> to vector<128xf32>
    %552 = vector.shape_cast %551 : vector<128xf32> to vector<128x1xf32>
    %553 = tpu.reciprocal %552 {approx = true} : vector<128x1xf32> -> vector<128x1xf32>
    %554 = vector.broadcast %553 : vector<128x1xf32> to vector<128x16xf32>
    %555 = arith.mulf %550, %554 : vector<128x16xf32>
    %556 = vector.extract_strided_slice %555 {offsets = [0, 0], sizes = [16, 16], strides = [1, 1]} : vector<128x16xf32> to vector<16x16xf32>
    %557 = vector.extract_strided_slice %511 {offsets = [0, 0], sizes = [16, 8], strides = [1, 1]} : vector<16x64xf32> to vector<16x8xf32>
    %cst_292 = arith.constant dense<0.000000e+00> : vector<16x8xf32>
    %558 = tpu.matmul %556, %557, %cst_292 {dimension_numbers = #tpu.dot_dimension_numbers<[1], [0], [0], [1], [0, 0, 1, 1], [], []>} : vector<16x16xf32>, vector<16x8xf32>, vector<16x8xf32> -> vector<16x8xf32>
    %c0_293 = arith.constant 0 : index
    %c0_294 = arith.constant 0 : index
    %559 = vector.load %arg7[%c0_293, %c0_294] : memref<16x64xf32, #tpu.memory_space<vmem>>, vector<16x8xf32>
    tpu.vector_store %arg7[%c0_293, %c0_294], %558 {strides = array<i32>} : memref<16x64xf32, #tpu.memory_space<vmem>>, vector<16x8xf32>,
    %560 = vector.extract_strided_slice %555 {offsets = [16, 0], sizes = [16, 16], strides = [1, 1]} : vector<128x16xf32> to vector<16x16xf32>
    %561 = vector.extract_strided_slice %511 {offsets = [0, 8], sizes = [16, 8], strides = [1, 1]} : vector<16x64xf32> to vector<16x8xf32>
    %cst_295 = arith.constant dense<0.000000e+00> : vector<16x8xf32>
    %562 = tpu.matmul %560, %561, %cst_295 {dimension_numbers = #tpu.dot_dimension_numbers<[1], [0], [0], [1], [0, 0, 1, 1], [], []>} : vector<16x16xf32>, vector<16x8xf32>, vector<16x8xf32> -> vector<16x8xf32>
    %c0_296 = arith.constant 0 : index
    %c8_297 = arith.constant 8 : index
    %563 = vector.load %arg7[%c0_296, %c8_297] : memref<16x64xf32, #tpu.memory_space<vmem>>, vector<16x8xf32>
    tpu.vector_store %arg7[%c0_296, %c8_297], %562 {strides = array<i32>} : memref<16x64xf32, #tpu.memory_space<vmem>>, vector<16x8xf32>,
    %564 = vector.extract_strided_slice %555 {offsets = [32, 0], sizes = [16, 16], strides = [1, 1]} : vector<128x16xf32> to vector<16x16xf32>
    %565 = vector.extract_strided_slice %511 {offsets = [0, 16], sizes = [16, 8], strides = [1, 1]} : vector<16x64xf32> to vector<16x8xf32>
    %cst_298 = arith.constant dense<0.000000e+00> : vector<16x8xf32>
    %566 = tpu.matmul %564, %565, %cst_298 {dimension_numbers = #tpu.dot_dimension_numbers<[1], [0], [0], [1], [0, 0, 1, 1], [], []>} : vector<16x16xf32>, vector<16x8xf32>, vector<16x8xf32> -> vector<16x8xf32>
    %c0_299 = arith.constant 0 : index
    %c16_300 = arith.constant 16 : index
    %567 = vector.load %arg7[%c0_299, %c16_300] : memref<16x64xf32, #tpu.memory_space<vmem>>, vector<16x8xf32>
    tpu.vector_store %arg7[%c0_299, %c16_300], %566 {strides = array<i32>} : memref<16x64xf32, #tpu.memory_space<vmem>>, vector<16x8xf32>,
    %568 = vector.extract_strided_slice %555 {offsets = [48, 0], sizes = [16, 16], strides = [1, 1]} : vector<128x16xf32> to vector<16x16xf32>
    %569 = vector.extract_strided_slice %511 {offsets = [0, 24], sizes = [16, 8], strides = [1, 1]} : vector<16x64xf32> to vector<16x8xf32>
    %cst_301 = arith.constant dense<0.000000e+00> : vector<16x8xf32>
    %570 = tpu.matmul %568, %569, %cst_301 {dimension_numbers = #tpu.dot_dimension_numbers<[1], [0], [0], [1], [0, 0, 1, 1], [], []>} : vector<16x16xf32>, vector<16x8xf32>, vector<16x8xf32> -> vector<16x8xf32>
    %c0_302 = arith.constant 0 : index
    %c24_303 = arith.constant 24 : index
    %571 = vector.load %arg7[%c0_302, %c24_303] : memref<16x64xf32, #tpu.memory_space<vmem>>, vector<16x8xf32>
    tpu.vector_store %arg7[%c0_302, %c24_303], %570 {strides = array<i32>} : memref<16x64xf32, #tpu.memory_space<vmem>>, vector<16x8xf32>,
    %572 = vector.extract_strided_slice %555 {offsets = [64, 0], sizes = [16, 16], strides = [1, 1]} : vector<128x16xf32> to vector<16x16xf32>
    %573 = vector.extract_strided_slice %511 {offsets = [0, 32], sizes = [16, 8], strides = [1, 1]} : vector<16x64xf32> to vector<16x8xf32>
    %cst_304 = arith.constant dense<0.000000e+00> : vector<16x8xf32>
    %574 = tpu.matmul %572, %573, %cst_304 {dimension_numbers = #tpu.dot_dimension_numbers<[1], [0], [0], [1], [0, 0, 1, 1], [], []>} : vector<16x16xf32>, vector<16x8xf32>, vector<16x8xf32> -> vector<16x8xf32>
    %c0_305 = arith.constant 0 : index
    %c32_306 = arith.constant 32 : index
    %575 = vector.load %arg7[%c0_305, %c32_306] : memref<16x64xf32, #tpu.memory_space<vmem>>, vector<16x8xf32>
    tpu.vector_store %arg7[%c0_305, %c32_306], %574 {strides = array<i32>} : memref<16x64xf32, #tpu.memory_space<vmem>>, vector<16x8xf32>,
    %576 = vector.extract_strided_slice %555 {offsets = [80, 0], sizes = [16, 16], strides = [1, 1]} : vector<128x16xf32> to vector<16x16xf32>
    %577 = vector.extract_strided_slice %511 {offsets = [0, 40], sizes = [16, 8], strides = [1, 1]} : vector<16x64xf32> to vector<16x8xf32>
    %cst_307 = arith.constant dense<0.000000e+00> : vector<16x8xf32>
    %578 = tpu.matmul %576, %577, %cst_307 {dimension_numbers = #tpu.dot_dimension_numbers<[1], [0], [0], [1], [0, 0, 1, 1], [], []>} : vector<16x16xf32>, vector<16x8xf32>, vector<16x8xf32> -> vector<16x8xf32>
    %c0_308 = arith.constant 0 : index
    %c40_309 = arith.constant 40 : index
    %579 = vector.load %arg7[%c0_308, %c40_309] : memref<16x64xf32, #tpu.memory_space<vmem>>, vector<16x8xf32>
    tpu.vector_store %arg7[%c0_308, %c40_309], %578 {strides = array<i32>} : memref<16x64xf32, #tpu.memory_space<vmem>>, vector<16x8xf32>,
    %580 = vector.extract_strided_slice %555 {offsets = [96, 0], sizes = [16, 16], strides = [1, 1]} : vector<128x16xf32> to vector<16x16xf32>
    %581 = vector.extract_strided_slice %511 {offsets = [0, 48], sizes = [16, 8], strides = [1, 1]} : vector<16x64xf32> to vector<16x8xf32>
    %cst_310 = arith.constant dense<0.000000e+00> : vector<16x8xf32>
    %582 = tpu.matmul %580, %581, %cst_310 {dimension_numbers = #tpu.dot_dimension_numbers<[1], [0], [0], [1], [0, 0, 1, 1], [], []>} : vector<16x16xf32>, vector<16x8xf32>, vector<16x8xf32> -> vector<16x8xf32>
    %c0_311 = arith.constant 0 : index
    %c48_312 = arith.constant 48 : index
    %583 = vector.load %arg7[%c0_311, %c48_312] : memref<16x64xf32, #tpu.memory_space<vmem>>, vector<16x8xf32>
    tpu.vector_store %arg7[%c0_311, %c48_312], %582 {strides = array<i32>} : memref<16x64xf32, #tpu.memory_space<vmem>>, vector<16x8xf32>,
    %584 = vector.extract_strided_slice %555 {offsets = [112, 0], sizes = [16, 16], strides = [1, 1]} : vector<128x16xf32> to vector<16x16xf32>
    %585 = vector.extract_strided_slice %511 {offsets = [0, 56], sizes = [16, 8], strides = [1, 1]} : vector<16x64xf32> to vector<16x8xf32>
    %cst_313 = arith.constant dense<0.000000e+00> : vector<16x8xf32>
    %586 = tpu.matmul %584, %585, %cst_313 {dimension_numbers = #tpu.dot_dimension_numbers<[1], [0], [0], [1], [0, 0, 1, 1], [], []>} : vector<16x16xf32>, vector<16x8xf32>, vector<16x8xf32> -> vector<16x8xf32>
    %c0_314 = arith.constant 0 : index
    %c56_315 = arith.constant 56 : index
    %587 = vector.load %arg7[%c0_314, %c56_315] : memref<16x64xf32, #tpu.memory_space<vmem>>, vector<16x8xf32>
    tpu.vector_store %arg7[%c0_314, %c56_315], %586 {strides = array<i32>} : memref<16x64xf32, #tpu.memory_space<vmem>>, vector<16x8xf32>,
    %588 = vector.broadcast %484 : vector<1x40xf32> to vector<16x40xf32>
    %589 = arith.addf %467, %588 : vector<16x40xf32>
    %c0_316 = arith.constant 0 : index
    %c0_317 = arith.constant 0 : index
    %590 = vector.load %arg7[%c0_316, %c0_317] : memref<16x64xf32, #tpu.memory_space<vmem>>, vector<16x64xf32>
    %cst_318 = arith.constant dense<0.000000e+00> : vector<16x40xf32>
    %591 = tpu.matmul %590, %473, %cst_318 {dimension_numbers = #tpu.dot_dimension_numbers<[1], [0], [0], [1], [0, 0, 1, 1], [], []>} : vector<16x64xf32>, vector<64x40xf32>, vector<16x40xf32> -> vector<16x40xf32>
    %592 = arith.addf %589, %591 : vector<16x40xf32>
    %cst_319 = arith.constant dense<0.000000e+00> : vector<16xf32>
    %593 = vector.multi_reduction <add>, %592, %cst_319 [1] : vector<16x40xf32> to vector<16xf32>
    %594 = vector.shape_cast %593 : vector<16xf32> to vector<16x1xf32>
    %cst_320 = arith.constant 4.000000e+01 : f32
    %595 = vector.broadcast %cst_320 : f32 to vector<16x1xf32>
    %596 = arith.divf %594, %595 : vector<16x1xf32>
    %597 = vector.broadcast %596 : vector<16x1xf32> to vector<16x40xf32>
    %598 = arith.subf %592, %597 : vector<16x40xf32>
    %599 = arith.mulf %598, %598 : vector<16x40xf32>
    %cst_321 = arith.constant dense<0.000000e+00> : vector<16xf32>
    %600 = vector.multi_reduction <add>, %599, %cst_321 [1] : vector<16x40xf32> to vector<16xf32>
    %601 = vector.shape_cast %600 : vector<16xf32> to vector<16x1xf32>
    %cst_322 = arith.constant 4.000000e+01 : f32
    %602 = vector.broadcast %cst_322 : f32 to vector<16x1xf32>
    %603 = arith.divf %601, %602 : vector<16x1xf32>
    %cst_323 = arith.constant 9.99999974E-6 : f32
    %604 = vector.broadcast %cst_323 : f32 to vector<16x1xf32>
    %605 = arith.addf %603, %604 : vector<16x1xf32>
    %606 = math.rsqrt %605 : vector<16x1xf32>
    %607 = vector.broadcast %606 : vector<16x1xf32> to vector<16x40xf32>
    %608 = arith.mulf %598, %607 : vector<16x40xf32>
    %609 = vector.broadcast %482 : vector<1x40xf32> to vector<16x40xf32>
    %610 = arith.mulf %608, %609 : vector<16x40xf32>
    %611 = vector.broadcast %483 : vector<1x40xf32> to vector<16x40xf32>
    %612 = arith.addf %610, %611 : vector<16x40xf32>
    %cst_324 = arith.constant dense<0.000000e+00> : vector<16x160xf32>
    %613 = tpu.matmul %612, %471, %cst_324 {dimension_numbers = #tpu.dot_dimension_numbers<[1], [0], [0], [1], [0, 0, 1, 1], [], []>} : vector<16x40xf32>, vector<40x160xf32>, vector<16x160xf32> -> vector<16x160xf32>
    %614 = vector.broadcast %479 : vector<1x160xf32> to vector<16x160xf32>
    %615 = arith.addf %613, %614 : vector<16x160xf32>
    %cst_325 = arith.constant 0.000000e+00 : f32
    %616 = vector.broadcast %cst_325 : f32 to vector<16x160xf32>
    %617 = arith.maximumf %615, %616 : vector<16x160xf32>
    %cst_326 = arith.constant dense<0.000000e+00> : vector<16x40xf32>
    %618 = tpu.matmul %617, %475, %cst_326 {dimension_numbers = #tpu.dot_dimension_numbers<[1], [0], [0], [1], [0, 0, 1, 1], [], []>} : vector<16x160xf32>, vector<160x40xf32>, vector<16x40xf32> -> vector<16x40xf32>
    %619 = vector.broadcast %485 : vector<1x40xf32> to vector<16x40xf32>
    %620 = arith.addf %618, %619 : vector<16x40xf32>
    %621 = arith.addf %620, %592 : vector<16x40xf32>
    %c160 = arith.constant 160 : index
    %c0_327 = arith.constant 0 : index
    %622 = vector.load %arg4[%c160, %c0_327] : memref<328x40xf32, #tpu.memory_space<vmem>>, vector<1x40xf32>
    %c168 = arith.constant 168 : index
    %c0_328 = arith.constant 0 : index
    %623 = vector.load %arg4[%c168, %c0_328] : memref<328x40xf32, #tpu.memory_space<vmem>>, vector<1x40xf32>
    %cst_329 = arith.constant dense<0.000000e+00> : vector<16xf32>
    %624 = vector.multi_reduction <add>, %621, %cst_329 [1] : vector<16x40xf32> to vector<16xf32>
    %625 = vector.shape_cast %624 : vector<16xf32> to vector<16x1xf32>
    %cst_330 = arith.constant 4.000000e+01 : f32
    %626 = vector.broadcast %cst_330 : f32 to vector<16x1xf32>
    %627 = arith.divf %625, %626 : vector<16x1xf32>
    %628 = vector.broadcast %627 : vector<16x1xf32> to vector<16x40xf32>
    %629 = arith.subf %621, %628 : vector<16x40xf32>
    %630 = arith.mulf %629, %629 : vector<16x40xf32>
    %cst_331 = arith.constant dense<0.000000e+00> : vector<16xf32>
    %631 = vector.multi_reduction <add>, %630, %cst_331 [1] : vector<16x40xf32> to vector<16xf32>
    %632 = vector.shape_cast %631 : vector<16xf32> to vector<16x1xf32>
    %cst_332 = arith.constant 4.000000e+01 : f32
    %633 = vector.broadcast %cst_332 : f32 to vector<16x1xf32>
    %634 = arith.divf %632, %633 : vector<16x1xf32>
    %cst_333 = arith.constant 9.99999974E-6 : f32
    %635 = vector.broadcast %cst_333 : f32 to vector<16x1xf32>
    %636 = arith.addf %634, %635 : vector<16x1xf32>
    %637 = math.rsqrt %636 : vector<16x1xf32>
    %638 = vector.broadcast %637 : vector<16x1xf32> to vector<16x40xf32>
    %639 = arith.mulf %629, %638 : vector<16x40xf32>
    %640 = vector.broadcast %622 : vector<1x40xf32> to vector<16x40xf32>
    %641 = arith.mulf %639, %640 : vector<16x40xf32>
    %642 = vector.broadcast %623 : vector<1x40xf32> to vector<16x40xf32>
    %643 = arith.addf %641, %642 : vector<16x40xf32>
    %c40_334 = arith.constant 40 : index
    %c0_335 = arith.constant 0 : index
    %644 = vector.load %arg4[%c40_334, %c0_335] : memref<328x40xf32, #tpu.memory_space<vmem>>, vector<40x40xf32>
    %cst_336 = arith.constant dense<0.000000e+00> : vector<16x40xf32>
    %645 = tpu.matmul %643, %644, %cst_336 {dimension_numbers = #tpu.dot_dimension_numbers<[1], [0], [0], [1], [0, 0, 1, 1], [], []>} : vector<16x40xf32>, vector<40x40xf32>, vector<16x40xf32> -> vector<16x40xf32>
    %c176 = arith.constant 176 : index
    %c0_337 = arith.constant 0 : index
    %646 = vector.load %arg4[%c176, %c0_337] : memref<328x40xf32, #tpu.memory_space<vmem>>, vector<1x40xf32>
    %647 = vector.broadcast %646 : vector<1x40xf32> to vector<16x40xf32>
    %648 = arith.addf %645, %647 : vector<16x40xf32>
    %cst_338 = arith.constant 0.000000e+00 : f32
    %649 = vector.broadcast %cst_338 : f32 to vector<16x40xf32>
    %650 = arith.maximumf %648, %649 : vector<16x40xf32>
    %c80_339 = arith.constant 80 : index
    %c0_340 = arith.constant 0 : index
    %651 = vector.load %arg4[%c80_339, %c0_340] : memref<328x40xf32, #tpu.memory_space<vmem>>, vector<40x40xf32>
    %cst_341 = arith.constant dense<0.000000e+00> : vector<16x40xf32>
    %652 = tpu.matmul %650, %651, %cst_341 {dimension_numbers = #tpu.dot_dimension_numbers<[1], [0], [0], [1], [0, 0, 1, 1], [], []>} : vector<16x40xf32>, vector<40x40xf32>, vector<16x40xf32> -> vector<16x40xf32>
    %c184 = arith.constant 184 : index
    %c0_342 = arith.constant 0 : index
    %653 = vector.load %arg4[%c184, %c0_342] : memref<328x40xf32, #tpu.memory_space<vmem>>, vector<1x40xf32>
    %654 = vector.broadcast %653 : vector<1x40xf32> to vector<16x40xf32>
    %655 = arith.addf %652, %654 : vector<16x40xf32>
    %656 = arith.addf %655, %643 : vector<16x40xf32>
    %c120 = arith.constant 120 : index
    %c0_343 = arith.constant 0 : index
    %657 = vector.load %arg4[%c120, %c0_343] : memref<328x40xf32, #tpu.memory_space<vmem>>, vector<40x8xf32>
    %cst_344 = arith.constant dense<0.000000e+00> : vector<16x8xf32>
    %658 = tpu.matmul %656, %657, %cst_344 {dimension_numbers = #tpu.dot_dimension_numbers<[1], [0], [0], [1], [0, 0, 1, 1], [], []>} : vector<16x40xf32>, vector<40x8xf32>, vector<16x8xf32> -> vector<16x8xf32>
    %c192 = arith.constant 192 : index
    %c0_345 = arith.constant 0 : index
    %659 = vector.load %arg4[%c192, %c0_345] : memref<328x40xf32, #tpu.memory_space<vmem>>, vector<1x8xf32>
    %660 = vector.broadcast %659 : vector<1x8xf32> to vector<16x8xf32>
    %661 = arith.addf %658, %660 : vector<16x8xf32>
    %662 = vector.extract_strided_slice %661 {offsets = [7, 0], sizes = [1, 8], strides = [1, 1]} : vector<16x8xf32> to vector<1x8xf32>
    %c0_346 = arith.constant 0 : index
    %c0_347 = arith.constant 0 : index
    %663 = vector.load %arg5[%c0_346, %c0_347] : memref<2x8xf32, #tpu.memory_space<vmem>>, vector<1x8xf32>
    tpu.vector_store %arg5[%c0_346, %c0_347], %662 {strides = array<i32>} : memref<2x8xf32, #tpu.memory_space<vmem>>, vector<1x8xf32>,
    %664 = vector.extract_strided_slice %661 {offsets = [15, 0], sizes = [1, 8], strides = [1, 1]} : vector<16x8xf32> to vector<1x8xf32>
    %c1_348 = arith.constant 1 : index
    %c0_349 = arith.constant 0 : index
    %665 = vector.load %arg5[%c1_348, %c0_349] : memref<2x8xf32, #tpu.memory_space<vmem>>, vector<1x8xf32>
    tpu.vector_store %arg5[%c1_348, %c0_349], %664 {strides = array<i32>} : memref<2x8xf32, #tpu.memory_space<vmem>>, vector<1x8xf32>,
    return
  }
}

</mosaic_0001>

<llo_original>
// kernel: forward.1
$region0: #{forward.1}
  #allocation0 [shape = 'u32[]', space=smem, size = 0x4, offset = 0x4, fixed_abs, tag = 'smem constant byte address 0x4 - core index']
  #allocation1 [shape = 'u32[144,128]{1,0:T(1,128)}', space=vmem, size = 0x12000, scoped, tag = 'internal scratch']
  #allocation2 [shape = 'f32[128,16]{1,0:T(8,128)}', space=vmem, size = 0x10000, scoped, tag = 'scratch operand']
  #allocation3 [shape = 'f32[16,64]{1,0:T(8,128)}', space=vmem, size = 0x2000, scoped, tag = 'scratch operand']
  %s0 = inlined_call_operand.vmem [shape: f32[16,20], index: 0, kind: input, shape index: {}]
  %s1 = inlined_call_operand.vmem [shape: f32[4,40,544], index: 1, kind: input, shape index: {}]
  %s2 = inlined_call_operand.vmem [shape: f32[4,224,40], index: 2, kind: input, shape index: {}]
  %s3 = inlined_call_operand.vmem [shape: f32[4,8,384], index: 3, kind: input, shape index: {}]
  %s4 = inlined_call_operand.vmem [shape: f32[328,40], index: 4, kind: input, shape index: {}]
  %s5 = inlined_call_operand.hbm [shape: f32[2,8], index: 5, kind: output, shape index: {}]
  %s6 = sld [smem:[#allocation0]]
  $region30: #{forward.1} parent=0
    _
  %s8 = ssub.s32 1, %s6
  %s9 = scalar_select 0, %s8, %s6
  $region1: #{forward.1} parent=0
    #allocation4 [shape = 'u8[1024]{0}', space=vmem, size = 0x400, scoped, tag = 'output window, operand 0, single buffered']
    #allocation5 [shape = 's32[1]{0}', space=sflag, size = 0x4, scoped, tag = 'scoped memory for forward.1']
    %10 = vsyncpa [#allocation5], 0
    // Predicated region
    $region2: #{forward.1} parent=1 // pred_check
      _
    $region3: #{forward.1} parent=1 // pred_check_branch
      %12 = sbr.rel (0) target = $region5
    $region4: #{forward.1} parent=1 // pred_region
      _
    $region5: #{forward.1} parent=1 // pred_fallthru
      _
    // Predicated region
    $region6: #{forward.1} parent=1 // pred_check
      _
    $region7: #{forward.1} parent=1 // pred_check_branch
      %14 = sbr.rel (0) target = $region9
    $region8: #{forward.1} parent=1 // pred_region
      _
    $region9: #{forward.1} parent=1 // pred_fallthru
      _
    // Predicated region
    $region10: #{forward.1} parent=1 // pred_check
      _
    $region11: #{forward.1} parent=1 // pred_check_branch
      %16 = sbr.rel (0) target = $region13
    $region12: #{forward.1} parent=1 // pred_region
      _
    $region13: #{forward.1} parent=1 // pred_fallthru
      _
    // Predicated region
    $region14: #{forward.1} parent=1 // pred_check
      _
    $region15: #{forward.1} parent=1 // pred_check_branch
      %18 = sbr.rel (0) target = $region17
    $region16: #{forward.1} parent=1 // pred_region
      _
    $region17: #{forward.1} parent=1 // pred_fallthru
      _
    // Predicated region
    $region18: #{forward.1} parent=1 // pred_check
      _
    $region19: #{forward.1} parent=1 // pred_check_branch
      %20 = sbr.rel (0) target = $region21
    $region20: #{forward.1} parent=1 // pred_region
      _
    $region21: #{forward.1} parent=1 // pred_fallthru
      _
    %v21 = vld [vmem:[%s0] sm:$0xff]
    %v22 = vld [vmem:[%s0 + $0x8] sm:$0xff]
    %v23 = vld [vmem:[%s4] sm:$0xff]
    %v24 = vld [vmem:[%s4 + $0x8] sm:$0xff]
    %v25 = vld [vmem:[%s4 + $0x10] sm:$0xf]
    %v26 = vld [vmem:[%s4 + $0x18] sm:$0xff]
    %v27 = vld [vmem:[%s4 + $0x20] sm:$0xff]
    %vm28 = vcmask 162816
    %v30 = vsel %vm28, %v21, 0
    %v33 = vsel %vm28, %v22, 0
    %vm35 = vcmask 1043456
    %v37 = vsel %vm35, %v25, 0
    %39 = vmatprep.subr.mxu0 0.0
    %40 = vmatpush1.msra.mxu0 0.0
    %41 = vmatprep.subr.mxu0 0.0
    %42 = vmatpush1.msra.mxu0 0.0
    %43 = vmatprep.subr.mxu0 0.0
    %44 = vmatpush1.msra.mxu0 0.0
    %45 = vmatprep.subr.mxu0 0.0
    %46 = vmatpush1.msra.mxu0 0.0
    %47 = vmatprep.subr.mxu0 0.0
    %48 = vmatpush1.msra.mxu0 0.0
    %49 = vmatprep.subr.mxu0 0.0
    %50 = vmatpush1.msra.mxu0 0.0
    %51 = vmatprep.subr.mxu0 0.0
    %52 = vmatpush1.msra.mxu0 0.0
    %53 = vmatprep.subr.mxu0 0.0
    %54 = vmatpush1.msra.mxu0 0.0
    %55 = vmatprep.subr.mxu0 0.0
    %56 = vmatpush1.msra.mxu0 0.0
    %57 = vmatprep.subr.mxu0 0.0
    %58 = vmatpush1.msra.mxu0 0.0
    %59 = vmatprep.subr.mxu0 0.0
    %60 = vmatpush1.msra.mxu0 0.0
    %61 = vmatprep.subr.mxu0 0.0
    %62 = vmatpush1.msra.mxu0 0.0
    %63 = vmatprep.subr.mxu0 0.0
    %64 = vmatpush1.msra.mxu0 0.0
    %65 = vmatprep.subr.mxu0 0.0
    %66 = vmatpush1.msra.mxu0 %v37
    %67 = vmatprep.subr.mxu0 0.0
    %68 = vmatpush1.msra.mxu0 %v24
    %69 = vmatprep.subr.mxu0 0.0
    %70 = vmatpush1.msra.mxu0 %v23
    %71 = vmatprep.subr.mxu0 0.0
    %72 = vmatpush2.msra.mxu0 0.0
    %73 = vmatprep.subr.mxu0 0.0
    %74 = vmatpush2.msra.mxu0 0.0
    %75 = vmatprep.subr.mxu0 0.0
    %76 = vmatpush2.msra.mxu0 0.0
    %77 = vmatprep.subr.mxu0 0.0
    %78 = vmatpush2.msra.mxu0 0.0
    %79 = vmatprep.subr.mxu0 0.0
    %80 = vmatpush2.msra.mxu0 0.0
    %81 = vmatprep.subr.mxu0 0.0
    %82 = vmatpush2.msra.mxu0 0.0
    %83 = vmatprep.subr.mxu0 0.0
    %84 = vmatpush2.msra.mxu0 0.0
    %85 = vmatprep.subr.mxu0 0.0
    %86 = vmatpush2.msra.mxu0 0.0
    %87 = vmatprep.subr.mxu0 0.0
    %88 = vmatpush2.msra.mxu0 0.0
    %89 = vmatprep.subr.mxu0 0.0
    %90 = vmatpush2.msra.mxu0 0.0
    %91 = vmatprep.subr.mxu0 0.0
    %92 = vmatpush2.msra.mxu0 0.0
    %93 = vmatprep.subr.mxu0 0.0
    %94 = vmatpush2.msra.mxu0 0.0
    %95 = vmatprep.subr.mxu0 0.0
    %96 = vmatpush2.msra.mxu0 0.0
    %97 = vmatprep.subr.mxu0 0.0
    %98 = vmatpush2.msra.mxu0 0.0
    %99 = vmatprep.subr.mxu0 0.0
    %100 = vmatpush2.msra.mxu0 0.0
    %101 = vmatprep.subr.mxu0 0.0
    %102 = vmatpush2.msra.mxu0 0.0
    %103 = vmatprep.mubr.f32.mxu0 0.0
    %104 = vmatmul.mubr.f32.gmra.mxu0 %v30
    %v105 = vpop.f32.mrf.mxu0
    %v106 = vadd.f32 %v26, %v105
    %v107 = vpop.f32.mrf.mxu0
    %108 = vmatprep.mubr.f32.mxu0 0.0
    %109 = vmatmul.mubr.f32.gmra.mxu0 %v33
    %v110 = vpop.f32.mrf.mxu0
    %v111 = vadd.f32 %v27, %v110
    %v112 = vpop.f32.mrf.mxu0
    %113 = vdwg.mxu0
    %v114 = vld [vmem:[%s4 + $0xc8] sm:$0xff]
    %v115 = vld [vmem:[%s4 + $0xd0] sm:$0xff]
    %v116 = vld [vmem:[%s4 + $0xd8] sm:$0xff]
    %v117 = vld [vmem:[%s4 + $0xe0] sm:$0xff]
    %v118 = vld [vmem:[%s4 + $0xe8] sm:$0xff]
    %v119 = vld [vmem:[%s4 + $0xf0] sm:$0xff]
    %v120 = vld [vmem:[%s4 + $0xf8] sm:$0xff]
    %v121 = vld [vmem:[%s4 + $0x100] sm:$0xff]
    %v122 = vld [vmem:[%s4 + $0x108] sm:$0xff]
    %v123 = vld [vmem:[%s4 + $0x110] sm:$0xff]
    %v124 = vld [vmem:[%s4 + $0x118] sm:$0xff]
    %v125 = vld [vmem:[%s4 + $0x120] sm:$0xff]
    %v126 = vld [vmem:[%s4 + $0x128] sm:$0xff]
    %v127 = vld [vmem:[%s4 + $0x130] sm:$0xff]
    %v128 = vld [vmem:[%s4 + $0x138] sm:$0xff]
    %v129 = vld [vmem:[%s4 + $0x140] sm:$0xff]
    %v130 = vld [vmem:[%s1] sm:$0xff]
    %v131 = vld [vmem:[%s1 + $0x8] sm:$0xff]
    %v132 = vld [vmem:[%s1 + $0x10] sm:$0xff]
    %v133 = vld [vmem:[%s1 + $0x28] sm:$0xff]
    %v134 = vld [vmem:[%s1 + $0x30] sm:$0xff]
    %v135 = vld [vmem:[%s1 + $0x38] sm:$0xff]
    %v136 = vld [vmem:[%s1 + $0x50] sm:$0xff]
    %v137 = vld [vmem:[%s1 + $0x58] sm:$0xff]
    %v138 = vld [vmem:[%s1 + $0x60] sm:$0xff]
    %v139 = vld [vmem:[%s1 + $0x78] sm:$0xff]
    %v140 = vld [vmem:[%s1 + $0x80] sm:$0xff]
    %v141 = vld [vmem:[%s1 + $0x88] sm:$0xff]
    %v142 = vld [vmem:[%s1 + $0xa0] sm:$0xff]
    %v143 = vld [vmem:[%s1 + $0xa8] sm:$0xff]
    %v144 = vld [vmem:[%s1 + $0xb0] sm:$0xff]
    %v145 = vld [vmem:[%s1 + $0x18] sm:$0xff]
    %v146 = vld [vmem:[%s1 + $0x20] sm:$0xff]
    %v147 = vld [vmem:[%s1 + $0x40] sm:$0xff]
    %v148 = vld [vmem:[%s1 + $0x48] sm:$0xff]
    %v149 = vld [vmem:[%s1 + $0x68] sm:$0xff]
    %v150 = vld [vmem:[%s1 + $0x70] sm:$0xff]
    %v151 = vld [vmem:[%s1 + $0x90] sm:$0xff]
    %v152 = vld [vmem:[%s1 + $0x98] sm:$0xff]
    %v153 = vld [vmem:[%s1 + $0xb8] sm:$0xff]
    %v154 = vld [vmem:[%s1 + $0xc0] sm:$0xff]
    %v155 = vld [vmem:[%s2] sm:$0xff]
    %v156 = vld [vmem:[%s2 + $0x8] sm:$0xff]
    %v157 = vld [vmem:[%s2 + $0x10] sm:$0xff]
    %v158 = vld [vmem:[%s2 + $0x18] sm:$0xff]
    %v159 = vld [vmem:[%s2 + $0x20] sm:$0xff]
    %v160 = vld [vmem:[%s2 + $0x28] sm:$0xff]
    %v161 = vld [vmem:[%s2 + $0x30] sm:$0xff]
    %v162 = vld [vmem:[%s2 + $0x38] sm:$0xff]
    %v163 = vld [vmem:[%s2 + $0x40] sm:$0xff]
    %v164 = vld [vmem:[%s2 + $0x48] sm:$0xff]
    %v165 = vld [vmem:[%s2 + $0x50] sm:$0xff]
    %v166 = vld [vmem:[%s2 + $0x58] sm:$0xff]
    %v167 = vld [vmem:[%s2 + $0x60] sm:$0xff]
    %v168 = vld [vmem:[%s2 + $0x68] sm:$0xff]
    %v169 = vld [vmem:[%s2 + $0x70] sm:$0xff]
    %v170 = vld [vmem:[%s2 + $0x78] sm:$0xff]
    %v171 = vld [vmem:[%s2 + $0x80] sm:$0xff]
    %v172 = vld [vmem:[%s2 + $0x88] sm:$0xff]
    %v173 = vld [vmem:[%s2 + $0x90] sm:$0xff]
    %v174 = vld [vmem:[%s2 + $0x98] sm:$0xff]
    %v175 = vld [vmem:[%s2 + $0xa0] sm:$0xff]
    %v176 = vld [vmem:[%s2 + $0xa8] sm:$0xff]
    %v177 = vld [vmem:[%s2 + $0xb0] sm:$0xff]
    %v178 = vld [vmem:[%s2 + $0xb8] sm:$0xff]
    %v179 = vld [vmem:[%s2 + $0xc0] sm:$0xff]
    %v180 = vld [vmem:[%s2 + $0xc8] sm:$0xff]
    %v181 = vld [vmem:[%s2 + $0xd0] sm:$0xff]
    %v182 = vld [vmem:[%s2 + $0xd8] sm:$0xff]
    %v183 = vld [vmem:[%s3] sm:$0xff]
    %v184 = vld [vmem:[%s3 + $0x8] sm:$0xff]
    %v185 = vld [vmem:[%s3 + $0x10] sm:$0xff]
    %vm186 = vcmask 326656
    %v187 = vsel %vm186, %v106, 0.0
    %188 = vadd.xlane.f32.xlu0 %v187
    %v189 = vpop.xlane.xlu0 %188
    %v190 = vsel %vm186, %v111, 0.0
    %191 = vadd.xlane.f32.xlu0 %v190
    %v192 = vpop.xlane.xlu0 %191
    %v193 = vrcp.pop 40.0
    %v194 = vmul.f32 %v189, %v193
    %v195 = vmul.f32 %v192, %v193
    %v196 = vsub.f32 %v106, %v194
    %v197 = vsub.f32 %v111, %v195
    %v198 = vmul.f32 %v196, %v196
    %v199 = vmul.f32 %v197, %v197
    %v200 = vsel %vm186, %v198, 0.0
    %201 = vadd.xlane.f32.xlu0 %v200
    %v202 = vpop.xlane.xlu0 %201
    %v203 = vsel %vm186, %v199, 0.0
    %204 = vadd.xlane.f32.xlu0 %v203
    %v205 = vpop.xlane.xlu0 %204
    %v206 = vmul.f32 %v202, %v193
    %v207 = vmul.f32 %v205, %v193
    %v208 = vadd.f32 %v206, 1e-05
    %v209 = vadd.f32 %v207, 1e-05
    %v210 = vrsqrt.pop %v208
    %v211 = vrsqrt.pop %v209
    %v212 = vmul.f32 %v196, %v210
    %v213 = vmul.f32 %v197, %v211
    %v214 = vlaneseq
    %v215 = vshrl.u32 %v214, 7
    %v216 = vsub.s32 2, %v215
    %v217 = vrot.slane %v183, %v216
    %v218 = vmul.f32 %v212, %v217
    %v219 = vmul.f32 %v213, %v217
    %v220 = vlaneseq
    %v221 = vshrl.u32 %v220, 7
    %v222 = vsub.s32 3, %v221
    %v223 = vrot.slane %v183, %v222
    %v224 = vadd.f32 %v218, %v223
    %v225 = vadd.f32 %v219, %v223
    %v226 = vlaneseq
    %v227 = vshrl.u32 %v226, 7
    %v228 = vsub.s32 0, %v227
    %v229 = vrot.slane %v183, %v228
    %v230 = vlaneseq
    %v231 = vshrl.u32 %v230, 7
    %v232 = vsub.s32 0, %v231
    %v233 = vrot.slane %v184, %v232
    %v234 = vlaneseq
    %v235 = vshrl.u32 %v234, 7
    %v236 = vsub.s32 0, %v235
    %v237 = vrot.slane %v185, %v236
    %v239 = vsel %vm186, %v224, 0
    %v242 = vsel %vm186, %v225, 0
    %244 = vmatprep.subr.mxu0 0.0
    %245 = vmatpush1.msra.mxu0 0.0
    %246 = vmatprep.subr.mxu0 0.0
    %247 = vmatpush1.msra.mxu0 0.0
    %248 = vmatprep.subr.mxu0 0.0
    %249 = vmatpush1.msra.mxu0 0.0
    %250 = vmatprep.subr.mxu0 0.0
    %251 = vmatpush1.msra.mxu0 0.0
    %252 = vmatprep.subr.mxu0 0.0
    %253 = vmatpush1.msra.mxu0 0.0
    %254 = vmatprep.subr.mxu0 0.0
    %255 = vmatpush1.msra.mxu0 0.0
    %256 = vmatprep.subr.mxu0 0.0
    %257 = vmatpush1.msra.mxu0 0.0
    %258 = vmatprep.subr.mxu0 0.0
    %259 = vmatpush1.msra.mxu0 0.0
    %260 = vmatprep.subr.mxu0 0.0
    %261 = vmatpush1.msra.mxu0 0.0
    %262 = vmatprep.subr.mxu0 0.0
    %263 = vmatpush1.msra.mxu0 0.0
    %264 = vmatprep.subr.mxu0 0.0
    %265 = vmatpush1.msra.mxu0 0.0
    %266 = vmatprep.subr.mxu0 %v143
    %267 = vmatpush1.msra.mxu0 %v142
    %268 = vmatprep.subr.mxu0 %v140
    %269 = vmatpush1.msra.mxu0 %v139
    %270 = vmatprep.subr.mxu0 %v137
    %271 = vmatpush1.msra.mxu0 %v136
    %272 = vmatprep.subr.mxu0 %v134
    %273 = vmatpush1.msra.mxu0 %v133
    %274 = vmatprep.subr.mxu0 %v131
    %275 = vmatpush1.msra.mxu0 %v130
    %276 = vmatprep.subr.mxu0 0.0
    %277 = vmatpush2.msra.mxu0 0.0
    %278 = vmatprep.subr.mxu0 0.0
    %279 = vmatpush2.msra.mxu0 0.0
    %280 = vmatprep.subr.mxu0 0.0
    %281 = vmatpush2.msra.mxu0 0.0
    %282 = vmatprep.subr.mxu0 0.0
    %283 = vmatpush2.msra.mxu0 0.0
    %284 = vmatprep.subr.mxu0 0.0
    %285 = vmatpush2.msra.mxu0 0.0
    %286 = vmatprep.subr.mxu0 0.0
    %287 = vmatpush2.msra.mxu0 0.0
    %288 = vmatprep.subr.mxu0 0.0
    %289 = vmatpush2.msra.mxu0 0.0
    %290 = vmatprep.subr.mxu0 0.0
    %291 = vmatpush2.msra.mxu0 0.0
    %292 = vmatprep.subr.mxu0 0.0
    %293 = vmatpush2.msra.mxu0 0.0
    %294 = vmatprep.subr.mxu0 0.0
    %295 = vmatpush2.msra.mxu0 0.0
    %296 = vmatprep.subr.mxu0 0.0
    %297 = vmatpush2.msra.mxu0 0.0
    %298 = vmatprep.subr.mxu0 0.0
    %299 = vmatpush2.msra.mxu0 0.0
    %300 = vmatprep.subr.mxu0 0.0
    %301 = vmatpush2.msra.mxu0 0.0
    %302 = vmatprep.subr.mxu0 0.0
    %303 = vmatpush2.msra.mxu0 0.0
    %304 = vmatprep.subr.mxu0 0.0
    %305 = vmatpush2.msra.mxu0 0.0
    %306 = vmatprep.subr.mxu0 0.0
    %307 = vmatpush2.msra.mxu0 0.0
    %308 = vmatprep.mubr.f32.mxu0 0.0
    %309 = vmatmul.mubr.f32.gmra.mxu0 %v239
    %v310 = vpop.f32.mrf.mxu0
    %v311 = vadd.f32 %v229, %v310
    %v312 = vpop.f32.mrf.mxu0
    %v313 = vadd.f32 %v233, %v312
    %314 = vmatprep.mubr.f32.mxu0 0.0
    %315 = vmatmul.mubr.f32.gmra.mxu0 %v242
    %v316 = vpop.f32.mrf.mxu0
    %v317 = vadd.f32 %v229, %v316
    %v318 = vpop.f32.mrf.mxu0
    %v319 = vadd.f32 %v233, %v318
    %320 = vdwg.mxu0
    %321 = vmatprep.subr.mxu0 0.0
    %322 = vmatpush1.msra.mxu0 0.0
    %323 = vmatprep.subr.mxu0 0.0
    %324 = vmatpush1.msra.mxu0 0.0
    %325 = vmatprep.subr.mxu0 0.0
    %326 = vmatpush1.msra.mxu0 0.0
    %327 = vmatprep.subr.mxu0 0.0
    %328 = vmatpush1.msra.mxu0 0.0
    %329 = vmatprep.subr.mxu0 0.0
    %330 = vmatpush1.msra.mxu0 0.0
    %331 = vmatprep.subr.mxu0 0.0
    %332 = vmatpush1.msra.mxu0 0.0
    %333 = vmatprep.subr.mxu0 0.0
    %334 = vmatpush1.msra.mxu0 0.0
    %335 = vmatprep.subr.mxu0 0.0
    %336 = vmatpush1.msra.mxu0 0.0
    %337 = vmatprep.subr.mxu0 0.0
    %338 = vmatpush1.msra.mxu0 0.0
    %339 = vmatprep.subr.mxu0 0.0
    %340 = vmatpush1.msra.mxu0 0.0
    %341 = vmatprep.subr.mxu0 0.0
    %342 = vmatpush1.msra.mxu0 0.0
    %343 = vmatprep.subr.mxu0 0.0
    %344 = vmatpush1.msra.mxu0 %v144
    %345 = vmatprep.subr.mxu0 0.0
    %346 = vmatpush1.msra.mxu0 %v141
    %347 = vmatprep.subr.mxu0 0.0
    %348 = vmatpush1.msra.mxu0 %v138
    %349 = vmatprep.subr.mxu0 0.0
    %350 = vmatpush1.msra.mxu0 %v135
    %351 = vmatprep.subr.mxu0 0.0
    %352 = vmatpush1.msra.mxu0 %v132
    %353 = vmatprep.subr.mxu0 0.0
    %354 = vmatpush2.msra.mxu0 0.0
    %355 = vmatprep.subr.mxu0 0.0
    %356 = vmatpush2.msra.mxu0 0.0
    %357 = vmatprep.subr.mxu0 0.0
    %358 = vmatpush2.msra.mxu0 0.0
    %359 = vmatprep.subr.mxu0 0.0
    %360 = vmatpush2.msra.mxu0 0.0
    %361 = vmatprep.subr.mxu0 0.0
    %362 = vmatpush2.msra.mxu0 0.0
    %363 = vmatprep.subr.mxu0 0.0
    %364 = vmatpush2.msra.mxu0 0.0
    %365 = vmatprep.subr.mxu0 0.0
    %366 = vmatpush2.msra.mxu0 0.0
    %367 = vmatprep.subr.mxu0 0.0
    %368 = vmatpush2.msra.mxu0 0.0
    %369 = vmatprep.subr.mxu0 0.0
    %370 = vmatpush2.msra.mxu0 0.0
    %371 = vmatprep.subr.mxu0 0.0
    %372 = vmatpush2.msra.mxu0 0.0
    %373 = vmatprep.subr.mxu0 0.0
    %374 = vmatpush2.msra.mxu0 0.0
    %375 = vmatprep.subr.mxu0 0.0
    %376 = vmatpush2.msra.mxu0 0.0
    %377 = vmatprep.subr.mxu0 0.0
    %378 = vmatpush2.msra.mxu0 0.0
    %379 = vmatprep.subr.mxu0 0.0
    %380 = vmatpush2.msra.mxu0 0.0
    %381 = vmatprep.subr.mxu0 0.0
    %382 = vmatpush2.msra.mxu0 0.0
    %383 = vmatprep.subr.mxu0 0.0
    %384 = vmatpush2.msra.mxu0 0.0
    %385 = vmatprep.mubr.f32.mxu0 0.0
    %386 = vmatmul.mubr.f32.gmra.mxu0 %v239
    %v387 = vpop.f32.mrf.mxu0
    %v388 = vadd.f32 %v237, %v387
    %v389 = vpop.f32.mrf.mxu0
    %390 = vmatprep.mubr.f32.mxu0 0.0
    %391 = vmatmul.mubr.f32.gmra.mxu0 %v242
    %v392 = vpop.f32.mrf.mxu0
    %v393 = vadd.f32 %v237, %v392
    %v394 = vpop.f32.mrf.mxu0
    %395 = vdwg.mxu0
    %vm396 = vcmask 64512
    %v398 = vsel %vm396, %v311, 0
    %v401 = vsel %vm396, %v317, 0
    %v404 = vsel %vm396, %v313, 0
    %v407 = vsel %vm396, %v319, 0
    %409 = vmatprep.subr.mxu0 0.0
    %410 = vmatpush1.xpose.msra.mxu0 0.0
    %411 = vmatprep.subr.mxu0 0.0
    %412 = vmatpush1.xpose.msra.mxu0 0.0
    %413 = vmatprep.subr.mxu0 0.0
    %414 = vmatpush1.xpose.msra.mxu0 0.0
    %415 = vmatprep.subr.mxu0 0.0
    %416 = vmatpush1.xpose.msra.mxu0 0.0
    %417 = vmatprep.subr.mxu0 0.0
    %418 = vmatpush1.xpose.msra.mxu0 0.0
    %419 = vmatprep.subr.mxu0 0.0
    %420 = vmatpush1.xpose.msra.mxu0 0.0
    %421 = vmatprep.subr.mxu0 0.0
    %422 = vmatpush1.xpose.msra.mxu0 0.0
    %423 = vmatprep.subr.mxu0 0.0
    %424 = vmatpush1.xpose.msra.mxu0 0.0
    %425 = vmatprep.subr.mxu0 0.0
    %426 = vmatpush1.xpose.msra.mxu0 0.0
    %427 = vmatprep.subr.mxu0 0.0
    %428 = vmatpush1.xpose.msra.mxu0 0.0
    %429 = vmatprep.subr.mxu0 0.0
    %430 = vmatpush1.xpose.msra.mxu0 0.0
    %431 = vmatprep.subr.mxu0 0.0
    %432 = vmatpush1.xpose.msra.mxu0 0.0
    %433 = vmatprep.subr.mxu0 0.0
    %434 = vmatpush1.xpose.msra.mxu0 0.0
    %435 = vmatprep.subr.mxu0 0.0
    %436 = vmatpush1.xpose.msra.mxu0 0.0
    %437 = vmatprep.subr.mxu0 0.0
    %438 = vmatpush1.xpose.msra.mxu0 %v407
    %439 = vmatprep.subr.mxu0 0.0
    %440 = vmatpush1.xpose.msra.mxu0 %v404
    %441 = vmatprep.subr.mxu0 0.0
    %442 = vmatpush2.xpose.msra.mxu0 0.0
    %443 = vmatprep.subr.mxu0 0.0
    %444 = vmatpush2.xpose.msra.mxu0 0.0
    %445 = vmatprep.subr.mxu0 0.0
    %446 = vmatpush2.xpose.msra.mxu0 0.0
    %447 = vmatprep.subr.mxu0 0.0
    %448 = vmatpush2.xpose.msra.mxu0 0.0
    %449 = vmatprep.subr.mxu0 0.0
    %450 = vmatpush2.xpose.msra.mxu0 0.0
    %451 = vmatprep.subr.mxu0 0.0
    %452 = vmatpush2.xpose.msra.mxu0 0.0
    %453 = vmatprep.subr.mxu0 0.0
    %454 = vmatpush2.xpose.msra.mxu0 0.0
    %455 = vmatprep.subr.mxu0 0.0
    %456 = vmatpush2.xpose.msra.mxu0 0.0
    %457 = vmatprep.subr.mxu0 0.0
    %458 = vmatpush2.xpose.msra.mxu0 0.0
    %459 = vmatprep.subr.mxu0 0.0
    %460 = vmatpush2.xpose.msra.mxu0 0.0
    %461 = vmatprep.subr.mxu0 0.0
    %462 = vmatpush2.xpose.msra.mxu0 0.0
    %463 = vmatprep.subr.mxu0 0.0
    %464 = vmatpush2.xpose.msra.mxu0 0.0
    %465 = vmatprep.subr.mxu0 0.0
    %466 = vmatpush2.xpose.msra.mxu0 0.0
    %467 = vmatprep.subr.mxu0 0.0
    %468 = vmatpush2.xpose.msra.mxu0 0.0
    %469 = vmatprep.subr.mxu0 0.0
    %470 = vmatpush2.xpose.msra.mxu0 0.0
    %471 = vmatprep.subr.mxu0 0.0
    %472 = vmatpush2.xpose.msra.mxu0 0.0
    %473 = vmatprep.mubr.f32.mxu0 0.0
    %474 = vmatmul.mubr.f32.gmra.mxu0 %v398
    %v475 = vpop.f32.mrf.mxu0
    %v476 = vadd.f32 0.0, %v475
    %v477 = vpop.f32.mrf.mxu0
    %478 = vmatprep.mubr.f32.mxu0 0.0
    %479 = vmatmul.mubr.f32.gmra.mxu0 %v401
    %v480 = vpop.f32.mrf.mxu0
    %v481 = vadd.f32 0.0, %v480
    %v482 = vpop.f32.mrf.mxu0
    %483 = vdwg.mxu0
    %vm484 = vcmask 130048
    %485 = vst.msk [vmem:[#allocation2] sm:$0xff] %vm484, %v476
    %486 = vst.msk [vmem:[#allocation2 + $0x8] sm:$0xff] %vm484, %v481
    %487 = vrot.lane.b32.xlu0 %v311, 120
    %v488 = vpop.permute.xlu0 %487
    %489 = vrot.lane.b32.xlu0 %v317, 120
    %v490 = vpop.permute.xlu0 %489
    %491 = vrot.lane.b32.xlu0 %v313, 120
    %v492 = vpop.permute.xlu0 %491
    %493 = vrot.lane.b32.xlu0 %v319, 120
    %v494 = vpop.permute.xlu0 %493
    %v495 = vsel %vm396, %v488, 0
    %v497 = vsel %vm396, %v490, 0
    %v499 = vsel %vm396, %v492, 0
    %v501 = vsel %vm396, %v494, 0
    %503 = vmatprep.subr.mxu0 0.0
    %504 = vmatpush1.xpose.msra.mxu0 0.0
    %505 = vmatprep.subr.mxu0 0.0
    %506 = vmatpush1.xpose.msra.mxu0 0.0
    %507 = vmatprep.subr.mxu0 0.0
    %508 = vmatpush1.xpose.msra.mxu0 0.0
    %509 = vmatprep.subr.mxu0 0.0
    %510 = vmatpush1.xpose.msra.mxu0 0.0
    %511 = vmatprep.subr.mxu0 0.0
    %512 = vmatpush1.xpose.msra.mxu0 0.0
    %513 = vmatprep.subr.mxu0 0.0
    %514 = vmatpush1.xpose.msra.mxu0 0.0
    %515 = vmatprep.subr.mxu0 0.0
    %516 = vmatpush1.xpose.msra.mxu0 0.0
    %517 = vmatprep.subr.mxu0 0.0
    %518 = vmatpush1.xpose.msra.mxu0 0.0
    %519 = vmatprep.subr.mxu0 0.0
    %520 = vmatpush1.xpose.msra.mxu0 0.0
    %521 = vmatprep.subr.mxu0 0.0
    %522 = vmatpush1.xpose.msra.mxu0 0.0
    %523 = vmatprep.subr.mxu0 0.0
    %524 = vmatpush1.xpose.msra.mxu0 0.0
    %525 = vmatprep.subr.mxu0 0.0
    %526 = vmatpush1.xpose.msra.mxu0 0.0
    %527 = vmatprep.subr.mxu0 0.0
    %528 = vmatpush1.xpose.msra.mxu0 0.0
    %529 = vmatprep.subr.mxu0 0.0
    %530 = vmatpush1.xpose.msra.mxu0 0.0
    %531 = vmatprep.subr.mxu0 0.0
    %532 = vmatpush1.xpose.msra.mxu0 %v501
    %533 = vmatprep.subr.mxu0 0.0
    %534 = vmatpush1.xpose.msra.mxu0 %v499
    %535 = vmatprep.subr.mxu0 0.0
    %536 = vmatpush2.xpose.msra.mxu0 0.0
    %537 = vmatprep.subr.mxu0 0.0
    %538 = vmatpush2.xpose.msra.mxu0 0.0
    %539 = vmatprep.subr.mxu0 0.0
    %540 = vmatpush2.xpose.msra.mxu0 0.0
    %541 = vmatprep.subr.mxu0 0.0
    %542 = vmatpush2.xpose.msra.mxu0 0.0
    %543 = vmatprep.subr.mxu0 0.0
    %544 = vmatpush2.xpose.msra.mxu0 0.0
    %545 = vmatprep.subr.mxu0 0.0
    %546 = vmatpush2.xpose.msra.mxu0 0.0
    %547 = vmatprep.subr.mxu0 0.0
    %548 = vmatpush2.xpose.msra.mxu0 0.0
    %549 = vmatprep.subr.mxu0 0.0
    %550 = vmatpush2.xpose.msra.mxu0 0.0
    %551 = vmatprep.subr.mxu0 0.0
    %552 = vmatpush2.xpose.msra.mxu0 0.0
    %553 = vmatprep.subr.mxu0 0.0
    %554 = vmatpush2.xpose.msra.mxu0 0.0
    %555 = vmatprep.subr.mxu0 0.0
    %556 = vmatpush2.xpose.msra.mxu0 0.0
    %557 = vmatprep.subr.mxu0 0.0
    %558 = vmatpush2.xpose.msra.mxu0 0.0
    %559 = vmatprep.subr.mxu0 0.0
    %560 = vmatpush2.xpose.msra.mxu0 0.0
    %561 = vmatprep.subr.mxu0 0.0
    %562 = vmatpush2.xpose.msra.mxu0 0.0
    %563 = vmatprep.subr.mxu0 0.0
    %564 = vmatpush2.xpose.msra.mxu0 0.0
    %565 = vmatprep.subr.mxu0 0.0
    %566 = vmatpush2.xpose.msra.mxu0 0.0
    %567 = vmatprep.mubr.f32.mxu0 0.0
    %568 = vmatmul.mubr.f32.gmra.mxu0 %v495
    %v569 = vpop.f32.mrf.mxu0
    %v570 = vadd.f32 0.0, %v569
    %v571 = vpop.f32.mrf.mxu0
    %572 = vmatprep.mubr.f32.mxu0 0.0
    %573 = vmatmul.mubr.f32.gmra.mxu0 %v497
    %v574 = vpop.f32.mrf.mxu0
    %v575 = vadd.f32 0.0, %v574
    %v576 = vpop.f32.mrf.mxu0
    %577 = vdwg.mxu0
    %578 = vst.msk [vmem:[#allocation2 + $0x10] sm:$0xff] %vm484, %v570
    %579 = vst.msk [vmem:[#allocation2 + $0x18] sm:$0xff] %vm484, %v575
    %580 = vrot.lane.b32.xlu0 %v311, 112
    %v581 = vpop.permute.xlu0 %580
    %582 = vrot.lane.b32.xlu0 %v317, 112
    %v583 = vpop.permute.xlu0 %582
    %584 = vrot.lane.b32.xlu0 %v313, 112
    %v585 = vpop.permute.xlu0 %584
    %586 = vrot.lane.b32.xlu0 %v319, 112
    %v587 = vpop.permute.xlu0 %586
    %v588 = vsel %vm396, %v581, 0
    %v590 = vsel %vm396, %v583, 0
    %v592 = vsel %vm396, %v585, 0
    %v594 = vsel %vm396, %v587, 0
    %596 = vmatprep.subr.mxu0 0.0
    %597 = vmatpush1.xpose.msra.mxu0 0.0
    %598 = vmatprep.subr.mxu0 0.0
    %599 = vmatpush1.xpose.msra.mxu0 0.0
    %600 = vmatprep.subr.mxu0 0.0
    %601 = vmatpush1.xpose.msra.mxu0 0.0
    %602 = vmatprep.subr.mxu0 0.0
    %603 = vmatpush1.xpose.msra.mxu0 0.0
    %604 = vmatprep.subr.mxu0 0.0
    %605 = vmatpush1.xpose.msra.mxu0 0.0
    %606 = vmatprep.subr.mxu0 0.0
    %607 = vmatpush1.xpose.msra.mxu0 0.0
    %608 = vmatprep.subr.mxu0 0.0
    %609 = vmatpush1.xpose.msra.mxu0 0.0
    %610 = vmatprep.subr.mxu0 0.0
    %611 = vmatpush1.xpose.msra.mxu0 0.0
    %612 = vmatprep.subr.mxu0 0.0
    %613 = vmatpush1.xpose.msra.mxu0 0.0
    %614 = vmatprep.subr.mxu0 0.0
    %615 = vmatpush1.xpose.msra.mxu0 0.0
    %616 = vmatprep.subr.mxu0 0.0
    %617 = vmatpush1.xpose.msra.mxu0 0.0
    %618 = vmatprep.subr.mxu0 0.0
    %619 = vmatpush1.xpose.msra.mxu0 0.0
    %620 = vmatprep.subr.mxu0 0.0
    %621 = vmatpush1.xpose.msra.mxu0 0.0
    %622 = vmatprep.subr.mxu0 0.0
    %623 = vmatpush1.xpose.msra.mxu0 0.0
    %624 = vmatprep.subr.mxu0 0.0
    %625 = vmatpush1.xpose.msra.mxu0 %v594
    %626 = vmatprep.subr.mxu0 0.0
    %627 = vmatpush1.xpose.msra.mxu0 %v592
    %628 = vmatprep.subr.mxu0 0.0
    %629 = vmatpush2.xpose.msra.mxu0 0.0
    %630 = vmatprep.subr.mxu0 0.0
    %631 = vmatpush2.xpose.msra.mxu0 0.0
    %632 = vmatprep.subr.mxu0 0.0
    %633 = vmatpush2.xpose.msra.mxu0 0.0
    %634 = vmatprep.subr.mxu0 0.0
    %635 = vmatpush2.xpose.msra.mxu0 0.0
    %636 = vmatprep.subr.mxu0 0.0
    %637 = vmatpush2.xpose.msra.mxu0 0.0
    %638 = vmatprep.subr.mxu0 0.0
    %639 = vmatpush2.xpose.msra.mxu0 0.0
    %640 = vmatprep.subr.mxu0 0.0
    %641 = vmatpush2.xpose.msra.mxu0 0.0
    %642 = vmatprep.subr.mxu0 0.0
    %643 = vmatpush2.xpose.msra.mxu0 0.0
    %644 = vmatprep.subr.mxu0 0.0
    %645 = vmatpush2.xpose.msra.mxu0 0.0
    %646 = vmatprep.subr.mxu0 0.0
    %647 = vmatpush2.xpose.msra.mxu0 0.0
    %648 = vmatprep.subr.mxu0 0.0
    %649 = vmatpush2.xpose.msra.mxu0 0.0
    %650 = vmatprep.subr.mxu0 0.0
    %651 = vmatpush2.xpose.msra.mxu0 0.0
    %652 = vmatprep.subr.mxu0 0.0
    %653 = vmatpush2.xpose.msra.mxu0 0.0
    %654 = vmatprep.subr.mxu0 0.0
    %655 = vmatpush2.xpose.msra.mxu0 0.0
    %656 = vmatprep.subr.mxu0 0.0
    %657 = vmatpush2.xpose.msra.mxu0 0.0
    %658 = vmatprep.subr.mxu0 0.0
    %659 = vmatpush2.xpose.msra.mxu0 0.0
    %660 = vmatprep.mubr.f32.mxu0 0.0
    %661 = vmatmul.mubr.f32.gmra.mxu0 %v588
    %v662 = vpop.f32.mrf.mxu0
    %v663 = vadd.f32 0.0, %v662
    %v664 = vpop.f32.mrf.mxu0
    %665 = vmatprep.mubr.f32.mxu0 0.0
    %666 = vmatmul.mubr.f32.gmra.mxu0 %v590
    %v667 = vpop.f32.mrf.mxu0
    %v668 = vadd.f32 0.0, %v667
    %v669 = vpop.f32.mrf.mxu0
    %670 = vdwg.mxu0
    %671 = vst.msk [vmem:[#allocation2 + $0x20] sm:$0xff] %vm484, %v663
    %672 = vst.msk [vmem:[#allocation2 + $0x28] sm:$0xff] %vm484, %v668
    %673 = vrot.lane.b32.xlu0 %v311, 104
    %v674 = vpop.permute.xlu0 %673
    %675 = vrot.lane.b32.xlu0 %v317, 104
    %v676 = vpop.permute.xlu0 %675
    %677 = vrot.lane.b32.xlu0 %v313, 104
    %v678 = vpop.permute.xlu0 %677
    %679 = vrot.lane.b32.xlu0 %v319, 104
    %v680 = vpop.permute.xlu0 %679
    %v681 = vsel %vm396, %v674, 0
    %v683 = vsel %vm396, %v676, 0
    %v685 = vsel %vm396, %v678, 0
    %v687 = vsel %vm396, %v680, 0
    %689 = vmatprep.subr.mxu0 0.0
    %690 = vmatpush1.xpose.msra.mxu0 0.0
    %691 = vmatprep.subr.mxu0 0.0
    %692 = vmatpush1.xpose.msra.mxu0 0.0
    %693 = vmatprep.subr.mxu0 0.0
    %694 = vmatpush1.xpose.msra.mxu0 0.0
    %695 = vmatprep.subr.mxu0 0.0
    %696 = vmatpush1.xpose.msra.mxu0 0.0
    %697 = vmatprep.subr.mxu0 0.0
    %698 = vmatpush1.xpose.msra.mxu0 0.0
    %699 = vmatprep.subr.mxu0 0.0
    %700 = vmatpush1.xpose.msra.mxu0 0.0
    %701 = vmatprep.subr.mxu0 0.0
    %702 = vmatpush1.xpose.msra.mxu0 0.0
    %703 = vmatprep.subr.mxu0 0.0
    %704 = vmatpush1.xpose.msra.mxu0 0.0
    %705 = vmatprep.subr.mxu0 0.0
    %706 = vmatpush1.xpose.msra.mxu0 0.0
    %707 = vmatprep.subr.mxu0 0.0
    %708 = vmatpush1.xpose.msra.mxu0 0.0
    %709 = vmatprep.subr.mxu0 0.0
    %710 = vmatpush1.xpose.msra.mxu0 0.0
    %711 = vmatprep.subr.mxu0 0.0
    %712 = vmatpush1.xpose.msra.mxu0 0.0
    %713 = vmatprep.subr.mxu0 0.0
    %714 = vmatpush1.xpose.msra.mxu0 0.0
    %715 = vmatprep.subr.mxu0 0.0
    %716 = vmatpush1.xpose.msra.mxu0 0.0
    %717 = vmatprep.subr.mxu0 0.0
    %718 = vmatpush1.xpose.msra.mxu0 %v687
    %719 = vmatprep.subr.mxu0 0.0
    %720 = vmatpush1.xpose.msra.mxu0 %v685
    %721 = vmatprep.subr.mxu0 0.0
    %722 = vmatpush2.xpose.msra.mxu0 0.0
    %723 = vmatprep.subr.mxu0 0.0
    %724 = vmatpush2.xpose.msra.mxu0 0.0
    %725 = vmatprep.subr.mxu0 0.0
    %726 = vmatpush2.xpose.msra.mxu0 0.0
    %727 = vmatprep.subr.mxu0 0.0
    %728 = vmatpush2.xpose.msra.mxu0 0.0
    %729 = vmatprep.subr.mxu0 0.0
    %730 = vmatpush2.xpose.msra.mxu0 0.0
    %731 = vmatprep.subr.mxu0 0.0
    %732 = vmatpush2.xpose.msra.mxu0 0.0
    %733 = vmatprep.subr.mxu0 0.0
    %734 = vmatpush2.xpose.msra.mxu0 0.0
    %735 = vmatprep.subr.mxu0 0.0
    %736 = vmatpush2.xpose.msra.mxu0 0.0
    %737 = vmatprep.subr.mxu0 0.0
    %738 = vmatpush2.xpose.msra.mxu0 0.0
    %739 = vmatprep.subr.mxu0 0.0
    %740 = vmatpush2.xpose.msra.mxu0 0.0
    %741 = vmatprep.subr.mxu0 0.0
    %742 = vmatpush2.xpose.msra.mxu0 0.0
    %743 = vmatprep.subr.mxu0 0.0
    %744 = vmatpush2.xpose.msra.mxu0 0.0
    %745 = vmatprep.subr.mxu0 0.0
    %746 = vmatpush2.xpose.msra.mxu0 0.0
    %747 = vmatprep.subr.mxu0 0.0
    %748 = vmatpush2.xpose.msra.mxu0 0.0
    %749 = vmatprep.subr.mxu0 0.0
    %750 = vmatpush2.xpose.msra.mxu0 0.0
    %751 = vmatprep.subr.mxu0 0.0
    %752 = vmatpush2.xpose.msra.mxu0 0.0
    %753 = vmatprep.mubr.f32.mxu0 0.0
    %754 = vmatmul.mubr.f32.gmra.mxu0 %v681
    %v755 = vpop.f32.mrf.mxu0
    %v756 = vadd.f32 0.0, %v755
    %v757 = vpop.f32.mrf.mxu0
    %758 = vmatprep.mubr.f32.mxu0 0.0
    %759 = vmatmul.mubr.f32.gmra.mxu0 %v683
    %v760 = vpop.f32.mrf.mxu0
    %v761 = vadd.f32 0.0, %v760
    %v762 = vpop.f32.mrf.mxu0
    %763 = vdwg.mxu0
    %764 = vst.msk [vmem:[#allocation2 + $0x30] sm:$0xff] %vm484, %v756
    %765 = vst.msk [vmem:[#allocation2 + $0x38] sm:$0xff] %vm484, %v761
    %766 = vrot.lane.b32.xlu0 %v311, 96
    %v767 = vpop.permute.xlu0 %766
    %768 = vrot.lane.b32.xlu0 %v317, 96
    %v769 = vpop.permute.xlu0 %768
    %770 = vrot.lane.b32.xlu0 %v313, 96
    %v771 = vpop.permute.xlu0 %770
    %772 = vrot.lane.b32.xlu0 %v319, 96
    %v773 = vpop.permute.xlu0 %772
    %v774 = vsel %vm396, %v767, 0
    %v776 = vsel %vm396, %v769, 0
    %v778 = vsel %vm396, %v771, 0
    %v780 = vsel %vm396, %v773, 0
    %782 = vmatprep.subr.mxu0 0.0
    %783 = vmatpush1.xpose.msra.mxu0 0.0
    %784 = vmatprep.subr.mxu0 0.0
    %785 = vmatpush1.xpose.msra.mxu0 0.0
    %786 = vmatprep.subr.mxu0 0.0
    %787 = vmatpush1.xpose.msra.mxu0 0.0
    %788 = vmatprep.subr.mxu0 0.0
    %789 = vmatpush1.xpose.msra.mxu0 0.0
    %790 = vmatprep.subr.mxu0 0.0
    %791 = vmatpush1.xpose.msra.mxu0 0.0
    %792 = vmatprep.subr.mxu0 0.0
    %793 = vmatpush1.xpose.msra.mxu0 0.0
    %794 = vmatprep.subr.mxu0 0.0
    %795 = vmatpush1.xpose.msra.mxu0 0.0
    %796 = vmatprep.subr.mxu0 0.0
    %797 = vmatpush1.xpose.msra.mxu0 0.0
    %798 = vmatprep.subr.mxu0 0.0
    %799 = vmatpush1.xpose.msra.mxu0 0.0
    %800 = vmatprep.subr.mxu0 0.0
    %801 = vmatpush1.xpose.msra.mxu0 0.0
    %802 = vmatprep.subr.mxu0 0.0
    %803 = vmatpush1.xpose.msra.mxu0 0.0
    %804 = vmatprep.subr.mxu0 0.0
    %805 = vmatpush1.xpose.msra.mxu0 0.0
    %806 = vmatprep.subr.mxu0 0.0
    %807 = vmatpush1.xpose.msra.mxu0 0.0
    %808 = vmatprep.subr.mxu0 0.0
    %809 = vmatpush1.xpose.msra.mxu0 0.0
    %810 = vmatprep.subr.mxu0 0.0
    %811 = vmatpush1.xpose.msra.mxu0 %v780
    %812 = vmatprep.subr.mxu0 0.0
    %813 = vmatpush1.xpose.msra.mxu0 %v778
    %814 = vmatprep.subr.mxu0 0.0
    %815 = vmatpush2.xpose.msra.mxu0 0.0
    %816 = vmatprep.subr.mxu0 0.0
    %817 = vmatpush2.xpose.msra.mxu0 0.0
    %818 = vmatprep.subr.mxu0 0.0
    %819 = vmatpush2.xpose.msra.mxu0 0.0
    %820 = vmatprep.subr.mxu0 0.0
    %821 = vmatpush2.xpose.msra.mxu0 0.0
    %822 = vmatprep.subr.mxu0 0.0
    %823 = vmatpush2.xpose.msra.mxu0 0.0
    %824 = vmatprep.subr.mxu0 0.0
    %825 = vmatpush2.xpose.msra.mxu0 0.0
    %826 = vmatprep.subr.mxu0 0.0
    %827 = vmatpush2.xpose.msra.mxu0 0.0
    %828 = vmatprep.subr.mxu0 0.0
    %829 = vmatpush2.xpose.msra.mxu0 0.0
    %830 = vmatprep.subr.mxu0 0.0
    %831 = vmatpush2.xpose.msra.mxu0 0.0
    %832 = vmatprep.subr.mxu0 0.0
    %833 = vmatpush2.xpose.msra.mxu0 0.0
    %834 = vmatprep.subr.mxu0 0.0
    %835 = vmatpush2.xpose.msra.mxu0 0.0
    %836 = vmatprep.subr.mxu0 0.0
    %837 = vmatpush2.xpose.msra.mxu0 0.0
    %838 = vmatprep.subr.mxu0 0.0
    %839 = vmatpush2.xpose.msra.mxu0 0.0
    %840 = vmatprep.subr.mxu0 0.0
    %841 = vmatpush2.xpose.msra.mxu0 0.0
    %842 = vmatprep.subr.mxu0 0.0
    %843 = vmatpush2.xpose.msra.mxu0 0.0
    %844 = vmatprep.subr.mxu0 0.0
    %845 = vmatpush2.xpose.msra.mxu0 0.0
    %846 = vmatprep.mubr.f32.mxu0 0.0
    %847 = vmatmul.mubr.f32.gmra.mxu0 %v774
    %v848 = vpop.f32.mrf.mxu0
    %v849 = vadd.f32 0.0, %v848
    %v850 = vpop.f32.mrf.mxu0
    %851 = vmatprep.mubr.f32.mxu0 0.0
    %852 = vmatmul.mubr.f32.gmra.mxu0 %v776
    %v853 = vpop.f32.mrf.mxu0
    %v854 = vadd.f32 0.0, %v853
    %v855 = vpop.f32.mrf.mxu0
    %856 = vdwg.mxu0
    %857 = vst.msk [vmem:[#allocation2 + $0x40] sm:$0xff] %vm484, %v849
    %858 = vst.msk [vmem:[#allocation2 + $0x48] sm:$0xff] %vm484, %v854
    %859 = vrot.lane.b32.xlu0 %v311, 88
    %v860 = vpop.permute.xlu0 %859
    %861 = vrot.lane.b32.xlu0 %v317, 88
    %v862 = vpop.permute.xlu0 %861
    %863 = vrot.lane.b32.xlu0 %v313, 88
    %v864 = vpop.permute.xlu0 %863
    %865 = vrot.lane.b32.xlu0 %v319, 88
    %v866 = vpop.permute.xlu0 %865
    %v867 = vsel %vm396, %v860, 0
    %v869 = vsel %vm396, %v862, 0
    %v871 = vsel %vm396, %v864, 0
    %v873 = vsel %vm396, %v866, 0
    %875 = vmatprep.subr.mxu0 0.0
    %876 = vmatpush1.xpose.msra.mxu0 0.0
    %877 = vmatprep.subr.mxu0 0.0
    %878 = vmatpush1.xpose.msra.mxu0 0.0
    %879 = vmatprep.subr.mxu0 0.0
    %880 = vmatpush1.xpose.msra.mxu0 0.0
    %881 = vmatprep.subr.mxu0 0.0
    %882 = vmatpush1.xpose.msra.mxu0 0.0
    %883 = vmatprep.subr.mxu0 0.0
    %884 = vmatpush1.xpose.msra.mxu0 0.0
    %885 = vmatprep.subr.mxu0 0.0
    %886 = vmatpush1.xpose.msra.mxu0 0.0
    %887 = vmatprep.subr.mxu0 0.0
    %888 = vmatpush1.xpose.msra.mxu0 0.0
    %889 = vmatprep.subr.mxu0 0.0
    %890 = vmatpush1.xpose.msra.mxu0 0.0
    %891 = vmatprep.subr.mxu0 0.0
    %892 = vmatpush1.xpose.msra.mxu0 0.0
    %893 = vmatprep.subr.mxu0 0.0
    %894 = vmatpush1.xpose.msra.mxu0 0.0
    %895 = vmatprep.subr.mxu0 0.0
    %896 = vmatpush1.xpose.msra.mxu0 0.0
    %897 = vmatprep.subr.mxu0 0.0
    %898 = vmatpush1.xpose.msra.mxu0 0.0
    %899 = vmatprep.subr.mxu0 0.0
    %900 = vmatpush1.xpose.msra.mxu0 0.0
    %901 = vmatprep.subr.mxu0 0.0
    %902 = vmatpush1.xpose.msra.mxu0 0.0
    %903 = vmatprep.subr.mxu0 0.0
    %904 = vmatpush1.xpose.msra.mxu0 %v873
    %905 = vmatprep.subr.mxu0 0.0
    %906 = vmatpush1.xpose.msra.mxu0 %v871
    %907 = vmatprep.subr.mxu0 0.0
    %908 = vmatpush2.xpose.msra.mxu0 0.0
    %909 = vmatprep.subr.mxu0 0.0
    %910 = vmatpush2.xpose.msra.mxu0 0.0
    %911 = vmatprep.subr.mxu0 0.0
    %912 = vmatpush2.xpose.msra.mxu0 0.0
    %913 = vmatprep.subr.mxu0 0.0
    %914 = vmatpush2.xpose.msra.mxu0 0.0
    %915 = vmatprep.subr.mxu0 0.0
    %916 = vmatpush2.xpose.msra.mxu0 0.0
    %917 = vmatprep.subr.mxu0 0.0
    %918 = vmatpush2.xpose.msra.mxu0 0.0
    %919 = vmatprep.subr.mxu0 0.0
    %920 = vmatpush2.xpose.msra.mxu0 0.0
    %921 = vmatprep.subr.mxu0 0.0
    %922 = vmatpush2.xpose.msra.mxu0 0.0
    %923 = vmatprep.subr.mxu0 0.0
    %924 = vmatpush2.xpose.msra.mxu0 0.0
    %925 = vmatprep.subr.mxu0 0.0
    %926 = vmatpush2.xpose.msra.mxu0 0.0
    %927 = vmatprep.subr.mxu0 0.0
    %928 = vmatpush2.xpose.msra.mxu0 0.0
    %929 = vmatprep.subr.mxu0 0.0
    %930 = vmatpush2.xpose.msra.mxu0 0.0
    %931 = vmatprep.subr.mxu0 0.0
    %932 = vmatpush2.xpose.msra.mxu0 0.0
    %933 = vmatprep.subr.mxu0 0.0
    %934 = vmatpush2.xpose.msra.mxu0 0.0
    %935 = vmatprep.subr.mxu0 0.0
    %936 = vmatpush2.xpose.msra.mxu0 0.0
    %937 = vmatprep.subr.mxu0 0.0
    %938 = vmatpush2.xpose.msra.mxu0 0.0
    %939 = vmatprep.mubr.f32.mxu0 0.0
    %940 = vmatmul.mubr.f32.gmra.mxu0 %v867
    %v941 = vpop.f32.mrf.mxu0
    %v942 = vadd.f32 0.0, %v941
    %v943 = vpop.f32.mrf.mxu0
    %944 = vmatprep.mubr.f32.mxu0 0.0
    %945 = vmatmul.mubr.f32.gmra.mxu0 %v869
    %v946 = vpop.f32.mrf.mxu0
    %v947 = vadd.f32 0.0, %v946
    %v948 = vpop.f32.mrf.mxu0
    %949 = vdwg.mxu0
    %950 = vst.msk [vmem:[#allocation2 + $0x50] sm:$0xff] %vm484, %v942
    %951 = vst.msk [vmem:[#allocation2 + $0x58] sm:$0xff] %vm484, %v947
    %952 = vrot.lane.b32.xlu0 %v311, 80
    %v953 = vpop.permute.xlu0 %952
    %954 = vrot.lane.b32.xlu0 %v317, 80
    %v955 = vpop.permute.xlu0 %954
    %956 = vrot.lane.b32.xlu0 %v313, 80
    %v957 = vpop.permute.xlu0 %956
    %958 = vrot.lane.b32.xlu0 %v319, 80
    %v959 = vpop.permute.xlu0 %958
    %v960 = vsel %vm396, %v953, 0
    %v962 = vsel %vm396, %v955, 0
    %v964 = vsel %vm396, %v957, 0
    %v966 = vsel %vm396, %v959, 0
    %968 = vmatprep.subr.mxu0 0.0
    %969 = vmatpush1.xpose.msra.mxu0 0.0
    %970 = vmatprep.subr.mxu0 0.0
    %971 = vmatpush1.xpose.msra.mxu0 0.0
    %972 = vmatprep.subr.mxu0 0.0
    %973 = vmatpush1.xpose.msra.mxu0 0.0
    %974 = vmatprep.subr.mxu0 0.0
    %975 = vmatpush1.xpose.msra.mxu0 0.0
    %976 = vmatprep.subr.mxu0 0.0
    %977 = vmatpush1.xpose.msra.mxu0 0.0
    %978 = vmatprep.subr.mxu0 0.0
    %979 = vmatpush1.xpose.msra.mxu0 0.0
    %980 = vmatprep.subr.mxu0 0.0
    %981 = vmatpush1.xpose.msra.mxu0 0.0
    %982 = vmatprep.subr.mxu0 0.0
    %983 = vmatpush1.xpose.msra.mxu0 0.0
    %984 = vmatprep.subr.mxu0 0.0
    %985 = vmatpush1.xpose.msra.mxu0 0.0
    %986 = vmatprep.subr.mxu0 0.0
    %987 = vmatpush1.xpose.msra.mxu0 0.0
    %988 = vmatprep.subr.mxu0 0.0
    %989 = vmatpush1.xpose.msra.mxu0 0.0
    %990 = vmatprep.subr.mxu0 0.0
    %991 = vmatpush1.xpose.msra.mxu0 0.0
    %992 = vmatprep.subr.mxu0 0.0
    %993 = vmatpush1.xpose.msra.mxu0 0.0
    %994 = vmatprep.subr.mxu0 0.0
    %995 = vmatpush1.xpose.msra.mxu0 0.0
    %996 = vmatprep.subr.mxu0 0.0
    %997 = vmatpush1.xpose.msra.mxu0 %v966
    %998 = vmatprep.subr.mxu0 0.0
    %999 = vmatpush1.xpose.msra.mxu0 %v964
    %1000 = vmatprep.subr.mxu0 0.0
    %1001 = vmatpush2.xpose.msra.mxu0 0.0
    %1002 = vmatprep.subr.mxu0 0.0
    %1003 = vmatpush2.xpose.msra.mxu0 0.0
    %1004 = vmatprep.subr.mxu0 0.0
    %1005 = vmatpush2.xpose.msra.mxu0 0.0
    %1006 = vmatprep.subr.mxu0 0.0
    %1007 = vmatpush2.xpose.msra.mxu0 0.0
    %1008 = vmatprep.subr.mxu0 0.0
    %1009 = vmatpush2.xpose.msra.mxu0 0.0
    %1010 = vmatprep.subr.mxu0 0.0
    %1011 = vmatpush2.xpose.msra.mxu0 0.0
    %1012 = vmatprep.subr.mxu0 0.0
    %1013 = vmatpush2.xpose.msra.mxu0 0.0
    %1014 = vmatprep.subr.mxu0 0.0
    %1015 = vmatpush2.xpose.msra.mxu0 0.0
    %1016 = vmatprep.subr.mxu0 0.0
    %1017 = vmatpush2.xpose.msra.mxu0 0.0
    %1018 = vmatprep.subr.mxu0 0.0
    %1019 = vmatpush2.xpose.msra.mxu0 0.0
    %1020 = vmatprep.subr.mxu0 0.0
    %1021 = vmatpush2.xpose.msra.mxu0 0.0
    %1022 = vmatprep.subr.mxu0 0.0
    %1023 = vmatpush2.xpose.msra.mxu0 0.0
    %1024 = vmatprep.subr.mxu0 0.0
    %1025 = vmatpush2.xpose.msra.mxu0 0.0
    %1026 = vmatprep.subr.mxu0 0.0
    %1027 = vmatpush2.xpose.msra.mxu0 0.0
    %1028 = vmatprep.subr.mxu0 0.0
    %1029 = vmatpush2.xpose.msra.mxu0 0.0
    %1030 = vmatprep.subr.mxu0 0.0
    %1031 = vmatpush2.xpose.msra.mxu0 0.0
    %1032 = vmatprep.mubr.f32.mxu0 0.0
    %1033 = vmatmul.mubr.f32.gmra.mxu0 %v960
    %v1034 = vpop.f32.mrf.mxu0
    %v1035 = vadd.f32 0.0, %v1034
    %v1036 = vpop.f32.mrf.mxu0
    %1037 = vmatprep.mubr.f32.mxu0 0.0
    %1038 = vmatmul.mubr.f32.gmra.mxu0 %v962
    %v1039 = vpop.f32.mrf.mxu0
    %v1040 = vadd.f32 0.0, %v1039
    %v1041 = vpop.f32.mrf.mxu0
    %1042 = vdwg.mxu0
    %1043 = vst.msk [vmem:[#allocation2 + $0x60] sm:$0xff] %vm484, %v1035
    %1044 = vst.msk [vmem:[#allocation2 + $0x68] sm:$0xff] %vm484, %v1040
    %1045 = vrot.lane.b32.xlu0 %v311, 72
    %v1046 = vpop.permute.xlu0 %1045
    %1047 = vrot.lane.b32.xlu0 %v317, 72
    %v1048 = vpop.permute.xlu0 %1047
    %1049 = vrot.lane.b32.xlu0 %v313, 72
    %v1050 = vpop.permute.xlu0 %1049
    %1051 = vrot.lane.b32.xlu0 %v319, 72
    %v1052 = vpop.permute.xlu0 %1051
    %v1053 = vsel %vm396, %v1046, 0
    %v1055 = vsel %vm396, %v1048, 0
    %v1057 = vsel %vm396, %v1050, 0
    %v1059 = vsel %vm396, %v1052, 0
    %1061 = vmatprep.subr.mxu0 0.0
    %1062 = vmatpush1.xpose.msra.mxu0 0.0
    %1063 = vmatprep.subr.mxu0 0.0
    %1064 = vmatpush1.xpose.msra.mxu0 0.0
    %1065 = vmatprep.subr.mxu0 0.0
    %1066 = vmatpush1.xpose.msra.mxu0 0.0
    %1067 = vmatprep.subr.mxu0 0.0
    %1068 = vmatpush1.xpose.msra.mxu0 0.0
    %1069 = vmatprep.subr.mxu0 0.0
    %1070 = vmatpush1.xpose.msra.mxu0 0.0
    %1071 = vmatprep.subr.mxu0 0.0
    %1072 = vmatpush1.xpose.msra.mxu0 0.0
    %1073 = vmatprep.subr.mxu0 0.0
    %1074 = vmatpush1.xpose.msra.mxu0 0.0
    %1075 = vmatprep.subr.mxu0 0.0
    %1076 = vmatpush1.xpose.msra.mxu0 0.0
    %1077 = vmatprep.subr.mxu0 0.0
    %1078 = vmatpush1.xpose.msra.mxu0 0.0
    %1079 = vmatprep.subr.mxu0 0.0
    %1080 = vmatpush1.xpose.msra.mxu0 0.0
    %1081 = vmatprep.subr.mxu0 0.0
    %1082 = vmatpush1.xpose.msra.mxu0 0.0
    %1083 = vmatprep.subr.mxu0 0.0
    %1084 = vmatpush1.xpose.msra.mxu0 0.0
    %1085 = vmatprep.subr.mxu0 0.0
    %1086 = vmatpush1.xpose.msra.mxu0 0.0
    %1087 = vmatprep.subr.mxu0 0.0
    %1088 = vmatpush1.xpose.msra.mxu0 0.0
    %1089 = vmatprep.subr.mxu0 0.0
    %1090 = vmatpush1.xpose.msra.mxu0 %v1059
    %1091 = vmatprep.subr.mxu0 0.0
    %1092 = vmatpush1.xpose.msra.mxu0 %v1057
    %1093 = vmatprep.subr.mxu0 0.0
    %1094 = vmatpush2.xpose.msra.mxu0 0.0
    %1095 = vmatprep.subr.mxu0 0.0
    %1096 = vmatpush2.xpose.msra.mxu0 0.0
    %1097 = vmatprep.subr.mxu0 0.0
    %1098 = vmatpush2.xpose.msra.mxu0 0.0
    %1099 = vmatprep.subr.mxu0 0.0
    %1100 = vmatpush2.xpose.msra.mxu0 0.0
    %1101 = vmatprep.subr.mxu0 0.0
    %1102 = vmatpush2.xpose.msra.mxu0 0.0
    %1103 = vmatprep.subr.mxu0 0.0
    %1104 = vmatpush2.xpose.msra.mxu0 0.0
    %1105 = vmatprep.subr.mxu0 0.0
    %1106 = vmatpush2.xpose.msra.mxu0 0.0
    %1107 = vmatprep.subr.mxu0 0.0
    %1108 = vmatpush2.xpose.msra.mxu0 0.0
    %1109 = vmatprep.subr.mxu0 0.0
    %1110 = vmatpush2.xpose.msra.mxu0 0.0
    %1111 = vmatprep.subr.mxu0 0.0
    %1112 = vmatpush2.xpose.msra.mxu0 0.0
    %1113 = vmatprep.subr.mxu0 0.0
    %1114 = vmatpush2.xpose.msra.mxu0 0.0
    %1115 = vmatprep.subr.mxu0 0.0
    %1116 = vmatpush2.xpose.msra.mxu0 0.0
    %1117 = vmatprep.subr.mxu0 0.0
    %1118 = vmatpush2.xpose.msra.mxu0 0.0
    %1119 = vmatprep.subr.mxu0 0.0
    %1120 = vmatpush2.xpose.msra.mxu0 0.0
    %1121 = vmatprep.subr.mxu0 0.0
    %1122 = vmatpush2.xpose.msra.mxu0 0.0
    %1123 = vmatprep.subr.mxu0 0.0
    %1124 = vmatpush2.xpose.msra.mxu0 0.0
    %1125 = vmatprep.mubr.f32.mxu0 0.0
    %1126 = vmatmul.mubr.f32.gmra.mxu0 %v1053
    %v1127 = vpop.f32.mrf.mxu0
    %v1128 = vadd.f32 0.0, %v1127
    %v1129 = vpop.f32.mrf.mxu0
    %1130 = vmatprep.mubr.f32.mxu0 0.0
    %1131 = vmatmul.mubr.f32.gmra.mxu0 %v1055
    %v1132 = vpop.f32.mrf.mxu0
    %v1133 = vadd.f32 0.0, %v1132
    %v1134 = vpop.f32.mrf.mxu0
    %1135 = vdwg.mxu0
    %1136 = vst.msk [vmem:[#allocation2 + $0x70] sm:$0xff] %vm484, %v1128
    %1137 = vst.msk [vmem:[#allocation2 + $0x78] sm:$0xff] %vm484, %v1133
    %v1138 = vld [vmem:[#allocation2] sm:$0xff]
    %v1139 = vld [vmem:[#allocation2 + $0x8] sm:$0xff]
    %v1140 = vld [vmem:[#allocation2 + $0x10] sm:$0xff]
    %v1141 = vld [vmem:[#allocation2 + $0x18] sm:$0xff]
    %v1142 = vld [vmem:[#allocation2 + $0x20] sm:$0xff]
    %v1143 = vld [vmem:[#allocation2 + $0x28] sm:$0xff]
    %v1144 = vld [vmem:[#allocation2 + $0x30] sm:$0xff]
    %v1145 = vld [vmem:[#allocation2 + $0x38] sm:$0xff]
    %v1146 = vld [vmem:[#allocation2 + $0x40] sm:$0xff]
    %v1147 = vld [vmem:[#allocation2 + $0x48] sm:$0xff]
    %v1148 = vld [vmem:[#allocation2 + $0x50] sm:$0xff]
    %v1149 = vld [vmem:[#allocation2 + $0x58] sm:$0xff]
    %v1150 = vld [vmem:[#allocation2 + $0x60] sm:$0xff]
    %v1151 = vld [vmem:[#allocation2 + $0x68] sm:$0xff]
    %v1152 = vld [vmem:[#allocation2 + $0x70] sm:$0xff]
    %v1153 = vld [vmem:[#allocation2 + $0x78] sm:$0xff]
    %v1154 = vadd.f32 %v1138, %v114
    %v1155 = vadd.f32 %v1139, %v115
    %v1156 = vadd.f32 %v1140, %v116
    %v1157 = vadd.f32 %v1141, %v117
    %v1158 = vadd.f32 %v1142, %v118
    %v1159 = vadd.f32 %v1143, %v119
    %v1160 = vadd.f32 %v1144, %v120
    %v1161 = vadd.f32 %v1145, %v121
    %v1162 = vadd.f32 %v1146, %v122
    %v1163 = vadd.f32 %v1147, %v123
    %v1164 = vadd.f32 %v1148, %v124
    %v1165 = vadd.f32 %v1149, %v125
    %v1166 = vadd.f32 %v1150, %v126
    %v1167 = vadd.f32 %v1151, %v127
    %v1168 = vadd.f32 %v1152, %v128
    %v1169 = vadd.f32 %v1153, %v129
    %v1170 = vsel %vm484, %v1154, -inf
    %1171 = vmax.xlane.f32.xlu0 %v1170
    %v1172 = vpop.xlane.xlu0 %1171
    %v1173 = vsel %vm484, %v1155, -inf
    %1174 = vmax.xlane.f32.xlu0 %v1173
    %v1175 = vpop.xlane.xlu0 %1174
    %v1176 = vsel %vm484, %v1156, -inf
    %1177 = vmax.xlane.f32.xlu0 %v1176
    %v1178 = vpop.xlane.xlu0 %1177
    %v1179 = vsel %vm484, %v1157, -inf
    %1180 = vmax.xlane.f32.xlu0 %v1179
    %v1181 = vpop.xlane.xlu0 %1180
    %v1182 = vsel %vm484, %v1158, -inf
    %1183 = vmax.xlane.f32.xlu0 %v1182
    %v1184 = vpop.xlane.xlu0 %1183
    %v1185 = vsel %vm484, %v1159, -inf
    %1186 = vmax.xlane.f32.xlu0 %v1185
    %v1187 = vpop.xlane.xlu0 %1186
    %v1188 = vsel %vm484, %v1160, -inf
    %1189 = vmax.xlane.f32.xlu0 %v1188
    %v1190 = vpop.xlane.xlu0 %1189
    %v1191 = vsel %vm484, %v1161, -inf
    %1192 = vmax.xlane.f32.xlu0 %v1191
    %v1193 = vpop.xlane.xlu0 %1192
    %v1194 = vsel %vm484, %v1162, -inf
    %1195 = vmax.xlane.f32.xlu0 %v1194
    %v1196 = vpop.xlane.xlu0 %1195
    %v1197 = vsel %vm484, %v1163, -inf
    %1198 = vmax.xlane.f32.xlu0 %v1197
    %v1199 = vpop.xlane.xlu0 %1198
    %v1200 = vsel %vm484, %v1164, -inf
    %1201 = vmax.xlane.f32.xlu0 %v1200
    %v1202 = vpop.xlane.xlu0 %1201
    %v1203 = vsel %vm484, %v1165, -inf
    %1204 = vmax.xlane.f32.xlu0 %v1203
    %v1205 = vpop.xlane.xlu0 %1204
    %v1206 = vsel %vm484, %v1166, -inf
    %1207 = vmax.xlane.f32.xlu0 %v1206
    %v1208 = vpop.xlane.xlu0 %1207
    %v1209 = vsel %vm484, %v1167, -inf
    %1210 = vmax.xlane.f32.xlu0 %v1209
    %v1211 = vpop.xlane.xlu0 %1210
    %v1212 = vsel %vm484, %v1168, -inf
    %1213 = vmax.xlane.f32.xlu0 %v1212
    %v1214 = vpop.xlane.xlu0 %1213
    %v1215 = vsel %vm484, %v1169, -inf
    %1216 = vmax.xlane.f32.xlu0 %v1215
    %v1217 = vpop.xlane.xlu0 %1216
    %v1218 = vsub.f32 %v1154, %v1172
    %v1219 = vsub.f32 %v1155, %v1175
    %v1220 = vsub.f32 %v1156, %v1178
    %v1221 = vsub.f32 %v1157, %v1181
    %v1222 = vsub.f32 %v1158, %v1184
    %v1223 = vsub.f32 %v1159, %v1187
    %v1224 = vsub.f32 %v1160, %v1190
    %v1225 = vsub.f32 %v1161, %v1193
    %v1226 = vsub.f32 %v1162, %v1196
    %v1227 = vsub.f32 %v1163, %v1199
    %v1228 = vsub.f32 %v1164, %v1202
    %v1229 = vsub.f32 %v1165, %v1205
    %v1230 = vsub.f32 %v1166, %v1208
    %v1231 = vsub.f32 %v1167, %v1211
    %v1232 = vsub.f32 %v1168, %v1214
    %v1233 = vsub.f32 %v1169, %v1217
    %v1234 = vmul.f32 %v1218, 1.442695
    %v1235 = vpow.pop %v1234
    %v1236 = vmul.f32 %v1219, 1.442695
    %v1237 = vpow.pop %v1236
    %v1238 = vmul.f32 %v1220, 1.442695
    %v1239 = vpow.pop %v1238
    %v1240 = vmul.f32 %v1221, 1.442695
    %v1241 = vpow.pop %v1240
    %v1242 = vmul.f32 %v1222, 1.442695
    %v1243 = vpow.pop %v1242
    %v1244 = vmul.f32 %v1223, 1.442695
    %v1245 = vpow.pop %v1244
    %v1246 = vmul.f32 %v1224, 1.442695
    %v1247 = vpow.pop %v1246
    %v1248 = vmul.f32 %v1225, 1.442695
    %v1249 = vpow.pop %v1248
    %v1250 = vmul.f32 %v1226, 1.442695
    %v1251 = vpow.pop %v1250
    %v1252 = vmul.f32 %v1227, 1.442695
    %v1253 = vpow.pop %v1252
    %v1254 = vmul.f32 %v1228, 1.442695
    %v1255 = vpow.pop %v1254
    %v1256 = vmul.f32 %v1229, 1.442695
    %v1257 = vpow.pop %v1256
    %v1258 = vmul.f32 %v1230, 1.442695
    %v1259 = vpow.pop %v1258
    %v1260 = vmul.f32 %v1231, 1.442695
    %v1261 = vpow.pop %v1260
    %v1262 = vmul.f32 %v1232, 1.442695
    %v1263 = vpow.pop %v1262
    %v1264 = vmul.f32 %v1233, 1.442695
    %v1265 = vpow.pop %v1264
    %v1266 = vsel %vm484, %v1235, 0.0
    %1267 = vadd.xlane.f32.xlu0 %v1266
    %v1268 = vpop.xlane.xlu0 %1267
    %v1269 = vsel %vm484, %v1237, 0.0
    %1270 = vadd.xlane.f32.xlu0 %v1269
    %v1271 = vpop.xlane.xlu0 %1270
    %v1272 = vsel %vm484, %v1239, 0.0
    %1273 = vadd.xlane.f32.xlu0 %v1272
    %v1274 = vpop.xlane.xlu0 %1273
    %v1275 = vsel %vm484, %v1241, 0.0
    %1276 = vadd.xlane.f32.xlu0 %v1275
    %v1277 = vpop.xlane.xlu0 %1276
    %v1278 = vsel %vm484, %v1243, 0.0
    %1279 = vadd.xlane.f32.xlu0 %v1278
    %v1280 = vpop.xlane.xlu0 %1279
    %v1281 = vsel %vm484, %v1245, 0.0
    %1282 = vadd.xlane.f32.xlu0 %v1281
    %v1283 = vpop.xlane.xlu0 %1282
    %v1284 = vsel %vm484, %v1247, 0.0
    %1285 = vadd.xlane.f32.xlu0 %v1284
    %v1286 = vpop.xlane.xlu0 %1285
    %v1287 = vsel %vm484, %v1249, 0.0
    %1288 = vadd.xlane.f32.xlu0 %v1287
    %v1289 = vpop.xlane.xlu0 %1288
    %v1290 = vsel %vm484, %v1251, 0.0
    %1291 = vadd.xlane.f32.xlu0 %v1290
    %v1292 = vpop.xlane.xlu0 %1291
    %v1293 = vsel %vm484, %v1253, 0.0
    %1294 = vadd.xlane.f32.xlu0 %v1293
    %v1295 = vpop.xlane.xlu0 %1294
    %v1296 = vsel %vm484, %v1255, 0.0
    %1297 = vadd.xlane.f32.xlu0 %v1296
    %v1298 = vpop.xlane.xlu0 %1297
    %v1299 = vsel %vm484, %v1257, 0.0
    %1300 = vadd.xlane.f32.xlu0 %v1299
    %v1301 = vpop.xlane.xlu0 %1300
    %v1302 = vsel %vm484, %v1259, 0.0
    %1303 = vadd.xlane.f32.xlu0 %v1302
    %v1304 = vpop.xlane.xlu0 %1303
    %v1305 = vsel %vm484, %v1261, 0.0
    %1306 = vadd.xlane.f32.xlu0 %v1305
    %v1307 = vpop.xlane.xlu0 %1306
    %v1308 = vsel %vm484, %v1263, 0.0
    %1309 = vadd.xlane.f32.xlu0 %v1308
    %v1310 = vpop.xlane.xlu0 %1309
    %v1311 = vsel %vm484, %v1265, 0.0
    %1312 = vadd.xlane.f32.xlu0 %v1311
    %v1313 = vpop.xlane.xlu0 %1312
    %v1314 = vrcp.pop %v1268
    %v1315 = vrcp.pop %v1271
    %v1316 = vrcp.pop %v1274
    %v1317 = vrcp.pop %v1277
    %v1318 = vrcp.pop %v1280
    %v1319 = vrcp.pop %v1283
    %v1320 = vrcp.pop %v1286
    %v1321 = vrcp.pop %v1289
    %v1322 = vrcp.pop %v1292
    %v1323 = vrcp.pop %v1295
    %v1324 = vrcp.pop %v1298
    %v1325 = vrcp.pop %v1301
    %v1326 = vrcp.pop %v1304
    %v1327 = vrcp.pop %v1307
    %v1328 = vrcp.pop %v1310
    %v1329 = vrcp.pop %v1313
    %v1330 = vmul.f32 %v1235, %v1314
    %v1331 = vmul.f32 %v1237, %v1315
    %v1332 = vmul.f32 %v1239, %v1316
    %v1333 = vmul.f32 %v1241, %v1317
    %v1334 = vmul.f32 %v1243, %v1318
    %v1335 = vmul.f32 %v1245, %v1319
    %v1336 = vmul.f32 %v1247, %v1320
    %v1337 = vmul.f32 %v1249, %v1321
    %v1338 = vmul.f32 %v1251, %v1322
    %v1339 = vmul.f32 %v1253, %v1323
    %v1340 = vmul.f32 %v1255, %v1324
    %v1341 = vmul.f32 %v1257, %v1325
    %v1342 = vmul.f32 %v1259, %v1326
    %v1343 = vmul.f32 %v1261, %v1327
    %v1344 = vmul.f32 %v1263, %v1328
    %v1345 = vmul.f32 %v1265, %v1329
    %v1347 = vsel %vm484, %v1330, 0
    %v1350 = vsel %vm484, %v1331, 0
    %1352 = vmatprep.subr.mxu0 0.0
    %1353 = vmatpush1.msra.mxu0 0.0
    %1354 = vmatprep.subr.mxu0 0.0
    %1355 = vmatpush1.msra.mxu0 0.0
    %1356 = vmatprep.subr.mxu0 0.0
    %1357 = vmatpush1.msra.mxu0 0.0
    %1358 = vmatprep.subr.mxu0 0.0
    %1359 = vmatpush1.msra.mxu0 0.0
    %1360 = vmatprep.subr.mxu0 0.0
    %1361 = vmatpush1.msra.mxu0 0.0
    %1362 = vmatprep.subr.mxu0 0.0
    %1363 = vmatpush1.msra.mxu0 0.0
    %1364 = vmatprep.subr.mxu0 0.0
    %1365 = vmatpush1.msra.mxu0 0.0
    %1366 = vmatprep.subr.mxu0 0.0
    %1367 = vmatpush1.msra.mxu0 0.0
    %1368 = vmatprep.subr.mxu0 0.0
    %1369 = vmatpush1.msra.mxu0 0.0
    %1370 = vmatprep.subr.mxu0 0.0
    %1371 = vmatpush1.msra.mxu0 0.0
    %1372 = vmatprep.subr.mxu0 0.0
    %1373 = vmatpush1.msra.mxu0 0.0
    %1374 = vmatprep.subr.mxu0 0.0
    %1375 = vmatpush1.msra.mxu0 0.0
    %1376 = vmatprep.subr.mxu0 0.0
    %1377 = vmatpush1.msra.mxu0 0.0
    %1378 = vmatprep.subr.mxu0 0.0
    %1379 = vmatpush1.msra.mxu0 0.0
    %1380 = vmatprep.subr.mxu0 0.0
    %1381 = vmatpush1.msra.mxu0 %v393
    %1382 = vmatprep.subr.mxu0 0.0
    %1383 = vmatpush1.msra.mxu0 %v388
    %1384 = vmatprep.subr.mxu0 0.0
    %1385 = vmatpush2.msra.mxu0 0.0
    %1386 = vmatprep.subr.mxu0 0.0
    %1387 = vmatpush2.msra.mxu0 0.0
    %1388 = vmatprep.subr.mxu0 0.0
    %1389 = vmatpush2.msra.mxu0 0.0
    %1390 = vmatprep.subr.mxu0 0.0
    %1391 = vmatpush2.msra.mxu0 0.0
    %1392 = vmatprep.subr.mxu0 0.0
    %1393 = vmatpush2.msra.mxu0 0.0
    %1394 = vmatprep.subr.mxu0 0.0
    %1395 = vmatpush2.msra.mxu0 0.0
    %1396 = vmatprep.subr.mxu0 0.0
    %1397 = vmatpush2.msra.mxu0 0.0
    %1398 = vmatprep.subr.mxu0 0.0
    %1399 = vmatpush2.msra.mxu0 0.0
    %1400 = vmatprep.subr.mxu0 0.0
    %1401 = vmatpush2.msra.mxu0 0.0
    %1402 = vmatprep.subr.mxu0 0.0
    %1403 = vmatpush2.msra.mxu0 0.0
    %1404 = vmatprep.subr.mxu0 0.0
    %1405 = vmatpush2.msra.mxu0 0.0
    %1406 = vmatprep.subr.mxu0 0.0
    %1407 = vmatpush2.msra.mxu0 0.0
    %1408 = vmatprep.subr.mxu0 0.0
    %1409 = vmatpush2.msra.mxu0 0.0
    %1410 = vmatprep.subr.mxu0 0.0
    %1411 = vmatpush2.msra.mxu0 0.0
    %1412 = vmatprep.subr.mxu0 0.0
    %1413 = vmatpush2.msra.mxu0 0.0
    %1414 = vmatprep.subr.mxu0 0.0
    %1415 = vmatpush2.msra.mxu0 0.0
    %1416 = vmatprep.mubr.f32.mxu0 0.0
    %1417 = vmatmul.mubr.f32.gmra.mxu0 %v1347
    %v1418 = vpop.f32.mrf.mxu0
    %v1419 = vadd.f32 0.0, %v1418
    %v1420 = vpop.f32.mrf.mxu0
    %1421 = vmatprep.mubr.f32.mxu0 0.0
    %1422 = vmatmul.mubr.f32.gmra.mxu0 %v1350
    %v1423 = vpop.f32.mrf.mxu0
    %v1424 = vadd.f32 0.0, %v1423
    %v1425 = vpop.f32.mrf.mxu0
    %1426 = vdwg.mxu0
    %1427 = vst.msk [vmem:[#allocation3] sm:$0xff] %vm396, %v1419
    %1428 = vst.msk [vmem:[#allocation3 + $0x8] sm:$0xff] %vm396, %v1424
    %1431 = vrot.lane.b32.xlu0 %v388, 120
    %v1432 = vpop.permute.xlu0 %1431
    %1433 = vrot.lane.b32.xlu0 %v393, 120
    %v1434 = vpop.permute.xlu0 %1433
    %v1438 = vsel %vm484, %v1332, 0
    %v1441 = vsel %vm484, %v1333, 0
    %1443 = vmatprep.subr.mxu0 0.0
    %1444 = vmatpush1.msra.mxu0 0.0
    %1445 = vmatprep.subr.mxu0 0.0
    %1446 = vmatpush1.msra.mxu0 0.0
    %1447 = vmatprep.subr.mxu0 0.0
    %1448 = vmatpush1.msra.mxu0 0.0
    %1449 = vmatprep.subr.mxu0 0.0
    %1450 = vmatpush1.msra.mxu0 0.0
    %1451 = vmatprep.subr.mxu0 0.0
    %1452 = vmatpush1.msra.mxu0 0.0
    %1453 = vmatprep.subr.mxu0 0.0
    %1454 = vmatpush1.msra.mxu0 0.0
    %1455 = vmatprep.subr.mxu0 0.0
    %1456 = vmatpush1.msra.mxu0 0.0
    %1457 = vmatprep.subr.mxu0 0.0
    %1458 = vmatpush1.msra.mxu0 0.0
    %1459 = vmatprep.subr.mxu0 0.0
    %1460 = vmatpush1.msra.mxu0 0.0
    %1461 = vmatprep.subr.mxu0 0.0
    %1462 = vmatpush1.msra.mxu0 0.0
    %1463 = vmatprep.subr.mxu0 0.0
    %1464 = vmatpush1.msra.mxu0 0.0
    %1465 = vmatprep.subr.mxu0 0.0
    %1466 = vmatpush1.msra.mxu0 0.0
    %1467 = vmatprep.subr.mxu0 0.0
    %1468 = vmatpush1.msra.mxu0 0.0
    %1469 = vmatprep.subr.mxu0 0.0
    %1470 = vmatpush1.msra.mxu0 0.0
    %1471 = vmatprep.subr.mxu0 0.0
    %1472 = vmatpush1.msra.mxu0 %v1434
    %1473 = vmatprep.subr.mxu0 0.0
    %1474 = vmatpush1.msra.mxu0 %v1432
    %1475 = vmatprep.subr.mxu0 0.0
    %1476 = vmatpush2.msra.mxu0 0.0
    %1477 = vmatprep.subr.mxu0 0.0
    %1478 = vmatpush2.msra.mxu0 0.0
    %1479 = vmatprep.subr.mxu0 0.0
    %1480 = vmatpush2.msra.mxu0 0.0
    %1481 = vmatprep.subr.mxu0 0.0
    %1482 = vmatpush2.msra.mxu0 0.0
    %1483 = vmatprep.subr.mxu0 0.0
    %1484 = vmatpush2.msra.mxu0 0.0
    %1485 = vmatprep.subr.mxu0 0.0
    %1486 = vmatpush2.msra.mxu0 0.0
    %1487 = vmatprep.subr.mxu0 0.0
    %1488 = vmatpush2.msra.mxu0 0.0
    %1489 = vmatprep.subr.mxu0 0.0
    %1490 = vmatpush2.msra.mxu0 0.0
    %1491 = vmatprep.subr.mxu0 0.0
    %1492 = vmatpush2.msra.mxu0 0.0
    %1493 = vmatprep.subr.mxu0 0.0
    %1494 = vmatpush2.msra.mxu0 0.0
    %1495 = vmatprep.subr.mxu0 0.0
    %1496 = vmatpush2.msra.mxu0 0.0
    %1497 = vmatprep.subr.mxu0 0.0
    %1498 = vmatpush2.msra.mxu0 0.0
    %1499 = vmatprep.subr.mxu0 0.0
    %1500 = vmatpush2.msra.mxu0 0.0
    %1501 = vmatprep.subr.mxu0 0.0
    %1502 = vmatpush2.msra.mxu0 0.0
    %1503 = vmatprep.subr.mxu0 0.0
    %1504 = vmatpush2.msra.mxu0 0.0
    %1505 = vmatprep.subr.mxu0 0.0
    %1506 = vmatpush2.msra.mxu0 0.0
    %1507 = vmatprep.mubr.f32.mxu0 0.0
    %1508 = vmatmul.mubr.f32.gmra.mxu0 %v1438
    %v1509 = vpop.f32.mrf.mxu0
    %v1510 = vadd.f32 0.0, %v1509
    %v1511 = vpop.f32.mrf.mxu0
    %1512 = vmatprep.mubr.f32.mxu0 0.0
    %1513 = vmatmul.mubr.f32.gmra.mxu0 %v1441
    %v1514 = vpop.f32.mrf.mxu0
    %v1515 = vadd.f32 0.0, %v1514
    %v1516 = vpop.f32.mrf.mxu0
    %1517 = vdwg.mxu0
    %1520 = vrot.lane.b32.xlu0 %v1510, 8
    %v1521 = vpop.permute.xlu0 %1520
    %1522 = vrot.lane.b32.xlu0 %v1515, 8
    %v1523 = vpop.permute.xlu0 %1522
    %vm1526 = vcmask 130112
    %1527 = vst.msk [vmem:[#allocation3] sm:$0xff] %vm1526, %v1521
    %1528 = vst.msk [vmem:[#allocation3 + $0x8] sm:$0xff] %vm1526, %v1523
    %1529 = vrot.lane.b32.xlu0 %v388, 112
    %v1530 = vpop.permute.xlu0 %1529
    %1531 = vrot.lane.b32.xlu0 %v393, 112
    %v1532 = vpop.permute.xlu0 %1531
    %v1536 = vsel %vm484, %v1334, 0
    %v1539 = vsel %vm484, %v1335, 0
    %1541 = vmatprep.subr.mxu0 0.0
    %1542 = vmatpush1.msra.mxu0 0.0
    %1543 = vmatprep.subr.mxu0 0.0
    %1544 = vmatpush1.msra.mxu0 0.0
    %1545 = vmatprep.subr.mxu0 0.0
    %1546 = vmatpush1.msra.mxu0 0.0
    %1547 = vmatprep.subr.mxu0 0.0
    %1548 = vmatpush1.msra.mxu0 0.0
    %1549 = vmatprep.subr.mxu0 0.0
    %1550 = vmatpush1.msra.mxu0 0.0
    %1551 = vmatprep.subr.mxu0 0.0
    %1552 = vmatpush1.msra.mxu0 0.0
    %1553 = vmatprep.subr.mxu0 0.0
    %1554 = vmatpush1.msra.mxu0 0.0
    %1555 = vmatprep.subr.mxu0 0.0
    %1556 = vmatpush1.msra.mxu0 0.0
    %1557 = vmatprep.subr.mxu0 0.0
    %1558 = vmatpush1.msra.mxu0 0.0
    %1559 = vmatprep.subr.mxu0 0.0
    %1560 = vmatpush1.msra.mxu0 0.0
    %1561 = vmatprep.subr.mxu0 0.0
    %1562 = vmatpush1.msra.mxu0 0.0
    %1563 = vmatprep.subr.mxu0 0.0
    %1564 = vmatpush1.msra.mxu0 0.0
    %1565 = vmatprep.subr.mxu0 0.0
    %1566 = vmatpush1.msra.mxu0 0.0
    %1567 = vmatprep.subr.mxu0 0.0
    %1568 = vmatpush1.msra.mxu0 0.0
    %1569 = vmatprep.subr.mxu0 0.0
    %1570 = vmatpush1.msra.mxu0 %v1532
    %1571 = vmatprep.subr.mxu0 0.0
    %1572 = vmatpush1.msra.mxu0 %v1530
    %1573 = vmatprep.subr.mxu0 0.0
    %1574 = vmatpush2.msra.mxu0 0.0
    %1575 = vmatprep.subr.mxu0 0.0
    %1576 = vmatpush2.msra.mxu0 0.0
    %1577 = vmatprep.subr.mxu0 0.0
    %1578 = vmatpush2.msra.mxu0 0.0
    %1579 = vmatprep.subr.mxu0 0.0
    %1580 = vmatpush2.msra.mxu0 0.0
    %1581 = vmatprep.subr.mxu0 0.0
    %1582 = vmatpush2.msra.mxu0 0.0
    %1583 = vmatprep.subr.mxu0 0.0
    %1584 = vmatpush2.msra.mxu0 0.0
    %1585 = vmatprep.subr.mxu0 0.0
    %1586 = vmatpush2.msra.mxu0 0.0
    %1587 = vmatprep.subr.mxu0 0.0
    %1588 = vmatpush2.msra.mxu0 0.0
    %1589 = vmatprep.subr.mxu0 0.0
    %1590 = vmatpush2.msra.mxu0 0.0
    %1591 = vmatprep.subr.mxu0 0.0
    %1592 = vmatpush2.msra.mxu0 0.0
    %1593 = vmatprep.subr.mxu0 0.0
    %1594 = vmatpush2.msra.mxu0 0.0
    %1595 = vmatprep.subr.mxu0 0.0
    %1596 = vmatpush2.msra.mxu0 0.0
    %1597 = vmatprep.subr.mxu0 0.0
    %1598 = vmatpush2.msra.mxu0 0.0
    %1599 = vmatprep.subr.mxu0 0.0
    %1600 = vmatpush2.msra.mxu0 0.0
    %1601 = vmatprep.subr.mxu0 0.0
    %1602 = vmatpush2.msra.mxu0 0.0
    %1603 = vmatprep.subr.mxu0 0.0
    %1604 = vmatpush2.msra.mxu0 0.0
    %1605 = vmatprep.mubr.f32.mxu0 0.0
    %1606 = vmatmul.mubr.f32.gmra.mxu0 %v1536
    %v1607 = vpop.f32.mrf.mxu0
    %v1608 = vadd.f32 0.0, %v1607
    %v1609 = vpop.f32.mrf.mxu0
    %1610 = vmatprep.mubr.f32.mxu0 0.0
    %1611 = vmatmul.mubr.f32.gmra.mxu0 %v1539
    %v1612 = vpop.f32.mrf.mxu0
    %v1613 = vadd.f32 0.0, %v1612
    %v1614 = vpop.f32.mrf.mxu0
    %1615 = vdwg.mxu0
    %1618 = vrot.lane.b32.xlu0 %v1608, 16
    %v1619 = vpop.permute.xlu0 %1618
    %1620 = vrot.lane.b32.xlu0 %v1613, 16
    %v1621 = vpop.permute.xlu0 %1620
    %vm1624 = vcmask 195712
    %1625 = vst.msk [vmem:[#allocation3] sm:$0xff] %vm1624, %v1619
    %1626 = vst.msk [vmem:[#allocation3 + $0x8] sm:$0xff] %vm1624, %v1621
    %1627 = vrot.lane.b32.xlu0 %v388, 104
    %v1628 = vpop.permute.xlu0 %1627
    %1629 = vrot.lane.b32.xlu0 %v393, 104
    %v1630 = vpop.permute.xlu0 %1629
    %v1634 = vsel %vm484, %v1336, 0
    %v1637 = vsel %vm484, %v1337, 0
    %1639 = vmatprep.subr.mxu0 0.0
    %1640 = vmatpush1.msra.mxu0 0.0
    %1641 = vmatprep.subr.mxu0 0.0
    %1642 = vmatpush1.msra.mxu0 0.0
    %1643 = vmatprep.subr.mxu0 0.0
    %1644 = vmatpush1.msra.mxu0 0.0
    %1645 = vmatprep.subr.mxu0 0.0
    %1646 = vmatpush1.msra.mxu0 0.0
    %1647 = vmatprep.subr.mxu0 0.0
    %1648 = vmatpush1.msra.mxu0 0.0
    %1649 = vmatprep.subr.mxu0 0.0
    %1650 = vmatpush1.msra.mxu0 0.0
    %1651 = vmatprep.subr.mxu0 0.0
    %1652 = vmatpush1.msra.mxu0 0.0
    %1653 = vmatprep.subr.mxu0 0.0
    %1654 = vmatpush1.msra.mxu0 0.0
    %1655 = vmatprep.subr.mxu0 0.0
    %1656 = vmatpush1.msra.mxu0 0.0
    %1657 = vmatprep.subr.mxu0 0.0
    %1658 = vmatpush1.msra.mxu0 0.0
    %1659 = vmatprep.subr.mxu0 0.0
    %1660 = vmatpush1.msra.mxu0 0.0
    %1661 = vmatprep.subr.mxu0 0.0
    %1662 = vmatpush1.msra.mxu0 0.0
    %1663 = vmatprep.subr.mxu0 0.0
    %1664 = vmatpush1.msra.mxu0 0.0
    %1665 = vmatprep.subr.mxu0 0.0
    %1666 = vmatpush1.msra.mxu0 0.0
    %1667 = vmatprep.subr.mxu0 0.0
    %1668 = vmatpush1.msra.mxu0 %v1630
    %1669 = vmatprep.subr.mxu0 0.0
    %1670 = vmatpush1.msra.mxu0 %v1628
    %1671 = vmatprep.subr.mxu0 0.0
    %1672 = vmatpush2.msra.mxu0 0.0
    %1673 = vmatprep.subr.mxu0 0.0
    %1674 = vmatpush2.msra.mxu0 0.0
    %1675 = vmatprep.subr.mxu0 0.0
    %1676 = vmatpush2.msra.mxu0 0.0
    %1677 = vmatprep.subr.mxu0 0.0
    %1678 = vmatpush2.msra.mxu0 0.0
    %1679 = vmatprep.subr.mxu0 0.0
    %1680 = vmatpush2.msra.mxu0 0.0
    %1681 = vmatprep.subr.mxu0 0.0
    %1682 = vmatpush2.msra.mxu0 0.0
    %1683 = vmatprep.subr.mxu0 0.0
    %1684 = vmatpush2.msra.mxu0 0.0
    %1685 = vmatprep.subr.mxu0 0.0
    %1686 = vmatpush2.msra.mxu0 0.0
    %1687 = vmatprep.subr.mxu0 0.0
    %1688 = vmatpush2.msra.mxu0 0.0
    %1689 = vmatprep.subr.mxu0 0.0
    %1690 = vmatpush2.msra.mxu0 0.0
    %1691 = vmatprep.subr.mxu0 0.0
    %1692 = vmatpush2.msra.mxu0 0.0
    %1693 = vmatprep.subr.mxu0 0.0
    %1694 = vmatpush2.msra.mxu0 0.0
    %1695 = vmatprep.subr.mxu0 0.0
    %1696 = vmatpush2.msra.mxu0 0.0
    %1697 = vmatprep.subr.mxu0 0.0
    %1698 = vmatpush2.msra.mxu0 0.0
    %1699 = vmatprep.subr.mxu0 0.0
    %1700 = vmatpush2.msra.mxu0 0.0
    %1701 = vmatprep.subr.mxu0 0.0
    %1702 = vmatpush2.msra.mxu0 0.0
    %1703 = vmatprep.mubr.f32.mxu0 0.0
    %1704 = vmatmul.mubr.f32.gmra.mxu0 %v1634
    %v1705 = vpop.f32.mrf.mxu0
    %v1706 = vadd.f32 0.0, %v1705
    %v1707 = vpop.f32.mrf.mxu0
    %1708 = vmatprep.mubr.f32.mxu0 0.0
    %1709 = vmatmul.mubr.f32.gmra.mxu0 %v1637
    %v1710 = vpop.f32.mrf.mxu0
    %v1711 = vadd.f32 0.0, %v1710
    %v1712 = vpop.f32.mrf.mxu0
    %1713 = vdwg.mxu0
    %1716 = vrot.lane.b32.xlu0 %v1706, 24
    %v1717 = vpop.permute.xlu0 %1716
    %1718 = vrot.lane.b32.xlu0 %v1711, 24
    %v1719 = vpop.permute.xlu0 %1718
    %vm1722 = vcmask 261312
    %1723 = vst.msk [vmem:[#allocation3] sm:$0xff] %vm1722, %v1717
    %1724 = vst.msk [vmem:[#allocation3 + $0x8] sm:$0xff] %vm1722, %v1719
    %1725 = vrot.lane.b32.xlu0 %v388, 96
    %v1726 = vpop.permute.xlu0 %1725
    %1727 = vrot.lane.b32.xlu0 %v393, 96
    %v1728 = vpop.permute.xlu0 %1727
    %v1732 = vsel %vm484, %v1338, 0
    %v1735 = vsel %vm484, %v1339, 0
    %1737 = vmatprep.subr.mxu0 0.0
    %1738 = vmatpush1.msra.mxu0 0.0
    %1739 = vmatprep.subr.mxu0 0.0
    %1740 = vmatpush1.msra.mxu0 0.0
    %1741 = vmatprep.subr.mxu0 0.0
    %1742 = vmatpush1.msra.mxu0 0.0
    %1743 = vmatprep.subr.mxu0 0.0
    %1744 = vmatpush1.msra.mxu0 0.0
    %1745 = vmatprep.subr.mxu0 0.0
    %1746 = vmatpush1.msra.mxu0 0.0
    %1747 = vmatprep.subr.mxu0 0.0
    %1748 = vmatpush1.msra.mxu0 0.0
    %1749 = vmatprep.subr.mxu0 0.0
    %1750 = vmatpush1.msra.mxu0 0.0
    %1751 = vmatprep.subr.mxu0 0.0
    %1752 = vmatpush1.msra.mxu0 0.0
    %1753 = vmatprep.subr.mxu0 0.0
    %1754 = vmatpush1.msra.mxu0 0.0
    %1755 = vmatprep.subr.mxu0 0.0
    %1756 = vmatpush1.msra.mxu0 0.0
    %1757 = vmatprep.subr.mxu0 0.0
    %1758 = vmatpush1.msra.mxu0 0.0
    %1759 = vmatprep.subr.mxu0 0.0
    %1760 = vmatpush1.msra.mxu0 0.0
    %1761 = vmatprep.subr.mxu0 0.0
    %1762 = vmatpush1.msra.mxu0 0.0
    %1763 = vmatprep.subr.mxu0 0.0
    %1764 = vmatpush1.msra.mxu0 0.0
    %1765 = vmatprep.subr.mxu0 0.0
    %1766 = vmatpush1.msra.mxu0 %v1728
    %1767 = vmatprep.subr.mxu0 0.0
    %1768 = vmatpush1.msra.mxu0 %v1726
    %1769 = vmatprep.subr.mxu0 0.0
    %1770 = vmatpush2.msra.mxu0 0.0
    %1771 = vmatprep.subr.mxu0 0.0
    %1772 = vmatpush2.msra.mxu0 0.0
    %1773 = vmatprep.subr.mxu0 0.0
    %1774 = vmatpush2.msra.mxu0 0.0
    %1775 = vmatprep.subr.mxu0 0.0
    %1776 = vmatpush2.msra.mxu0 0.0
    %1777 = vmatprep.subr.mxu0 0.0
    %1778 = vmatpush2.msra.mxu0 0.0
    %1779 = vmatprep.subr.mxu0 0.0
    %1780 = vmatpush2.msra.mxu0 0.0
    %1781 = vmatprep.subr.mxu0 0.0
    %1782 = vmatpush2.msra.mxu0 0.0
    %1783 = vmatprep.subr.mxu0 0.0
    %1784 = vmatpush2.msra.mxu0 0.0
    %1785 = vmatprep.subr.mxu0 0.0
    %1786 = vmatpush2.msra.mxu0 0.0
    %1787 = vmatprep.subr.mxu0 0.0
    %1788 = vmatpush2.msra.mxu0 0.0
    %1789 = vmatprep.subr.mxu0 0.0
    %1790 = vmatpush2.msra.mxu0 0.0
    %1791 = vmatprep.subr.mxu0 0.0
    %1792 = vmatpush2.msra.mxu0 0.0
    %1793 = vmatprep.subr.mxu0 0.0
    %1794 = vmatpush2.msra.mxu0 0.0
    %1795 = vmatprep.subr.mxu0 0.0
    %1796 = vmatpush2.msra.mxu0 0.0
    %1797 = vmatprep.subr.mxu0 0.0
    %1798 = vmatpush2.msra.mxu0 0.0
    %1799 = vmatprep.subr.mxu0 0.0
    %1800 = vmatpush2.msra.mxu0 0.0
    %1801 = vmatprep.mubr.f32.mxu0 0.0
    %1802 = vmatmul.mubr.f32.gmra.mxu0 %v1732
    %v1803 = vpop.f32.mrf.mxu0
    %v1804 = vadd.f32 0.0, %v1803
    %v1805 = vpop.f32.mrf.mxu0
    %1806 = vmatprep.mubr.f32.mxu0 0.0
    %1807 = vmatmul.mubr.f32.gmra.mxu0 %v1735
    %v1808 = vpop.f32.mrf.mxu0
    %v1809 = vadd.f32 0.0, %v1808
    %v1810 = vpop.f32.mrf.mxu0
    %1811 = vdwg.mxu0
    %1814 = vrot.lane.b32.xlu0 %v1804, 32
    %v1815 = vpop.permute.xlu0 %1814
    %1816 = vrot.lane.b32.xlu0 %v1809, 32
    %v1817 = vpop.permute.xlu0 %1816
    %vm1820 = vcmask 326912
    %1821 = vst.msk [vmem:[#allocation3] sm:$0xff] %vm1820, %v1815
    %1822 = vst.msk [vmem:[#allocation3 + $0x8] sm:$0xff] %vm1820, %v1817
    %1823 = vrot.lane.b32.xlu0 %v388, 88
    %v1824 = vpop.permute.xlu0 %1823
    %1825 = vrot.lane.b32.xlu0 %v393, 88
    %v1826 = vpop.permute.xlu0 %1825
    %v1830 = vsel %vm484, %v1340, 0
    %v1833 = vsel %vm484, %v1341, 0
    %1835 = vmatprep.subr.mxu0 0.0
    %1836 = vmatpush1.msra.mxu0 0.0
    %1837 = vmatprep.subr.mxu0 0.0
    %1838 = vmatpush1.msra.mxu0 0.0
    %1839 = vmatprep.subr.mxu0 0.0
    %1840 = vmatpush1.msra.mxu0 0.0
    %1841 = vmatprep.subr.mxu0 0.0
    %1842 = vmatpush1.msra.mxu0 0.0
    %1843 = vmatprep.subr.mxu0 0.0
    %1844 = vmatpush1.msra.mxu0 0.0
    %1845 = vmatprep.subr.mxu0 0.0
    %1846 = vmatpush1.msra.mxu0 0.0
    %1847 = vmatprep.subr.mxu0 0.0
    %1848 = vmatpush1.msra.mxu0 0.0
    %1849 = vmatprep.subr.mxu0 0.0
    %1850 = vmatpush1.msra.mxu0 0.0
    %1851 = vmatprep.subr.mxu0 0.0
    %1852 = vmatpush1.msra.mxu0 0.0
    %1853 = vmatprep.subr.mxu0 0.0
    %1854 = vmatpush1.msra.mxu0 0.0
    %1855 = vmatprep.subr.mxu0 0.0
    %1856 = vmatpush1.msra.mxu0 0.0
    %1857 = vmatprep.subr.mxu0 0.0
    %1858 = vmatpush1.msra.mxu0 0.0
    %1859 = vmatprep.subr.mxu0 0.0
    %1860 = vmatpush1.msra.mxu0 0.0
    %1861 = vmatprep.subr.mxu0 0.0
    %1862 = vmatpush1.msra.mxu0 0.0
    %1863 = vmatprep.subr.mxu0 0.0
    %1864 = vmatpush1.msra.mxu0 %v1826
    %1865 = vmatprep.subr.mxu0 0.0
    %1866 = vmatpush1.msra.mxu0 %v1824
    %1867 = vmatprep.subr.mxu0 0.0
    %1868 = vmatpush2.msra.mxu0 0.0
    %1869 = vmatprep.subr.mxu0 0.0
    %1870 = vmatpush2.msra.mxu0 0.0
    %1871 = vmatprep.subr.mxu0 0.0
    %1872 = vmatpush2.msra.mxu0 0.0
    %1873 = vmatprep.subr.mxu0 0.0
    %1874 = vmatpush2.msra.mxu0 0.0
    %1875 = vmatprep.subr.mxu0 0.0
    %1876 = vmatpush2.msra.mxu0 0.0
    %1877 = vmatprep.subr.mxu0 0.0
    %1878 = vmatpush2.msra.mxu0 0.0
    %1879 = vmatprep.subr.mxu0 0.0
    %1880 = vmatpush2.msra.mxu0 0.0
    %1881 = vmatprep.subr.mxu0 0.0
    %1882 = vmatpush2.msra.mxu0 0.0
    %1883 = vmatprep.subr.mxu0 0.0
    %1884 = vmatpush2.msra.mxu0 0.0
    %1885 = vmatprep.subr.mxu0 0.0
    %1886 = vmatpush2.msra.mxu0 0.0
    %1887 = vmatprep.subr.mxu0 0.0
    %1888 = vmatpush2.msra.mxu0 0.0
    %1889 = vmatprep.subr.mxu0 0.0
    %1890 = vmatpush2.msra.mxu0 0.0
    %1891 = vmatprep.subr.mxu0 0.0
    %1892 = vmatpush2.msra.mxu0 0.0
    %1893 = vmatprep.subr.mxu0 0.0
    %1894 = vmatpush2.msra.mxu0 0.0
    %1895 = vmatprep.subr.mxu0 0.0
    %1896 = vmatpush2.msra.mxu0 0.0
    %1897 = vmatprep.subr.mxu0 0.0
    %1898 = vmatpush2.msra.mxu0 0.0
    %1899 = vmatprep.mubr.f32.mxu0 0.0
    %1900 = vmatmul.mubr.f32.gmra.mxu0 %v1830
    %v1901 = vpop.f32.mrf.mxu0
    %v1902 = vadd.f32 0.0, %v1901
    %v1903 = vpop.f32.mrf.mxu0
    %1904 = vmatprep.mubr.f32.mxu0 0.0
    %1905 = vmatmul.mubr.f32.gmra.mxu0 %v1833
    %v1906 = vpop.f32.mrf.mxu0
    %v1907 = vadd.f32 0.0, %v1906
    %v1908 = vpop.f32.mrf.mxu0
    %1909 = vdwg.mxu0
    %1912 = vrot.lane.b32.xlu0 %v1902, 40
    %v1913 = vpop.permute.xlu0 %1912
    %1914 = vrot.lane.b32.xlu0 %v1907, 40
    %v1915 = vpop.permute.xlu0 %1914
    %vm1918 = vcmask 392512
    %1919 = vst.msk [vmem:[#allocation3] sm:$0xff] %vm1918, %v1913
    %1920 = vst.msk [vmem:[#allocation3 + $0x8] sm:$0xff] %vm1918, %v1915
    %1921 = vrot.lane.b32.xlu0 %v388, 80
    %v1922 = vpop.permute.xlu0 %1921
    %1923 = vrot.lane.b32.xlu0 %v393, 80
    %v1924 = vpop.permute.xlu0 %1923
    %v1928 = vsel %vm484, %v1342, 0
    %v1931 = vsel %vm484, %v1343, 0
    %1933 = vmatprep.subr.mxu0 0.0
    %1934 = vmatpush1.msra.mxu0 0.0
    %1935 = vmatprep.subr.mxu0 0.0
    %1936 = vmatpush1.msra.mxu0 0.0
    %1937 = vmatprep.subr.mxu0 0.0
    %1938 = vmatpush1.msra.mxu0 0.0
    %1939 = vmatprep.subr.mxu0 0.0
    %1940 = vmatpush1.msra.mxu0 0.0
    %1941 = vmatprep.subr.mxu0 0.0
    %1942 = vmatpush1.msra.mxu0 0.0
    %1943 = vmatprep.subr.mxu0 0.0
    %1944 = vmatpush1.msra.mxu0 0.0
    %1945 = vmatprep.subr.mxu0 0.0
    %1946 = vmatpush1.msra.mxu0 0.0
    %1947 = vmatprep.subr.mxu0 0.0
    %1948 = vmatpush1.msra.mxu0 0.0
    %1949 = vmatprep.subr.mxu0 0.0
    %1950 = vmatpush1.msra.mxu0 0.0
    %1951 = vmatprep.subr.mxu0 0.0
    %1952 = vmatpush1.msra.mxu0 0.0
    %1953 = vmatprep.subr.mxu0 0.0
    %1954 = vmatpush1.msra.mxu0 0.0
    %1955 = vmatprep.subr.mxu0 0.0
    %1956 = vmatpush1.msra.mxu0 0.0
    %1957 = vmatprep.subr.mxu0 0.0
    %1958 = vmatpush1.msra.mxu0 0.0
    %1959 = vmatprep.subr.mxu0 0.0
    %1960 = vmatpush1.msra.mxu0 0.0
    %1961 = vmatprep.subr.mxu0 0.0
    %1962 = vmatpush1.msra.mxu0 %v1924
    %1963 = vmatprep.subr.mxu0 0.0
    %1964 = vmatpush1.msra.mxu0 %v1922
    %1965 = vmatprep.subr.mxu0 0.0
    %1966 = vmatpush2.msra.mxu0 0.0
    %1967 = vmatprep.subr.mxu0 0.0
    %1968 = vmatpush2.msra.mxu0 0.0
    %1969 = vmatprep.subr.mxu0 0.0
    %1970 = vmatpush2.msra.mxu0 0.0
    %1971 = vmatprep.subr.mxu0 0.0
    %1972 = vmatpush2.msra.mxu0 0.0
    %1973 = vmatprep.subr.mxu0 0.0
    %1974 = vmatpush2.msra.mxu0 0.0
    %1975 = vmatprep.subr.mxu0 0.0
    %1976 = vmatpush2.msra.mxu0 0.0
    %1977 = vmatprep.subr.mxu0 0.0
    %1978 = vmatpush2.msra.mxu0 0.0
    %1979 = vmatprep.subr.mxu0 0.0
    %1980 = vmatpush2.msra.mxu0 0.0
    %1981 = vmatprep.subr.mxu0 0.0
    %1982 = vmatpush2.msra.mxu0 0.0
    %1983 = vmatprep.subr.mxu0 0.0
    %1984 = vmatpush2.msra.mxu0 0.0
    %1985 = vmatprep.subr.mxu0 0.0
    %1986 = vmatpush2.msra.mxu0 0.0
    %1987 = vmatprep.subr.mxu0 0.0
    %1988 = vmatpush2.msra.mxu0 0.0
    %1989 = vmatprep.subr.mxu0 0.0
    %1990 = vmatpush2.msra.mxu0 0.0
    %1991 = vmatprep.subr.mxu0 0.0
    %1992 = vmatpush2.msra.mxu0 0.0
    %1993 = vmatprep.subr.mxu0 0.0
    %1994 = vmatpush2.msra.mxu0 0.0
    %1995 = vmatprep.subr.mxu0 0.0
    %1996 = vmatpush2.msra.mxu0 0.0
    %1997 = vmatprep.mubr.f32.mxu0 0.0
    %1998 = vmatmul.mubr.f32.gmra.mxu0 %v1928
    %v1999 = vpop.f32.mrf.mxu0
    %v2000 = vadd.f32 0.0, %v1999
    %v2001 = vpop.f32.mrf.mxu0
    %2002 = vmatprep.mubr.f32.mxu0 0.0
    %2003 = vmatmul.mubr.f32.gmra.mxu0 %v1931
    %v2004 = vpop.f32.mrf.mxu0
    %v2005 = vadd.f32 0.0, %v2004
    %v2006 = vpop.f32.mrf.mxu0
    %2007 = vdwg.mxu0
    %2010 = vrot.lane.b32.xlu0 %v2000, 48
    %v2011 = vpop.permute.xlu0 %2010
    %2012 = vrot.lane.b32.xlu0 %v2005, 48
    %v2013 = vpop.permute.xlu0 %2012
    %vm2016 = vcmask 458112
    %2017 = vst.msk [vmem:[#allocation3] sm:$0xff] %vm2016, %v2011
    %2018 = vst.msk [vmem:[#allocation3 + $0x8] sm:$0xff] %vm2016, %v2013
    %2019 = vrot.lane.b32.xlu0 %v388, 72
    %v2020 = vpop.permute.xlu0 %2019
    %2021 = vrot.lane.b32.xlu0 %v393, 72
    %v2022 = vpop.permute.xlu0 %2021
    %v2026 = vsel %vm484, %v1344, 0
    %v2029 = vsel %vm484, %v1345, 0
    %2031 = vmatprep.subr.mxu0 0.0
    %2032 = vmatpush1.msra.mxu0 0.0
    %2033 = vmatprep.subr.mxu0 0.0
    %2034 = vmatpush1.msra.mxu0 0.0
    %2035 = vmatprep.subr.mxu0 0.0
    %2036 = vmatpush1.msra.mxu0 0.0
    %2037 = vmatprep.subr.mxu0 0.0
    %2038 = vmatpush1.msra.mxu0 0.0
    %2039 = vmatprep.subr.mxu0 0.0
    %2040 = vmatpush1.msra.mxu0 0.0
    %2041 = vmatprep.subr.mxu0 0.0
    %2042 = vmatpush1.msra.mxu0 0.0
    %2043 = vmatprep.subr.mxu0 0.0
    %2044 = vmatpush1.msra.mxu0 0.0
    %2045 = vmatprep.subr.mxu0 0.0
    %2046 = vmatpush1.msra.mxu0 0.0
    %2047 = vmatprep.subr.mxu0 0.0
    %2048 = vmatpush1.msra.mxu0 0.0
    %2049 = vmatprep.subr.mxu0 0.0
    %2050 = vmatpush1.msra.mxu0 0.0
    %2051 = vmatprep.subr.mxu0 0.0
    %2052 = vmatpush1.msra.mxu0 0.0
    %2053 = vmatprep.subr.mxu0 0.0
    %2054 = vmatpush1.msra.mxu0 0.0
    %2055 = vmatprep.subr.mxu0 0.0
    %2056 = vmatpush1.msra.mxu0 0.0
    %2057 = vmatprep.subr.mxu0 0.0
    %2058 = vmatpush1.msra.mxu0 0.0
    %2059 = vmatprep.subr.mxu0 0.0
    %2060 = vmatpush1.msra.mxu0 %v2022
    %2061 = vmatprep.subr.mxu0 0.0
    %2062 = vmatpush1.msra.mxu0 %v2020
    %2063 = vmatprep.subr.mxu0 0.0
    %2064 = vmatpush2.msra.mxu0 0.0
    %2065 = vmatprep.subr.mxu0 0.0
    %2066 = vmatpush2.msra.mxu0 0.0
    %2067 = vmatprep.subr.mxu0 0.0
    %2068 = vmatpush2.msra.mxu0 0.0
    %2069 = vmatprep.subr.mxu0 0.0
    %2070 = vmatpush2.msra.mxu0 0.0
    %2071 = vmatprep.subr.mxu0 0.0
    %2072 = vmatpush2.msra.mxu0 0.0
    %2073 = vmatprep.subr.mxu0 0.0
    %2074 = vmatpush2.msra.mxu0 0.0
    %2075 = vmatprep.subr.mxu0 0.0
    %2076 = vmatpush2.msra.mxu0 0.0
    %2077 = vmatprep.subr.mxu0 0.0
    %2078 = vmatpush2.msra.mxu0 0.0
    %2079 = vmatprep.subr.mxu0 0.0
    %2080 = vmatpush2.msra.mxu0 0.0
    %2081 = vmatprep.subr.mxu0 0.0
    %2082 = vmatpush2.msra.mxu0 0.0
    %2083 = vmatprep.subr.mxu0 0.0
    %2084 = vmatpush2.msra.mxu0 0.0
    %2085 = vmatprep.subr.mxu0 0.0
    %2086 = vmatpush2.msra.mxu0 0.0
    %2087 = vmatprep.subr.mxu0 0.0
    %2088 = vmatpush2.msra.mxu0 0.0
    %2089 = vmatprep.subr.mxu0 0.0
    %2090 = vmatpush2.msra.mxu0 0.0
    %2091 = vmatprep.subr.mxu0 0.0
    %2092 = vmatpush2.msra.mxu0 0.0
    %2093 = vmatprep.subr.mxu0 0.0
    %2094 = vmatpush2.msra.mxu0 0.0
    %2095 = vmatprep.mubr.f32.mxu0 0.0
    %2096 = vmatmul.mubr.f32.gmra.mxu0 %v2026
    %v2097 = vpop.f32.mrf.mxu0
    %v2098 = vadd.f32 0.0, %v2097
    %v2099 = vpop.f32.mrf.mxu0
    %2100 = vmatprep.mubr.f32.mxu0 0.0
    %2101 = vmatmul.mubr.f32.gmra.mxu0 %v2029
    %v2102 = vpop.f32.mrf.mxu0
    %v2103 = vadd.f32 0.0, %v2102
    %v2104 = vpop.f32.mrf.mxu0
    %2105 = vdwg.mxu0
    %2108 = vrot.lane.b32.xlu0 %v2098, 56
    %v2109 = vpop.permute.xlu0 %2108
    %2110 = vrot.lane.b32.xlu0 %v2103, 56
    %v2111 = vpop.permute.xlu0 %2110
    %vm2114 = vcmask 523712
    %2115 = vst.msk [vmem:[#allocation3] sm:$0xff] %vm2114, %v2109
    %2116 = vst.msk [vmem:[#allocation3 + $0x8] sm:$0xff] %vm2114, %v2111
    %v2117 = vlaneseq
    %v2118 = vshrl.u32 %v2117, 7
    %v2119 = vsub.s32 6, %v2118
    %v2120 = vrot.slane %v183, %v2119
    %v2121 = vadd.f32 %v106, %v2120
    %v2122 = vadd.f32 %v111, %v2120
    %v2123 = vld [vmem:[#allocation3] sm:$0xff]
    %v2124 = vld [vmem:[#allocation3 + $0x8] sm:$0xff]
    %vm2125 = vcmask 523264
    %v2127 = vsel %vm2125, %v2123, 0
    %v2130 = vsel %vm2125, %v2124, 0
    %2132 = vmatprep.subr.mxu0 0.0
    %2133 = vmatpush1.msra.mxu0 0.0
    %2134 = vmatprep.subr.mxu0 0.0
    %2135 = vmatpush1.msra.mxu0 0.0
    %2136 = vmatprep.subr.mxu0 0.0
    %2137 = vmatpush1.msra.mxu0 0.0
    %2138 = vmatprep.subr.mxu0 0.0
    %2139 = vmatpush1.msra.mxu0 0.0
    %2140 = vmatprep.subr.mxu0 0.0
    %2141 = vmatpush1.msra.mxu0 0.0
    %2142 = vmatprep.subr.mxu0 0.0
    %2143 = vmatpush1.msra.mxu0 0.0
    %2144 = vmatprep.subr.mxu0 0.0
    %2145 = vmatpush1.msra.mxu0 0.0
    %2146 = vmatprep.subr.mxu0 0.0
    %2147 = vmatpush1.msra.mxu0 0.0
    %2148 = vmatprep.subr.mxu0 0.0
    %2149 = vmatpush1.msra.mxu0 %v162
    %2150 = vmatprep.subr.mxu0 0.0
    %2151 = vmatpush1.msra.mxu0 %v161
    %2152 = vmatprep.subr.mxu0 0.0
    %2153 = vmatpush1.msra.mxu0 %v160
    %2154 = vmatprep.subr.mxu0 0.0
    %2155 = vmatpush1.msra.mxu0 %v159
    %2156 = vmatprep.subr.mxu0 0.0
    %2157 = vmatpush1.msra.mxu0 %v158
    %2158 = vmatprep.subr.mxu0 0.0
    %2159 = vmatpush1.msra.mxu0 %v157
    %2160 = vmatprep.subr.mxu0 0.0
    %2161 = vmatpush1.msra.mxu0 %v156
    %2162 = vmatprep.subr.mxu0 0.0
    %2163 = vmatpush1.msra.mxu0 %v155
    %2164 = vmatprep.subr.mxu0 0.0
    %2165 = vmatpush2.msra.mxu0 0.0
    %2166 = vmatprep.subr.mxu0 0.0
    %2167 = vmatpush2.msra.mxu0 0.0
    %2168 = vmatprep.subr.mxu0 0.0
    %2169 = vmatpush2.msra.mxu0 0.0
    %2170 = vmatprep.subr.mxu0 0.0
    %2171 = vmatpush2.msra.mxu0 0.0
    %2172 = vmatprep.subr.mxu0 0.0
    %2173 = vmatpush2.msra.mxu0 0.0
    %2174 = vmatprep.subr.mxu0 0.0
    %2175 = vmatpush2.msra.mxu0 0.0
    %2176 = vmatprep.subr.mxu0 0.0
    %2177 = vmatpush2.msra.mxu0 0.0
    %2178 = vmatprep.subr.mxu0 0.0
    %2179 = vmatpush2.msra.mxu0 0.0
    %2180 = vmatprep.subr.mxu0 0.0
    %2181 = vmatpush2.msra.mxu0 0.0
    %2182 = vmatprep.subr.mxu0 0.0
    %2183 = vmatpush2.msra.mxu0 0.0
    %2184 = vmatprep.subr.mxu0 0.0
    %2185 = vmatpush2.msra.mxu0 0.0
    %2186 = vmatprep.subr.mxu0 0.0
    %2187 = vmatpush2.msra.mxu0 0.0
    %2188 = vmatprep.subr.mxu0 0.0
    %2189 = vmatpush2.msra.mxu0 0.0
    %2190 = vmatprep.subr.mxu0 0.0
    %2191 = vmatpush2.msra.mxu0 0.0
    %2192 = vmatprep.subr.mxu0 0.0
    %2193 = vmatpush2.msra.mxu0 0.0
    %2194 = vmatprep.subr.mxu0 0.0
    %2195 = vmatpush2.msra.mxu0 0.0
    %2196 = vmatprep.mubr.f32.mxu0 0.0
    %2197 = vmatmul.mubr.f32.gmra.mxu0 %v2127
    %v2198 = vpop.f32.mrf.mxu0
    %v2199 = vadd.f32 0.0, %v2198
    %v2200 = vpop.f32.mrf.mxu0
    %2201 = vmatprep.mubr.f32.mxu0 0.0
    %2202 = vmatmul.mubr.f32.gmra.mxu0 %v2130
    %v2203 = vpop.f32.mrf.mxu0
    %v2204 = vadd.f32 0.0, %v2203
    %v2205 = vpop.f32.mrf.mxu0
    %2206 = vdwg.mxu0
    %v2207 = vadd.f32 %v2121, %v2199
    %v2208 = vadd.f32 %v2122, %v2204
    %v2209 = vsel %vm186, %v2207, 0.0
    %2210 = vadd.xlane.f32.xlu0 %v2209
    %v2211 = vpop.xlane.xlu0 %2210
    %v2212 = vsel %vm186, %v2208, 0.0
    %2213 = vadd.xlane.f32.xlu0 %v2212
    %v2214 = vpop.xlane.xlu0 %2213
    %v2215 = vmul.f32 %v2211, %v193
    %v2216 = vmul.f32 %v2214, %v193
    %v2217 = vsub.f32 %v2207, %v2215
    %v2218 = vsub.f32 %v2208, %v2216
    %v2219 = vmul.f32 %v2217, %v2217
    %v2220 = vmul.f32 %v2218, %v2218
    %v2221 = vsel %vm186, %v2219, 0.0
    %2222 = vadd.xlane.f32.xlu0 %v2221
    %v2223 = vpop.xlane.xlu0 %2222
    %v2224 = vsel %vm186, %v2220, 0.0
    %2225 = vadd.xlane.f32.xlu0 %v2224
    %v2226 = vpop.xlane.xlu0 %2225
    %v2227 = vmul.f32 %v2223, %v193
    %v2228 = vmul.f32 %v2226, %v193
    %v2229 = vadd.f32 %v2227, 1e-05
    %v2230 = vadd.f32 %v2228, 1e-05
    %v2231 = vrsqrt.pop %v2229
    %v2232 = vrsqrt.pop %v2230
    %v2233 = vmul.f32 %v2217, %v2231
    %v2234 = vmul.f32 %v2218, %v2232
    %v2235 = vlaneseq
    %v2236 = vshrl.u32 %v2235, 7
    %v2237 = vsub.s32 4, %v2236
    %v2238 = vrot.slane %v183, %v2237
    %v2239 = vmul.f32 %v2233, %v2238
    %v2240 = vmul.f32 %v2234, %v2238
    %v2241 = vlaneseq
    %v2242 = vshrl.u32 %v2241, 7
    %v2243 = vsub.s32 5, %v2242
    %v2244 = vrot.slane %v183, %v2243
    %v2245 = vadd.f32 %v2239, %v2244
    %v2246 = vadd.f32 %v2240, %v2244
    %v2247 = vlaneseq
    %v2248 = vshrl.u32 %v2247, 7
    %v2249 = vsub.s32 1, %v2248
    %v2250 = vrot.slane %v183, %v2249
    %v2251 = vlaneseq
    %v2252 = vshrl.u32 %v2251, 7
    %v2253 = vsub.s32 1, %v2252
    %v2254 = vrot.slane %v184, %v2253
    %v2256 = vsel %vm186, %v2245, 0
    %v2259 = vsel %vm186, %v2246, 0
    %2261 = vmatprep.subr.mxu0 0.0
    %2262 = vmatpush1.msra.mxu0 0.0
    %2263 = vmatprep.subr.mxu0 0.0
    %2264 = vmatpush1.msra.mxu0 0.0
    %2265 = vmatprep.subr.mxu0 0.0
    %2266 = vmatpush1.msra.mxu0 0.0
    %2267 = vmatprep.subr.mxu0 0.0
    %2268 = vmatpush1.msra.mxu0 0.0
    %2269 = vmatprep.subr.mxu0 0.0
    %2270 = vmatpush1.msra.mxu0 0.0
    %2271 = vmatprep.subr.mxu0 0.0
    %2272 = vmatpush1.msra.mxu0 0.0
    %2273 = vmatprep.subr.mxu0 0.0
    %2274 = vmatpush1.msra.mxu0 0.0
    %2275 = vmatprep.subr.mxu0 0.0
    %2276 = vmatpush1.msra.mxu0 0.0
    %2277 = vmatprep.subr.mxu0 0.0
    %2278 = vmatpush1.msra.mxu0 0.0
    %2279 = vmatprep.subr.mxu0 0.0
    %2280 = vmatpush1.msra.mxu0 0.0
    %2281 = vmatprep.subr.mxu0 0.0
    %2282 = vmatpush1.msra.mxu0 0.0
    %2283 = vmatprep.subr.mxu0 %v154
    %2284 = vmatpush1.msra.mxu0 %v153
    %2285 = vmatprep.subr.mxu0 %v152
    %2286 = vmatpush1.msra.mxu0 %v151
    %2287 = vmatprep.subr.mxu0 %v150
    %2288 = vmatpush1.msra.mxu0 %v149
    %2289 = vmatprep.subr.mxu0 %v148
    %2290 = vmatpush1.msra.mxu0 %v147
    %2291 = vmatprep.subr.mxu0 %v146
    %2292 = vmatpush1.msra.mxu0 %v145
    %2293 = vmatprep.subr.mxu0 0.0
    %2294 = vmatpush2.msra.mxu0 0.0
    %2295 = vmatprep.subr.mxu0 0.0
    %2296 = vmatpush2.msra.mxu0 0.0
    %2297 = vmatprep.subr.mxu0 0.0
    %2298 = vmatpush2.msra.mxu0 0.0
    %2299 = vmatprep.subr.mxu0 0.0
    %2300 = vmatpush2.msra.mxu0 0.0
    %2301 = vmatprep.subr.mxu0 0.0
    %2302 = vmatpush2.msra.mxu0 0.0
    %2303 = vmatprep.subr.mxu0 0.0
    %2304 = vmatpush2.msra.mxu0 0.0
    %2305 = vmatprep.subr.mxu0 0.0
    %2306 = vmatpush2.msra.mxu0 0.0
    %2307 = vmatprep.subr.mxu0 0.0
    %2308 = vmatpush2.msra.mxu0 0.0
    %2309 = vmatprep.subr.mxu0 0.0
    %2310 = vmatpush2.msra.mxu0 0.0
    %2311 = vmatprep.subr.mxu0 0.0
    %2312 = vmatpush2.msra.mxu0 0.0
    %2313 = vmatprep.subr.mxu0 0.0
    %2314 = vmatpush2.msra.mxu0 0.0
    %2315 = vmatprep.subr.mxu0 0.0
    %2316 = vmatpush2.msra.mxu0 0.0
    %2317 = vmatprep.subr.mxu0 0.0
    %2318 = vmatpush2.msra.mxu0 0.0
    %2319 = vmatprep.subr.mxu0 0.0
    %2320 = vmatpush2.msra.mxu0 0.0
    %2321 = vmatprep.subr.mxu0 0.0
    %2322 = vmatpush2.msra.mxu0 0.0
    %2323 = vmatprep.subr.mxu0 0.0
    %2324 = vmatpush2.msra.mxu0 0.0
    %2325 = vmatprep.mubr.f32.mxu0 0.0
    %2326 = vmatmul.mubr.f32.gmra.mxu0 %v2256
    %v2327 = vpop.f32.mrf.mxu0
    %v2328 = vadd.f32 %v2250, %v2327
    %v2329 = vpop.f32.mrf.mxu0
    %v2330 = vadd.f32 %v2254, %v2329
    %2331 = vmatprep.mubr.f32.mxu0 0.0
    %2332 = vmatmul.mubr.f32.gmra.mxu0 %v2259
    %v2333 = vpop.f32.mrf.mxu0
    %v2334 = vadd.f32 %v2250, %v2333
    %v2335 = vpop.f32.mrf.mxu0
    %v2336 = vadd.f32 %v2254, %v2335
    %2337 = vdwg.mxu0
    %v2338 = vmax.f32 %v2328, 0.0
    %v2339 = vmax.f32 %v2330, 0.0
    %v2340 = vmax.f32 %v2334, 0.0
    %v2341 = vmax.f32 %v2336, 0.0
    %v2342 = vlaneseq
    %v2343 = vshrl.u32 %v2342, 7
    %v2344 = vsub.s32 7, %v2343
    %v2345 = vrot.slane %v183, %v2344
    %vm2346 = vcmask 261120
    %v2348 = vsel %vm2346, %v2339, 0
    %v2351 = vsel %vm2346, %v2341, 0
    %2353 = vmatprep.subr.mxu0 0.0
    %2354 = vmatpush1.msra.mxu0 %v178
    %2355 = vmatprep.subr.mxu0 0.0
    %2356 = vmatpush1.msra.mxu0 %v177
    %2357 = vmatprep.subr.mxu0 0.0
    %2358 = vmatpush1.msra.mxu0 %v176
    %2359 = vmatprep.subr.mxu0 0.0
    %2360 = vmatpush1.msra.mxu0 %v175
    %2361 = vmatprep.subr.mxu0 0.0
    %2362 = vmatpush1.msra.mxu0 %v174
    %2363 = vmatprep.subr.mxu0 0.0
    %2364 = vmatpush1.msra.mxu0 %v173
    %2365 = vmatprep.subr.mxu0 0.0
    %2366 = vmatpush1.msra.mxu0 %v172
    %2367 = vmatprep.subr.mxu0 0.0
    %2368 = vmatpush1.msra.mxu0 %v171
    %2369 = vmatprep.subr.mxu0 0.0
    %2370 = vmatpush1.msra.mxu0 %v170
    %2371 = vmatprep.subr.mxu0 0.0
    %2372 = vmatpush1.msra.mxu0 %v169
    %2373 = vmatprep.subr.mxu0 0.0
    %2374 = vmatpush1.msra.mxu0 %v168
    %2375 = vmatprep.subr.mxu0 0.0
    %2376 = vmatpush1.msra.mxu0 %v167
    %2377 = vmatprep.subr.mxu0 0.0
    %2378 = vmatpush1.msra.mxu0 %v166
    %2379 = vmatprep.subr.mxu0 0.0
    %2380 = vmatpush1.msra.mxu0 %v165
    %2381 = vmatprep.subr.mxu0 0.0
    %2382 = vmatpush1.msra.mxu0 %v164
    %2383 = vmatprep.subr.mxu0 0.0
    %2384 = vmatpush1.msra.mxu0 %v163
    %2385 = vmatprep.subr.mxu0 0.0
    %2386 = vmatpush2.msra.mxu0 0.0
    %2387 = vmatprep.subr.mxu0 0.0
    %2388 = vmatpush2.msra.mxu0 0.0
    %2389 = vmatprep.subr.mxu0 0.0
    %2390 = vmatpush2.msra.mxu0 0.0
    %2391 = vmatprep.subr.mxu0 0.0
    %2392 = vmatpush2.msra.mxu0 0.0
    %2393 = vmatprep.subr.mxu0 0.0
    %2394 = vmatpush2.msra.mxu0 0.0
    %2395 = vmatprep.subr.mxu0 0.0
    %2396 = vmatpush2.msra.mxu0 0.0
    %2397 = vmatprep.subr.mxu0 0.0
    %2398 = vmatpush2.msra.mxu0 0.0
    %2399 = vmatprep.subr.mxu0 0.0
    %2400 = vmatpush2.msra.mxu0 0.0
    %2401 = vmatprep.subr.mxu0 0.0
    %2402 = vmatpush2.msra.mxu0 0.0
    %2403 = vmatprep.subr.mxu0 0.0
    %2404 = vmatpush2.msra.mxu0 0.0
    %2405 = vmatprep.subr.mxu0 0.0
    %2406 = vmatpush2.msra.mxu0 0.0
    %2407 = vmatprep.subr.mxu0 0.0
    %2408 = vmatpush2.msra.mxu0 0.0
    %2409 = vmatprep.subr.mxu0 0.0
    %2410 = vmatpush2.msra.mxu0 %v182
    %2411 = vmatprep.subr.mxu0 0.0
    %2412 = vmatpush2.msra.mxu0 %v181
    %2413 = vmatprep.subr.mxu0 0.0
    %2414 = vmatpush2.msra.mxu0 %v180
    %2415 = vmatprep.subr.mxu0 0.0
    %2416 = vmatpush2.msra.mxu0 %v179
    %2417 = vmatprep.mubr.f32.mxu0 %v2348
    %2418 = vmatmul.mubr.f32.gmra.mxu0 %v2338
    %v2419 = vpop.f32.mrf.mxu0
    %v2420 = vadd.f32 %v2345, %v2419
    %v2421 = vpop.f32.mrf.mxu0
    %2422 = vmatprep.mubr.f32.mxu0 %v2351
    %2423 = vmatmul.mubr.f32.gmra.mxu0 %v2340
    %v2424 = vpop.f32.mrf.mxu0
    %v2425 = vadd.f32 %v2345, %v2424
    %v2426 = vpop.f32.mrf.mxu0
    %2427 = vdwg.mxu0
    %v2428 = vadd.f32 %v2420, %v2207
    %v2429 = vadd.f32 %v2425, %v2208
    %s2430 = scalar_lea.vmem %s1, 200
    %v2431 = vld [vmem:[%s2430] sm:$0xff]
    %v2432 = vld [vmem:[%s2430 + $0x8] sm:$0xff]
    %v2433 = vld [vmem:[%s2430 + $0x10] sm:$0xff]
    %v2434 = vld [vmem:[%s2430 + $0x28] sm:$0xff]
    %v2435 = vld [vmem:[%s2430 + $0x30] sm:$0xff]
    %v2436 = vld [vmem:[%s2430 + $0x38] sm:$0xff]
    %v2437 = vld [vmem:[%s2430 + $0x50] sm:$0xff]
    %v2438 = vld [vmem:[%s2430 + $0x58] sm:$0xff]
    %v2439 = vld [vmem:[%s2430 + $0x60] sm:$0xff]
    %v2440 = vld [vmem:[%s2430 + $0x78] sm:$0xff]
    %v2441 = vld [vmem:[%s2430 + $0x80] sm:$0xff]
    %v2442 = vld [vmem:[%s2430 + $0x88] sm:$0xff]
    %v2443 = vld [vmem:[%s2430 + $0xa0] sm:$0xff]
    %v2444 = vld [vmem:[%s2430 + $0xa8] sm:$0xff]
    %v2445 = vld [vmem:[%s2430 + $0xb0] sm:$0xff]
    %v2446 = vld [vmem:[%s2430 + $0x18] sm:$0xff]
    %v2447 = vld [vmem:[%s2430 + $0x20] sm:$0xff]
    %v2448 = vld [vmem:[%s2430 + $0x40] sm:$0xff]
    %v2449 = vld [vmem:[%s2430 + $0x48] sm:$0xff]
    %v2450 = vld [vmem:[%s2430 + $0x68] sm:$0xff]
    %v2451 = vld [vmem:[%s2430 + $0x70] sm:$0xff]
    %v2452 = vld [vmem:[%s2430 + $0x90] sm:$0xff]
    %v2453 = vld [vmem:[%s2430 + $0x98] sm:$0xff]
    %v2454 = vld [vmem:[%s2430 + $0xb8] sm:$0xff]
    %v2455 = vld [vmem:[%s2430 + $0xc0] sm:$0xff]
    %s2456 = scalar_lea.vmem %s2, 224
    %v2457 = vld [vmem:[%s2456] sm:$0xff]
    %v2458 = vld [vmem:[%s2456 + $0x8] sm:$0xff]
    %v2459 = vld [vmem:[%s2456 + $0x10] sm:$0xff]
    %v2460 = vld [vmem:[%s2456 + $0x18] sm:$0xff]
    %v2461 = vld [vmem:[%s2456 + $0x20] sm:$0xff]
    %v2462 = vld [vmem:[%s2456 + $0x28] sm:$0xff]
    %v2463 = vld [vmem:[%s2456 + $0x30] sm:$0xff]
    %v2464 = vld [vmem:[%s2456 + $0x38] sm:$0xff]
    %v2465 = vld [vmem:[%s2456 + $0x40] sm:$0xff]
    %v2466 = vld [vmem:[%s2456 + $0x48] sm:$0xff]
    %v2467 = vld [vmem:[%s2456 + $0x50] sm:$0xff]
    %v2468 = vld [vmem:[%s2456 + $0x58] sm:$0xff]
    %v2469 = vld [vmem:[%s2456 + $0x60] sm:$0xff]
    %v2470 = vld [vmem:[%s2456 + $0x68] sm:$0xff]
    %v2471 = vld [vmem:[%s2456 + $0x70] sm:$0xff]
    %v2472 = vld [vmem:[%s2456 + $0x78] sm:$0xff]
    %v2473 = vld [vmem:[%s2456 + $0x80] sm:$0xff]
    %v2474 = vld [vmem:[%s2456 + $0x88] sm:$0xff]
    %v2475 = vld [vmem:[%s2456 + $0x90] sm:$0xff]
    %v2476 = vld [vmem:[%s2456 + $0x98] sm:$0xff]
    %v2477 = vld [vmem:[%s2456 + $0xa0] sm:$0xff]
    %v2478 = vld [vmem:[%s2456 + $0xa8] sm:$0xff]
    %v2479 = vld [vmem:[%s2456 + $0xb0] sm:$0xff]
    %v2480 = vld [vmem:[%s2456 + $0xb8] sm:$0xff]
    %v2481 = vld [vmem:[%s2456 + $0xc0] sm:$0xff]
    %v2482 = vld [vmem:[%s2456 + $0xc8] sm:$0xff]
    %v2483 = vld [vmem:[%s2456 + $0xd0] sm:$0xff]
    %v2484 = vld [vmem:[%s2456 + $0xd8] sm:$0xff]
    %s2485 = scalar_lea.vmem %s3, 24
    %v2486 = vld [vmem:[%s2485] sm:$0xff]
    %v2487 = vld [vmem:[%s2485 + $0x8] sm:$0xff]
    %v2488 = vld [vmem:[%s2485 + $0x10] sm:$0xff]
    %v2489 = vsel %vm186, %v2428, 0.0
    %2490 = vadd.xlane.f32.xlu0 %v2489
    %v2491 = vpop.xlane.xlu0 %2490
    %v2492 = vsel %vm186, %v2429, 0.0
    %2493 = vadd.xlane.f32.xlu0 %v2492
    %v2494 = vpop.xlane.xlu0 %2493
    %v2495 = vmul.f32 %v2491, %v193
    %v2496 = vmul.f32 %v2494, %v193
    %v2497 = vsub.f32 %v2428, %v2495
    %v2498 = vsub.f32 %v2429, %v2496
    %v2499 = vmul.f32 %v2497, %v2497
    %v2500 = vmul.f32 %v2498, %v2498
    %v2501 = vsel %vm186, %v2499, 0.0
    %2502 = vadd.xlane.f32.xlu0 %v2501
    %v2503 = vpop.xlane.xlu0 %2502
    %v2504 = vsel %vm186, %v2500, 0.0
    %2505 = vadd.xlane.f32.xlu0 %v2504
    %v2506 = vpop.xlane.xlu0 %2505
    %v2507 = vmul.f32 %v2503, %v193
    %v2508 = vmul.f32 %v2506, %v193
    %v2509 = vadd.f32 %v2507, 1e-05
    %v2510 = vadd.f32 %v2508, 1e-05
    %v2511 = vrsqrt.pop %v2509
    %v2512 = vrsqrt.pop %v2510
    %v2513 = vmul.f32 %v2497, %v2511
    %v2514 = vmul.f32 %v2498, %v2512
    %v2515 = vlaneseq
    %v2516 = vshrl.u32 %v2515, 7
    %v2517 = vsub.s32 2, %v2516
    %v2518 = vrot.slane %v2486, %v2517
    %v2519 = vmul.f32 %v2513, %v2518
    %v2520 = vmul.f32 %v2514, %v2518
    %v2521 = vlaneseq
    %v2522 = vshrl.u32 %v2521, 7
    %v2523 = vsub.s32 3, %v2522
    %v2524 = vrot.slane %v2486, %v2523
    %v2525 = vadd.f32 %v2519, %v2524
    %v2526 = vadd.f32 %v2520, %v2524
    %v2527 = vlaneseq
    %v2528 = vshrl.u32 %v2527, 7
    %v2529 = vsub.s32 0, %v2528
    %v2530 = vrot.slane %v2486, %v2529
    %v2531 = vlaneseq
    %v2532 = vshrl.u32 %v2531, 7
    %v2533 = vsub.s32 0, %v2532
    %v2534 = vrot.slane %v2487, %v2533
    %v2535 = vlaneseq
    %v2536 = vshrl.u32 %v2535, 7
    %v2537 = vsub.s32 0, %v2536
    %v2538 = vrot.slane %v2488, %v2537
    %v2540 = vsel %vm186, %v2525, 0
    %v2543 = vsel %vm186, %v2526, 0
    %2545 = vmatprep.subr.mxu0 0.0
    %2546 = vmatpush1.msra.mxu0 0.0
    %2547 = vmatprep.subr.mxu0 0.0
    %2548 = vmatpush1.msra.mxu0 0.0
    %2549 = vmatprep.subr.mxu0 0.0
    %2550 = vmatpush1.msra.mxu0 0.0
    %2551 = vmatprep.subr.mxu0 0.0
    %2552 = vmatpush1.msra.mxu0 0.0
    %2553 = vmatprep.subr.mxu0 0.0
    %2554 = vmatpush1.msra.mxu0 0.0
    %2555 = vmatprep.subr.mxu0 0.0
    %2556 = vmatpush1.msra.mxu0 0.0
    %2557 = vmatprep.subr.mxu0 0.0
    %2558 = vmatpush1.msra.mxu0 0.0
    %2559 = vmatprep.subr.mxu0 0.0
    %2560 = vmatpush1.msra.mxu0 0.0
    %2561 = vmatprep.subr.mxu0 0.0
    %2562 = vmatpush1.msra.mxu0 0.0
    %2563 = vmatprep.subr.mxu0 0.0
    %2564 = vmatpush1.msra.mxu0 0.0
    %2565 = vmatprep.subr.mxu0 0.0
    %2566 = vmatpush1.msra.mxu0 0.0
    %2567 = vmatprep.subr.mxu0 %v2444
    %2568 = vmatpush1.msra.mxu0 %v2443
    %2569 = vmatprep.subr.mxu0 %v2441
    %2570 = vmatpush1.msra.mxu0 %v2440
    %2571 = vmatprep.subr.mxu0 %v2438
    %2572 = vmatpush1.msra.mxu0 %v2437
    %2573 = vmatprep.subr.mxu0 %v2435
    %2574 = vmatpush1.msra.mxu0 %v2434
    %2575 = vmatprep.subr.mxu0 %v2432
    %2576 = vmatpush1.msra.mxu0 %v2431
    %2577 = vmatprep.subr.mxu0 0.0
    %2578 = vmatpush2.msra.mxu0 0.0
    %2579 = vmatprep.subr.mxu0 0.0
    %2580 = vmatpush2.msra.mxu0 0.0
    %2581 = vmatprep.subr.mxu0 0.0
    %2582 = vmatpush2.msra.mxu0 0.0
    %2583 = vmatprep.subr.mxu0 0.0
    %2584 = vmatpush2.msra.mxu0 0.0
    %2585 = vmatprep.subr.mxu0 0.0
    %2586 = vmatpush2.msra.mxu0 0.0
    %2587 = vmatprep.subr.mxu0 0.0
    %2588 = vmatpush2.msra.mxu0 0.0
    %2589 = vmatprep.subr.mxu0 0.0
    %2590 = vmatpush2.msra.mxu0 0.0
    %2591 = vmatprep.subr.mxu0 0.0
    %2592 = vmatpush2.msra.mxu0 0.0
    %2593 = vmatprep.subr.mxu0 0.0
    %2594 = vmatpush2.msra.mxu0 0.0
    %2595 = vmatprep.subr.mxu0 0.0
    %2596 = vmatpush2.msra.mxu0 0.0
    %2597 = vmatprep.subr.mxu0 0.0
    %2598 = vmatpush2.msra.mxu0 0.0
    %2599 = vmatprep.subr.mxu0 0.0
    %2600 = vmatpush2.msra.mxu0 0.0
    %2601 = vmatprep.subr.mxu0 0.0
    %2602 = vmatpush2.msra.mxu0 0.0
    %2603 = vmatprep.subr.mxu0 0.0
    %2604 = vmatpush2.msra.mxu0 0.0
    %2605 = vmatprep.subr.mxu0 0.0
    %2606 = vmatpush2.msra.mxu0 0.0
    %2607 = vmatprep.subr.mxu0 0.0
    %2608 = vmatpush2.msra.mxu0 0.0
    %2609 = vmatprep.mubr.f32.mxu0 0.0
    %2610 = vmatmul.mubr.f32.gmra.mxu0 %v2540
    %v2611 = vpop.f32.mrf.mxu0
    %v2612 = vadd.f32 %v2530, %v2611
    %v2613 = vpop.f32.mrf.mxu0
    %v2614 = vadd.f32 %v2534, %v2613
    %2615 = vmatprep.mubr.f32.mxu0 0.0
    %2616 = vmatmul.mubr.f32.gmra.mxu0 %v2543
    %v2617 = vpop.f32.mrf.mxu0
    %v2618 = vadd.f32 %v2530, %v2617
    %v2619 = vpop.f32.mrf.mxu0
    %v2620 = vadd.f32 %v2534, %v2619
    %2621 = vdwg.mxu0
    %2622 = vmatprep.subr.mxu0 0.0
    %2623 = vmatpush1.msra.mxu0 0.0
    %2624 = vmatprep.subr.mxu0 0.0
    %2625 = vmatpush1.msra.mxu0 0.0
    %2626 = vmatprep.subr.mxu0 0.0
    %2627 = vmatpush1.msra.mxu0 0.0
    %2628 = vmatprep.subr.mxu0 0.0
    %2629 = vmatpush1.msra.mxu0 0.0
    %2630 = vmatprep.subr.mxu0 0.0
    %2631 = vmatpush1.msra.mxu0 0.0
    %2632 = vmatprep.subr.mxu0 0.0
    %2633 = vmatpush1.msra.mxu0 0.0
    %2634 = vmatprep.subr.mxu0 0.0
    %2635 = vmatpush1.msra.mxu0 0.0
    %2636 = vmatprep.subr.mxu0 0.0
    %2637 = vmatpush1.msra.mxu0 0.0
    %2638 = vmatprep.subr.mxu0 0.0
    %2639 = vmatpush1.msra.mxu0 0.0
    %2640 = vmatprep.subr.mxu0 0.0
    %2641 = vmatpush1.msra.mxu0 0.0
    %2642 = vmatprep.subr.mxu0 0.0
    %2643 = vmatpush1.msra.mxu0 0.0
    %2644 = vmatprep.subr.mxu0 0.0
    %2645 = vmatpush1.msra.mxu0 %v2445
    %2646 = vmatprep.subr.mxu0 0.0
    %2647 = vmatpush1.msra.mxu0 %v2442
    %2648 = vmatprep.subr.mxu0 0.0
    %2649 = vmatpush1.msra.mxu0 %v2439
    %2650 = vmatprep.subr.mxu0 0.0
    %2651 = vmatpush1.msra.mxu0 %v2436
    %2652 = vmatprep.subr.mxu0 0.0
    %2653 = vmatpush1.msra.mxu0 %v2433
    %2654 = vmatprep.subr.mxu0 0.0
    %2655 = vmatpush2.msra.mxu0 0.0
    %2656 = vmatprep.subr.mxu0 0.0
    %2657 = vmatpush2.msra.mxu0 0.0
    %2658 = vmatprep.subr.mxu0 0.0
    %2659 = vmatpush2.msra.mxu0 0.0
    %2660 = vmatprep.subr.mxu0 0.0
    %2661 = vmatpush2.msra.mxu0 0.0
    %2662 = vmatprep.subr.mxu0 0.0
    %2663 = vmatpush2.msra.mxu0 0.0
    %2664 = vmatprep.subr.mxu0 0.0
    %2665 = vmatpush2.msra.mxu0 0.0
    %2666 = vmatprep.subr.mxu0 0.0
    %2667 = vmatpush2.msra.mxu0 0.0
    %2668 = vmatprep.subr.mxu0 0.0
    %2669 = vmatpush2.msra.mxu0 0.0
    %2670 = vmatprep.subr.mxu0 0.0
    %2671 = vmatpush2.msra.mxu0 0.0
    %2672 = vmatprep.subr.mxu0 0.0
    %2673 = vmatpush2.msra.mxu0 0.0
    %2674 = vmatprep.subr.mxu0 0.0
    %2675 = vmatpush2.msra.mxu0 0.0
    %2676 = vmatprep.subr.mxu0 0.0
    %2677 = vmatpush2.msra.mxu0 0.0
    %2678 = vmatprep.subr.mxu0 0.0
    %2679 = vmatpush2.msra.mxu0 0.0
    %2680 = vmatprep.subr.mxu0 0.0
    %2681 = vmatpush2.msra.mxu0 0.0
    %2682 = vmatprep.subr.mxu0 0.0
    %2683 = vmatpush2.msra.mxu0 0.0
    %2684 = vmatprep.subr.mxu0 0.0
    %2685 = vmatpush2.msra.mxu0 0.0
    %2686 = vmatprep.mubr.f32.mxu0 0.0
    %2687 = vmatmul.mubr.f32.gmra.mxu0 %v2540
    %v2688 = vpop.f32.mrf.mxu0
    %v2689 = vadd.f32 %v2538, %v2688
    %v2690 = vpop.f32.mrf.mxu0
    %2691 = vmatprep.mubr.f32.mxu0 0.0
    %2692 = vmatmul.mubr.f32.gmra.mxu0 %v2543
    %v2693 = vpop.f32.mrf.mxu0
    %v2694 = vadd.f32 %v2538, %v2693
    %v2695 = vpop.f32.mrf.mxu0
    %2696 = vdwg.mxu0
    %v2698 = vsel %vm396, %v2612, 0
    %v2701 = vsel %vm396, %v2618, 0
    %v2704 = vsel %vm396, %v2614, 0
    %v2707 = vsel %vm396, %v2620, 0
    %2709 = vmatprep.subr.mxu0 0.0
    %2710 = vmatpush1.xpose.msra.mxu0 0.0
    %2711 = vmatprep.subr.mxu0 0.0
    %2712 = vmatpush1.xpose.msra.mxu0 0.0
    %2713 = vmatprep.subr.mxu0 0.0
    %2714 = vmatpush1.xpose.msra.mxu0 0.0
    %2715 = vmatprep.subr.mxu0 0.0
    %2716 = vmatpush1.xpose.msra.mxu0 0.0
    %2717 = vmatprep.subr.mxu0 0.0
    %2718 = vmatpush1.xpose.msra.mxu0 0.0
    %2719 = vmatprep.subr.mxu0 0.0
    %2720 = vmatpush1.xpose.msra.mxu0 0.0
    %2721 = vmatprep.subr.mxu0 0.0
    %2722 = vmatpush1.xpose.msra.mxu0 0.0
    %2723 = vmatprep.subr.mxu0 0.0
    %2724 = vmatpush1.xpose.msra.mxu0 0.0
    %2725 = vmatprep.subr.mxu0 0.0
    %2726 = vmatpush1.xpose.msra.mxu0 0.0
    %2727 = vmatprep.subr.mxu0 0.0
    %2728 = vmatpush1.xpose.msra.mxu0 0.0
    %2729 = vmatprep.subr.mxu0 0.0
    %2730 = vmatpush1.xpose.msra.mxu0 0.0
    %2731 = vmatprep.subr.mxu0 0.0
    %2732 = vmatpush1.xpose.msra.mxu0 0.0
    %2733 = vmatprep.subr.mxu0 0.0
    %2734 = vmatpush1.xpose.msra.mxu0 0.0
    %2735 = vmatprep.subr.mxu0 0.0
    %2736 = vmatpush1.xpose.msra.mxu0 0.0
    %2737 = vmatprep.subr.mxu0 0.0
    %2738 = vmatpush1.xpose.msra.mxu0 %v2707
    %2739 = vmatprep.subr.mxu0 0.0
    %2740 = vmatpush1.xpose.msra.mxu0 %v2704
    %2741 = vmatprep.subr.mxu0 0.0
    %2742 = vmatpush2.xpose.msra.mxu0 0.0
    %2743 = vmatprep.subr.mxu0 0.0
    %2744 = vmatpush2.xpose.msra.mxu0 0.0
    %2745 = vmatprep.subr.mxu0 0.0
    %2746 = vmatpush2.xpose.msra.mxu0 0.0
    %2747 = vmatprep.subr.mxu0 0.0
    %2748 = vmatpush2.xpose.msra.mxu0 0.0
    %2749 = vmatprep.subr.mxu0 0.0
    %2750 = vmatpush2.xpose.msra.mxu0 0.0
    %2751 = vmatprep.subr.mxu0 0.0
    %2752 = vmatpush2.xpose.msra.mxu0 0.0
    %2753 = vmatprep.subr.mxu0 0.0
    %2754 = vmatpush2.xpose.msra.mxu0 0.0
    %2755 = vmatprep.subr.mxu0 0.0
    %2756 = vmatpush2.xpose.msra.mxu0 0.0
    %2757 = vmatprep.subr.mxu0 0.0
    %2758 = vmatpush2.xpose.msra.mxu0 0.0
    %2759 = vmatprep.subr.mxu0 0.0
    %2760 = vmatpush2.xpose.msra.mxu0 0.0
    %2761 = vmatprep.subr.mxu0 0.0
    %2762 = vmatpush2.xpose.msra.mxu0 0.0
    %2763 = vmatprep.subr.mxu0 0.0
    %2764 = vmatpush2.xpose.msra.mxu0 0.0
    %2765 = vmatprep.subr.mxu0 0.0
    %2766 = vmatpush2.xpose.msra.mxu0 0.0
    %2767 = vmatprep.subr.mxu0 0.0
    %2768 = vmatpush2.xpose.msra.mxu0 0.0
    %2769 = vmatprep.subr.mxu0 0.0
    %2770 = vmatpush2.xpose.msra.mxu0 0.0
    %2771 = vmatprep.subr.mxu0 0.0
    %2772 = vmatpush2.xpose.msra.mxu0 0.0
    %2773 = vmatprep.mubr.f32.mxu0 0.0
    %2774 = vmatmul.mubr.f32.gmra.mxu0 %v2698
    %v2775 = vpop.f32.mrf.mxu0
    %v2776 = vadd.f32 0.0, %v2775
    %v2777 = vpop.f32.mrf.mxu0
    %2778 = vmatprep.mubr.f32.mxu0 0.0
    %2779 = vmatmul.mubr.f32.gmra.mxu0 %v2701
    %v2780 = vpop.f32.mrf.mxu0
    %v2781 = vadd.f32 0.0, %v2780
    %v2782 = vpop.f32.mrf.mxu0
    %2783 = vdwg.mxu0
    %2784 = vst.msk [vmem:[#allocation2] sm:$0xff] %vm484, %v2776
    %2785 = vst.msk [vmem:[#allocation2 + $0x8] sm:$0xff] %vm484, %v2781
    %2786 = vrot.lane.b32.xlu0 %v2612, 120
    %v2787 = vpop.permute.xlu0 %2786
    %2788 = vrot.lane.b32.xlu0 %v2618, 120
    %v2789 = vpop.permute.xlu0 %2788
    %2790 = vrot.lane.b32.xlu0 %v2614, 120
    %v2791 = vpop.permute.xlu0 %2790
    %2792 = vrot.lane.b32.xlu0 %v2620, 120
    %v2793 = vpop.permute.xlu0 %2792
    %v2794 = vsel %vm396, %v2787, 0
    %v2796 = vsel %vm396, %v2789, 0
    %v2798 = vsel %vm396, %v2791, 0
    %v2800 = vsel %vm396, %v2793, 0
    %2802 = vmatprep.subr.mxu0 0.0
    %2803 = vmatpush1.xpose.msra.mxu0 0.0
    %2804 = vmatprep.subr.mxu0 0.0
    %2805 = vmatpush1.xpose.msra.mxu0 0.0
    %2806 = vmatprep.subr.mxu0 0.0
    %2807 = vmatpush1.xpose.msra.mxu0 0.0
    %2808 = vmatprep.subr.mxu0 0.0
    %2809 = vmatpush1.xpose.msra.mxu0 0.0
    %2810 = vmatprep.subr.mxu0 0.0
    %2811 = vmatpush1.xpose.msra.mxu0 0.0
    %2812 = vmatprep.subr.mxu0 0.0
    %2813 = vmatpush1.xpose.msra.mxu0 0.0
    %2814 = vmatprep.subr.mxu0 0.0
    %2815 = vmatpush1.xpose.msra.mxu0 0.0
    %2816 = vmatprep.subr.mxu0 0.0
    %2817 = vmatpush1.xpose.msra.mxu0 0.0
    %2818 = vmatprep.subr.mxu0 0.0
    %2819 = vmatpush1.xpose.msra.mxu0 0.0
    %2820 = vmatprep.subr.mxu0 0.0
    %2821 = vmatpush1.xpose.msra.mxu0 0.0
    %2822 = vmatprep.subr.mxu0 0.0
    %2823 = vmatpush1.xpose.msra.mxu0 0.0
    %2824 = vmatprep.subr.mxu0 0.0
    %2825 = vmatpush1.xpose.msra.mxu0 0.0
    %2826 = vmatprep.subr.mxu0 0.0
    %2827 = vmatpush1.xpose.msra.mxu0 0.0
    %2828 = vmatprep.subr.mxu0 0.0
    %2829 = vmatpush1.xpose.msra.mxu0 0.0
    %2830 = vmatprep.subr.mxu0 0.0
    %2831 = vmatpush1.xpose.msra.mxu0 %v2800
    %2832 = vmatprep.subr.mxu0 0.0
    %2833 = vmatpush1.xpose.msra.mxu0 %v2798
    %2834 = vmatprep.subr.mxu0 0.0
    %2835 = vmatpush2.xpose.msra.mxu0 0.0
    %2836 = vmatprep.subr.mxu0 0.0
    %2837 = vmatpush2.xpose.msra.mxu0 0.0
    %2838 = vmatprep.subr.mxu0 0.0
    %2839 = vmatpush2.xpose.msra.mxu0 0.0
    %2840 = vmatprep.subr.mxu0 0.0
    %2841 = vmatpush2.xpose.msra.mxu0 0.0
    %2842 = vmatprep.subr.mxu0 0.0
    %2843 = vmatpush2.xpose.msra.mxu0 0.0
    %2844 = vmatprep.subr.mxu0 0.0
    %2845 = vmatpush2.xpose.msra.mxu0 0.0
    %2846 = vmatprep.subr.mxu0 0.0
    %2847 = vmatpush2.xpose.msra.mxu0 0.0
    %2848 = vmatprep.subr.mxu0 0.0
    %2849 = vmatpush2.xpose.msra.mxu0 0.0
    %2850 = vmatprep.subr.mxu0 0.0
    %2851 = vmatpush2.xpose.msra.mxu0 0.0
    %2852 = vmatprep.subr.mxu0 0.0
    %2853 = vmatpush2.xpose.msra.mxu0 0.0
    %2854 = vmatprep.subr.mxu0 0.0
    %2855 = vmatpush2.xpose.msra.mxu0 0.0
    %2856 = vmatprep.subr.mxu0 0.0
    %2857 = vmatpush2.xpose.msra.mxu0 0.0
    %2858 = vmatprep.subr.mxu0 0.0
    %2859 = vmatpush2.xpose.msra.mxu0 0.0
    %2860 = vmatprep.subr.mxu0 0.0
    %2861 = vmatpush2.xpose.msra.mxu0 0.0
    %2862 = vmatprep.subr.mxu0 0.0
    %2863 = vmatpush2.xpose.msra.mxu0 0.0
    %2864 = vmatprep.subr.mxu0 0.0
    %2865 = vmatpush2.xpose.msra.mxu0 0.0
    %2866 = vmatprep.mubr.f32.mxu0 0.0
    %2867 = vmatmul.mubr.f32.gmra.mxu0 %v2794
    %v2868 = vpop.f32.mrf.mxu0
    %v2869 = vadd.f32 0.0, %v2868
    %v2870 = vpop.f32.mrf.mxu0
    %2871 = vmatprep.mubr.f32.mxu0 0.0
    %2872 = vmatmul.mubr.f32.gmra.mxu0 %v2796
    %v2873 = vpop.f32.mrf.mxu0
    %v2874 = vadd.f32 0.0, %v2873
    %v2875 = vpop.f32.mrf.mxu0
    %2876 = vdwg.mxu0
    %2877 = vst.msk [vmem:[#allocation2 + $0x10] sm:$0xff] %vm484, %v2869
    %2878 = vst.msk [vmem:[#allocation2 + $0x18] sm:$0xff] %vm484, %v2874
    %2879 = vrot.lane.b32.xlu0 %v2612, 112
    %v2880 = vpop.permute.xlu0 %2879
    %2881 = vrot.lane.b32.xlu0 %v2618, 112
    %v2882 = vpop.permute.xlu0 %2881
    %2883 = vrot.lane.b32.xlu0 %v2614, 112
    %v2884 = vpop.permute.xlu0 %2883
    %2885 = vrot.lane.b32.xlu0 %v2620, 112
    %v2886 = vpop.permute.xlu0 %2885
    %v2887 = vsel %vm396, %v2880, 0
    %v2889 = vsel %vm396, %v2882, 0
    %v2891 = vsel %vm396, %v2884, 0
    %v2893 = vsel %vm396, %v2886, 0
    %2895 = vmatprep.subr.mxu0 0.0
    %2896 = vmatpush1.xpose.msra.mxu0 0.0
    %2897 = vmatprep.subr.mxu0 0.0
    %2898 = vmatpush1.xpose.msra.mxu0 0.0
    %2899 = vmatprep.subr.mxu0 0.0
    %2900 = vmatpush1.xpose.msra.mxu0 0.0
    %2901 = vmatprep.subr.mxu0 0.0
    %2902 = vmatpush1.xpose.msra.mxu0 0.0
    %2903 = vmatprep.subr.mxu0 0.0
    %2904 = vmatpush1.xpose.msra.mxu0 0.0
    %2905 = vmatprep.subr.mxu0 0.0
    %2906 = vmatpush1.xpose.msra.mxu0 0.0
    %2907 = vmatprep.subr.mxu0 0.0
    %2908 = vmatpush1.xpose.msra.mxu0 0.0
    %2909 = vmatprep.subr.mxu0 0.0
    %2910 = vmatpush1.xpose.msra.mxu0 0.0
    %2911 = vmatprep.subr.mxu0 0.0
    %2912 = vmatpush1.xpose.msra.mxu0 0.0
    %2913 = vmatprep.subr.mxu0 0.0
    %2914 = vmatpush1.xpose.msra.mxu0 0.0
    %2915 = vmatprep.subr.mxu0 0.0
    %2916 = vmatpush1.xpose.msra.mxu0 0.0
    %2917 = vmatprep.subr.mxu0 0.0
    %2918 = vmatpush1.xpose.msra.mxu0 0.0
    %2919 = vmatprep.subr.mxu0 0.0
    %2920 = vmatpush1.xpose.msra.mxu0 0.0
    %2921 = vmatprep.subr.mxu0 0.0
    %2922 = vmatpush1.xpose.msra.mxu0 0.0
    %2923 = vmatprep.subr.mxu0 0.0
    %2924 = vmatpush1.xpose.msra.mxu0 %v2893
    %2925 = vmatprep.subr.mxu0 0.0
    %2926 = vmatpush1.xpose.msra.mxu0 %v2891
    %2927 = vmatprep.subr.mxu0 0.0
    %2928 = vmatpush2.xpose.msra.mxu0 0.0
    %2929 = vmatprep.subr.mxu0 0.0
    %2930 = vmatpush2.xpose.msra.mxu0 0.0
    %2931 = vmatprep.subr.mxu0 0.0
    %2932 = vmatpush2.xpose.msra.mxu0 0.0
    %2933 = vmatprep.subr.mxu0 0.0
    %2934 = vmatpush2.xpose.msra.mxu0 0.0
    %2935 = vmatprep.subr.mxu0 0.0
    %2936 = vmatpush2.xpose.msra.mxu0 0.0
    %2937 = vmatprep.subr.mxu0 0.0
    %2938 = vmatpush2.xpose.msra.mxu0 0.0
    %2939 = vmatprep.subr.mxu0 0.0
    %2940 = vmatpush2.xpose.msra.mxu0 0.0
    %2941 = vmatprep.subr.mxu0 0.0
    %2942 = vmatpush2.xpose.msra.mxu0 0.0
    %2943 = vmatprep.subr.mxu0 0.0
    %2944 = vmatpush2.xpose.msra.mxu0 0.0
    %2945 = vmatprep.subr.mxu0 0.0
    %2946 = vmatpush2.xpose.msra.mxu0 0.0
    %2947 = vmatprep.subr.mxu0 0.0
    %2948 = vmatpush2.xpose.msra.mxu0 0.0
    %2949 = vmatprep.subr.mxu0 0.0
    %2950 = vmatpush2.xpose.msra.mxu0 0.0
    %2951 = vmatprep.subr.mxu0 0.0
    %2952 = vmatpush2.xpose.msra.mxu0 0.0
    %2953 = vmatprep.subr.mxu0 0.0
    %2954 = vmatpush2.xpose.msra.mxu0 0.0
    %2955 = vmatprep.subr.mxu0 0.0
    %2956 = vmatpush2.xpose.msra.mxu0 0.0
    %2957 = vmatprep.subr.mxu0 0.0
    %2958 = vmatpush2.xpose.msra.mxu0 0.0
    %2959 = vmatprep.mubr.f32.mxu0 0.0
    %2960 = vmatmul.mubr.f32.gmra.mxu0 %v2887
    %v2961 = vpop.f32.mrf.mxu0
    %v2962 = vadd.f32 0.0, %v2961
    %v2963 = vpop.f32.mrf.mxu0
    %2964 = vmatprep.mubr.f32.mxu0 0.0
    %2965 = vmatmul.mubr.f32.gmra.mxu0 %v2889
    %v2966 = vpop.f32.mrf.mxu0
    %v2967 = vadd.f32 0.0, %v2966
    %v2968 = vpop.f32.mrf.mxu0
    %2969 = vdwg.mxu0
    %2970 = vst.msk [vmem:[#allocation2 + $0x20] sm:$0xff] %vm484, %v2962
    %2971 = vst.msk [vmem:[#allocation2 + $0x28] sm:$0xff] %vm484, %v2967
    %2972 = vrot.lane.b32.xlu0 %v2612, 104
    %v2973 = vpop.permute.xlu0 %2972
    %2974 = vrot.lane.b32.xlu0 %v2618, 104
    %v2975 = vpop.permute.xlu0 %2974
    %2976 = vrot.lane.b32.xlu0 %v2614, 104
    %v2977 = vpop.permute.xlu0 %2976
    %2978 = vrot.lane.b32.xlu0 %v2620, 104
    %v2979 = vpop.permute.xlu0 %2978
    %v2980 = vsel %vm396, %v2973, 0
    %v2982 = vsel %vm396, %v2975, 0
    %v2984 = vsel %vm396, %v2977, 0
    %v2986 = vsel %vm396, %v2979, 0
    %2988 = vmatprep.subr.mxu0 0.0
    %2989 = vmatpush1.xpose.msra.mxu0 0.0
    %2990 = vmatprep.subr.mxu0 0.0
    %2991 = vmatpush1.xpose.msra.mxu0 0.0
    %2992 = vmatprep.subr.mxu0 0.0
    %2993 = vmatpush1.xpose.msra.mxu0 0.0
    %2994 = vmatprep.subr.mxu0 0.0
    %2995 = vmatpush1.xpose.msra.mxu0 0.0
    %2996 = vmatprep.subr.mxu0 0.0
    %2997 = vmatpush1.xpose.msra.mxu0 0.0
    %2998 = vmatprep.subr.mxu0 0.0
    %2999 = vmatpush1.xpose.msra.mxu0 0.0
    %3000 = vmatprep.subr.mxu0 0.0
    %3001 = vmatpush1.xpose.msra.mxu0 0.0
    %3002 = vmatprep.subr.mxu0 0.0
    %3003 = vmatpush1.xpose.msra.mxu0 0.0
    %3004 = vmatprep.subr.mxu0 0.0
    %3005 = vmatpush1.xpose.msra.mxu0 0.0
    %3006 = vmatprep.subr.mxu0 0.0
    %3007 = vmatpush1.xpose.msra.mxu0 0.0
    %3008 = vmatprep.subr.mxu0 0.0
    %3009 = vmatpush1.xpose.msra.mxu0 0.0
    %3010 = vmatprep.subr.mxu0 0.0
    %3011 = vmatpush1.xpose.msra.mxu0 0.0
    %3012 = vmatprep.subr.mxu0 0.0
    %3013 = vmatpush1.xpose.msra.mxu0 0.0
    %3014 = vmatprep.subr.mxu0 0.0
    %3015 = vmatpush1.xpose.msra.mxu0 0.0
    %3016 = vmatprep.subr.mxu0 0.0
    %3017 = vmatpush1.xpose.msra.mxu0 %v2986
    %3018 = vmatprep.subr.mxu0 0.0
    %3019 = vmatpush1.xpose.msra.mxu0 %v2984
    %3020 = vmatprep.subr.mxu0 0.0
    %3021 = vmatpush2.xpose.msra.mxu0 0.0
    %3022 = vmatprep.subr.mxu0 0.0
    %3023 = vmatpush2.xpose.msra.mxu0 0.0
    %3024 = vmatprep.subr.mxu0 0.0
    %3025 = vmatpush2.xpose.msra.mxu0 0.0
    %3026 = vmatprep.subr.mxu0 0.0
    %3027 = vmatpush2.xpose.msra.mxu0 0.0
    %3028 = vmatprep.subr.mxu0 0.0
    %3029 = vmatpush2.xpose.msra.mxu0 0.0
    %3030 = vmatprep.subr.mxu0 0.0
    %3031 = vmatpush2.xpose.msra.mxu0 0.0
    %3032 = vmatprep.subr.mxu0 0.0
    %3033 = vmatpush2.xpose.msra.mxu0 0.0
    %3034 = vmatprep.subr.mxu0 0.0
    %3035 = vmatpush2.xpose.msra.mxu0 0.0
    %3036 = vmatprep.subr.mxu0 0.0
    %3037 = vmatpush2.xpose.msra.mxu0 0.0
    %3038 = vmatprep.subr.mxu0 0.0
    %3039 = vmatpush2.xpose.msra.mxu0 0.0
    %3040 = vmatprep.subr.mxu0 0.0
    %3041 = vmatpush2.xpose.msra.mxu0 0.0
    %3042 = vmatprep.subr.mxu0 0.0
    %3043 = vmatpush2.xpose.msra.mxu0 0.0
    %3044 = vmatprep.subr.mxu0 0.0
    %3045 = vmatpush2.xpose.msra.mxu0 0.0
    %3046 = vmatprep.subr.mxu0 0.0
    %3047 = vmatpush2.xpose.msra.mxu0 0.0
    %3048 = vmatprep.subr.mxu0 0.0
    %3049 = vmatpush2.xpose.msra.mxu0 0.0
    %3050 = vmatprep.subr.mxu0 0.0
    %3051 = vmatpush2.xpose.msra.mxu0 0.0
    %3052 = vmatprep.mubr.f32.mxu0 0.0
    %3053 = vmatmul.mubr.f32.gmra.mxu0 %v2980
    %v3054 = vpop.f32.mrf.mxu0
    %v3055 = vadd.f32 0.0, %v3054
    %v3056 = vpop.f32.mrf.mxu0
    %3057 = vmatprep.mubr.f32.mxu0 0.0
    %3058 = vmatmul.mubr.f32.gmra.mxu0 %v2982
    %v3059 = vpop.f32.mrf.mxu0
    %v3060 = vadd.f32 0.0, %v3059
    %v3061 = vpop.f32.mrf.mxu0
    %3062 = vdwg.mxu0
    %3063 = vst.msk [vmem:[#allocation2 + $0x30] sm:$0xff] %vm484, %v3055
    %3064 = vst.msk [vmem:[#allocation2 + $0x38] sm:$0xff] %vm484, %v3060
    %3065 = vrot.lane.b32.xlu0 %v2612, 96
    %v3066 = vpop.permute.xlu0 %3065
    %3067 = vrot.lane.b32.xlu0 %v2618, 96
    %v3068 = vpop.permute.xlu0 %3067
    %3069 = vrot.lane.b32.xlu0 %v2614, 96
    %v3070 = vpop.permute.xlu0 %3069
    %3071 = vrot.lane.b32.xlu0 %v2620, 96
    %v3072 = vpop.permute.xlu0 %3071
    %v3073 = vsel %vm396, %v3066, 0
    %v3075 = vsel %vm396, %v3068, 0
    %v3077 = vsel %vm396, %v3070, 0
    %v3079 = vsel %vm396, %v3072, 0
    %3081 = vmatprep.subr.mxu0 0.0
    %3082 = vmatpush1.xpose.msra.mxu0 0.0
    %3083 = vmatprep.subr.mxu0 0.0
    %3084 = vmatpush1.xpose.msra.mxu0 0.0
    %3085 = vmatprep.subr.mxu0 0.0
    %3086 = vmatpush1.xpose.msra.mxu0 0.0
    %3087 = vmatprep.subr.mxu0 0.0
    %3088 = vmatpush1.xpose.msra.mxu0 0.0
    %3089 = vmatprep.subr.mxu0 0.0
    %3090 = vmatpush1.xpose.msra.mxu0 0.0
    %3091 = vmatprep.subr.mxu0 0.0
    %3092 = vmatpush1.xpose.msra.mxu0 0.0
    %3093 = vmatprep.subr.mxu0 0.0
    %3094 = vmatpush1.xpose.msra.mxu0 0.0
    %3095 = vmatprep.subr.mxu0 0.0
    %3096 = vmatpush1.xpose.msra.mxu0 0.0
    %3097 = vmatprep.subr.mxu0 0.0
    %3098 = vmatpush1.xpose.msra.mxu0 0.0
    %3099 = vmatprep.subr.mxu0 0.0
    %3100 = vmatpush1.xpose.msra.mxu0 0.0
    %3101 = vmatprep.subr.mxu0 0.0
    %3102 = vmatpush1.xpose.msra.mxu0 0.0
    %3103 = vmatprep.subr.mxu0 0.0
    %3104 = vmatpush1.xpose.msra.mxu0 0.0
    %3105 = vmatprep.subr.mxu0 0.0
    %3106 = vmatpush1.xpose.msra.mxu0 0.0
    %3107 = vmatprep.subr.mxu0 0.0
    %3108 = vmatpush1.xpose.msra.mxu0 0.0
    %3109 = vmatprep.subr.mxu0 0.0
    %3110 = vmatpush1.xpose.msra.mxu0 %v3079
    %3111 = vmatprep.subr.mxu0 0.0
    %3112 = vmatpush1.xpose.msra.mxu0 %v3077
    %3113 = vmatprep.subr.mxu0 0.0
    %3114 = vmatpush2.xpose.msra.mxu0 0.0
    %3115 = vmatprep.subr.mxu0 0.0
    %3116 = vmatpush2.xpose.msra.mxu0 0.0
    %3117 = vmatprep.subr.mxu0 0.0
    %3118 = vmatpush2.xpose.msra.mxu0 0.0
    %3119 = vmatprep.subr.mxu0 0.0
    %3120 = vmatpush2.xpose.msra.mxu0 0.0
    %3121 = vmatprep.subr.mxu0 0.0
    %3122 = vmatpush2.xpose.msra.mxu0 0.0
    %3123 = vmatprep.subr.mxu0 0.0
    %3124 = vmatpush2.xpose.msra.mxu0 0.0
    %3125 = vmatprep.subr.mxu0 0.0
    %3126 = vmatpush2.xpose.msra.mxu0 0.0
    %3127 = vmatprep.subr.mxu0 0.0
    %3128 = vmatpush2.xpose.msra.mxu0 0.0
    %3129 = vmatprep.subr.mxu0 0.0
    %3130 = vmatpush2.xpose.msra.mxu0 0.0
    %3131 = vmatprep.subr.mxu0 0.0
    %3132 = vmatpush2.xpose.msra.mxu0 0.0
    %3133 = vmatprep.subr.mxu0 0.0
    %3134 = vmatpush2.xpose.msra.mxu0 0.0
    %3135 = vmatprep.subr.mxu0 0.0
    %3136 = vmatpush2.xpose.msra.mxu0 0.0
    %3137 = vmatprep.subr.mxu0 0.0
    %3138 = vmatpush2.xpose.msra.mxu0 0.0
    %3139 = vmatprep.subr.mxu0 0.0
    %3140 = vmatpush2.xpose.msra.mxu0 0.0
    %3141 = vmatprep.subr.mxu0 0.0
    %3142 = vmatpush2.xpose.msra.mxu0 0.0
    %3143 = vmatprep.subr.mxu0 0.0
    %3144 = vmatpush2.xpose.msra.mxu0 0.0
    %3145 = vmatprep.mubr.f32.mxu0 0.0
    %3146 = vmatmul.mubr.f32.gmra.mxu0 %v3073
    %v3147 = vpop.f32.mrf.mxu0
    %v3148 = vadd.f32 0.0, %v3147
    %v3149 = vpop.f32.mrf.mxu0
    %3150 = vmatprep.mubr.f32.mxu0 0.0
    %3151 = vmatmul.mubr.f32.gmra.mxu0 %v3075
    %v3152 = vpop.f32.mrf.mxu0
    %v3153 = vadd.f32 0.0, %v3152
    %v3154 = vpop.f32.mrf.mxu0
    %3155 = vdwg.mxu0
    %3156 = vst.msk [vmem:[#allocation2 + $0x40] sm:$0xff] %vm484, %v3148
    %3157 = vst.msk [vmem:[#allocation2 + $0x48] sm:$0xff] %vm484, %v3153
    %3158 = vrot.lane.b32.xlu0 %v2612, 88
    %v3159 = vpop.permute.xlu0 %3158
    %3160 = vrot.lane.b32.xlu0 %v2618, 88
    %v3161 = vpop.permute.xlu0 %3160
    %3162 = vrot.lane.b32.xlu0 %v2614, 88
    %v3163 = vpop.permute.xlu0 %3162
    %3164 = vrot.lane.b32.xlu0 %v2620, 88
    %v3165 = vpop.permute.xlu0 %3164
    %v3166 = vsel %vm396, %v3159, 0
    %v3168 = vsel %vm396, %v3161, 0
    %v3170 = vsel %vm396, %v3163, 0
    %v3172 = vsel %vm396, %v3165, 0
    %3174 = vmatprep.subr.mxu0 0.0
    %3175 = vmatpush1.xpose.msra.mxu0 0.0
    %3176 = vmatprep.subr.mxu0 0.0
    %3177 = vmatpush1.xpose.msra.mxu0 0.0
    %3178 = vmatprep.subr.mxu0 0.0
    %3179 = vmatpush1.xpose.msra.mxu0 0.0
    %3180 = vmatprep.subr.mxu0 0.0
    %3181 = vmatpush1.xpose.msra.mxu0 0.0
    %3182 = vmatprep.subr.mxu0 0.0
    %3183 = vmatpush1.xpose.msra.mxu0 0.0
    %3184 = vmatprep.subr.mxu0 0.0
    %3185 = vmatpush1.xpose.msra.mxu0 0.0
    %3186 = vmatprep.subr.mxu0 0.0
    %3187 = vmatpush1.xpose.msra.mxu0 0.0
    %3188 = vmatprep.subr.mxu0 0.0
    %3189 = vmatpush1.xpose.msra.mxu0 0.0
    %3190 = vmatprep.subr.mxu0 0.0
    %3191 = vmatpush1.xpose.msra.mxu0 0.0
    %3192 = vmatprep.subr.mxu0 0.0
    %3193 = vmatpush1.xpose.msra.mxu0 0.0
    %3194 = vmatprep.subr.mxu0 0.0
    %3195 = vmatpush1.xpose.msra.mxu0 0.0
    %3196 = vmatprep.subr.mxu0 0.0
    %3197 = vmatpush1.xpose.msra.mxu0 0.0
    %3198 = vmatprep.subr.mxu0 0.0
    %3199 = vmatpush1.xpose.msra.mxu0 0.0
    %3200 = vmatprep.subr.mxu0 0.0
    %3201 = vmatpush1.xpose.msra.mxu0 0.0
    %3202 = vmatprep.subr.mxu0 0.0
    %3203 = vmatpush1.xpose.msra.mxu0 %v3172
    %3204 = vmatprep.subr.mxu0 0.0
    %3205 = vmatpush1.xpose.msra.mxu0 %v3170
    %3206 = vmatprep.subr.mxu0 0.0
    %3207 = vmatpush2.xpose.msra.mxu0 0.0
    %3208 = vmatprep.subr.mxu0 0.0
    %3209 = vmatpush2.xpose.msra.mxu0 0.0
    %3210 = vmatprep.subr.mxu0 0.0
    %3211 = vmatpush2.xpose.msra.mxu0 0.0
    %3212 = vmatprep.subr.mxu0 0.0
    %3213 = vmatpush2.xpose.msra.mxu0 0.0
    %3214 = vmatprep.subr.mxu0 0.0
    %3215 = vmatpush2.xpose.msra.mxu0 0.0
    %3216 = vmatprep.subr.mxu0 0.0
    %3217 = vmatpush2.xpose.msra.mxu0 0.0
    %3218 = vmatprep.subr.mxu0 0.0
    %3219 = vmatpush2.xpose.msra.mxu0 0.0
    %3220 = vmatprep.subr.mxu0 0.0
    %3221 = vmatpush2.xpose.msra.mxu0 0.0
    %3222 = vmatprep.subr.mxu0 0.0
    %3223 = vmatpush2.xpose.msra.mxu0 0.0
    %3224 = vmatprep.subr.mxu0 0.0
    %3225 = vmatpush2.xpose.msra.mxu0 0.0
    %3226 = vmatprep.subr.mxu0 0.0
    %3227 = vmatpush2.xpose.msra.mxu0 0.0
    %3228 = vmatprep.subr.mxu0 0.0
    %3229 = vmatpush2.xpose.msra.mxu0 0.0
    %3230 = vmatprep.subr.mxu0 0.0
    %3231 = vmatpush2.xpose.msra.mxu0 0.0
    %3232 = vmatprep.subr.mxu0 0.0
    %3233 = vmatpush2.xpose.msra.mxu0 0.0
    %3234 = vmatprep.subr.mxu0 0.0
    %3235 = vmatpush2.xpose.msra.mxu0 0.0
    %3236 = vmatprep.subr.mxu0 0.0
    %3237 = vmatpush2.xpose.msra.mxu0 0.0
    %3238 = vmatprep.mubr.f32.mxu0 0.0
    %3239 = vmatmul.mubr.f32.gmra.mxu0 %v3166
    %v3240 = vpop.f32.mrf.mxu0
    %v3241 = vadd.f32 0.0, %v3240
    %v3242 = vpop.f32.mrf.mxu0
    %3243 = vmatprep.mubr.f32.mxu0 0.0
    %3244 = vmatmul.mubr.f32.gmra.mxu0 %v3168
    %v3245 = vpop.f32.mrf.mxu0
    %v3246 = vadd.f32 0.0, %v3245
    %v3247 = vpop.f32.mrf.mxu0
    %3248 = vdwg.mxu0
    %3249 = vst.msk [vmem:[#allocation2 + $0x50] sm:$0xff] %vm484, %v3241
    %3250 = vst.msk [vmem:[#allocation2 + $0x58] sm:$0xff] %vm484, %v3246
    %3251 = vrot.lane.b32.xlu0 %v2612, 80
    %v3252 = vpop.permute.xlu0 %3251
    %3253 = vrot.lane.b32.xlu0 %v2618, 80
    %v3254 = vpop.permute.xlu0 %3253
    %3255 = vrot.lane.b32.xlu0 %v2614, 80
    %v3256 = vpop.permute.xlu0 %3255
    %3257 = vrot.lane.b32.xlu0 %v2620, 80
    %v3258 = vpop.permute.xlu0 %3257
    %v3259 = vsel %vm396, %v3252, 0
    %v3261 = vsel %vm396, %v3254, 0
    %v3263 = vsel %vm396, %v3256, 0
    %v3265 = vsel %vm396, %v3258, 0
    %3267 = vmatprep.subr.mxu0 0.0
    %3268 = vmatpush1.xpose.msra.mxu0 0.0
    %3269 = vmatprep.subr.mxu0 0.0
    %3270 = vmatpush1.xpose.msra.mxu0 0.0
    %3271 = vmatprep.subr.mxu0 0.0
    %3272 = vmatpush1.xpose.msra.mxu0 0.0
    %3273 = vmatprep.subr.mxu0 0.0
    %3274 = vmatpush1.xpose.msra.mxu0 0.0
    %3275 = vmatprep.subr.mxu0 0.0
    %3276 = vmatpush1.xpose.msra.mxu0 0.0
    %3277 = vmatprep.subr.mxu0 0.0
    %3278 = vmatpush1.xpose.msra.mxu0 0.0
    %3279 = vmatprep.subr.mxu0 0.0
    %3280 = vmatpush1.xpose.msra.mxu0 0.0
    %3281 = vmatprep.subr.mxu0 0.0
    %3282 = vmatpush1.xpose.msra.mxu0 0.0
    %3283 = vmatprep.subr.mxu0 0.0
    %3284 = vmatpush1.xpose.msra.mxu0 0.0
    %3285 = vmatprep.subr.mxu0 0.0
    %3286 = vmatpush1.xpose.msra.mxu0 0.0
    %3287 = vmatprep.subr.mxu0 0.0
    %3288 = vmatpush1.xpose.msra.mxu0 0.0
    %3289 = vmatprep.subr.mxu0 0.0
    %3290 = vmatpush1.xpose.msra.mxu0 0.0
    %3291 = vmatprep.subr.mxu0 0.0
    %3292 = vmatpush1.xpose.msra.mxu0 0.0
    %3293 = vmatprep.subr.mxu0 0.0
    %3294 = vmatpush1.xpose.msra.mxu0 0.0
    %3295 = vmatprep.subr.mxu0 0.0
    %3296 = vmatpush1.xpose.msra.mxu0 %v3265
    %3297 = vmatprep.subr.mxu0 0.0
    %3298 = vmatpush1.xpose.msra.mxu0 %v3263
    %3299 = vmatprep.subr.mxu0 0.0
    %3300 = vmatpush2.xpose.msra.mxu0 0.0
    %3301 = vmatprep.subr.mxu0 0.0
    %3302 = vmatpush2.xpose.msra.mxu0 0.0
    %3303 = vmatprep.subr.mxu0 0.0
    %3304 = vmatpush2.xpose.msra.mxu0 0.0
    %3305 = vmatprep.subr.mxu0 0.0
    %3306 = vmatpush2.xpose.msra.mxu0 0.0
    %3307 = vmatprep.subr.mxu0 0.0
    %3308 = vmatpush2.xpose.msra.mxu0 0.0
    %3309 = vmatprep.subr.mxu0 0.0
    %3310 = vmatpush2.xpose.msra.mxu0 0.0
    %3311 = vmatprep.subr.mxu0 0.0
    %3312 = vmatpush2.xpose.msra.mxu0 0.0
    %3313 = vmatprep.subr.mxu0 0.0
    %3314 = vmatpush2.xpose.msra.mxu0 0.0
    %3315 = vmatprep.subr.mxu0 0.0
    %3316 = vmatpush2.xpose.msra.mxu0 0.0
    %3317 = vmatprep.subr.mxu0 0.0
    %3318 = vmatpush2.xpose.msra.mxu0 0.0
    %3319 = vmatprep.subr.mxu0 0.0
    %3320 = vmatpush2.xpose.msra.mxu0 0.0
    %3321 = vmatprep.subr.mxu0 0.0
    %3322 = vmatpush2.xpose.msra.mxu0 0.0
    %3323 = vmatprep.subr.mxu0 0.0
    %3324 = vmatpush2.xpose.msra.mxu0 0.0
    %3325 = vmatprep.subr.mxu0 0.0
    %3326 = vmatpush2.xpose.msra.mxu0 0.0
    %3327 = vmatprep.subr.mxu0 0.0
    %3328 = vmatpush2.xpose.msra.mxu0 0.0
    %3329 = vmatprep.subr.mxu0 0.0
    %3330 = vmatpush2.xpose.msra.mxu0 0.0
    %3331 = vmatprep.mubr.f32.mxu0 0.0
    %3332 = vmatmul.mubr.f32.gmra.mxu0 %v3259
    %v3333 = vpop.f32.mrf.mxu0
    %v3334 = vadd.f32 0.0, %v3333
    %v3335 = vpop.f32.mrf.mxu0
    %3336 = vmatprep.mubr.f32.mxu0 0.0
    %3337 = vmatmul.mubr.f32.gmra.mxu0 %v3261
    %v3338 = vpop.f32.mrf.mxu0
    %v3339 = vadd.f32 0.0, %v3338
    %v3340 = vpop.f32.mrf.mxu0
    %3341 = vdwg.mxu0
    %3342 = vst.msk [vmem:[#allocation2 + $0x60] sm:$0xff] %vm484, %v3334
    %3343 = vst.msk [vmem:[#allocation2 + $0x68] sm:$0xff] %vm484, %v3339
    %3344 = vrot.lane.b32.xlu0 %v2612, 72
    %v3345 = vpop.permute.xlu0 %3344
    %3346 = vrot.lane.b32.xlu0 %v2618, 72
    %v3347 = vpop.permute.xlu0 %3346
    %3348 = vrot.lane.b32.xlu0 %v2614, 72
    %v3349 = vpop.permute.xlu0 %3348
    %3350 = vrot.lane.b32.xlu0 %v2620, 72
    %v3351 = vpop.permute.xlu0 %3350
    %v3352 = vsel %vm396, %v3345, 0
    %v3354 = vsel %vm396, %v3347, 0
    %v3356 = vsel %vm396, %v3349, 0
    %v3358 = vsel %vm396, %v3351, 0
    %3360 = vmatprep.subr.mxu0 0.0
    %3361 = vmatpush1.xpose.msra.mxu0 0.0
    %3362 = vmatprep.subr.mxu0 0.0
    %3363 = vmatpush1.xpose.msra.mxu0 0.0
    %3364 = vmatprep.subr.mxu0 0.0
    %3365 = vmatpush1.xpose.msra.mxu0 0.0
    %3366 = vmatprep.subr.mxu0 0.0
    %3367 = vmatpush1.xpose.msra.mxu0 0.0
    %3368 = vmatprep.subr.mxu0 0.0
    %3369 = vmatpush1.xpose.msra.mxu0 0.0
    %3370 = vmatprep.subr.mxu0 0.0
    %3371 = vmatpush1.xpose.msra.mxu0 0.0
    %3372 = vmatprep.subr.mxu0 0.0
    %3373 = vmatpush1.xpose.msra.mxu0 0.0
    %3374 = vmatprep.subr.mxu0 0.0
    %3375 = vmatpush1.xpose.msra.mxu0 0.0
    %3376 = vmatprep.subr.mxu0 0.0
    %3377 = vmatpush1.xpose.msra.mxu0 0.0
    %3378 = vmatprep.subr.mxu0 0.0
    %3379 = vmatpush1.xpose.msra.mxu0 0.0
    %3380 = vmatprep.subr.mxu0 0.0
    %3381 = vmatpush1.xpose.msra.mxu0 0.0
    %3382 = vmatprep.subr.mxu0 0.0
    %3383 = vmatpush1.xpose.msra.mxu0 0.0
    %3384 = vmatprep.subr.mxu0 0.0
    %3385 = vmatpush1.xpose.msra.mxu0 0.0
    %3386 = vmatprep.subr.mxu0 0.0
    %3387 = vmatpush1.xpose.msra.mxu0 0.0
    %3388 = vmatprep.subr.mxu0 0.0
    %3389 = vmatpush1.xpose.msra.mxu0 %v3358
    %3390 = vmatprep.subr.mxu0 0.0
    %3391 = vmatpush1.xpose.msra.mxu0 %v3356
    %3392 = vmatprep.subr.mxu0 0.0
    %3393 = vmatpush2.xpose.msra.mxu0 0.0
    %3394 = vmatprep.subr.mxu0 0.0
    %3395 = vmatpush2.xpose.msra.mxu0 0.0
    %3396 = vmatprep.subr.mxu0 0.0
    %3397 = vmatpush2.xpose.msra.mxu0 0.0
    %3398 = vmatprep.subr.mxu0 0.0
    %3399 = vmatpush2.xpose.msra.mxu0 0.0
    %3400 = vmatprep.subr.mxu0 0.0
    %3401 = vmatpush2.xpose.msra.mxu0 0.0
    %3402 = vmatprep.subr.mxu0 0.0
    %3403 = vmatpush2.xpose.msra.mxu0 0.0
    %3404 = vmatprep.subr.mxu0 0.0
    %3405 = vmatpush2.xpose.msra.mxu0 0.0
    %3406 = vmatprep.subr.mxu0 0.0
    %3407 = vmatpush2.xpose.msra.mxu0 0.0
    %3408 = vmatprep.subr.mxu0 0.0
    %3409 = vmatpush2.xpose.msra.mxu0 0.0
    %3410 = vmatprep.subr.mxu0 0.0
    %3411 = vmatpush2.xpose.msra.mxu0 0.0
    %3412 = vmatprep.subr.mxu0 0.0
    %3413 = vmatpush2.xpose.msra.mxu0 0.0
    %3414 = vmatprep.subr.mxu0 0.0
    %3415 = vmatpush2.xpose.msra.mxu0 0.0
    %3416 = vmatprep.subr.mxu0 0.0
    %3417 = vmatpush2.xpose.msra.mxu0 0.0
    %3418 = vmatprep.subr.mxu0 0.0
    %3419 = vmatpush2.xpose.msra.mxu0 0.0
    %3420 = vmatprep.subr.mxu0 0.0
    %3421 = vmatpush2.xpose.msra.mxu0 0.0
    %3422 = vmatprep.subr.mxu0 0.0
    %3423 = vmatpush2.xpose.msra.mxu0 0.0
    %3424 = vmatprep.mubr.f32.mxu0 0.0
    %3425 = vmatmul.mubr.f32.gmra.mxu0 %v3352
    %v3426 = vpop.f32.mrf.mxu0
    %v3427 = vadd.f32 0.0, %v3426
    %v3428 = vpop.f32.mrf.mxu0
    %3429 = vmatprep.mubr.f32.mxu0 0.0
    %3430 = vmatmul.mubr.f32.gmra.mxu0 %v3354
    %v3431 = vpop.f32.mrf.mxu0
    %v3432 = vadd.f32 0.0, %v3431
    %v3433 = vpop.f32.mrf.mxu0
    %3434 = vdwg.mxu0
    %3435 = vst.msk [vmem:[#allocation2 + $0x70] sm:$0xff] %vm484, %v3427
    %3436 = vst.msk [vmem:[#allocation2 + $0x78] sm:$0xff] %vm484, %v3432
    %v3437 = vld [vmem:[#allocation2] sm:$0xff]
    %v3438 = vld [vmem:[#allocation2 + $0x8] sm:$0xff]
    %v3439 = vld [vmem:[#allocation2 + $0x10] sm:$0xff]
    %v3440 = vld [vmem:[#allocation2 + $0x18] sm:$0xff]
    %v3441 = vld [vmem:[#allocation2 + $0x20] sm:$0xff]
    %v3442 = vld [vmem:[#allocation2 + $0x28] sm:$0xff]
    %v3443 = vld [vmem:[#allocation2 + $0x30] sm:$0xff]
    %v3444 = vld [vmem:[#allocation2 + $0x38] sm:$0xff]
    %v3445 = vld [vmem:[#allocation2 + $0x40] sm:$0xff]
    %v3446 = vld [vmem:[#allocation2 + $0x48] sm:$0xff]
    %v3447 = vld [vmem:[#allocation2 + $0x50] sm:$0xff]
    %v3448 = vld [vmem:[#allocation2 + $0x58] sm:$0xff]
    %v3449 = vld [vmem:[#allocation2 + $0x60] sm:$0xff]
    %v3450 = vld [vmem:[#allocation2 + $0x68] sm:$0xff]
    %v3451 = vld [vmem:[#allocation2 + $0x70] sm:$0xff]
    %v3452 = vld [vmem:[#allocation2 + $0x78] sm:$0xff]
    %v3453 = vadd.f32 %v3437, %v114
    %v3454 = vadd.f32 %v3438, %v115
    %v3455 = vadd.f32 %v3439, %v116
    %v3456 = vadd.f32 %v3440, %v117
    %v3457 = vadd.f32 %v3441, %v118
    %v3458 = vadd.f32 %v3442, %v119
    %v3459 = vadd.f32 %v3443, %v120
    %v3460 = vadd.f32 %v3444, %v121
    %v3461 = vadd.f32 %v3445, %v122
    %v3462 = vadd.f32 %v3446, %v123
    %v3463 = vadd.f32 %v3447, %v124
    %v3464 = vadd.f32 %v3448, %v125
    %v3465 = vadd.f32 %v3449, %v126
    %v3466 = vadd.f32 %v3450, %v127
    %v3467 = vadd.f32 %v3451, %v128
    %v3468 = vadd.f32 %v3452, %v129
    %v3469 = vsel %vm484, %v3453, -inf
    %3470 = vmax.xlane.f32.xlu0 %v3469
    %v3471 = vpop.xlane.xlu0 %3470
    %v3472 = vsel %vm484, %v3454, -inf
    %3473 = vmax.xlane.f32.xlu0 %v3472
    %v3474 = vpop.xlane.xlu0 %3473
    %v3475 = vsel %vm484, %v3455, -inf
    %3476 = vmax.xlane.f32.xlu0 %v3475
    %v3477 = vpop.xlane.xlu0 %3476
    %v3478 = vsel %vm484, %v3456, -inf
    %3479 = vmax.xlane.f32.xlu0 %v3478
    %v3480 = vpop.xlane.xlu0 %3479
    %v3481 = vsel %vm484, %v3457, -inf
    %3482 = vmax.xlane.f32.xlu0 %v3481
    %v3483 = vpop.xlane.xlu0 %3482
    %v3484 = vsel %vm484, %v3458, -inf
    %3485 = vmax.xlane.f32.xlu0 %v3484
    %v3486 = vpop.xlane.xlu0 %3485
    %v3487 = vsel %vm484, %v3459, -inf
    %3488 = vmax.xlane.f32.xlu0 %v3487
    %v3489 = vpop.xlane.xlu0 %3488
    %v3490 = vsel %vm484, %v3460, -inf
    %3491 = vmax.xlane.f32.xlu0 %v3490
    %v3492 = vpop.xlane.xlu0 %3491
    %v3493 = vsel %vm484, %v3461, -inf
    %3494 = vmax.xlane.f32.xlu0 %v3493
    %v3495 = vpop.xlane.xlu0 %3494
    %v3496 = vsel %vm484, %v3462, -inf
    %3497 = vmax.xlane.f32.xlu0 %v3496
    %v3498 = vpop.xlane.xlu0 %3497
    %v3499 = vsel %vm484, %v3463, -inf
    %3500 = vmax.xlane.f32.xlu0 %v3499
    %v3501 = vpop.xlane.xlu0 %3500
    %v3502 = vsel %vm484, %v3464, -inf
    %3503 = vmax.xlane.f32.xlu0 %v3502
    %v3504 = vpop.xlane.xlu0 %3503
    %v3505 = vsel %vm484, %v3465, -inf
    %3506 = vmax.xlane.f32.xlu0 %v3505
    %v3507 = vpop.xlane.xlu0 %3506
    %v3508 = vsel %vm484, %v3466, -inf
    %3509 = vmax.xlane.f32.xlu0 %v3508
    %v3510 = vpop.xlane.xlu0 %3509
    %v3511 = vsel %vm484, %v3467, -inf
    %3512 = vmax.xlane.f32.xlu0 %v3511
    %v3513 = vpop.xlane.xlu0 %3512
    %v3514 = vsel %vm484, %v3468, -inf
    %3515 = vmax.xlane.f32.xlu0 %v3514
    %v3516 = vpop.xlane.xlu0 %3515
    %v3517 = vsub.f32 %v3453, %v3471
    %v3518 = vsub.f32 %v3454, %v3474
    %v3519 = vsub.f32 %v3455, %v3477
    %v3520 = vsub.f32 %v3456, %v3480
    %v3521 = vsub.f32 %v3457, %v3483
    %v3522 = vsub.f32 %v3458, %v3486
    %v3523 = vsub.f32 %v3459, %v3489
    %v3524 = vsub.f32 %v3460, %v3492
    %v3525 = vsub.f32 %v3461, %v3495
    %v3526 = vsub.f32 %v3462, %v3498
    %v3527 = vsub.f32 %v3463, %v3501
    %v3528 = vsub.f32 %v3464, %v3504
    %v3529 = vsub.f32 %v3465, %v3507
    %v3530 = vsub.f32 %v3466, %v3510
    %v3531 = vsub.f32 %v3467, %v3513
    %v3532 = vsub.f32 %v3468, %v3516
    %v3533 = vmul.f32 %v3517, 1.442695
    %v3534 = vpow.pop %v3533
    %v3535 = vmul.f32 %v3518, 1.442695
    %v3536 = vpow.pop %v3535
    %v3537 = vmul.f32 %v3519, 1.442695
    %v3538 = vpow.pop %v3537
    %v3539 = vmul.f32 %v3520, 1.442695
    %v3540 = vpow.pop %v3539
    %v3541 = vmul.f32 %v3521, 1.442695
    %v3542 = vpow.pop %v3541
    %v3543 = vmul.f32 %v3522, 1.442695
    %v3544 = vpow.pop %v3543
    %v3545 = vmul.f32 %v3523, 1.442695
    %v3546 = vpow.pop %v3545
    %v3547 = vmul.f32 %v3524, 1.442695
    %v3548 = vpow.pop %v3547
    %v3549 = vmul.f32 %v3525, 1.442695
    %v3550 = vpow.pop %v3549
    %v3551 = vmul.f32 %v3526, 1.442695
    %v3552 = vpow.pop %v3551
    %v3553 = vmul.f32 %v3527, 1.442695
    %v3554 = vpow.pop %v3553
    %v3555 = vmul.f32 %v3528, 1.442695
    %v3556 = vpow.pop %v3555
    %v3557 = vmul.f32 %v3529, 1.442695
    %v3558 = vpow.pop %v3557
    %v3559 = vmul.f32 %v3530, 1.442695
    %v3560 = vpow.pop %v3559
    %v3561 = vmul.f32 %v3531, 1.442695
    %v3562 = vpow.pop %v3561
    %v3563 = vmul.f32 %v3532, 1.442695
    %v3564 = vpow.pop %v3563
    %v3565 = vsel %vm484, %v3534, 0.0
    %3566 = vadd.xlane.f32.xlu0 %v3565
    %v3567 = vpop.xlane.xlu0 %3566
    %v3568 = vsel %vm484, %v3536, 0.0
    %3569 = vadd.xlane.f32.xlu0 %v3568
    %v3570 = vpop.xlane.xlu0 %3569
    %v3571 = vsel %vm484, %v3538, 0.0
    %3572 = vadd.xlane.f32.xlu0 %v3571
    %v3573 = vpop.xlane.xlu0 %3572
    %v3574 = vsel %vm484, %v3540, 0.0
    %3575 = vadd.xlane.f32.xlu0 %v3574
    %v3576 = vpop.xlane.xlu0 %3575
    %v3577 = vsel %vm484, %v3542, 0.0
    %3578 = vadd.xlane.f32.xlu0 %v3577
    %v3579 = vpop.xlane.xlu0 %3578
    %v3580 = vsel %vm484, %v3544, 0.0
    %3581 = vadd.xlane.f32.xlu0 %v3580
    %v3582 = vpop.xlane.xlu0 %3581
    %v3583 = vsel %vm484, %v3546, 0.0
    %3584 = vadd.xlane.f32.xlu0 %v3583
    %v3585 = vpop.xlane.xlu0 %3584
    %v3586 = vsel %vm484, %v3548, 0.0
    %3587 = vadd.xlane.f32.xlu0 %v3586
    %v3588 = vpop.xlane.xlu0 %3587
    %v3589 = vsel %vm484, %v3550, 0.0
    %3590 = vadd.xlane.f32.xlu0 %v3589
    %v3591 = vpop.xlane.xlu0 %3590
    %v3592 = vsel %vm484, %v3552, 0.0
    %3593 = vadd.xlane.f32.xlu0 %v3592
    %v3594 = vpop.xlane.xlu0 %3593
    %v3595 = vsel %vm484, %v3554, 0.0
    %3596 = vadd.xlane.f32.xlu0 %v3595
    %v3597 = vpop.xlane.xlu0 %3596
    %v3598 = vsel %vm484, %v3556, 0.0
    %3599 = vadd.xlane.f32.xlu0 %v3598
    %v3600 = vpop.xlane.xlu0 %3599
    %v3601 = vsel %vm484, %v3558, 0.0
    %3602 = vadd.xlane.f32.xlu0 %v3601
    %v3603 = vpop.xlane.xlu0 %3602
    %v3604 = vsel %vm484, %v3560, 0.0
    %3605 = vadd.xlane.f32.xlu0 %v3604
    %v3606 = vpop.xlane.xlu0 %3605
    %v3607 = vsel %vm484, %v3562, 0.0
    %3608 = vadd.xlane.f32.xlu0 %v3607
    %v3609 = vpop.xlane.xlu0 %3608
    %v3610 = vsel %vm484, %v3564, 0.0
    %3611 = vadd.xlane.f32.xlu0 %v3610
    %v3612 = vpop.xlane.xlu0 %3611
    %v3613 = vrcp.pop %v3567
    %v3614 = vrcp.pop %v3570
    %v3615 = vrcp.pop %v3573
    %v3616 = vrcp.pop %v3576
    %v3617 = vrcp.pop %v3579
    %v3618 = vrcp.pop %v3582
    %v3619 = vrcp.pop %v3585
    %v3620 = vrcp.pop %v3588
    %v3621 = vrcp.pop %v3591
    %v3622 = vrcp.pop %v3594
    %v3623 = vrcp.pop %v3597
    %v3624 = vrcp.pop %v3600
    %v3625 = vrcp.pop %v3603
    %v3626 = vrcp.pop %v3606
    %v3627 = vrcp.pop %v3609
    %v3628 = vrcp.pop %v3612
    %v3629 = vmul.f32 %v3534, %v3613
    %v3630 = vmul.f32 %v3536, %v3614
    %v3631 = vmul.f32 %v3538, %v3615
    %v3632 = vmul.f32 %v3540, %v3616
    %v3633 = vmul.f32 %v3542, %v3617
    %v3634 = vmul.f32 %v3544, %v3618
    %v3635 = vmul.f32 %v3546, %v3619
    %v3636 = vmul.f32 %v3548, %v3620
    %v3637 = vmul.f32 %v3550, %v3621
    %v3638 = vmul.f32 %v3552, %v3622
    %v3639 = vmul.f32 %v3554, %v3623
    %v3640 = vmul.f32 %v3556, %v3624
    %v3641 = vmul.f32 %v3558, %v3625
    %v3642 = vmul.f32 %v3560, %v3626
    %v3643 = vmul.f32 %v3562, %v3627
    %v3644 = vmul.f32 %v3564, %v3628
    %v3646 = vsel %vm484, %v3629, 0
    %v3649 = vsel %vm484, %v3630, 0
    %3651 = vmatprep.subr.mxu0 0.0
    %3652 = vmatpush1.msra.mxu0 0.0
    %3653 = vmatprep.subr.mxu0 0.0
    %3654 = vmatpush1.msra.mxu0 0.0
    %3655 = vmatprep.subr.mxu0 0.0
    %3656 = vmatpush1.msra.mxu0 0.0
    %3657 = vmatprep.subr.mxu0 0.0
    %3658 = vmatpush1.msra.mxu0 0.0
    %3659 = vmatprep.subr.mxu0 0.0
    %3660 = vmatpush1.msra.mxu0 0.0
    %3661 = vmatprep.subr.mxu0 0.0
    %3662 = vmatpush1.msra.mxu0 0.0
    %3663 = vmatprep.subr.mxu0 0.0
    %3664 = vmatpush1.msra.mxu0 0.0
    %3665 = vmatprep.subr.mxu0 0.0
    %3666 = vmatpush1.msra.mxu0 0.0
    %3667 = vmatprep.subr.mxu0 0.0
    %3668 = vmatpush1.msra.mxu0 0.0
    %3669 = vmatprep.subr.mxu0 0.0
    %3670 = vmatpush1.msra.mxu0 0.0
    %3671 = vmatprep.subr.mxu0 0.0
    %3672 = vmatpush1.msra.mxu0 0.0
    %3673 = vmatprep.subr.mxu0 0.0
    %3674 = vmatpush1.msra.mxu0 0.0
    %3675 = vmatprep.subr.mxu0 0.0
    %3676 = vmatpush1.msra.mxu0 0.0
    %3677 = vmatprep.subr.mxu0 0.0
    %3678 = vmatpush1.msra.mxu0 0.0
    %3679 = vmatprep.subr.mxu0 0.0
    %3680 = vmatpush1.msra.mxu0 %v2694
    %3681 = vmatprep.subr.mxu0 0.0
    %3682 = vmatpush1.msra.mxu0 %v2689
    %3683 = vmatprep.subr.mxu0 0.0
    %3684 = vmatpush2.msra.mxu0 0.0
    %3685 = vmatprep.subr.mxu0 0.0
    %3686 = vmatpush2.msra.mxu0 0.0
    %3687 = vmatprep.subr.mxu0 0.0
    %3688 = vmatpush2.msra.mxu0 0.0
    %3689 = vmatprep.subr.mxu0 0.0
    %3690 = vmatpush2.msra.mxu0 0.0
    %3691 = vmatprep.subr.mxu0 0.0
    %3692 = vmatpush2.msra.mxu0 0.0
    %3693 = vmatprep.subr.mxu0 0.0
    %3694 = vmatpush2.msra.mxu0 0.0
    %3695 = vmatprep.subr.mxu0 0.0
    %3696 = vmatpush2.msra.mxu0 0.0
    %3697 = vmatprep.subr.mxu0 0.0
    %3698 = vmatpush2.msra.mxu0 0.0
    %3699 = vmatprep.subr.mxu0 0.0
    %3700 = vmatpush2.msra.mxu0 0.0
    %3701 = vmatprep.subr.mxu0 0.0
    %3702 = vmatpush2.msra.mxu0 0.0
    %3703 = vmatprep.subr.mxu0 0.0
    %3704 = vmatpush2.msra.mxu0 0.0
    %3705 = vmatprep.subr.mxu0 0.0
    %3706 = vmatpush2.msra.mxu0 0.0
    %3707 = vmatprep.subr.mxu0 0.0
    %3708 = vmatpush2.msra.mxu0 0.0
    %3709 = vmatprep.subr.mxu0 0.0
    %3710 = vmatpush2.msra.mxu0 0.0
    %3711 = vmatprep.subr.mxu0 0.0
    %3712 = vmatpush2.msra.mxu0 0.0
    %3713 = vmatprep.subr.mxu0 0.0
    %3714 = vmatpush2.msra.mxu0 0.0
    %3715 = vmatprep.mubr.f32.mxu0 0.0
    %3716 = vmatmul.mubr.f32.gmra.mxu0 %v3646
    %v3717 = vpop.f32.mrf.mxu0
    %v3718 = vadd.f32 0.0, %v3717
    %v3719 = vpop.f32.mrf.mxu0
    %3720 = vmatprep.mubr.f32.mxu0 0.0
    %3721 = vmatmul.mubr.f32.gmra.mxu0 %v3649
    %v3722 = vpop.f32.mrf.mxu0
    %v3723 = vadd.f32 0.0, %v3722
    %v3724 = vpop.f32.mrf.mxu0
    %3725 = vdwg.mxu0
    %3726 = vst.msk [vmem:[#allocation3] sm:$0xff] %vm396, %v3718
    %3727 = vst.msk [vmem:[#allocation3 + $0x8] sm:$0xff] %vm396, %v3723
    %3730 = vrot.lane.b32.xlu0 %v2689, 120
    %v3731 = vpop.permute.xlu0 %3730
    %3732 = vrot.lane.b32.xlu0 %v2694, 120
    %v3733 = vpop.permute.xlu0 %3732
    %v3737 = vsel %vm484, %v3631, 0
    %v3740 = vsel %vm484, %v3632, 0
    %3742 = vmatprep.subr.mxu0 0.0
    %3743 = vmatpush1.msra.mxu0 0.0
    %3744 = vmatprep.subr.mxu0 0.0
    %3745 = vmatpush1.msra.mxu0 0.0
    %3746 = vmatprep.subr.mxu0 0.0
    %3747 = vmatpush1.msra.mxu0 0.0
    %3748 = vmatprep.subr.mxu0 0.0
    %3749 = vmatpush1.msra.mxu0 0.0
    %3750 = vmatprep.subr.mxu0 0.0
    %3751 = vmatpush1.msra.mxu0 0.0
    %3752 = vmatprep.subr.mxu0 0.0
    %3753 = vmatpush1.msra.mxu0 0.0
    %3754 = vmatprep.subr.mxu0 0.0
    %3755 = vmatpush1.msra.mxu0 0.0
    %3756 = vmatprep.subr.mxu0 0.0
    %3757 = vmatpush1.msra.mxu0 0.0
    %3758 = vmatprep.subr.mxu0 0.0
    %3759 = vmatpush1.msra.mxu0 0.0
    %3760 = vmatprep.subr.mxu0 0.0
    %3761 = vmatpush1.msra.mxu0 0.0
    %3762 = vmatprep.subr.mxu0 0.0
    %3763 = vmatpush1.msra.mxu0 0.0
    %3764 = vmatprep.subr.mxu0 0.0
    %3765 = vmatpush1.msra.mxu0 0.0
    %3766 = vmatprep.subr.mxu0 0.0
    %3767 = vmatpush1.msra.mxu0 0.0
    %3768 = vmatprep.subr.mxu0 0.0
    %3769 = vmatpush1.msra.mxu0 0.0
    %3770 = vmatprep.subr.mxu0 0.0
    %3771 = vmatpush1.msra.mxu0 %v3733
    %3772 = vmatprep.subr.mxu0 0.0
    %3773 = vmatpush1.msra.mxu0 %v3731
    %3774 = vmatprep.subr.mxu0 0.0
    %3775 = vmatpush2.msra.mxu0 0.0
    %3776 = vmatprep.subr.mxu0 0.0
    %3777 = vmatpush2.msra.mxu0 0.0
    %3778 = vmatprep.subr.mxu0 0.0
    %3779 = vmatpush2.msra.mxu0 0.0
    %3780 = vmatprep.subr.mxu0 0.0
    %3781 = vmatpush2.msra.mxu0 0.0
    %3782 = vmatprep.subr.mxu0 0.0
    %3783 = vmatpush2.msra.mxu0 0.0
    %3784 = vmatprep.subr.mxu0 0.0
    %3785 = vmatpush2.msra.mxu0 0.0
    %3786 = vmatprep.subr.mxu0 0.0
    %3787 = vmatpush2.msra.mxu0 0.0
    %3788 = vmatprep.subr.mxu0 0.0
    %3789 = vmatpush2.msra.mxu0 0.0
    %3790 = vmatprep.subr.mxu0 0.0
    %3791 = vmatpush2.msra.mxu0 0.0
    %3792 = vmatprep.subr.mxu0 0.0
    %3793 = vmatpush2.msra.mxu0 0.0
    %3794 = vmatprep.subr.mxu0 0.0
    %3795 = vmatpush2.msra.mxu0 0.0
    %3796 = vmatprep.subr.mxu0 0.0
    %3797 = vmatpush2.msra.mxu0 0.0
    %3798 = vmatprep.subr.mxu0 0.0
    %3799 = vmatpush2.msra.mxu0 0.0
    %3800 = vmatprep.subr.mxu0 0.0
    %3801 = vmatpush2.msra.mxu0 0.0
    %3802 = vmatprep.subr.mxu0 0.0
    %3803 = vmatpush2.msra.mxu0 0.0
    %3804 = vmatprep.subr.mxu0 0.0
    %3805 = vmatpush2.msra.mxu0 0.0
    %3806 = vmatprep.mubr.f32.mxu0 0.0
    %3807 = vmatmul.mubr.f32.gmra.mxu0 %v3737
    %v3808 = vpop.f32.mrf.mxu0
    %v3809 = vadd.f32 0.0, %v3808
    %v3810 = vpop.f32.mrf.mxu0
    %3811 = vmatprep.mubr.f32.mxu0 0.0
    %3812 = vmatmul.mubr.f32.gmra.mxu0 %v3740
    %v3813 = vpop.f32.mrf.mxu0
    %v3814 = vadd.f32 0.0, %v3813
    %v3815 = vpop.f32.mrf.mxu0
    %3816 = vdwg.mxu0
    %3819 = vrot.lane.b32.xlu0 %v3809, 8
    %v3820 = vpop.permute.xlu0 %3819
    %3821 = vrot.lane.b32.xlu0 %v3814, 8
    %v3822 = vpop.permute.xlu0 %3821
    %3825 = vst.msk [vmem:[#allocation3] sm:$0xff] %vm1526, %v3820
    %3826 = vst.msk [vmem:[#allocation3 + $0x8] sm:$0xff] %vm1526, %v3822
    %3827 = vrot.lane.b32.xlu0 %v2689, 112
    %v3828 = vpop.permute.xlu0 %3827
    %3829 = vrot.lane.b32.xlu0 %v2694, 112
    %v3830 = vpop.permute.xlu0 %3829
    %v3834 = vsel %vm484, %v3633, 0
    %v3837 = vsel %vm484, %v3634, 0
    %3839 = vmatprep.subr.mxu0 0.0
    %3840 = vmatpush1.msra.mxu0 0.0
    %3841 = vmatprep.subr.mxu0 0.0
    %3842 = vmatpush1.msra.mxu0 0.0
    %3843 = vmatprep.subr.mxu0 0.0
    %3844 = vmatpush1.msra.mxu0 0.0
    %3845 = vmatprep.subr.mxu0 0.0
    %3846 = vmatpush1.msra.mxu0 0.0
    %3847 = vmatprep.subr.mxu0 0.0
    %3848 = vmatpush1.msra.mxu0 0.0
    %3849 = vmatprep.subr.mxu0 0.0
    %3850 = vmatpush1.msra.mxu0 0.0
    %3851 = vmatprep.subr.mxu0 0.0
    %3852 = vmatpush1.msra.mxu0 0.0
    %3853 = vmatprep.subr.mxu0 0.0
    %3854 = vmatpush1.msra.mxu0 0.0
    %3855 = vmatprep.subr.mxu0 0.0
    %3856 = vmatpush1.msra.mxu0 0.0
    %3857 = vmatprep.subr.mxu0 0.0
    %3858 = vmatpush1.msra.mxu0 0.0
    %3859 = vmatprep.subr.mxu0 0.0
    %3860 = vmatpush1.msra.mxu0 0.0
    %3861 = vmatprep.subr.mxu0 0.0
    %3862 = vmatpush1.msra.mxu0 0.0
    %3863 = vmatprep.subr.mxu0 0.0
    %3864 = vmatpush1.msra.mxu0 0.0
    %3865 = vmatprep.subr.mxu0 0.0
    %3866 = vmatpush1.msra.mxu0 0.0
    %3867 = vmatprep.subr.mxu0 0.0
    %3868 = vmatpush1.msra.mxu0 %v3830
    %3869 = vmatprep.subr.mxu0 0.0
    %3870 = vmatpush1.msra.mxu0 %v3828
    %3871 = vmatprep.subr.mxu0 0.0
    %3872 = vmatpush2.msra.mxu0 0.0
    %3873 = vmatprep.subr.mxu0 0.0
    %3874 = vmatpush2.msra.mxu0 0.0
    %3875 = vmatprep.subr.mxu0 0.0
    %3876 = vmatpush2.msra.mxu0 0.0
    %3877 = vmatprep.subr.mxu0 0.0
    %3878 = vmatpush2.msra.mxu0 0.0
    %3879 = vmatprep.subr.mxu0 0.0
    %3880 = vmatpush2.msra.mxu0 0.0
    %3881 = vmatprep.subr.mxu0 0.0
    %3882 = vmatpush2.msra.mxu0 0.0
    %3883 = vmatprep.subr.mxu0 0.0
    %3884 = vmatpush2.msra.mxu0 0.0
    %3885 = vmatprep.subr.mxu0 0.0
    %3886 = vmatpush2.msra.mxu0 0.0
    %3887 = vmatprep.subr.mxu0 0.0
    %3888 = vmatpush2.msra.mxu0 0.0
    %3889 = vmatprep.subr.mxu0 0.0
    %3890 = vmatpush2.msra.mxu0 0.0
    %3891 = vmatprep.subr.mxu0 0.0
    %3892 = vmatpush2.msra.mxu0 0.0
    %3893 = vmatprep.subr.mxu0 0.0
    %3894 = vmatpush2.msra.mxu0 0.0
    %3895 = vmatprep.subr.mxu0 0.0
    %3896 = vmatpush2.msra.mxu0 0.0
    %3897 = vmatprep.subr.mxu0 0.0
    %3898 = vmatpush2.msra.mxu0 0.0
    %3899 = vmatprep.subr.mxu0 0.0
    %3900 = vmatpush2.msra.mxu0 0.0
    %3901 = vmatprep.subr.mxu0 0.0
    %3902 = vmatpush2.msra.mxu0 0.0
    %3903 = vmatprep.mubr.f32.mxu0 0.0
    %3904 = vmatmul.mubr.f32.gmra.mxu0 %v3834
    %v3905 = vpop.f32.mrf.mxu0
    %v3906 = vadd.f32 0.0, %v3905
    %v3907 = vpop.f32.mrf.mxu0
    %3908 = vmatprep.mubr.f32.mxu0 0.0
    %3909 = vmatmul.mubr.f32.gmra.mxu0 %v3837
    %v3910 = vpop.f32.mrf.mxu0
    %v3911 = vadd.f32 0.0, %v3910
    %v3912 = vpop.f32.mrf.mxu0
    %3913 = vdwg.mxu0
    %3916 = vrot.lane.b32.xlu0 %v3906, 16
    %v3917 = vpop.permute.xlu0 %3916
    %3918 = vrot.lane.b32.xlu0 %v3911, 16
    %v3919 = vpop.permute.xlu0 %3918
    %3922 = vst.msk [vmem:[#allocation3] sm:$0xff] %vm1624, %v3917
    %3923 = vst.msk [vmem:[#allocation3 + $0x8] sm:$0xff] %vm1624, %v3919
    %3924 = vrot.lane.b32.xlu0 %v2689, 104
    %v3925 = vpop.permute.xlu0 %3924
    %3926 = vrot.lane.b32.xlu0 %v2694, 104
    %v3927 = vpop.permute.xlu0 %3926
    %v3931 = vsel %vm484, %v3635, 0
    %v3934 = vsel %vm484, %v3636, 0
    %3936 = vmatprep.subr.mxu0 0.0
    %3937 = vmatpush1.msra.mxu0 0.0
    %3938 = vmatprep.subr.mxu0 0.0
    %3939 = vmatpush1.msra.mxu0 0.0
    %3940 = vmatprep.subr.mxu0 0.0
    %3941 = vmatpush1.msra.mxu0 0.0
    %3942 = vmatprep.subr.mxu0 0.0
    %3943 = vmatpush1.msra.mxu0 0.0
    %3944 = vmatprep.subr.mxu0 0.0
    %3945 = vmatpush1.msra.mxu0 0.0
    %3946 = vmatprep.subr.mxu0 0.0
    %3947 = vmatpush1.msra.mxu0 0.0
    %3948 = vmatprep.subr.mxu0 0.0
    %3949 = vmatpush1.msra.mxu0 0.0
    %3950 = vmatprep.subr.mxu0 0.0
    %3951 = vmatpush1.msra.mxu0 0.0
    %3952 = vmatprep.subr.mxu0 0.0
    %3953 = vmatpush1.msra.mxu0 0.0
    %3954 = vmatprep.subr.mxu0 0.0
    %3955 = vmatpush1.msra.mxu0 0.0
    %3956 = vmatprep.subr.mxu0 0.0
    %3957 = vmatpush1.msra.mxu0 0.0
    %3958 = vmatprep.subr.mxu0 0.0
    %3959 = vmatpush1.msra.mxu0 0.0
    %3960 = vmatprep.subr.mxu0 0.0
    %3961 = vmatpush1.msra.mxu0 0.0
    %3962 = vmatprep.subr.mxu0 0.0
    %3963 = vmatpush1.msra.mxu0 0.0
    %3964 = vmatprep.subr.mxu0 0.0
    %3965 = vmatpush1.msra.mxu0 %v3927
    %3966 = vmatprep.subr.mxu0 0.0
    %3967 = vmatpush1.msra.mxu0 %v3925
    %3968 = vmatprep.subr.mxu0 0.0
    %3969 = vmatpush2.msra.mxu0 0.0
    %3970 = vmatprep.subr.mxu0 0.0
    %3971 = vmatpush2.msra.mxu0 0.0
    %3972 = vmatprep.subr.mxu0 0.0
    %3973 = vmatpush2.msra.mxu0 0.0
    %3974 = vmatprep.subr.mxu0 0.0
    %3975 = vmatpush2.msra.mxu0 0.0
    %3976 = vmatprep.subr.mxu0 0.0
    %3977 = vmatpush2.msra.mxu0 0.0
    %3978 = vmatprep.subr.mxu0 0.0
    %3979 = vmatpush2.msra.mxu0 0.0
    %3980 = vmatprep.subr.mxu0 0.0
    %3981 = vmatpush2.msra.mxu0 0.0
    %3982 = vmatprep.subr.mxu0 0.0
    %3983 = vmatpush2.msra.mxu0 0.0
    %3984 = vmatprep.subr.mxu0 0.0
    %3985 = vmatpush2.msra.mxu0 0.0
    %3986 = vmatprep.subr.mxu0 0.0
    %3987 = vmatpush2.msra.mxu0 0.0
    %3988 = vmatprep.subr.mxu0 0.0
    %3989 = vmatpush2.msra.mxu0 0.0
    %3990 = vmatprep.subr.mxu0 0.0
    %3991 = vmatpush2.msra.mxu0 0.0
    %3992 = vmatprep.subr.mxu0 0.0
    %3993 = vmatpush2.msra.mxu0 0.0
    %3994 = vmatprep.subr.mxu0 0.0
    %3995 = vmatpush2.msra.mxu0 0.0
    %3996 = vmatprep.subr.mxu0 0.0
    %3997 = vmatpush2.msra.mxu0 0.0
    %3998 = vmatprep.subr.mxu0 0.0
    %3999 = vmatpush2.msra.mxu0 0.0
    %4000 = vmatprep.mubr.f32.mxu0 0.0
    %4001 = vmatmul.mubr.f32.gmra.mxu0 %v3931
    %v4002 = vpop.f32.mrf.mxu0
    %v4003 = vadd.f32 0.0, %v4002
    %v4004 = vpop.f32.mrf.mxu0
    %4005 = vmatprep.mubr.f32.mxu0 0.0
    %4006 = vmatmul.mubr.f32.gmra.mxu0 %v3934
    %v4007 = vpop.f32.mrf.mxu0
    %v4008 = vadd.f32 0.0, %v4007
    %v4009 = vpop.f32.mrf.mxu0
    %4010 = vdwg.mxu0
    %4013 = vrot.lane.b32.xlu0 %v4003, 24
    %v4014 = vpop.permute.xlu0 %4013
    %4015 = vrot.lane.b32.xlu0 %v4008, 24
    %v4016 = vpop.permute.xlu0 %4015
    %4019 = vst.msk [vmem:[#allocation3] sm:$0xff] %vm1722, %v4014
    %4020 = vst.msk [vmem:[#allocation3 + $0x8] sm:$0xff] %vm1722, %v4016
    %4021 = vrot.lane.b32.xlu0 %v2689, 96
    %v4022 = vpop.permute.xlu0 %4021
    %4023 = vrot.lane.b32.xlu0 %v2694, 96
    %v4024 = vpop.permute.xlu0 %4023
    %v4028 = vsel %vm484, %v3637, 0
    %v4031 = vsel %vm484, %v3638, 0
    %4033 = vmatprep.subr.mxu0 0.0
    %4034 = vmatpush1.msra.mxu0 0.0
    %4035 = vmatprep.subr.mxu0 0.0
    %4036 = vmatpush1.msra.mxu0 0.0
    %4037 = vmatprep.subr.mxu0 0.0
    %4038 = vmatpush1.msra.mxu0 0.0
    %4039 = vmatprep.subr.mxu0 0.0
    %4040 = vmatpush1.msra.mxu0 0.0
    %4041 = vmatprep.subr.mxu0 0.0
    %4042 = vmatpush1.msra.mxu0 0.0
    %4043 = vmatprep.subr.mxu0 0.0
    %4044 = vmatpush1.msra.mxu0 0.0
    %4045 = vmatprep.subr.mxu0 0.0
    %4046 = vmatpush1.msra.mxu0 0.0
    %4047 = vmatprep.subr.mxu0 0.0
    %4048 = vmatpush1.msra.mxu0 0.0
    %4049 = vmatprep.subr.mxu0 0.0
    %4050 = vmatpush1.msra.mxu0 0.0
    %4051 = vmatprep.subr.mxu0 0.0
    %4052 = vmatpush1.msra.mxu0 0.0
    %4053 = vmatprep.subr.mxu0 0.0
    %4054 = vmatpush1.msra.mxu0 0.0
    %4055 = vmatprep.subr.mxu0 0.0
    %4056 = vmatpush1.msra.mxu0 0.0
    %4057 = vmatprep.subr.mxu0 0.0
    %4058 = vmatpush1.msra.mxu0 0.0
    %4059 = vmatprep.subr.mxu0 0.0
    %4060 = vmatpush1.msra.mxu0 0.0
    %4061 = vmatprep.subr.mxu0 0.0
    %4062 = vmatpush1.msra.mxu0 %v4024
    %4063 = vmatprep.subr.mxu0 0.0
    %4064 = vmatpush1.msra.mxu0 %v4022
    %4065 = vmatprep.subr.mxu0 0.0
    %4066 = vmatpush2.msra.mxu0 0.0
    %4067 = vmatprep.subr.mxu0 0.0
    %4068 = vmatpush2.msra.mxu0 0.0
    %4069 = vmatprep.subr.mxu0 0.0
    %4070 = vmatpush2.msra.mxu0 0.0
    %4071 = vmatprep.subr.mxu0 0.0
    %4072 = vmatpush2.msra.mxu0 0.0
    %4073 = vmatprep.subr.mxu0 0.0
    %4074 = vmatpush2.msra.mxu0 0.0
    %4075 = vmatprep.subr.mxu0 0.0
    %4076 = vmatpush2.msra.mxu0 0.0
    %4077 = vmatprep.subr.mxu0 0.0
    %4078 = vmatpush2.msra.mxu0 0.0
    %4079 = vmatprep.subr.mxu0 0.0
    %4080 = vmatpush2.msra.mxu0 0.0
    %4081 = vmatprep.subr.mxu0 0.0
    %4082 = vmatpush2.msra.mxu0 0.0
    %4083 = vmatprep.subr.mxu0 0.0
    %4084 = vmatpush2.msra.mxu0 0.0
    %4085 = vmatprep.subr.mxu0 0.0
    %4086 = vmatpush2.msra.mxu0 0.0
    %4087 = vmatprep.subr.mxu0 0.0
    %4088 = vmatpush2.msra.mxu0 0.0
    %4089 = vmatprep.subr.mxu0 0.0
    %4090 = vmatpush2.msra.mxu0 0.0
    %4091 = vmatprep.subr.mxu0 0.0
    %4092 = vmatpush2.msra.mxu0 0.0
    %4093 = vmatprep.subr.mxu0 0.0
    %4094 = vmatpush2.msra.mxu0 0.0
    %4095 = vmatprep.subr.mxu0 0.0
    %4096 = vmatpush2.msra.mxu0 0.0
    %4097 = vmatprep.mubr.f32.mxu0 0.0
    %4098 = vmatmul.mubr.f32.gmra.mxu0 %v4028
    %v4099 = vpop.f32.mrf.mxu0
    %v4100 = vadd.f32 0.0, %v4099
    %v4101 = vpop.f32.mrf.mxu0
    %4102 = vmatprep.mubr.f32.mxu0 0.0
    %4103 = vmatmul.mubr.f32.gmra.mxu0 %v4031
    %v4104 = vpop.f32.mrf.mxu0
    %v4105 = vadd.f32 0.0, %v4104
    %v4106 = vpop.f32.mrf.mxu0
    %4107 = vdwg.mxu0
    %4110 = vrot.lane.b32.xlu0 %v4100, 32
    %v4111 = vpop.permute.xlu0 %4110
    %4112 = vrot.lane.b32.xlu0 %v4105, 32
    %v4113 = vpop.permute.xlu0 %4112
    %4116 = vst.msk [vmem:[#allocation3] sm:$0xff] %vm1820, %v4111
    %4117 = vst.msk [vmem:[#allocation3 + $0x8] sm:$0xff] %vm1820, %v4113
    %4118 = vrot.lane.b32.xlu0 %v2689, 88
    %v4119 = vpop.permute.xlu0 %4118
    %4120 = vrot.lane.b32.xlu0 %v2694, 88
    %v4121 = vpop.permute.xlu0 %4120
    %v4125 = vsel %vm484, %v3639, 0
    %v4128 = vsel %vm484, %v3640, 0
    %4130 = vmatprep.subr.mxu0 0.0
    %4131 = vmatpush1.msra.mxu0 0.0
    %4132 = vmatprep.subr.mxu0 0.0
    %4133 = vmatpush1.msra.mxu0 0.0
    %4134 = vmatprep.subr.mxu0 0.0
    %4135 = vmatpush1.msra.mxu0 0.0
    %4136 = vmatprep.subr.mxu0 0.0
    %4137 = vmatpush1.msra.mxu0 0.0
    %4138 = vmatprep.subr.mxu0 0.0
    %4139 = vmatpush1.msra.mxu0 0.0
    %4140 = vmatprep.subr.mxu0 0.0
    %4141 = vmatpush1.msra.mxu0 0.0
    %4142 = vmatprep.subr.mxu0 0.0
    %4143 = vmatpush1.msra.mxu0 0.0
    %4144 = vmatprep.subr.mxu0 0.0
    %4145 = vmatpush1.msra.mxu0 0.0
    %4146 = vmatprep.subr.mxu0 0.0
    %4147 = vmatpush1.msra.mxu0 0.0
    %4148 = vmatprep.subr.mxu0 0.0
    %4149 = vmatpush1.msra.mxu0 0.0
    %4150 = vmatprep.subr.mxu0 0.0
    %4151 = vmatpush1.msra.mxu0 0.0
    %4152 = vmatprep.subr.mxu0 0.0
    %4153 = vmatpush1.msra.mxu0 0.0
    %4154 = vmatprep.subr.mxu0 0.0
    %4155 = vmatpush1.msra.mxu0 0.0
    %4156 = vmatprep.subr.mxu0 0.0
    %4157 = vmatpush1.msra.mxu0 0.0
    %4158 = vmatprep.subr.mxu0 0.0
    %4159 = vmatpush1.msra.mxu0 %v4121
    %4160 = vmatprep.subr.mxu0 0.0
    %4161 = vmatpush1.msra.mxu0 %v4119
    %4162 = vmatprep.subr.mxu0 0.0
    %4163 = vmatpush2.msra.mxu0 0.0
    %4164 = vmatprep.subr.mxu0 0.0
    %4165 = vmatpush2.msra.mxu0 0.0
    %4166 = vmatprep.subr.mxu0 0.0
    %4167 = vmatpush2.msra.mxu0 0.0
    %4168 = vmatprep.subr.mxu0 0.0
    %4169 = vmatpush2.msra.mxu0 0.0
    %4170 = vmatprep.subr.mxu0 0.0
    %4171 = vmatpush2.msra.mxu0 0.0
    %4172 = vmatprep.subr.mxu0 0.0
    %4173 = vmatpush2.msra.mxu0 0.0
    %4174 = vmatprep.subr.mxu0 0.0
    %4175 = vmatpush2.msra.mxu0 0.0
    %4176 = vmatprep.subr.mxu0 0.0
    %4177 = vmatpush2.msra.mxu0 0.0
    %4178 = vmatprep.subr.mxu0 0.0
    %4179 = vmatpush2.msra.mxu0 0.0
    %4180 = vmatprep.subr.mxu0 0.0
    %4181 = vmatpush2.msra.mxu0 0.0
    %4182 = vmatprep.subr.mxu0 0.0
    %4183 = vmatpush2.msra.mxu0 0.0
    %4184 = vmatprep.subr.mxu0 0.0
    %4185 = vmatpush2.msra.mxu0 0.0
    %4186 = vmatprep.subr.mxu0 0.0
    %4187 = vmatpush2.msra.mxu0 0.0
    %4188 = vmatprep.subr.mxu0 0.0
    %4189 = vmatpush2.msra.mxu0 0.0
    %4190 = vmatprep.subr.mxu0 0.0
    %4191 = vmatpush2.msra.mxu0 0.0
    %4192 = vmatprep.subr.mxu0 0.0
    %4193 = vmatpush2.msra.mxu0 0.0
    %4194 = vmatprep.mubr.f32.mxu0 0.0
    %4195 = vmatmul.mubr.f32.gmra.mxu0 %v4125
    %v4196 = vpop.f32.mrf.mxu0
    %v4197 = vadd.f32 0.0, %v4196
    %v4198 = vpop.f32.mrf.mxu0
    %4199 = vmatprep.mubr.f32.mxu0 0.0
    %4200 = vmatmul.mubr.f32.gmra.mxu0 %v4128
    %v4201 = vpop.f32.mrf.mxu0
    %v4202 = vadd.f32 0.0, %v4201
    %v4203 = vpop.f32.mrf.mxu0
    %4204 = vdwg.mxu0
    %4207 = vrot.lane.b32.xlu0 %v4197, 40
    %v4208 = vpop.permute.xlu0 %4207
    %4209 = vrot.lane.b32.xlu0 %v4202, 40
    %v4210 = vpop.permute.xlu0 %4209
    %4213 = vst.msk [vmem:[#allocation3] sm:$0xff] %vm1918, %v4208
    %4214 = vst.msk [vmem:[#allocation3 + $0x8] sm:$0xff] %vm1918, %v4210
    %4215 = vrot.lane.b32.xlu0 %v2689, 80
    %v4216 = vpop.permute.xlu0 %4215
    %4217 = vrot.lane.b32.xlu0 %v2694, 80
    %v4218 = vpop.permute.xlu0 %4217
    %v4222 = vsel %vm484, %v3641, 0
    %v4225 = vsel %vm484, %v3642, 0
    %4227 = vmatprep.subr.mxu0 0.0
    %4228 = vmatpush1.msra.mxu0 0.0
    %4229 = vmatprep.subr.mxu0 0.0
    %4230 = vmatpush1.msra.mxu0 0.0
    %4231 = vmatprep.subr.mxu0 0.0
    %4232 = vmatpush1.msra.mxu0 0.0
    %4233 = vmatprep.subr.mxu0 0.0
    %4234 = vmatpush1.msra.mxu0 0.0
    %4235 = vmatprep.subr.mxu0 0.0
    %4236 = vmatpush1.msra.mxu0 0.0
    %4237 = vmatprep.subr.mxu0 0.0
    %4238 = vmatpush1.msra.mxu0 0.0
    %4239 = vmatprep.subr.mxu0 0.0
    %4240 = vmatpush1.msra.mxu0 0.0
    %4241 = vmatprep.subr.mxu0 0.0
    %4242 = vmatpush1.msra.mxu0 0.0
    %4243 = vmatprep.subr.mxu0 0.0
    %4244 = vmatpush1.msra.mxu0 0.0
    %4245 = vmatprep.subr.mxu0 0.0
    %4246 = vmatpush1.msra.mxu0 0.0
    %4247 = vmatprep.subr.mxu0 0.0
    %4248 = vmatpush1.msra.mxu0 0.0
    %4249 = vmatprep.subr.mxu0 0.0
    %4250 = vmatpush1.msra.mxu0 0.0
    %4251 = vmatprep.subr.mxu0 0.0
    %4252 = vmatpush1.msra.mxu0 0.0
    %4253 = vmatprep.subr.mxu0 0.0
    %4254 = vmatpush1.msra.mxu0 0.0
    %4255 = vmatprep.subr.mxu0 0.0
    %4256 = vmatpush1.msra.mxu0 %v4218
    %4257 = vmatprep.subr.mxu0 0.0
    %4258 = vmatpush1.msra.mxu0 %v4216
    %4259 = vmatprep.subr.mxu0 0.0
    %4260 = vmatpush2.msra.mxu0 0.0
    %4261 = vmatprep.subr.mxu0 0.0
    %4262 = vmatpush2.msra.mxu0 0.0
    %4263 = vmatprep.subr.mxu0 0.0
    %4264 = vmatpush2.msra.mxu0 0.0
    %4265 = vmatprep.subr.mxu0 0.0
    %4266 = vmatpush2.msra.mxu0 0.0
    %4267 = vmatprep.subr.mxu0 0.0
    %4268 = vmatpush2.msra.mxu0 0.0
    %4269 = vmatprep.subr.mxu0 0.0
    %4270 = vmatpush2.msra.mxu0 0.0
    %4271 = vmatprep.subr.mxu0 0.0
    %4272 = vmatpush2.msra.mxu0 0.0
    %4273 = vmatprep.subr.mxu0 0.0
    %4274 = vmatpush2.msra.mxu0 0.0
    %4275 = vmatprep.subr.mxu0 0.0
    %4276 = vmatpush2.msra.mxu0 0.0
    %4277 = vmatprep.subr.mxu0 0.0
    %4278 = vmatpush2.msra.mxu0 0.0
    %4279 = vmatprep.subr.mxu0 0.0
    %4280 = vmatpush2.msra.mxu0 0.0
    %4281 = vmatprep.subr.mxu0 0.0
    %4282 = vmatpush2.msra.mxu0 0.0
    %4283 = vmatprep.subr.mxu0 0.0
    %4284 = vmatpush2.msra.mxu0 0.0
    %4285 = vmatprep.subr.mxu0 0.0
    %4286 = vmatpush2.msra.mxu0 0.0
    %4287 = vmatprep.subr.mxu0 0.0
    %4288 = vmatpush2.msra.mxu0 0.0
    %4289 = vmatprep.subr.mxu0 0.0
    %4290 = vmatpush2.msra.mxu0 0.0
    %4291 = vmatprep.mubr.f32.mxu0 0.0
    %4292 = vmatmul.mubr.f32.gmra.mxu0 %v4222
    %v4293 = vpop.f32.mrf.mxu0
    %v4294 = vadd.f32 0.0, %v4293
    %v4295 = vpop.f32.mrf.mxu0
    %4296 = vmatprep.mubr.f32.mxu0 0.0
    %4297 = vmatmul.mubr.f32.gmra.mxu0 %v4225
    %v4298 = vpop.f32.mrf.mxu0
    %v4299 = vadd.f32 0.0, %v4298
    %v4300 = vpop.f32.mrf.mxu0
    %4301 = vdwg.mxu0
    %4304 = vrot.lane.b32.xlu0 %v4294, 48
    %v4305 = vpop.permute.xlu0 %4304
    %4306 = vrot.lane.b32.xlu0 %v4299, 48
    %v4307 = vpop.permute.xlu0 %4306
    %4310 = vst.msk [vmem:[#allocation3] sm:$0xff] %vm2016, %v4305
    %4311 = vst.msk [vmem:[#allocation3 + $0x8] sm:$0xff] %vm2016, %v4307
    %4312 = vrot.lane.b32.xlu0 %v2689, 72
    %v4313 = vpop.permute.xlu0 %4312
    %4314 = vrot.lane.b32.xlu0 %v2694, 72
    %v4315 = vpop.permute.xlu0 %4314
    %v4319 = vsel %vm484, %v3643, 0
    %v4322 = vsel %vm484, %v3644, 0
    %4324 = vmatprep.subr.mxu0 0.0
    %4325 = vmatpush1.msra.mxu0 0.0
    %4326 = vmatprep.subr.mxu0 0.0
    %4327 = vmatpush1.msra.mxu0 0.0
    %4328 = vmatprep.subr.mxu0 0.0
    %4329 = vmatpush1.msra.mxu0 0.0
    %4330 = vmatprep.subr.mxu0 0.0
    %4331 = vmatpush1.msra.mxu0 0.0
    %4332 = vmatprep.subr.mxu0 0.0
    %4333 = vmatpush1.msra.mxu0 0.0
    %4334 = vmatprep.subr.mxu0 0.0
    %4335 = vmatpush1.msra.mxu0 0.0
    %4336 = vmatprep.subr.mxu0 0.0
    %4337 = vmatpush1.msra.mxu0 0.0
    %4338 = vmatprep.subr.mxu0 0.0
    %4339 = vmatpush1.msra.mxu0 0.0
    %4340 = vmatprep.subr.mxu0 0.0
    %4341 = vmatpush1.msra.mxu0 0.0
    %4342 = vmatprep.subr.mxu0 0.0
    %4343 = vmatpush1.msra.mxu0 0.0
    %4344 = vmatprep.subr.mxu0 0.0
    %4345 = vmatpush1.msra.mxu0 0.0
    %4346 = vmatprep.subr.mxu0 0.0
    %4347 = vmatpush1.msra.mxu0 0.0
    %4348 = vmatprep.subr.mxu0 0.0
    %4349 = vmatpush1.msra.mxu0 0.0
    %4350 = vmatprep.subr.mxu0 0.0
    %4351 = vmatpush1.msra.mxu0 0.0
    %4352 = vmatprep.subr.mxu0 0.0
    %4353 = vmatpush1.msra.mxu0 %v4315
    %4354 = vmatprep.subr.mxu0 0.0
    %4355 = vmatpush1.msra.mxu0 %v4313
    %4356 = vmatprep.subr.mxu0 0.0
    %4357 = vmatpush2.msra.mxu0 0.0
    %4358 = vmatprep.subr.mxu0 0.0
    %4359 = vmatpush2.msra.mxu0 0.0
    %4360 = vmatprep.subr.mxu0 0.0
    %4361 = vmatpush2.msra.mxu0 0.0
    %4362 = vmatprep.subr.mxu0 0.0
    %4363 = vmatpush2.msra.mxu0 0.0
    %4364 = vmatprep.subr.mxu0 0.0
    %4365 = vmatpush2.msra.mxu0 0.0
    %4366 = vmatprep.subr.mxu0 0.0
    %4367 = vmatpush2.msra.mxu0 0.0
    %4368 = vmatprep.subr.mxu0 0.0
    %4369 = vmatpush2.msra.mxu0 0.0
    %4370 = vmatprep.subr.mxu0 0.0
    %4371 = vmatpush2.msra.mxu0 0.0
    %4372 = vmatprep.subr.mxu0 0.0
    %4373 = vmatpush2.msra.mxu0 0.0
    %4374 = vmatprep.subr.mxu0 0.0
    %4375 = vmatpush2.msra.mxu0 0.0
    %4376 = vmatprep.subr.mxu0 0.0
    %4377 = vmatpush2.msra.mxu0 0.0
    %4378 = vmatprep.subr.mxu0 0.0
    %4379 = vmatpush2.msra.mxu0 0.0
    %4380 = vmatprep.subr.mxu0 0.0
    %4381 = vmatpush2.msra.mxu0 0.0
    %4382 = vmatprep.subr.mxu0 0.0
    %4383 = vmatpush2.msra.mxu0 0.0
    %4384 = vmatprep.subr.mxu0 0.0
    %4385 = vmatpush2.msra.mxu0 0.0
    %4386 = vmatprep.subr.mxu0 0.0
    %4387 = vmatpush2.msra.mxu0 0.0
    %4388 = vmatprep.mubr.f32.mxu0 0.0
    %4389 = vmatmul.mubr.f32.gmra.mxu0 %v4319
    %v4390 = vpop.f32.mrf.mxu0
    %v4391 = vadd.f32 0.0, %v4390
    %v4392 = vpop.f32.mrf.mxu0
    %4393 = vmatprep.mubr.f32.mxu0 0.0
    %4394 = vmatmul.mubr.f32.gmra.mxu0 %v4322
    %v4395 = vpop.f32.mrf.mxu0
    %v4396 = vadd.f32 0.0, %v4395
    %v4397 = vpop.f32.mrf.mxu0
    %4398 = vdwg.mxu0
    %4401 = vrot.lane.b32.xlu0 %v4391, 56
    %v4402 = vpop.permute.xlu0 %4401
    %4403 = vrot.lane.b32.xlu0 %v4396, 56
    %v4404 = vpop.permute.xlu0 %4403
    %4407 = vst.msk [vmem:[#allocation3] sm:$0xff] %vm2114, %v4402
    %4408 = vst.msk [vmem:[#allocation3 + $0x8] sm:$0xff] %vm2114, %v4404
    %v4409 = vlaneseq
    %v4410 = vshrl.u32 %v4409, 7
    %v4411 = vsub.s32 6, %v4410
    %v4412 = vrot.slane %v2486, %v4411
    %v4413 = vadd.f32 %v2428, %v4412
    %v4414 = vadd.f32 %v2429, %v4412
    %v4415 = vld [vmem:[#allocation3] sm:$0xff]
    %v4416 = vld [vmem:[#allocation3 + $0x8] sm:$0xff]
    %v4418 = vsel %vm2125, %v4415, 0
    %v4421 = vsel %vm2125, %v4416, 0
    %4423 = vmatprep.subr.mxu0 0.0
    %4424 = vmatpush1.msra.mxu0 0.0
    %4425 = vmatprep.subr.mxu0 0.0
    %4426 = vmatpush1.msra.mxu0 0.0
    %4427 = vmatprep.subr.mxu0 0.0
    %4428 = vmatpush1.msra.mxu0 0.0
    %4429 = vmatprep.subr.mxu0 0.0
    %4430 = vmatpush1.msra.mxu0 0.0
    %4431 = vmatprep.subr.mxu0 0.0
    %4432 = vmatpush1.msra.mxu0 0.0
    %4433 = vmatprep.subr.mxu0 0.0
    %4434 = vmatpush1.msra.mxu0 0.0
    %4435 = vmatprep.subr.mxu0 0.0
    %4436 = vmatpush1.msra.mxu0 0.0
    %4437 = vmatprep.subr.mxu0 0.0
    %4438 = vmatpush1.msra.mxu0 0.0
    %4439 = vmatprep.subr.mxu0 0.0
    %4440 = vmatpush1.msra.mxu0 %v2464
    %4441 = vmatprep.subr.mxu0 0.0
    %4442 = vmatpush1.msra.mxu0 %v2463
    %4443 = vmatprep.subr.mxu0 0.0
    %4444 = vmatpush1.msra.mxu0 %v2462
    %4445 = vmatprep.subr.mxu0 0.0
    %4446 = vmatpush1.msra.mxu0 %v2461
    %4447 = vmatprep.subr.mxu0 0.0
    %4448 = vmatpush1.msra.mxu0 %v2460
    %4449 = vmatprep.subr.mxu0 0.0
    %4450 = vmatpush1.msra.mxu0 %v2459
    %4451 = vmatprep.subr.mxu0 0.0
    %4452 = vmatpush1.msra.mxu0 %v2458
    %4453 = vmatprep.subr.mxu0 0.0
    %4454 = vmatpush1.msra.mxu0 %v2457
    %4455 = vmatprep.subr.mxu0 0.0
    %4456 = vmatpush2.msra.mxu0 0.0
    %4457 = vmatprep.subr.mxu0 0.0
    %4458 = vmatpush2.msra.mxu0 0.0
    %4459 = vmatprep.subr.mxu0 0.0
    %4460 = vmatpush2.msra.mxu0 0.0
    %4461 = vmatprep.subr.mxu0 0.0
    %4462 = vmatpush2.msra.mxu0 0.0
    %4463 = vmatprep.subr.mxu0 0.0
    %4464 = vmatpush2.msra.mxu0 0.0
    %4465 = vmatprep.subr.mxu0 0.0
    %4466 = vmatpush2.msra.mxu0 0.0
    %4467 = vmatprep.subr.mxu0 0.0
    %4468 = vmatpush2.msra.mxu0 0.0
    %4469 = vmatprep.subr.mxu0 0.0
    %4470 = vmatpush2.msra.mxu0 0.0
    %4471 = vmatprep.subr.mxu0 0.0
    %4472 = vmatpush2.msra.mxu0 0.0
    %4473 = vmatprep.subr.mxu0 0.0
    %4474 = vmatpush2.msra.mxu0 0.0
    %4475 = vmatprep.subr.mxu0 0.0
    %4476 = vmatpush2.msra.mxu0 0.0
    %4477 = vmatprep.subr.mxu0 0.0
    %4478 = vmatpush2.msra.mxu0 0.0
    %4479 = vmatprep.subr.mxu0 0.0
    %4480 = vmatpush2.msra.mxu0 0.0
    %4481 = vmatprep.subr.mxu0 0.0
    %4482 = vmatpush2.msra.mxu0 0.0
    %4483 = vmatprep.subr.mxu0 0.0
    %4484 = vmatpush2.msra.mxu0 0.0
    %4485 = vmatprep.subr.mxu0 0.0
    %4486 = vmatpush2.msra.mxu0 0.0
    %4487 = vmatprep.mubr.f32.mxu0 0.0
    %4488 = vmatmul.mubr.f32.gmra.mxu0 %v4418
    %v4489 = vpop.f32.mrf.mxu0
    %v4490 = vadd.f32 0.0, %v4489
    %v4491 = vpop.f32.mrf.mxu0
    %4492 = vmatprep.mubr.f32.mxu0 0.0
    %4493 = vmatmul.mubr.f32.gmra.mxu0 %v4421
    %v4494 = vpop.f32.mrf.mxu0
    %v4495 = vadd.f32 0.0, %v4494
    %v4496 = vpop.f32.mrf.mxu0
    %4497 = vdwg.mxu0
    %v4498 = vadd.f32 %v4413, %v4490
    %v4499 = vadd.f32 %v4414, %v4495
    %v4500 = vsel %vm186, %v4498, 0.0
    %4501 = vadd.xlane.f32.xlu0 %v4500
    %v4502 = vpop.xlane.xlu0 %4501
    %v4503 = vsel %vm186, %v4499, 0.0
    %4504 = vadd.xlane.f32.xlu0 %v4503
    %v4505 = vpop.xlane.xlu0 %4504
    %v4506 = vmul.f32 %v4502, %v193
    %v4507 = vmul.f32 %v4505, %v193
    %v4508 = vsub.f32 %v4498, %v4506
    %v4509 = vsub.f32 %v4499, %v4507
    %v4510 = vmul.f32 %v4508, %v4508
    %v4511 = vmul.f32 %v4509, %v4509
    %v4512 = vsel %vm186, %v4510, 0.0
    %4513 = vadd.xlane.f32.xlu0 %v4512
    %v4514 = vpop.xlane.xlu0 %4513
    %v4515 = vsel %vm186, %v4511, 0.0
    %4516 = vadd.xlane.f32.xlu0 %v4515
    %v4517 = vpop.xlane.xlu0 %4516
    %v4518 = vmul.f32 %v4514, %v193
    %v4519 = vmul.f32 %v4517, %v193
    %v4520 = vadd.f32 %v4518, 1e-05
    %v4521 = vadd.f32 %v4519, 1e-05
    %v4522 = vrsqrt.pop %v4520
    %v4523 = vrsqrt.pop %v4521
    %v4524 = vmul.f32 %v4508, %v4522
    %v4525 = vmul.f32 %v4509, %v4523
    %v4526 = vlaneseq
    %v4527 = vshrl.u32 %v4526, 7
    %v4528 = vsub.s32 4, %v4527
    %v4529 = vrot.slane %v2486, %v4528
    %v4530 = vmul.f32 %v4524, %v4529
    %v4531 = vmul.f32 %v4525, %v4529
    %v4532 = vlaneseq
    %v4533 = vshrl.u32 %v4532, 7
    %v4534 = vsub.s32 5, %v4533
    %v4535 = vrot.slane %v2486, %v4534
    %v4536 = vadd.f32 %v4530, %v4535
    %v4537 = vadd.f32 %v4531, %v4535
    %v4538 = vlaneseq
    %v4539 = vshrl.u32 %v4538, 7
    %v4540 = vsub.s32 1, %v4539
    %v4541 = vrot.slane %v2486, %v4540
    %v4542 = vlaneseq
    %v4543 = vshrl.u32 %v4542, 7
    %v4544 = vsub.s32 1, %v4543
    %v4545 = vrot.slane %v2487, %v4544
    %v4547 = vsel %vm186, %v4536, 0
    %v4550 = vsel %vm186, %v4537, 0
    %4552 = vmatprep.subr.mxu0 0.0
    %4553 = vmatpush1.msra.mxu0 0.0
    %4554 = vmatprep.subr.mxu0 0.0
    %4555 = vmatpush1.msra.mxu0 0.0
    %4556 = vmatprep.subr.mxu0 0.0
    %4557 = vmatpush1.msra.mxu0 0.0
    %4558 = vmatprep.subr.mxu0 0.0
    %4559 = vmatpush1.msra.mxu0 0.0
    %4560 = vmatprep.subr.mxu0 0.0
    %4561 = vmatpush1.msra.mxu0 0.0
    %4562 = vmatprep.subr.mxu0 0.0
    %4563 = vmatpush1.msra.mxu0 0.0
    %4564 = vmatprep.subr.mxu0 0.0
    %4565 = vmatpush1.msra.mxu0 0.0
    %4566 = vmatprep.subr.mxu0 0.0
    %4567 = vmatpush1.msra.mxu0 0.0
    %4568 = vmatprep.subr.mxu0 0.0
    %4569 = vmatpush1.msra.mxu0 0.0
    %4570 = vmatprep.subr.mxu0 0.0
    %4571 = vmatpush1.msra.mxu0 0.0
    %4572 = vmatprep.subr.mxu0 0.0
    %4573 = vmatpush1.msra.mxu0 0.0
    %4574 = vmatprep.subr.mxu0 %v2455
    %4575 = vmatpush1.msra.mxu0 %v2454
    %4576 = vmatprep.subr.mxu0 %v2453
    %4577 = vmatpush1.msra.mxu0 %v2452
    %4578 = vmatprep.subr.mxu0 %v2451
    %4579 = vmatpush1.msra.mxu0 %v2450
    %4580 = vmatprep.subr.mxu0 %v2449
    %4581 = vmatpush1.msra.mxu0 %v2448
    %4582 = vmatprep.subr.mxu0 %v2447
    %4583 = vmatpush1.msra.mxu0 %v2446
    %4584 = vmatprep.subr.mxu0 0.0
    %4585 = vmatpush2.msra.mxu0 0.0
    %4586 = vmatprep.subr.mxu0 0.0
    %4587 = vmatpush2.msra.mxu0 0.0
    %4588 = vmatprep.subr.mxu0 0.0
    %4589 = vmatpush2.msra.mxu0 0.0
    %4590 = vmatprep.subr.mxu0 0.0
    %4591 = vmatpush2.msra.mxu0 0.0
    %4592 = vmatprep.subr.mxu0 0.0
    %4593 = vmatpush2.msra.mxu0 0.0
    %4594 = vmatprep.subr.mxu0 0.0
    %4595 = vmatpush2.msra.mxu0 0.0
    %4596 = vmatprep.subr.mxu0 0.0
    %4597 = vmatpush2.msra.mxu0 0.0
    %4598 = vmatprep.subr.mxu0 0.0
    %4599 = vmatpush2.msra.mxu0 0.0
    %4600 = vmatprep.subr.mxu0 0.0
    %4601 = vmatpush2.msra.mxu0 0.0
    %4602 = vmatprep.subr.mxu0 0.0
    %4603 = vmatpush2.msra.mxu0 0.0
    %4604 = vmatprep.subr.mxu0 0.0
    %4605 = vmatpush2.msra.mxu0 0.0
    %4606 = vmatprep.subr.mxu0 0.0
    %4607 = vmatpush2.msra.mxu0 0.0
    %4608 = vmatprep.subr.mxu0 0.0
    %4609 = vmatpush2.msra.mxu0 0.0
    %4610 = vmatprep.subr.mxu0 0.0
    %4611 = vmatpush2.msra.mxu0 0.0
    %4612 = vmatprep.subr.mxu0 0.0
    %4613 = vmatpush2.msra.mxu0 0.0
    %4614 = vmatprep.subr.mxu0 0.0
    %4615 = vmatpush2.msra.mxu0 0.0
    %4616 = vmatprep.mubr.f32.mxu0 0.0
    %4617 = vmatmul.mubr.f32.gmra.mxu0 %v4547
    %v4618 = vpop.f32.mrf.mxu0
    %v4619 = vadd.f32 %v4541, %v4618
    %v4620 = vpop.f32.mrf.mxu0
    %v4621 = vadd.f32 %v4545, %v4620
    %4622 = vmatprep.mubr.f32.mxu0 0.0
    %4623 = vmatmul.mubr.f32.gmra.mxu0 %v4550
    %v4624 = vpop.f32.mrf.mxu0
    %v4625 = vadd.f32 %v4541, %v4624
    %v4626 = vpop.f32.mrf.mxu0
    %v4627 = vadd.f32 %v4545, %v4626
    %4628 = vdwg.mxu0
    %v4629 = vmax.f32 %v4619, 0.0
    %v4630 = vmax.f32 %v4621, 0.0
    %v4631 = vmax.f32 %v4625, 0.0
    %v4632 = vmax.f32 %v4627, 0.0
    %v4633 = vlaneseq
    %v4634 = vshrl.u32 %v4633, 7
    %v4635 = vsub.s32 7, %v4634
    %v4636 = vrot.slane %v2486, %v4635
    %v4638 = vsel %vm2346, %v4630, 0
    %v4641 = vsel %vm2346, %v4632, 0
    %4643 = vmatprep.subr.mxu0 0.0
    %4644 = vmatpush1.msra.mxu0 %v2480
    %4645 = vmatprep.subr.mxu0 0.0
    %4646 = vmatpush1.msra.mxu0 %v2479
    %4647 = vmatprep.subr.mxu0 0.0
    %4648 = vmatpush1.msra.mxu0 %v2478
    %4649 = vmatprep.subr.mxu0 0.0
    %4650 = vmatpush1.msra.mxu0 %v2477
    %4651 = vmatprep.subr.mxu0 0.0
    %4652 = vmatpush1.msra.mxu0 %v2476
    %4653 = vmatprep.subr.mxu0 0.0
    %4654 = vmatpush1.msra.mxu0 %v2475
    %4655 = vmatprep.subr.mxu0 0.0
    %4656 = vmatpush1.msra.mxu0 %v2474
    %4657 = vmatprep.subr.mxu0 0.0
    %4658 = vmatpush1.msra.mxu0 %v2473
    %4659 = vmatprep.subr.mxu0 0.0
    %4660 = vmatpush1.msra.mxu0 %v2472
    %4661 = vmatprep.subr.mxu0 0.0
    %4662 = vmatpush1.msra.mxu0 %v2471
    %4663 = vmatprep.subr.mxu0 0.0
    %4664 = vmatpush1.msra.mxu0 %v2470
    %4665 = vmatprep.subr.mxu0 0.0
    %4666 = vmatpush1.msra.mxu0 %v2469
    %4667 = vmatprep.subr.mxu0 0.0
    %4668 = vmatpush1.msra.mxu0 %v2468
    %4669 = vmatprep.subr.mxu0 0.0
    %4670 = vmatpush1.msra.mxu0 %v2467
    %4671 = vmatprep.subr.mxu0 0.0
    %4672 = vmatpush1.msra.mxu0 %v2466
    %4673 = vmatprep.subr.mxu0 0.0
    %4674 = vmatpush1.msra.mxu0 %v2465
    %4675 = vmatprep.subr.mxu0 0.0
    %4676 = vmatpush2.msra.mxu0 0.0
    %4677 = vmatprep.subr.mxu0 0.0
    %4678 = vmatpush2.msra.mxu0 0.0
    %4679 = vmatprep.subr.mxu0 0.0
    %4680 = vmatpush2.msra.mxu0 0.0
    %4681 = vmatprep.subr.mxu0 0.0
    %4682 = vmatpush2.msra.mxu0 0.0
    %4683 = vmatprep.subr.mxu0 0.0
    %4684 = vmatpush2.msra.mxu0 0.0
    %4685 = vmatprep.subr.mxu0 0.0
    %4686 = vmatpush2.msra.mxu0 0.0
    %4687 = vmatprep.subr.mxu0 0.0
    %4688 = vmatpush2.msra.mxu0 0.0
    %4689 = vmatprep.subr.mxu0 0.0
    %4690 = vmatpush2.msra.mxu0 0.0
    %4691 = vmatprep.subr.mxu0 0.0
    %4692 = vmatpush2.msra.mxu0 0.0
    %4693 = vmatprep.subr.mxu0 0.0
    %4694 = vmatpush2.msra.mxu0 0.0
    %4695 = vmatprep.subr.mxu0 0.0
    %4696 = vmatpush2.msra.mxu0 0.0
    %4697 = vmatprep.subr.mxu0 0.0
    %4698 = vmatpush2.msra.mxu0 0.0
    %4699 = vmatprep.subr.mxu0 0.0
    %4700 = vmatpush2.msra.mxu0 %v2484
    %4701 = vmatprep.subr.mxu0 0.0
    %4702 = vmatpush2.msra.mxu0 %v2483
    %4703 = vmatprep.subr.mxu0 0.0
    %4704 = vmatpush2.msra.mxu0 %v2482
    %4705 = vmatprep.subr.mxu0 0.0
    %4706 = vmatpush2.msra.mxu0 %v2481
    %4707 = vmatprep.mubr.f32.mxu0 %v4638
    %4708 = vmatmul.mubr.f32.gmra.mxu0 %v4629
    %v4709 = vpop.f32.mrf.mxu0
    %v4710 = vadd.f32 %v4636, %v4709
    %v4711 = vpop.f32.mrf.mxu0
    %4712 = vmatprep.mubr.f32.mxu0 %v4641
    %4713 = vmatmul.mubr.f32.gmra.mxu0 %v4631
    %v4714 = vpop.f32.mrf.mxu0
    %v4715 = vadd.f32 %v4636, %v4714
    %v4716 = vpop.f32.mrf.mxu0
    %4717 = vdwg.mxu0
    %v4718 = vadd.f32 %v4710, %v4498
    %v4719 = vadd.f32 %v4715, %v4499
    %s4720 = scalar_lea.vmem %s1, 400
    %v4721 = vld [vmem:[%s4720] sm:$0xff]
    %v4722 = vld [vmem:[%s4720 + $0x8] sm:$0xff]
    %v4723 = vld [vmem:[%s4720 + $0x10] sm:$0xff]
    %v4724 = vld [vmem:[%s4720 + $0x28] sm:$0xff]
    %v4725 = vld [vmem:[%s4720 + $0x30] sm:$0xff]
    %v4726 = vld [vmem:[%s4720 + $0x38] sm:$0xff]
    %v4727 = vld [vmem:[%s4720 + $0x50] sm:$0xff]
    %v4728 = vld [vmem:[%s4720 + $0x58] sm:$0xff]
    %v4729 = vld [vmem:[%s4720 + $0x60] sm:$0xff]
    %v4730 = vld [vmem:[%s4720 + $0x78] sm:$0xff]
    %v4731 = vld [vmem:[%s4720 + $0x80] sm:$0xff]
    %v4732 = vld [vmem:[%s4720 + $0x88] sm:$0xff]
    %v4733 = vld [vmem:[%s4720 + $0xa0] sm:$0xff]
    %v4734 = vld [vmem:[%s4720 + $0xa8] sm:$0xff]
    %v4735 = vld [vmem:[%s4720 + $0xb0] sm:$0xff]
    %v4736 = vld [vmem:[%s4720 + $0x18] sm:$0xff]
    %v4737 = vld [vmem:[%s4720 + $0x20] sm:$0xff]
    %v4738 = vld [vmem:[%s4720 + $0x40] sm:$0xff]
    %v4739 = vld [vmem:[%s4720 + $0x48] sm:$0xff]
    %v4740 = vld [vmem:[%s4720 + $0x68] sm:$0xff]
    %v4741 = vld [vmem:[%s4720 + $0x70] sm:$0xff]
    %v4742 = vld [vmem:[%s4720 + $0x90] sm:$0xff]
    %v4743 = vld [vmem:[%s4720 + $0x98] sm:$0xff]
    %v4744 = vld [vmem:[%s4720 + $0xb8] sm:$0xff]
    %v4745 = vld [vmem:[%s4720 + $0xc0] sm:$0xff]
    %s4746 = scalar_lea.vmem %s2, 448
    %v4747 = vld [vmem:[%s4746] sm:$0xff]
    %v4748 = vld [vmem:[%s4746 + $0x8] sm:$0xff]
    %v4749 = vld [vmem:[%s4746 + $0x10] sm:$0xff]
    %v4750 = vld [vmem:[%s4746 + $0x18] sm:$0xff]
    %v4751 = vld [vmem:[%s4746 + $0x20] sm:$0xff]
    %v4752 = vld [vmem:[%s4746 + $0x28] sm:$0xff]
    %v4753 = vld [vmem:[%s4746 + $0x30] sm:$0xff]
    %v4754 = vld [vmem:[%s4746 + $0x38] sm:$0xff]
    %v4755 = vld [vmem:[%s4746 + $0x40] sm:$0xff]
    %v4756 = vld [vmem:[%s4746 + $0x48] sm:$0xff]
    %v4757 = vld [vmem:[%s4746 + $0x50] sm:$0xff]
    %v4758 = vld [vmem:[%s4746 + $0x58] sm:$0xff]
    %v4759 = vld [vmem:[%s4746 + $0x60] sm:$0xff]
    %v4760 = vld [vmem:[%s4746 + $0x68] sm:$0xff]
    %v4761 = vld [vmem:[%s4746 + $0x70] sm:$0xff]
    %v4762 = vld [vmem:[%s4746 + $0x78] sm:$0xff]
    %v4763 = vld [vmem:[%s4746 + $0x80] sm:$0xff]
    %v4764 = vld [vmem:[%s4746 + $0x88] sm:$0xff]
    %v4765 = vld [vmem:[%s4746 + $0x90] sm:$0xff]
    %v4766 = vld [vmem:[%s4746 + $0x98] sm:$0xff]
    %v4767 = vld [vmem:[%s4746 + $0xa0] sm:$0xff]
    %v4768 = vld [vmem:[%s4746 + $0xa8] sm:$0xff]
    %v4769 = vld [vmem:[%s4746 + $0xb0] sm:$0xff]
    %v4770 = vld [vmem:[%s4746 + $0xb8] sm:$0xff]
    %v4771 = vld [vmem:[%s4746 + $0xc0] sm:$0xff]
    %v4772 = vld [vmem:[%s4746 + $0xc8] sm:$0xff]
    %v4773 = vld [vmem:[%s4746 + $0xd0] sm:$0xff]
    %v4774 = vld [vmem:[%s4746 + $0xd8] sm:$0xff]
    %s4775 = scalar_lea.vmem %s3, 48
    %v4776 = vld [vmem:[%s4775] sm:$0xff]
    %v4777 = vld [vmem:[%s4775 + $0x8] sm:$0xff]
    %v4778 = vld [vmem:[%s4775 + $0x10] sm:$0xff]
    %v4779 = vsel %vm186, %v4718, 0.0
    %4780 = vadd.xlane.f32.xlu0 %v4779
    %v4781 = vpop.xlane.xlu0 %4780
    %v4782 = vsel %vm186, %v4719, 0.0
    %4783 = vadd.xlane.f32.xlu0 %v4782
    %v4784 = vpop.xlane.xlu0 %4783
    %v4785 = vmul.f32 %v4781, %v193
    %v4786 = vmul.f32 %v4784, %v193
    %v4787 = vsub.f32 %v4718, %v4785
    %v4788 = vsub.f32 %v4719, %v4786
    %v4789 = vmul.f32 %v4787, %v4787
    %v4790 = vmul.f32 %v4788, %v4788
    %v4791 = vsel %vm186, %v4789, 0.0
    %4792 = vadd.xlane.f32.xlu0 %v4791
    %v4793 = vpop.xlane.xlu0 %4792
    %v4794 = vsel %vm186, %v4790, 0.0
    %4795 = vadd.xlane.f32.xlu0 %v4794
    %v4796 = vpop.xlane.xlu0 %4795
    %v4797 = vmul.f32 %v4793, %v193
    %v4798 = vmul.f32 %v4796, %v193
    %v4799 = vadd.f32 %v4797, 1e-05
    %v4800 = vadd.f32 %v4798, 1e-05
    %v4801 = vrsqrt.pop %v4799
    %v4802 = vrsqrt.pop %v4800
    %v4803 = vmul.f32 %v4787, %v4801
    %v4804 = vmul.f32 %v4788, %v4802
    %v4805 = vlaneseq
    %v4806 = vshrl.u32 %v4805, 7
    %v4807 = vsub.s32 2, %v4806
    %v4808 = vrot.slane %v4776, %v4807
    %v4809 = vmul.f32 %v4803, %v4808
    %v4810 = vmul.f32 %v4804, %v4808
    %v4811 = vlaneseq
    %v4812 = vshrl.u32 %v4811, 7
    %v4813 = vsub.s32 3, %v4812
    %v4814 = vrot.slane %v4776, %v4813
    %v4815 = vadd.f32 %v4809, %v4814
    %v4816 = vadd.f32 %v4810, %v4814
    %v4817 = vlaneseq
    %v4818 = vshrl.u32 %v4817, 7
    %v4819 = vsub.s32 0, %v4818
    %v4820 = vrot.slane %v4776, %v4819
    %v4821 = vlaneseq
    %v4822 = vshrl.u32 %v4821, 7
    %v4823 = vsub.s32 0, %v4822
    %v4824 = vrot.slane %v4777, %v4823
    %v4825 = vlaneseq
    %v4826 = vshrl.u32 %v4825, 7
    %v4827 = vsub.s32 0, %v4826
    %v4828 = vrot.slane %v4778, %v4827
    %v4830 = vsel %vm186, %v4815, 0
    %v4833 = vsel %vm186, %v4816, 0
    %4835 = vmatprep.subr.mxu0 0.0
    %4836 = vmatpush1.msra.mxu0 0.0
    %4837 = vmatprep.subr.mxu0 0.0
    %4838 = vmatpush1.msra.mxu0 0.0
    %4839 = vmatprep.subr.mxu0 0.0
    %4840 = vmatpush1.msra.mxu0 0.0
    %4841 = vmatprep.subr.mxu0 0.0
    %4842 = vmatpush1.msra.mxu0 0.0
    %4843 = vmatprep.subr.mxu0 0.0
    %4844 = vmatpush1.msra.mxu0 0.0
    %4845 = vmatprep.subr.mxu0 0.0
    %4846 = vmatpush1.msra.mxu0 0.0
    %4847 = vmatprep.subr.mxu0 0.0
    %4848 = vmatpush1.msra.mxu0 0.0
    %4849 = vmatprep.subr.mxu0 0.0
    %4850 = vmatpush1.msra.mxu0 0.0
    %4851 = vmatprep.subr.mxu0 0.0
    %4852 = vmatpush1.msra.mxu0 0.0
    %4853 = vmatprep.subr.mxu0 0.0
    %4854 = vmatpush1.msra.mxu0 0.0
    %4855 = vmatprep.subr.mxu0 0.0
    %4856 = vmatpush1.msra.mxu0 0.0
    %4857 = vmatprep.subr.mxu0 %v4734
    %4858 = vmatpush1.msra.mxu0 %v4733
    %4859 = vmatprep.subr.mxu0 %v4731
    %4860 = vmatpush1.msra.mxu0 %v4730
    %4861 = vmatprep.subr.mxu0 %v4728
    %4862 = vmatpush1.msra.mxu0 %v4727
    %4863 = vmatprep.subr.mxu0 %v4725
    %4864 = vmatpush1.msra.mxu0 %v4724
    %4865 = vmatprep.subr.mxu0 %v4722
    %4866 = vmatpush1.msra.mxu0 %v4721
    %4867 = vmatprep.subr.mxu0 0.0
    %4868 = vmatpush2.msra.mxu0 0.0
    %4869 = vmatprep.subr.mxu0 0.0
    %4870 = vmatpush2.msra.mxu0 0.0
    %4871 = vmatprep.subr.mxu0 0.0
    %4872 = vmatpush2.msra.mxu0 0.0
    %4873 = vmatprep.subr.mxu0 0.0
    %4874 = vmatpush2.msra.mxu0 0.0
    %4875 = vmatprep.subr.mxu0 0.0
    %4876 = vmatpush2.msra.mxu0 0.0
    %4877 = vmatprep.subr.mxu0 0.0
    %4878 = vmatpush2.msra.mxu0 0.0
    %4879 = vmatprep.subr.mxu0 0.0
    %4880 = vmatpush2.msra.mxu0 0.0
    %4881 = vmatprep.subr.mxu0 0.0
    %4882 = vmatpush2.msra.mxu0 0.0
    %4883 = vmatprep.subr.mxu0 0.0
    %4884 = vmatpush2.msra.mxu0 0.0
    %4885 = vmatprep.subr.mxu0 0.0
    %4886 = vmatpush2.msra.mxu0 0.0
    %4887 = vmatprep.subr.mxu0 0.0
    %4888 = vmatpush2.msra.mxu0 0.0
    %4889 = vmatprep.subr.mxu0 0.0
    %4890 = vmatpush2.msra.mxu0 0.0
    %4891 = vmatprep.subr.mxu0 0.0
    %4892 = vmatpush2.msra.mxu0 0.0
    %4893 = vmatprep.subr.mxu0 0.0
    %4894 = vmatpush2.msra.mxu0 0.0
    %4895 = vmatprep.subr.mxu0 0.0
    %4896 = vmatpush2.msra.mxu0 0.0
    %4897 = vmatprep.subr.mxu0 0.0
    %4898 = vmatpush2.msra.mxu0 0.0
    %4899 = vmatprep.mubr.f32.mxu0 0.0
    %4900 = vmatmul.mubr.f32.gmra.mxu0 %v4830
    %v4901 = vpop.f32.mrf.mxu0
    %v4902 = vadd.f32 %v4820, %v4901
    %v4903 = vpop.f32.mrf.mxu0
    %v4904 = vadd.f32 %v4824, %v4903
    %4905 = vmatprep.mubr.f32.mxu0 0.0
    %4906 = vmatmul.mubr.f32.gmra.mxu0 %v4833
    %v4907 = vpop.f32.mrf.mxu0
    %v4908 = vadd.f32 %v4820, %v4907
    %v4909 = vpop.f32.mrf.mxu0
    %v4910 = vadd.f32 %v4824, %v4909
    %4911 = vdwg.mxu0
    %4912 = vmatprep.subr.mxu0 0.0
    %4913 = vmatpush1.msra.mxu0 0.0
    %4914 = vmatprep.subr.mxu0 0.0
    %4915 = vmatpush1.msra.mxu0 0.0
    %4916 = vmatprep.subr.mxu0 0.0
    %4917 = vmatpush1.msra.mxu0 0.0
    %4918 = vmatprep.subr.mxu0 0.0
    %4919 = vmatpush1.msra.mxu0 0.0
    %4920 = vmatprep.subr.mxu0 0.0
    %4921 = vmatpush1.msra.mxu0 0.0
    %4922 = vmatprep.subr.mxu0 0.0
    %4923 = vmatpush1.msra.mxu0 0.0
    %4924 = vmatprep.subr.mxu0 0.0
    %4925 = vmatpush1.msra.mxu0 0.0
    %4926 = vmatprep.subr.mxu0 0.0
    %4927 = vmatpush1.msra.mxu0 0.0
    %4928 = vmatprep.subr.mxu0 0.0
    %4929 = vmatpush1.msra.mxu0 0.0
    %4930 = vmatprep.subr.mxu0 0.0
    %4931 = vmatpush1.msra.mxu0 0.0
    %4932 = vmatprep.subr.mxu0 0.0
    %4933 = vmatpush1.msra.mxu0 0.0
    %4934 = vmatprep.subr.mxu0 0.0
    %4935 = vmatpush1.msra.mxu0 %v4735
    %4936 = vmatprep.subr.mxu0 0.0
    %4937 = vmatpush1.msra.mxu0 %v4732
    %4938 = vmatprep.subr.mxu0 0.0
    %4939 = vmatpush1.msra.mxu0 %v4729
    %4940 = vmatprep.subr.mxu0 0.0
    %4941 = vmatpush1.msra.mxu0 %v4726
    %4942 = vmatprep.subr.mxu0 0.0
    %4943 = vmatpush1.msra.mxu0 %v4723
    %4944 = vmatprep.subr.mxu0 0.0
    %4945 = vmatpush2.msra.mxu0 0.0
    %4946 = vmatprep.subr.mxu0 0.0
    %4947 = vmatpush2.msra.mxu0 0.0
    %4948 = vmatprep.subr.mxu0 0.0
    %4949 = vmatpush2.msra.mxu0 0.0
    %4950 = vmatprep.subr.mxu0 0.0
    %4951 = vmatpush2.msra.mxu0 0.0
    %4952 = vmatprep.subr.mxu0 0.0
    %4953 = vmatpush2.msra.mxu0 0.0
    %4954 = vmatprep.subr.mxu0 0.0
    %4955 = vmatpush2.msra.mxu0 0.0
    %4956 = vmatprep.subr.mxu0 0.0
    %4957 = vmatpush2.msra.mxu0 0.0
    %4958 = vmatprep.subr.mxu0 0.0
    %4959 = vmatpush2.msra.mxu0 0.0
    %4960 = vmatprep.subr.mxu0 0.0
    %4961 = vmatpush2.msra.mxu0 0.0
    %4962 = vmatprep.subr.mxu0 0.0
    %4963 = vmatpush2.msra.mxu0 0.0
    %4964 = vmatprep.subr.mxu0 0.0
    %4965 = vmatpush2.msra.mxu0 0.0
    %4966 = vmatprep.subr.mxu0 0.0
    %4967 = vmatpush2.msra.mxu0 0.0
    %4968 = vmatprep.subr.mxu0 0.0
    %4969 = vmatpush2.msra.mxu0 0.0
    %4970 = vmatprep.subr.mxu0 0.0
    %4971 = vmatpush2.msra.mxu0 0.0
    %4972 = vmatprep.subr.mxu0 0.0
    %4973 = vmatpush2.msra.mxu0 0.0
    %4974 = vmatprep.subr.mxu0 0.0
    %4975 = vmatpush2.msra.mxu0 0.0
    %4976 = vmatprep.mubr.f32.mxu0 0.0
    %4977 = vmatmul.mubr.f32.gmra.mxu0 %v4830
    %v4978 = vpop.f32.mrf.mxu0
    %v4979 = vadd.f32 %v4828, %v4978
    %v4980 = vpop.f32.mrf.mxu0
    %4981 = vmatprep.mubr.f32.mxu0 0.0
    %4982 = vmatmul.mubr.f32.gmra.mxu0 %v4833
    %v4983 = vpop.f32.mrf.mxu0
    %v4984 = vadd.f32 %v4828, %v4983
    %v4985 = vpop.f32.mrf.mxu0
    %4986 = vdwg.mxu0
    %v4988 = vsel %vm396, %v4902, 0
    %v4991 = vsel %vm396, %v4908, 0
    %v4994 = vsel %vm396, %v4904, 0
    %v4997 = vsel %vm396, %v4910, 0
    %4999 = vmatprep.subr.mxu0 0.0
    %5000 = vmatpush1.xpose.msra.mxu0 0.0
    %5001 = vmatprep.subr.mxu0 0.0
    %5002 = vmatpush1.xpose.msra.mxu0 0.0
    %5003 = vmatprep.subr.mxu0 0.0
    %5004 = vmatpush1.xpose.msra.mxu0 0.0
    %5005 = vmatprep.subr.mxu0 0.0
    %5006 = vmatpush1.xpose.msra.mxu0 0.0
    %5007 = vmatprep.subr.mxu0 0.0
    %5008 = vmatpush1.xpose.msra.mxu0 0.0
    %5009 = vmatprep.subr.mxu0 0.0
    %5010 = vmatpush1.xpose.msra.mxu0 0.0
    %5011 = vmatprep.subr.mxu0 0.0
    %5012 = vmatpush1.xpose.msra.mxu0 0.0
    %5013 = vmatprep.subr.mxu0 0.0
    %5014 = vmatpush1.xpose.msra.mxu0 0.0
    %5015 = vmatprep.subr.mxu0 0.0
    %5016 = vmatpush1.xpose.msra.mxu0 0.0
    %5017 = vmatprep.subr.mxu0 0.0
    %5018 = vmatpush1.xpose.msra.mxu0 0.0
    %5019 = vmatprep.subr.mxu0 0.0
    %5020 = vmatpush1.xpose.msra.mxu0 0.0
    %5021 = vmatprep.subr.mxu0 0.0
    %5022 = vmatpush1.xpose.msra.mxu0 0.0
    %5023 = vmatprep.subr.mxu0 0.0
    %5024 = vmatpush1.xpose.msra.mxu0 0.0
    %5025 = vmatprep.subr.mxu0 0.0
    %5026 = vmatpush1.xpose.msra.mxu0 0.0
    %5027 = vmatprep.subr.mxu0 0.0
    %5028 = vmatpush1.xpose.msra.mxu0 %v4997
    %5029 = vmatprep.subr.mxu0 0.0
    %5030 = vmatpush1.xpose.msra.mxu0 %v4994
    %5031 = vmatprep.subr.mxu0 0.0
    %5032 = vmatpush2.xpose.msra.mxu0 0.0
    %5033 = vmatprep.subr.mxu0 0.0
    %5034 = vmatpush2.xpose.msra.mxu0 0.0
    %5035 = vmatprep.subr.mxu0 0.0
    %5036 = vmatpush2.xpose.msra.mxu0 0.0
    %5037 = vmatprep.subr.mxu0 0.0
    %5038 = vmatpush2.xpose.msra.mxu0 0.0
    %5039 = vmatprep.subr.mxu0 0.0
    %5040 = vmatpush2.xpose.msra.mxu0 0.0
    %5041 = vmatprep.subr.mxu0 0.0
    %5042 = vmatpush2.xpose.msra.mxu0 0.0
    %5043 = vmatprep.subr.mxu0 0.0
    %5044 = vmatpush2.xpose.msra.mxu0 0.0
    %5045 = vmatprep.subr.mxu0 0.0
    %5046 = vmatpush2.xpose.msra.mxu0 0.0
    %5047 = vmatprep.subr.mxu0 0.0
    %5048 = vmatpush2.xpose.msra.mxu0 0.0
    %5049 = vmatprep.subr.mxu0 0.0
    %5050 = vmatpush2.xpose.msra.mxu0 0.0
    %5051 = vmatprep.subr.mxu0 0.0
    %5052 = vmatpush2.xpose.msra.mxu0 0.0
    %5053 = vmatprep.subr.mxu0 0.0
    %5054 = vmatpush2.xpose.msra.mxu0 0.0
    %5055 = vmatprep.subr.mxu0 0.0
    %5056 = vmatpush2.xpose.msra.mxu0 0.0
    %5057 = vmatprep.subr.mxu0 0.0
    %5058 = vmatpush2.xpose.msra.mxu0 0.0
    %5059 = vmatprep.subr.mxu0 0.0
    %5060 = vmatpush2.xpose.msra.mxu0 0.0
    %5061 = vmatprep.subr.mxu0 0.0
    %5062 = vmatpush2.xpose.msra.mxu0 0.0
    %5063 = vmatprep.mubr.f32.mxu0 0.0
    %5064 = vmatmul.mubr.f32.gmra.mxu0 %v4988
    %v5065 = vpop.f32.mrf.mxu0
    %v5066 = vadd.f32 0.0, %v5065
    %v5067 = vpop.f32.mrf.mxu0
    %5068 = vmatprep.mubr.f32.mxu0 0.0
    %5069 = vmatmul.mubr.f32.gmra.mxu0 %v4991
    %v5070 = vpop.f32.mrf.mxu0
    %v5071 = vadd.f32 0.0, %v5070
    %v5072 = vpop.f32.mrf.mxu0
    %5073 = vdwg.mxu0
    %5074 = vst.msk [vmem:[#allocation2] sm:$0xff] %vm484, %v5066
    %5075 = vst.msk [vmem:[#allocation2 + $0x8] sm:$0xff] %vm484, %v5071
    %5076 = vrot.lane.b32.xlu0 %v4902, 120
    %v5077 = vpop.permute.xlu0 %5076
    %5078 = vrot.lane.b32.xlu0 %v4908, 120
    %v5079 = vpop.permute.xlu0 %5078
    %5080 = vrot.lane.b32.xlu0 %v4904, 120
    %v5081 = vpop.permute.xlu0 %5080
    %5082 = vrot.lane.b32.xlu0 %v4910, 120
    %v5083 = vpop.permute.xlu0 %5082
    %v5084 = vsel %vm396, %v5077, 0
    %v5086 = vsel %vm396, %v5079, 0
    %v5088 = vsel %vm396, %v5081, 0
    %v5090 = vsel %vm396, %v5083, 0
    %5092 = vmatprep.subr.mxu0 0.0
    %5093 = vmatpush1.xpose.msra.mxu0 0.0
    %5094 = vmatprep.subr.mxu0 0.0
    %5095 = vmatpush1.xpose.msra.mxu0 0.0
    %5096 = vmatprep.subr.mxu0 0.0
    %5097 = vmatpush1.xpose.msra.mxu0 0.0
    %5098 = vmatprep.subr.mxu0 0.0
    %5099 = vmatpush1.xpose.msra.mxu0 0.0
    %5100 = vmatprep.subr.mxu0 0.0
    %5101 = vmatpush1.xpose.msra.mxu0 0.0
    %5102 = vmatprep.subr.mxu0 0.0
    %5103 = vmatpush1.xpose.msra.mxu0 0.0
    %5104 = vmatprep.subr.mxu0 0.0
    %5105 = vmatpush1.xpose.msra.mxu0 0.0
    %5106 = vmatprep.subr.mxu0 0.0
    %5107 = vmatpush1.xpose.msra.mxu0 0.0
    %5108 = vmatprep.subr.mxu0 0.0
    %5109 = vmatpush1.xpose.msra.mxu0 0.0
    %5110 = vmatprep.subr.mxu0 0.0
    %5111 = vmatpush1.xpose.msra.mxu0 0.0
    %5112 = vmatprep.subr.mxu0 0.0
    %5113 = vmatpush1.xpose.msra.mxu0 0.0
    %5114 = vmatprep.subr.mxu0 0.0
    %5115 = vmatpush1.xpose.msra.mxu0 0.0
    %5116 = vmatprep.subr.mxu0 0.0
    %5117 = vmatpush1.xpose.msra.mxu0 0.0
    %5118 = vmatprep.subr.mxu0 0.0
    %5119 = vmatpush1.xpose.msra.mxu0 0.0
    %5120 = vmatprep.subr.mxu0 0.0
    %5121 = vmatpush1.xpose.msra.mxu0 %v5090
    %5122 = vmatprep.subr.mxu0 0.0
    %5123 = vmatpush1.xpose.msra.mxu0 %v5088
    %5124 = vmatprep.subr.mxu0 0.0
    %5125 = vmatpush2.xpose.msra.mxu0 0.0
    %5126 = vmatprep.subr.mxu0 0.0
    %5127 = vmatpush2.xpose.msra.mxu0 0.0
    %5128 = vmatprep.subr.mxu0 0.0
    %5129 = vmatpush2.xpose.msra.mxu0 0.0
    %5130 = vmatprep.subr.mxu0 0.0
    %5131 = vmatpush2.xpose.msra.mxu0 0.0
    %5132 = vmatprep.subr.mxu0 0.0
    %5133 = vmatpush2.xpose.msra.mxu0 0.0
    %5134 = vmatprep.subr.mxu0 0.0
    %5135 = vmatpush2.xpose.msra.mxu0 0.0
    %5136 = vmatprep.subr.mxu0 0.0
    %5137 = vmatpush2.xpose.msra.mxu0 0.0
    %5138 = vmatprep.subr.mxu0 0.0
    %5139 = vmatpush2.xpose.msra.mxu0 0.0
    %5140 = vmatprep.subr.mxu0 0.0
    %5141 = vmatpush2.xpose.msra.mxu0 0.0
    %5142 = vmatprep.subr.mxu0 0.0
    %5143 = vmatpush2.xpose.msra.mxu0 0.0
    %5144 = vmatprep.subr.mxu0 0.0
    %5145 = vmatpush2.xpose.msra.mxu0 0.0
    %5146 = vmatprep.subr.mxu0 0.0
    %5147 = vmatpush2.xpose.msra.mxu0 0.0
    %5148 = vmatprep.subr.mxu0 0.0
    %5149 = vmatpush2.xpose.msra.mxu0 0.0
    %5150 = vmatprep.subr.mxu0 0.0
    %5151 = vmatpush2.xpose.msra.mxu0 0.0
    %5152 = vmatprep.subr.mxu0 0.0
    %5153 = vmatpush2.xpose.msra.mxu0 0.0
    %5154 = vmatprep.subr.mxu0 0.0
    %5155 = vmatpush2.xpose.msra.mxu0 0.0
    %5156 = vmatprep.mubr.f32.mxu0 0.0
    %5157 = vmatmul.mubr.f32.gmra.mxu0 %v5084
    %v5158 = vpop.f32.mrf.mxu0
    %v5159 = vadd.f32 0.0, %v5158
    %v5160 = vpop.f32.mrf.mxu0
    %5161 = vmatprep.mubr.f32.mxu0 0.0
    %5162 = vmatmul.mubr.f32.gmra.mxu0 %v5086
    %v5163 = vpop.f32.mrf.mxu0
    %v5164 = vadd.f32 0.0, %v5163
    %v5165 = vpop.f32.mrf.mxu0
    %5166 = vdwg.mxu0
    %5167 = vst.msk [vmem:[#allocation2 + $0x10] sm:$0xff] %vm484, %v5159
    %5168 = vst.msk [vmem:[#allocation2 + $0x18] sm:$0xff] %vm484, %v5164
    %5169 = vrot.lane.b32.xlu0 %v4902, 112
    %v5170 = vpop.permute.xlu0 %5169
    %5171 = vrot.lane.b32.xlu0 %v4908, 112
    %v5172 = vpop.permute.xlu0 %5171
    %5173 = vrot.lane.b32.xlu0 %v4904, 112
    %v5174 = vpop.permute.xlu0 %5173
    %5175 = vrot.lane.b32.xlu0 %v4910, 112
    %v5176 = vpop.permute.xlu0 %5175
    %v5177 = vsel %vm396, %v5170, 0
    %v5179 = vsel %vm396, %v5172, 0
    %v5181 = vsel %vm396, %v5174, 0
    %v5183 = vsel %vm396, %v5176, 0
    %5185 = vmatprep.subr.mxu0 0.0
    %5186 = vmatpush1.xpose.msra.mxu0 0.0
    %5187 = vmatprep.subr.mxu0 0.0
    %5188 = vmatpush1.xpose.msra.mxu0 0.0
    %5189 = vmatprep.subr.mxu0 0.0
    %5190 = vmatpush1.xpose.msra.mxu0 0.0
    %5191 = vmatprep.subr.mxu0 0.0
    %5192 = vmatpush1.xpose.msra.mxu0 0.0
    %5193 = vmatprep.subr.mxu0 0.0
    %5194 = vmatpush1.xpose.msra.mxu0 0.0
    %5195 = vmatprep.subr.mxu0 0.0
    %5196 = vmatpush1.xpose.msra.mxu0 0.0
    %5197 = vmatprep.subr.mxu0 0.0
    %5198 = vmatpush1.xpose.msra.mxu0 0.0
    %5199 = vmatprep.subr.mxu0 0.0
    %5200 = vmatpush1.xpose.msra.mxu0 0.0
    %5201 = vmatprep.subr.mxu0 0.0
    %5202 = vmatpush1.xpose.msra.mxu0 0.0
    %5203 = vmatprep.subr.mxu0 0.0
    %5204 = vmatpush1.xpose.msra.mxu0 0.0
    %5205 = vmatprep.subr.mxu0 0.0
    %5206 = vmatpush1.xpose.msra.mxu0 0.0
    %5207 = vmatprep.subr.mxu0 0.0
    %5208 = vmatpush1.xpose.msra.mxu0 0.0
    %5209 = vmatprep.subr.mxu0 0.0
    %5210 = vmatpush1.xpose.msra.mxu0 0.0
    %5211 = vmatprep.subr.mxu0 0.0
    %5212 = vmatpush1.xpose.msra.mxu0 0.0
    %5213 = vmatprep.subr.mxu0 0.0
    %5214 = vmatpush1.xpose.msra.mxu0 %v5183
    %5215 = vmatprep.subr.mxu0 0.0
    %5216 = vmatpush1.xpose.msra.mxu0 %v5181
    %5217 = vmatprep.subr.mxu0 0.0
    %5218 = vmatpush2.xpose.msra.mxu0 0.0
    %5219 = vmatprep.subr.mxu0 0.0
    %5220 = vmatpush2.xpose.msra.mxu0 0.0
    %5221 = vmatprep.subr.mxu0 0.0
    %5222 = vmatpush2.xpose.msra.mxu0 0.0
    %5223 = vmatprep.subr.mxu0 0.0
    %5224 = vmatpush2.xpose.msra.mxu0 0.0
    %5225 = vmatprep.subr.mxu0 0.0
    %5226 = vmatpush2.xpose.msra.mxu0 0.0
    %5227 = vmatprep.subr.mxu0 0.0
    %5228 = vmatpush2.xpose.msra.mxu0 0.0
    %5229 = vmatprep.subr.mxu0 0.0
    %5230 = vmatpush2.xpose.msra.mxu0 0.0
    %5231 = vmatprep.subr.mxu0 0.0
    %5232 = vmatpush2.xpose.msra.mxu0 0.0
    %5233 = vmatprep.subr.mxu0 0.0
    %5234 = vmatpush2.xpose.msra.mxu0 0.0
    %5235 = vmatprep.subr.mxu0 0.0
    %5236 = vmatpush2.xpose.msra.mxu0 0.0
    %5237 = vmatprep.subr.mxu0 0.0
    %5238 = vmatpush2.xpose.msra.mxu0 0.0
    %5239 = vmatprep.subr.mxu0 0.0
    %5240 = vmatpush2.xpose.msra.mxu0 0.0
    %5241 = vmatprep.subr.mxu0 0.0
    %5242 = vmatpush2.xpose.msra.mxu0 0.0
    %5243 = vmatprep.subr.mxu0 0.0
    %5244 = vmatpush2.xpose.msra.mxu0 0.0
    %5245 = vmatprep.subr.mxu0 0.0
    %5246 = vmatpush2.xpose.msra.mxu0 0.0
    %5247 = vmatprep.subr.mxu0 0.0
    %5248 = vmatpush2.xpose.msra.mxu0 0.0
    %5249 = vmatprep.mubr.f32.mxu0 0.0
    %5250 = vmatmul.mubr.f32.gmra.mxu0 %v5177
    %v5251 = vpop.f32.mrf.mxu0
    %v5252 = vadd.f32 0.0, %v5251
    %v5253 = vpop.f32.mrf.mxu0
    %5254 = vmatprep.mubr.f32.mxu0 0.0
    %5255 = vmatmul.mubr.f32.gmra.mxu0 %v5179
    %v5256 = vpop.f32.mrf.mxu0
    %v5257 = vadd.f32 0.0, %v5256
    %v5258 = vpop.f32.mrf.mxu0
    %5259 = vdwg.mxu0
    %5260 = vst.msk [vmem:[#allocation2 + $0x20] sm:$0xff] %vm484, %v5252
    %5261 = vst.msk [vmem:[#allocation2 + $0x28] sm:$0xff] %vm484, %v5257
    %5262 = vrot.lane.b32.xlu0 %v4902, 104
    %v5263 = vpop.permute.xlu0 %5262
    %5264 = vrot.lane.b32.xlu0 %v4908, 104
    %v5265 = vpop.permute.xlu0 %5264
    %5266 = vrot.lane.b32.xlu0 %v4904, 104
    %v5267 = vpop.permute.xlu0 %5266
    %5268 = vrot.lane.b32.xlu0 %v4910, 104
    %v5269 = vpop.permute.xlu0 %5268
    %v5270 = vsel %vm396, %v5263, 0
    %v5272 = vsel %vm396, %v5265, 0
    %v5274 = vsel %vm396, %v5267, 0
    %v5276 = vsel %vm396, %v5269, 0
    %5278 = vmatprep.subr.mxu0 0.0
    %5279 = vmatpush1.xpose.msra.mxu0 0.0
    %5280 = vmatprep.subr.mxu0 0.0
    %5281 = vmatpush1.xpose.msra.mxu0 0.0
    %5282 = vmatprep.subr.mxu0 0.0
    %5283 = vmatpush1.xpose.msra.mxu0 0.0
    %5284 = vmatprep.subr.mxu0 0.0
    %5285 = vmatpush1.xpose.msra.mxu0 0.0
    %5286 = vmatprep.subr.mxu0 0.0
    %5287 = vmatpush1.xpose.msra.mxu0 0.0
    %5288 = vmatprep.subr.mxu0 0.0
    %5289 = vmatpush1.xpose.msra.mxu0 0.0
    %5290 = vmatprep.subr.mxu0 0.0
    %5291 = vmatpush1.xpose.msra.mxu0 0.0
    %5292 = vmatprep.subr.mxu0 0.0
    %5293 = vmatpush1.xpose.msra.mxu0 0.0
    %5294 = vmatprep.subr.mxu0 0.0
    %5295 = vmatpush1.xpose.msra.mxu0 0.0
    %5296 = vmatprep.subr.mxu0 0.0
    %5297 = vmatpush1.xpose.msra.mxu0 0.0
    %5298 = vmatprep.subr.mxu0 0.0
    %5299 = vmatpush1.xpose.msra.mxu0 0.0
    %5300 = vmatprep.subr.mxu0 0.0
    %5301 = vmatpush1.xpose.msra.mxu0 0.0
    %5302 = vmatprep.subr.mxu0 0.0
    %5303 = vmatpush1.xpose.msra.mxu0 0.0
    %5304 = vmatprep.subr.mxu0 0.0
    %5305 = vmatpush1.xpose.msra.mxu0 0.0
    %5306 = vmatprep.subr.mxu0 0.0
    %5307 = vmatpush1.xpose.msra.mxu0 %v5276
    %5308 = vmatprep.subr.mxu0 0.0
    %5309 = vmatpush1.xpose.msra.mxu0 %v5274
    %5310 = vmatprep.subr.mxu0 0.0
    %5311 = vmatpush2.xpose.msra.mxu0 0.0
    %5312 = vmatprep.subr.mxu0 0.0
    %5313 = vmatpush2.xpose.msra.mxu0 0.0
    %5314 = vmatprep.subr.mxu0 0.0
    %5315 = vmatpush2.xpose.msra.mxu0 0.0
    %5316 = vmatprep.subr.mxu0 0.0
    %5317 = vmatpush2.xpose.msra.mxu0 0.0
    %5318 = vmatprep.subr.mxu0 0.0
    %5319 = vmatpush2.xpose.msra.mxu0 0.0
    %5320 = vmatprep.subr.mxu0 0.0
    %5321 = vmatpush2.xpose.msra.mxu0 0.0
    %5322 = vmatprep.subr.mxu0 0.0
    %5323 = vmatpush2.xpose.msra.mxu0 0.0
    %5324 = vmatprep.subr.mxu0 0.0
    %5325 = vmatpush2.xpose.msra.mxu0 0.0
    %5326 = vmatprep.subr.mxu0 0.0
    %5327 = vmatpush2.xpose.msra.mxu0 0.0
    %5328 = vmatprep.subr.mxu0 0.0
    %5329 = vmatpush2.xpose.msra.mxu0 0.0
    %5330 = vmatprep.subr.mxu0 0.0
    %5331 = vmatpush2.xpose.msra.mxu0 0.0
    %5332 = vmatprep.subr.mxu0 0.0
    %5333 = vmatpush2.xpose.msra.mxu0 0.0
    %5334 = vmatprep.subr.mxu0 0.0
    %5335 = vmatpush2.xpose.msra.mxu0 0.0
    %5336 = vmatprep.subr.mxu0 0.0
    %5337 = vmatpush2.xpose.msra.mxu0 0.0
    %5338 = vmatprep.subr.mxu0 0.0
    %5339 = vmatpush2.xpose.msra.mxu0 0.0
    %5340 = vmatprep.subr.mxu0 0.0
    %5341 = vmatpush2.xpose.msra.mxu0 0.0
    %5342 = vmatprep.mubr.f32.mxu0 0.0
    %5343 = vmatmul.mubr.f32.gmra.mxu0 %v5270
    %v5344 = vpop.f32.mrf.mxu0
    %v5345 = vadd.f32 0.0, %v5344
    %v5346 = vpop.f32.mrf.mxu0
    %5347 = vmatprep.mubr.f32.mxu0 0.0
    %5348 = vmatmul.mubr.f32.gmra.mxu0 %v5272
    %v5349 = vpop.f32.mrf.mxu0
    %v5350 = vadd.f32 0.0, %v5349
    %v5351 = vpop.f32.mrf.mxu0
    %5352 = vdwg.mxu0
    %5353 = vst.msk [vmem:[#allocation2 + $0x30] sm:$0xff] %vm484, %v5345
    %5354 = vst.msk [vmem:[#allocation2 + $0x38] sm:$0xff] %vm484, %v5350
    %5355 = vrot.lane.b32.xlu0 %v4902, 96
    %v5356 = vpop.permute.xlu0 %5355
    %5357 = vrot.lane.b32.xlu0 %v4908, 96
    %v5358 = vpop.permute.xlu0 %5357
    %5359 = vrot.lane.b32.xlu0 %v4904, 96
    %v5360 = vpop.permute.xlu0 %5359
    %5361 = vrot.lane.b32.xlu0 %v4910, 96
    %v5362 = vpop.permute.xlu0 %5361
    %v5363 = vsel %vm396, %v5356, 0
    %v5365 = vsel %vm396, %v5358, 0
    %v5367 = vsel %vm396, %v5360, 0
    %v5369 = vsel %vm396, %v5362, 0
    %5371 = vmatprep.subr.mxu0 0.0
    %5372 = vmatpush1.xpose.msra.mxu0 0.0
    %5373 = vmatprep.subr.mxu0 0.0
    %5374 = vmatpush1.xpose.msra.mxu0 0.0
    %5375 = vmatprep.subr.mxu0 0.0
    %5376 = vmatpush1.xpose.msra.mxu0 0.0
    %5377 = vmatprep.subr.mxu0 0.0
    %5378 = vmatpush1.xpose.msra.mxu0 0.0
    %5379 = vmatprep.subr.mxu0 0.0
    %5380 = vmatpush1.xpose.msra.mxu0 0.0
    %5381 = vmatprep.subr.mxu0 0.0
    %5382 = vmatpush1.xpose.msra.mxu0 0.0
    %5383 = vmatprep.subr.mxu0 0.0
    %5384 = vmatpush1.xpose.msra.mxu0 0.0
    %5385 = vmatprep.subr.mxu0 0.0
    %5386 = vmatpush1.xpose.msra.mxu0 0.0
    %5387 = vmatprep.subr.mxu0 0.0
    %5388 = vmatpush1.xpose.msra.mxu0 0.0
    %5389 = vmatprep.subr.mxu0 0.0
    %5390 = vmatpush1.xpose.msra.mxu0 0.0
    %5391 = vmatprep.subr.mxu0 0.0
    %5392 = vmatpush1.xpose.msra.mxu0 0.0
    %5393 = vmatprep.subr.mxu0 0.0
    %5394 = vmatpush1.xpose.msra.mxu0 0.0
    %5395 = vmatprep.subr.mxu0 0.0
    %5396 = vmatpush1.xpose.msra.mxu0 0.0
    %5397 = vmatprep.subr.mxu0 0.0
    %5398 = vmatpush1.xpose.msra.mxu0 0.0
    %5399 = vmatprep.subr.mxu0 0.0
    %5400 = vmatpush1.xpose.msra.mxu0 %v5369
    %5401 = vmatprep.subr.mxu0 0.0
    %5402 = vmatpush1.xpose.msra.mxu0 %v5367
    %5403 = vmatprep.subr.mxu0 0.0
    %5404 = vmatpush2.xpose.msra.mxu0 0.0
    %5405 = vmatprep.subr.mxu0 0.0
    %5406 = vmatpush2.xpose.msra.mxu0 0.0
    %5407 = vmatprep.subr.mxu0 0.0
    %5408 = vmatpush2.xpose.msra.mxu0 0.0
    %5409 = vmatprep.subr.mxu0 0.0
    %5410 = vmatpush2.xpose.msra.mxu0 0.0
    %5411 = vmatprep.subr.mxu0 0.0
    %5412 = vmatpush2.xpose.msra.mxu0 0.0
    %5413 = vmatprep.subr.mxu0 0.0
    %5414 = vmatpush2.xpose.msra.mxu0 0.0
    %5415 = vmatprep.subr.mxu0 0.0
    %5416 = vmatpush2.xpose.msra.mxu0 0.0
    %5417 = vmatprep.subr.mxu0 0.0
    %5418 = vmatpush2.xpose.msra.mxu0 0.0
    %5419 = vmatprep.subr.mxu0 0.0
    %5420 = vmatpush2.xpose.msra.mxu0 0.0
    %5421 = vmatprep.subr.mxu0 0.0
    %5422 = vmatpush2.xpose.msra.mxu0 0.0
    %5423 = vmatprep.subr.mxu0 0.0
    %5424 = vmatpush2.xpose.msra.mxu0 0.0
    %5425 = vmatprep.subr.mxu0 0.0
    %5426 = vmatpush2.xpose.msra.mxu0 0.0
    %5427 = vmatprep.subr.mxu0 0.0
    %5428 = vmatpush2.xpose.msra.mxu0 0.0
    %5429 = vmatprep.subr.mxu0 0.0
    %5430 = vmatpush2.xpose.msra.mxu0 0.0
    %5431 = vmatprep.subr.mxu0 0.0
    %5432 = vmatpush2.xpose.msra.mxu0 0.0
    %5433 = vmatprep.subr.mxu0 0.0
    %5434 = vmatpush2.xpose.msra.mxu0 0.0
    %5435 = vmatprep.mubr.f32.mxu0 0.0
    %5436 = vmatmul.mubr.f32.gmra.mxu0 %v5363
    %v5437 = vpop.f32.mrf.mxu0
    %v5438 = vadd.f32 0.0, %v5437
    %v5439 = vpop.f32.mrf.mxu0
    %5440 = vmatprep.mubr.f32.mxu0 0.0
    %5441 = vmatmul.mubr.f32.gmra.mxu0 %v5365
    %v5442 = vpop.f32.mrf.mxu0
    %v5443 = vadd.f32 0.0, %v5442
    %v5444 = vpop.f32.mrf.mxu0
    %5445 = vdwg.mxu0
    %5446 = vst.msk [vmem:[#allocation2 + $0x40] sm:$0xff] %vm484, %v5438
    %5447 = vst.msk [vmem:[#allocation2 + $0x48] sm:$0xff] %vm484, %v5443
    %5448 = vrot.lane.b32.xlu0 %v4902, 88
    %v5449 = vpop.permute.xlu0 %5448
    %5450 = vrot.lane.b32.xlu0 %v4908, 88
    %v5451 = vpop.permute.xlu0 %5450
    %5452 = vrot.lane.b32.xlu0 %v4904, 88
    %v5453 = vpop.permute.xlu0 %5452
    %5454 = vrot.lane.b32.xlu0 %v4910, 88
    %v5455 = vpop.permute.xlu0 %5454
    %v5456 = vsel %vm396, %v5449, 0
    %v5458 = vsel %vm396, %v5451, 0
    %v5460 = vsel %vm396, %v5453, 0
    %v5462 = vsel %vm396, %v5455, 0
    %5464 = vmatprep.subr.mxu0 0.0
    %5465 = vmatpush1.xpose.msra.mxu0 0.0
    %5466 = vmatprep.subr.mxu0 0.0
    %5467 = vmatpush1.xpose.msra.mxu0 0.0
    %5468 = vmatprep.subr.mxu0 0.0
    %5469 = vmatpush1.xpose.msra.mxu0 0.0
    %5470 = vmatprep.subr.mxu0 0.0
    %5471 = vmatpush1.xpose.msra.mxu0 0.0
    %5472 = vmatprep.subr.mxu0 0.0
    %5473 = vmatpush1.xpose.msra.mxu0 0.0
    %5474 = vmatprep.subr.mxu0 0.0
    %5475 = vmatpush1.xpose.msra.mxu0 0.0
    %5476 = vmatprep.subr.mxu0 0.0
    %5477 = vmatpush1.xpose.msra.mxu0 0.0
    %5478 = vmatprep.subr.mxu0 0.0
    %5479 = vmatpush1.xpose.msra.mxu0 0.0
    %5480 = vmatprep.subr.mxu0 0.0
    %5481 = vmatpush1.xpose.msra.mxu0 0.0
    %5482 = vmatprep.subr.mxu0 0.0
    %5483 = vmatpush1.xpose.msra.mxu0 0.0
    %5484 = vmatprep.subr.mxu0 0.0
    %5485 = vmatpush1.xpose.msra.mxu0 0.0
    %5486 = vmatprep.subr.mxu0 0.0
    %5487 = vmatpush1.xpose.msra.mxu0 0.0
    %5488 = vmatprep.subr.mxu0 0.0
    %5489 = vmatpush1.xpose.msra.mxu0 0.0
    %5490 = vmatprep.subr.mxu0 0.0
    %5491 = vmatpush1.xpose.msra.mxu0 0.0
    %5492 = vmatprep.subr.mxu0 0.0
    %5493 = vmatpush1.xpose.msra.mxu0 %v5462
    %5494 = vmatprep.subr.mxu0 0.0
    %5495 = vmatpush1.xpose.msra.mxu0 %v5460
    %5496 = vmatprep.subr.mxu0 0.0
    %5497 = vmatpush2.xpose.msra.mxu0 0.0
    %5498 = vmatprep.subr.mxu0 0.0
    %5499 = vmatpush2.xpose.msra.mxu0 0.0
    %5500 = vmatprep.subr.mxu0 0.0
    %5501 = vmatpush2.xpose.msra.mxu0 0.0
    %5502 = vmatprep.subr.mxu0 0.0
    %5503 = vmatpush2.xpose.msra.mxu0 0.0
    %5504 = vmatprep.subr.mxu0 0.0
    %5505 = vmatpush2.xpose.msra.mxu0 0.0
    %5506 = vmatprep.subr.mxu0 0.0
    %5507 = vmatpush2.xpose.msra.mxu0 0.0
    %5508 = vmatprep.subr.mxu0 0.0
    %5509 = vmatpush2.xpose.msra.mxu0 0.0
    %5510 = vmatprep.subr.mxu0 0.0
    %5511 = vmatpush2.xpose.msra.mxu0 0.0
    %5512 = vmatprep.subr.mxu0 0.0
    %5513 = vmatpush2.xpose.msra.mxu0 0.0
    %5514 = vmatprep.subr.mxu0 0.0
    %5515 = vmatpush2.xpose.msra.mxu0 0.0
    %5516 = vmatprep.subr.mxu0 0.0
    %5517 = vmatpush2.xpose.msra.mxu0 0.0
    %5518 = vmatprep.subr.mxu0 0.0
    %5519 = vmatpush2.xpose.msra.mxu0 0.0
    %5520 = vmatprep.subr.mxu0 0.0
    %5521 = vmatpush2.xpose.msra.mxu0 0.0
    %5522 = vmatprep.subr.mxu0 0.0
    %5523 = vmatpush2.xpose.msra.mxu0 0.0
    %5524 = vmatprep.subr.mxu0 0.0
    %5525 = vmatpush2.xpose.msra.mxu0 0.0
    %5526 = vmatprep.subr.mxu0 0.0
    %5527 = vmatpush2.xpose.msra.mxu0 0.0
    %5528 = vmatprep.mubr.f32.mxu0 0.0
    %5529 = vmatmul.mubr.f32.gmra.mxu0 %v5456
    %v5530 = vpop.f32.mrf.mxu0
    %v5531 = vadd.f32 0.0, %v5530
    %v5532 = vpop.f32.mrf.mxu0
    %5533 = vmatprep.mubr.f32.mxu0 0.0
    %5534 = vmatmul.mubr.f32.gmra.mxu0 %v5458
    %v5535 = vpop.f32.mrf.mxu0
    %v5536 = vadd.f32 0.0, %v5535
    %v5537 = vpop.f32.mrf.mxu0
    %5538 = vdwg.mxu0
    %5539 = vst.msk [vmem:[#allocation2 + $0x50] sm:$0xff] %vm484, %v5531
    %5540 = vst.msk [vmem:[#allocation2 + $0x58] sm:$0xff] %vm484, %v5536
    %5541 = vrot.lane.b32.xlu0 %v4902, 80
    %v5542 = vpop.permute.xlu0 %5541
    %5543 = vrot.lane.b32.xlu0 %v4908, 80
    %v5544 = vpop.permute.xlu0 %5543
    %5545 = vrot.lane.b32.xlu0 %v4904, 80
    %v5546 = vpop.permute.xlu0 %5545
    %5547 = vrot.lane.b32.xlu0 %v4910, 80
    %v5548 = vpop.permute.xlu0 %5547
    %v5549 = vsel %vm396, %v5542, 0
    %v5551 = vsel %vm396, %v5544, 0
    %v5553 = vsel %vm396, %v5546, 0
    %v5555 = vsel %vm396, %v5548, 0
    %5557 = vmatprep.subr.mxu0 0.0
    %5558 = vmatpush1.xpose.msra.mxu0 0.0
    %5559 = vmatprep.subr.mxu0 0.0
    %5560 = vmatpush1.xpose.msra.mxu0 0.0
    %5561 = vmatprep.subr.mxu0 0.0
    %5562 = vmatpush1.xpose.msra.mxu0 0.0
    %5563 = vmatprep.subr.mxu0 0.0
    %5564 = vmatpush1.xpose.msra.mxu0 0.0
    %5565 = vmatprep.subr.mxu0 0.0
    %5566 = vmatpush1.xpose.msra.mxu0 0.0
    %5567 = vmatprep.subr.mxu0 0.0
    %5568 = vmatpush1.xpose.msra.mxu0 0.0
    %5569 = vmatprep.subr.mxu0 0.0
    %5570 = vmatpush1.xpose.msra.mxu0 0.0
    %5571 = vmatprep.subr.mxu0 0.0
    %5572 = vmatpush1.xpose.msra.mxu0 0.0
    %5573 = vmatprep.subr.mxu0 0.0
    %5574 = vmatpush1.xpose.msra.mxu0 0.0
    %5575 = vmatprep.subr.mxu0 0.0
    %5576 = vmatpush1.xpose.msra.mxu0 0.0
    %5577 = vmatprep.subr.mxu0 0.0
    %5578 = vmatpush1.xpose.msra.mxu0 0.0
    %5579 = vmatprep.subr.mxu0 0.0
    %5580 = vmatpush1.xpose.msra.mxu0 0.0
    %5581 = vmatprep.subr.mxu0 0.0
    %5582 = vmatpush1.xpose.msra.mxu0 0.0
    %5583 = vmatprep.subr.mxu0 0.0
    %5584 = vmatpush1.xpose.msra.mxu0 0.0
    %5585 = vmatprep.subr.mxu0 0.0
    %5586 = vmatpush1.xpose.msra.mxu0 %v5555
    %5587 = vmatprep.subr.mxu0 0.0
    %5588 = vmatpush1.xpose.msra.mxu0 %v5553
    %5589 = vmatprep.subr.mxu0 0.0
    %5590 = vmatpush2.xpose.msra.mxu0 0.0
    %5591 = vmatprep.subr.mxu0 0.0
    %5592 = vmatpush2.xpose.msra.mxu0 0.0
    %5593 = vmatprep.subr.mxu0 0.0
    %5594 = vmatpush2.xpose.msra.mxu0 0.0
    %5595 = vmatprep.subr.mxu0 0.0
    %5596 = vmatpush2.xpose.msra.mxu0 0.0
    %5597 = vmatprep.subr.mxu0 0.0
    %5598 = vmatpush2.xpose.msra.mxu0 0.0
    %5599 = vmatprep.subr.mxu0 0.0
    %5600 = vmatpush2.xpose.msra.mxu0 0.0
    %5601 = vmatprep.subr.mxu0 0.0
    %5602 = vmatpush2.xpose.msra.mxu0 0.0
    %5603 = vmatprep.subr.mxu0 0.0
    %5604 = vmatpush2.xpose.msra.mxu0 0.0
    %5605 = vmatprep.subr.mxu0 0.0
    %5606 = vmatpush2.xpose.msra.mxu0 0.0
    %5607 = vmatprep.subr.mxu0 0.0
    %5608 = vmatpush2.xpose.msra.mxu0 0.0
    %5609 = vmatprep.subr.mxu0 0.0
    %5610 = vmatpush2.xpose.msra.mxu0 0.0
    %5611 = vmatprep.subr.mxu0 0.0
    %5612 = vmatpush2.xpose.msra.mxu0 0.0
    %5613 = vmatprep.subr.mxu0 0.0
    %5614 = vmatpush2.xpose.msra.mxu0 0.0
    %5615 = vmatprep.subr.mxu0 0.0
    %5616 = vmatpush2.xpose.msra.mxu0 0.0
    %5617 = vmatprep.subr.mxu0 0.0
    %5618 = vmatpush2.xpose.msra.mxu0 0.0
    %5619 = vmatprep.subr.mxu0 0.0
    %5620 = vmatpush2.xpose.msra.mxu0 0.0
    %5621 = vmatprep.mubr.f32.mxu0 0.0
    %5622 = vmatmul.mubr.f32.gmra.mxu0 %v5549
    %v5623 = vpop.f32.mrf.mxu0
    %v5624 = vadd.f32 0.0, %v5623
    %v5625 = vpop.f32.mrf.mxu0
    %5626 = vmatprep.mubr.f32.mxu0 0.0
    %5627 = vmatmul.mubr.f32.gmra.mxu0 %v5551
    %v5628 = vpop.f32.mrf.mxu0
    %v5629 = vadd.f32 0.0, %v5628
    %v5630 = vpop.f32.mrf.mxu0
    %5631 = vdwg.mxu0
    %5632 = vst.msk [vmem:[#allocation2 + $0x60] sm:$0xff] %vm484, %v5624
    %5633 = vst.msk [vmem:[#allocation2 + $0x68] sm:$0xff] %vm484, %v5629
    %5634 = vrot.lane.b32.xlu0 %v4902, 72
    %v5635 = vpop.permute.xlu0 %5634
    %5636 = vrot.lane.b32.xlu0 %v4908, 72
    %v5637 = vpop.permute.xlu0 %5636
    %5638 = vrot.lane.b32.xlu0 %v4904, 72
    %v5639 = vpop.permute.xlu0 %5638
    %5640 = vrot.lane.b32.xlu0 %v4910, 72
    %v5641 = vpop.permute.xlu0 %5640
    %v5642 = vsel %vm396, %v5635, 0
    %v5644 = vsel %vm396, %v5637, 0
    %v5646 = vsel %vm396, %v5639, 0
    %v5648 = vsel %vm396, %v5641, 0
    %5650 = vmatprep.subr.mxu0 0.0
    %5651 = vmatpush1.xpose.msra.mxu0 0.0
    %5652 = vmatprep.subr.mxu0 0.0
    %5653 = vmatpush1.xpose.msra.mxu0 0.0
    %5654 = vmatprep.subr.mxu0 0.0
    %5655 = vmatpush1.xpose.msra.mxu0 0.0
    %5656 = vmatprep.subr.mxu0 0.0
    %5657 = vmatpush1.xpose.msra.mxu0 0.0
    %5658 = vmatprep.subr.mxu0 0.0
    %5659 = vmatpush1.xpose.msra.mxu0 0.0
    %5660 = vmatprep.subr.mxu0 0.0
    %5661 = vmatpush1.xpose.msra.mxu0 0.0
    %5662 = vmatprep.subr.mxu0 0.0
    %5663 = vmatpush1.xpose.msra.mxu0 0.0
    %5664 = vmatprep.subr.mxu0 0.0
    %5665 = vmatpush1.xpose.msra.mxu0 0.0
    %5666 = vmatprep.subr.mxu0 0.0
    %5667 = vmatpush1.xpose.msra.mxu0 0.0
    %5668 = vmatprep.subr.mxu0 0.0
    %5669 = vmatpush1.xpose.msra.mxu0 0.0
    %5670 = vmatprep.subr.mxu0 0.0
    %5671 = vmatpush1.xpose.msra.mxu0 0.0
    %5672 = vmatprep.subr.mxu0 0.0
    %5673 = vmatpush1.xpose.msra.mxu0 0.0
    %5674 = vmatprep.subr.mxu0 0.0
    %5675 = vmatpush1.xpose.msra.mxu0 0.0
    %5676 = vmatprep.subr.mxu0 0.0
    %5677 = vmatpush1.xpose.msra.mxu0 0.0
    %5678 = vmatprep.subr.mxu0 0.0
    %5679 = vmatpush1.xpose.msra.mxu0 %v5648
    %5680 = vmatprep.subr.mxu0 0.0
    %5681 = vmatpush1.xpose.msra.mxu0 %v5646
    %5682 = vmatprep.subr.mxu0 0.0
    %5683 = vmatpush2.xpose.msra.mxu0 0.0
    %5684 = vmatprep.subr.mxu0 0.0
    %5685 = vmatpush2.xpose.msra.mxu0 0.0
    %5686 = vmatprep.subr.mxu0 0.0
    %5687 = vmatpush2.xpose.msra.mxu0 0.0
    %5688 = vmatprep.subr.mxu0 0.0
    %5689 = vmatpush2.xpose.msra.mxu0 0.0
    %5690 = vmatprep.subr.mxu0 0.0
    %5691 = vmatpush2.xpose.msra.mxu0 0.0
    %5692 = vmatprep.subr.mxu0 0.0
    %5693 = vmatpush2.xpose.msra.mxu0 0.0
    %5694 = vmatprep.subr.mxu0 0.0
    %5695 = vmatpush2.xpose.msra.mxu0 0.0
    %5696 = vmatprep.subr.mxu0 0.0
    %5697 = vmatpush2.xpose.msra.mxu0 0.0
    %5698 = vmatprep.subr.mxu0 0.0
    %5699 = vmatpush2.xpose.msra.mxu0 0.0
    %5700 = vmatprep.subr.mxu0 0.0
    %5701 = vmatpush2.xpose.msra.mxu0 0.0
    %5702 = vmatprep.subr.mxu0 0.0
    %5703 = vmatpush2.xpose.msra.mxu0 0.0
    %5704 = vmatprep.subr.mxu0 0.0
    %5705 = vmatpush2.xpose.msra.mxu0 0.0
    %5706 = vmatprep.subr.mxu0 0.0
    %5707 = vmatpush2.xpose.msra.mxu0 0.0
    %5708 = vmatprep.subr.mxu0 0.0
    %5709 = vmatpush2.xpose.msra.mxu0 0.0
    %5710 = vmatprep.subr.mxu0 0.0
    %5711 = vmatpush2.xpose.msra.mxu0 0.0
    %5712 = vmatprep.subr.mxu0 0.0
    %5713 = vmatpush2.xpose.msra.mxu0 0.0
    %5714 = vmatprep.mubr.f32.mxu0 0.0
    %5715 = vmatmul.mubr.f32.gmra.mxu0 %v5642
    %v5716 = vpop.f32.mrf.mxu0
    %v5717 = vadd.f32 0.0, %v5716
    %v5718 = vpop.f32.mrf.mxu0
    %5719 = vmatprep.mubr.f32.mxu0 0.0
    %5720 = vmatmul.mubr.f32.gmra.mxu0 %v5644
    %v5721 = vpop.f32.mrf.mxu0
    %v5722 = vadd.f32 0.0, %v5721
    %v5723 = vpop.f32.mrf.mxu0
    %5724 = vdwg.mxu0
    %5725 = vst.msk [vmem:[#allocation2 + $0x70] sm:$0xff] %vm484, %v5717
    %5726 = vst.msk [vmem:[#allocation2 + $0x78] sm:$0xff] %vm484, %v5722
    %v5727 = vld [vmem:[#allocation2] sm:$0xff]
    %v5728 = vld [vmem:[#allocation2 + $0x8] sm:$0xff]
    %v5729 = vld [vmem:[#allocation2 + $0x10] sm:$0xff]
    %v5730 = vld [vmem:[#allocation2 + $0x18] sm:$0xff]
    %v5731 = vld [vmem:[#allocation2 + $0x20] sm:$0xff]
    %v5732 = vld [vmem:[#allocation2 + $0x28] sm:$0xff]
    %v5733 = vld [vmem:[#allocation2 + $0x30] sm:$0xff]
    %v5734 = vld [vmem:[#allocation2 + $0x38] sm:$0xff]
    %v5735 = vld [vmem:[#allocation2 + $0x40] sm:$0xff]
    %v5736 = vld [vmem:[#allocation2 + $0x48] sm:$0xff]
    %v5737 = vld [vmem:[#allocation2 + $0x50] sm:$0xff]
    %v5738 = vld [vmem:[#allocation2 + $0x58] sm:$0xff]
    %v5739 = vld [vmem:[#allocation2 + $0x60] sm:$0xff]
    %v5740 = vld [vmem:[#allocation2 + $0x68] sm:$0xff]
    %v5741 = vld [vmem:[#allocation2 + $0x70] sm:$0xff]
    %v5742 = vld [vmem:[#allocation2 + $0x78] sm:$0xff]
    %v5743 = vadd.f32 %v5727, %v114
    %v5744 = vadd.f32 %v5728, %v115
    %v5745 = vadd.f32 %v5729, %v116
    %v5746 = vadd.f32 %v5730, %v117
    %v5747 = vadd.f32 %v5731, %v118
    %v5748 = vadd.f32 %v5732, %v119
    %v5749 = vadd.f32 %v5733, %v120
    %v5750 = vadd.f32 %v5734, %v121
    %v5751 = vadd.f32 %v5735, %v122
    %v5752 = vadd.f32 %v5736, %v123
    %v5753 = vadd.f32 %v5737, %v124
    %v5754 = vadd.f32 %v5738, %v125
    %v5755 = vadd.f32 %v5739, %v126
    %v5756 = vadd.f32 %v5740, %v127
    %v5757 = vadd.f32 %v5741, %v128
    %v5758 = vadd.f32 %v5742, %v129
    %v5759 = vsel %vm484, %v5743, -inf
    %5760 = vmax.xlane.f32.xlu0 %v5759
    %v5761 = vpop.xlane.xlu0 %5760
    %v5762 = vsel %vm484, %v5744, -inf
    %5763 = vmax.xlane.f32.xlu0 %v5762
    %v5764 = vpop.xlane.xlu0 %5763
    %v5765 = vsel %vm484, %v5745, -inf
    %5766 = vmax.xlane.f32.xlu0 %v5765
    %v5767 = vpop.xlane.xlu0 %5766
    %v5768 = vsel %vm484, %v5746, -inf
    %5769 = vmax.xlane.f32.xlu0 %v5768
    %v5770 = vpop.xlane.xlu0 %5769
    %v5771 = vsel %vm484, %v5747, -inf
    %5772 = vmax.xlane.f32.xlu0 %v5771
    %v5773 = vpop.xlane.xlu0 %5772
    %v5774 = vsel %vm484, %v5748, -inf
    %5775 = vmax.xlane.f32.xlu0 %v5774
    %v5776 = vpop.xlane.xlu0 %5775
    %v5777 = vsel %vm484, %v5749, -inf
    %5778 = vmax.xlane.f32.xlu0 %v5777
    %v5779 = vpop.xlane.xlu0 %5778
    %v5780 = vsel %vm484, %v5750, -inf
    %5781 = vmax.xlane.f32.xlu0 %v5780
    %v5782 = vpop.xlane.xlu0 %5781
    %v5783 = vsel %vm484, %v5751, -inf
    %5784 = vmax.xlane.f32.xlu0 %v5783
    %v5785 = vpop.xlane.xlu0 %5784
    %v5786 = vsel %vm484, %v5752, -inf
    %5787 = vmax.xlane.f32.xlu0 %v5786
    %v5788 = vpop.xlane.xlu0 %5787
    %v5789 = vsel %vm484, %v5753, -inf
    %5790 = vmax.xlane.f32.xlu0 %v5789
    %v5791 = vpop.xlane.xlu0 %5790
    %v5792 = vsel %vm484, %v5754, -inf
    %5793 = vmax.xlane.f32.xlu0 %v5792
    %v5794 = vpop.xlane.xlu0 %5793
    %v5795 = vsel %vm484, %v5755, -inf
    %5796 = vmax.xlane.f32.xlu0 %v5795
    %v5797 = vpop.xlane.xlu0 %5796
    %v5798 = vsel %vm484, %v5756, -inf
    %5799 = vmax.xlane.f32.xlu0 %v5798
    %v5800 = vpop.xlane.xlu0 %5799
    %v5801 = vsel %vm484, %v5757, -inf
    %5802 = vmax.xlane.f32.xlu0 %v5801
    %v5803 = vpop.xlane.xlu0 %5802
    %v5804 = vsel %vm484, %v5758, -inf
    %5805 = vmax.xlane.f32.xlu0 %v5804
    %v5806 = vpop.xlane.xlu0 %5805
    %v5807 = vsub.f32 %v5743, %v5761
    %v5808 = vsub.f32 %v5744, %v5764
    %v5809 = vsub.f32 %v5745, %v5767
    %v5810 = vsub.f32 %v5746, %v5770
    %v5811 = vsub.f32 %v5747, %v5773
    %v5812 = vsub.f32 %v5748, %v5776
    %v5813 = vsub.f32 %v5749, %v5779
    %v5814 = vsub.f32 %v5750, %v5782
    %v5815 = vsub.f32 %v5751, %v5785
    %v5816 = vsub.f32 %v5752, %v5788
    %v5817 = vsub.f32 %v5753, %v5791
    %v5818 = vsub.f32 %v5754, %v5794
    %v5819 = vsub.f32 %v5755, %v5797
    %v5820 = vsub.f32 %v5756, %v5800
    %v5821 = vsub.f32 %v5757, %v5803
    %v5822 = vsub.f32 %v5758, %v5806
    %v5823 = vmul.f32 %v5807, 1.442695
    %v5824 = vpow.pop %v5823
    %v5825 = vmul.f32 %v5808, 1.442695
    %v5826 = vpow.pop %v5825
    %v5827 = vmul.f32 %v5809, 1.442695
    %v5828 = vpow.pop %v5827
    %v5829 = vmul.f32 %v5810, 1.442695
    %v5830 = vpow.pop %v5829
    %v5831 = vmul.f32 %v5811, 1.442695
    %v5832 = vpow.pop %v5831
    %v5833 = vmul.f32 %v5812, 1.442695
    %v5834 = vpow.pop %v5833
    %v5835 = vmul.f32 %v5813, 1.442695
    %v5836 = vpow.pop %v5835
    %v5837 = vmul.f32 %v5814, 1.442695
    %v5838 = vpow.pop %v5837
    %v5839 = vmul.f32 %v5815, 1.442695
    %v5840 = vpow.pop %v5839
    %v5841 = vmul.f32 %v5816, 1.442695
    %v5842 = vpow.pop %v5841
    %v5843 = vmul.f32 %v5817, 1.442695
    %v5844 = vpow.pop %v5843
    %v5845 = vmul.f32 %v5818, 1.442695
    %v5846 = vpow.pop %v5845
    %v5847 = vmul.f32 %v5819, 1.442695
    %v5848 = vpow.pop %v5847
    %v5849 = vmul.f32 %v5820, 1.442695
    %v5850 = vpow.pop %v5849
    %v5851 = vmul.f32 %v5821, 1.442695
    %v5852 = vpow.pop %v5851
    %v5853 = vmul.f32 %v5822, 1.442695
    %v5854 = vpow.pop %v5853
    %v5855 = vsel %vm484, %v5824, 0.0
    %5856 = vadd.xlane.f32.xlu0 %v5855
    %v5857 = vpop.xlane.xlu0 %5856
    %v5858 = vsel %vm484, %v5826, 0.0
    %5859 = vadd.xlane.f32.xlu0 %v5858
    %v5860 = vpop.xlane.xlu0 %5859
    %v5861 = vsel %vm484, %v5828, 0.0
    %5862 = vadd.xlane.f32.xlu0 %v5861
    %v5863 = vpop.xlane.xlu0 %5862
    %v5864 = vsel %vm484, %v5830, 0.0
    %5865 = vadd.xlane.f32.xlu0 %v5864
    %v5866 = vpop.xlane.xlu0 %5865
    %v5867 = vsel %vm484, %v5832, 0.0
    %5868 = vadd.xlane.f32.xlu0 %v5867
    %v5869 = vpop.xlane.xlu0 %5868
    %v5870 = vsel %vm484, %v5834, 0.0
    %5871 = vadd.xlane.f32.xlu0 %v5870
    %v5872 = vpop.xlane.xlu0 %5871
    %v5873 = vsel %vm484, %v5836, 0.0
    %5874 = vadd.xlane.f32.xlu0 %v5873
    %v5875 = vpop.xlane.xlu0 %5874
    %v5876 = vsel %vm484, %v5838, 0.0
    %5877 = vadd.xlane.f32.xlu0 %v5876
    %v5878 = vpop.xlane.xlu0 %5877
    %v5879 = vsel %vm484, %v5840, 0.0
    %5880 = vadd.xlane.f32.xlu0 %v5879
    %v5881 = vpop.xlane.xlu0 %5880
    %v5882 = vsel %vm484, %v5842, 0.0
    %5883 = vadd.xlane.f32.xlu0 %v5882
    %v5884 = vpop.xlane.xlu0 %5883
    %v5885 = vsel %vm484, %v5844, 0.0
    %5886 = vadd.xlane.f32.xlu0 %v5885
    %v5887 = vpop.xlane.xlu0 %5886
    %v5888 = vsel %vm484, %v5846, 0.0
    %5889 = vadd.xlane.f32.xlu0 %v5888
    %v5890 = vpop.xlane.xlu0 %5889
    %v5891 = vsel %vm484, %v5848, 0.0
    %5892 = vadd.xlane.f32.xlu0 %v5891
    %v5893 = vpop.xlane.xlu0 %5892
    %v5894 = vsel %vm484, %v5850, 0.0
    %5895 = vadd.xlane.f32.xlu0 %v5894
    %v5896 = vpop.xlane.xlu0 %5895
    %v5897 = vsel %vm484, %v5852, 0.0
    %5898 = vadd.xlane.f32.xlu0 %v5897
    %v5899 = vpop.xlane.xlu0 %5898
    %v5900 = vsel %vm484, %v5854, 0.0
    %5901 = vadd.xlane.f32.xlu0 %v5900
    %v5902 = vpop.xlane.xlu0 %5901
    %v5903 = vrcp.pop %v5857
    %v5904 = vrcp.pop %v5860
    %v5905 = vrcp.pop %v5863
    %v5906 = vrcp.pop %v5866
    %v5907 = vrcp.pop %v5869
    %v5908 = vrcp.pop %v5872
    %v5909 = vrcp.pop %v5875
    %v5910 = vrcp.pop %v5878
    %v5911 = vrcp.pop %v5881
    %v5912 = vrcp.pop %v5884
    %v5913 = vrcp.pop %v5887
    %v5914 = vrcp.pop %v5890
    %v5915 = vrcp.pop %v5893
    %v5916 = vrcp.pop %v5896
    %v5917 = vrcp.pop %v5899
    %v5918 = vrcp.pop %v5902
    %v5919 = vmul.f32 %v5824, %v5903
    %v5920 = vmul.f32 %v5826, %v5904
    %v5921 = vmul.f32 %v5828, %v5905
    %v5922 = vmul.f32 %v5830, %v5906
    %v5923 = vmul.f32 %v5832, %v5907
    %v5924 = vmul.f32 %v5834, %v5908
    %v5925 = vmul.f32 %v5836, %v5909
    %v5926 = vmul.f32 %v5838, %v5910
    %v5927 = vmul.f32 %v5840, %v5911
    %v5928 = vmul.f32 %v5842, %v5912
    %v5929 = vmul.f32 %v5844, %v5913
    %v5930 = vmul.f32 %v5846, %v5914
    %v5931 = vmul.f32 %v5848, %v5915
    %v5932 = vmul.f32 %v5850, %v5916
    %v5933 = vmul.f32 %v5852, %v5917
    %v5934 = vmul.f32 %v5854, %v5918
    %v5936 = vsel %vm484, %v5919, 0
    %v5939 = vsel %vm484, %v5920, 0
    %5941 = vmatprep.subr.mxu0 0.0
    %5942 = vmatpush1.msra.mxu0 0.0
    %5943 = vmatprep.subr.mxu0 0.0
    %5944 = vmatpush1.msra.mxu0 0.0
    %5945 = vmatprep.subr.mxu0 0.0
    %5946 = vmatpush1.msra.mxu0 0.0
    %5947 = vmatprep.subr.mxu0 0.0
    %5948 = vmatpush1.msra.mxu0 0.0
    %5949 = vmatprep.subr.mxu0 0.0
    %5950 = vmatpush1.msra.mxu0 0.0
    %5951 = vmatprep.subr.mxu0 0.0
    %5952 = vmatpush1.msra.mxu0 0.0
    %5953 = vmatprep.subr.mxu0 0.0
    %5954 = vmatpush1.msra.mxu0 0.0
    %5955 = vmatprep.subr.mxu0 0.0
    %5956 = vmatpush1.msra.mxu0 0.0
    %5957 = vmatprep.subr.mxu0 0.0
    %5958 = vmatpush1.msra.mxu0 0.0
    %5959 = vmatprep.subr.mxu0 0.0
    %5960 = vmatpush1.msra.mxu0 0.0
    %5961 = vmatprep.subr.mxu0 0.0
    %5962 = vmatpush1.msra.mxu0 0.0
    %5963 = vmatprep.subr.mxu0 0.0
    %5964 = vmatpush1.msra.mxu0 0.0
    %5965 = vmatprep.subr.mxu0 0.0
    %5966 = vmatpush1.msra.mxu0 0.0
    %5967 = vmatprep.subr.mxu0 0.0
    %5968 = vmatpush1.msra.mxu0 0.0
    %5969 = vmatprep.subr.mxu0 0.0
    %5970 = vmatpush1.msra.mxu0 %v4984
    %5971 = vmatprep.subr.mxu0 0.0
    %5972 = vmatpush1.msra.mxu0 %v4979
    %5973 = vmatprep.subr.mxu0 0.0
    %5974 = vmatpush2.msra.mxu0 0.0
    %5975 = vmatprep.subr.mxu0 0.0
    %5976 = vmatpush2.msra.mxu0 0.0
    %5977 = vmatprep.subr.mxu0 0.0
    %5978 = vmatpush2.msra.mxu0 0.0
    %5979 = vmatprep.subr.mxu0 0.0
    %5980 = vmatpush2.msra.mxu0 0.0
    %5981 = vmatprep.subr.mxu0 0.0
    %5982 = vmatpush2.msra.mxu0 0.0
    %5983 = vmatprep.subr.mxu0 0.0
    %5984 = vmatpush2.msra.mxu0 0.0
    %5985 = vmatprep.subr.mxu0 0.0
    %5986 = vmatpush2.msra.mxu0 0.0
    %5987 = vmatprep.subr.mxu0 0.0
    %5988 = vmatpush2.msra.mxu0 0.0
    %5989 = vmatprep.subr.mxu0 0.0
    %5990 = vmatpush2.msra.mxu0 0.0
    %5991 = vmatprep.subr.mxu0 0.0
    %5992 = vmatpush2.msra.mxu0 0.0
    %5993 = vmatprep.subr.mxu0 0.0
    %5994 = vmatpush2.msra.mxu0 0.0
    %5995 = vmatprep.subr.mxu0 0.0
    %5996 = vmatpush2.msra.mxu0 0.0
    %5997 = vmatprep.subr.mxu0 0.0
    %5998 = vmatpush2.msra.mxu0 0.0
    %5999 = vmatprep.subr.mxu0 0.0
    %6000 = vmatpush2.msra.mxu0 0.0
    %6001 = vmatprep.subr.mxu0 0.0
    %6002 = vmatpush2.msra.mxu0 0.0
    %6003 = vmatprep.subr.mxu0 0.0
    %6004 = vmatpush2.msra.mxu0 0.0
    %6005 = vmatprep.mubr.f32.mxu0 0.0
    %6006 = vmatmul.mubr.f32.gmra.mxu0 %v5936
    %v6007 = vpop.f32.mrf.mxu0
    %v6008 = vadd.f32 0.0, %v6007
    %v6009 = vpop.f32.mrf.mxu0
    %6010 = vmatprep.mubr.f32.mxu0 0.0
    %6011 = vmatmul.mubr.f32.gmra.mxu0 %v5939
    %v6012 = vpop.f32.mrf.mxu0
    %v6013 = vadd.f32 0.0, %v6012
    %v6014 = vpop.f32.mrf.mxu0
    %6015 = vdwg.mxu0
    %6016 = vst.msk [vmem:[#allocation3] sm:$0xff] %vm396, %v6008
    %6017 = vst.msk [vmem:[#allocation3 + $0x8] sm:$0xff] %vm396, %v6013
    %6020 = vrot.lane.b32.xlu0 %v4979, 120
    %v6021 = vpop.permute.xlu0 %6020
    %6022 = vrot.lane.b32.xlu0 %v4984, 120
    %v6023 = vpop.permute.xlu0 %6022
    %v6027 = vsel %vm484, %v5921, 0
    %v6030 = vsel %vm484, %v5922, 0
    %6032 = vmatprep.subr.mxu0 0.0
    %6033 = vmatpush1.msra.mxu0 0.0
    %6034 = vmatprep.subr.mxu0 0.0
    %6035 = vmatpush1.msra.mxu0 0.0
    %6036 = vmatprep.subr.mxu0 0.0
    %6037 = vmatpush1.msra.mxu0 0.0
    %6038 = vmatprep.subr.mxu0 0.0
    %6039 = vmatpush1.msra.mxu0 0.0
    %6040 = vmatprep.subr.mxu0 0.0
    %6041 = vmatpush1.msra.mxu0 0.0
    %6042 = vmatprep.subr.mxu0 0.0
    %6043 = vmatpush1.msra.mxu0 0.0
    %6044 = vmatprep.subr.mxu0 0.0
    %6045 = vmatpush1.msra.mxu0 0.0
    %6046 = vmatprep.subr.mxu0 0.0
    %6047 = vmatpush1.msra.mxu0 0.0
    %6048 = vmatprep.subr.mxu0 0.0
    %6049 = vmatpush1.msra.mxu0 0.0
    %6050 = vmatprep.subr.mxu0 0.0
    %6051 = vmatpush1.msra.mxu0 0.0
    %6052 = vmatprep.subr.mxu0 0.0
    %6053 = vmatpush1.msra.mxu0 0.0
    %6054 = vmatprep.subr.mxu0 0.0
    %6055 = vmatpush1.msra.mxu0 0.0
    %6056 = vmatprep.subr.mxu0 0.0
    %6057 = vmatpush1.msra.mxu0 0.0
    %6058 = vmatprep.subr.mxu0 0.0
    %6059 = vmatpush1.msra.mxu0 0.0
    %6060 = vmatprep.subr.mxu0 0.0
    %6061 = vmatpush1.msra.mxu0 %v6023
    %6062 = vmatprep.subr.mxu0 0.0
    %6063 = vmatpush1.msra.mxu0 %v6021
    %6064 = vmatprep.subr.mxu0 0.0
    %6065 = vmatpush2.msra.mxu0 0.0
    %6066 = vmatprep.subr.mxu0 0.0
    %6067 = vmatpush2.msra.mxu0 0.0
    %6068 = vmatprep.subr.mxu0 0.0
    %6069 = vmatpush2.msra.mxu0 0.0
    %6070 = vmatprep.subr.mxu0 0.0
    %6071 = vmatpush2.msra.mxu0 0.0
    %6072 = vmatprep.subr.mxu0 0.0
    %6073 = vmatpush2.msra.mxu0 0.0
    %6074 = vmatprep.subr.mxu0 0.0
    %6075 = vmatpush2.msra.mxu0 0.0
    %6076 = vmatprep.subr.mxu0 0.0
    %6077 = vmatpush2.msra.mxu0 0.0
    %6078 = vmatprep.subr.mxu0 0.0
    %6079 = vmatpush2.msra.mxu0 0.0
    %6080 = vmatprep.subr.mxu0 0.0
    %6081 = vmatpush2.msra.mxu0 0.0
    %6082 = vmatprep.subr.mxu0 0.0
    %6083 = vmatpush2.msra.mxu0 0.0
    %6084 = vmatprep.subr.mxu0 0.0
    %6085 = vmatpush2.msra.mxu0 0.0
    %6086 = vmatprep.subr.mxu0 0.0
    %6087 = vmatpush2.msra.mxu0 0.0
    %6088 = vmatprep.subr.mxu0 0.0
    %6089 = vmatpush2.msra.mxu0 0.0
    %6090 = vmatprep.subr.mxu0 0.0
    %6091 = vmatpush2.msra.mxu0 0.0
    %6092 = vmatprep.subr.mxu0 0.0
    %6093 = vmatpush2.msra.mxu0 0.0
    %6094 = vmatprep.subr.mxu0 0.0
    %6095 = vmatpush2.msra.mxu0 0.0
    %6096 = vmatprep.mubr.f32.mxu0 0.0
    %6097 = vmatmul.mubr.f32.gmra.mxu0 %v6027
    %v6098 = vpop.f32.mrf.mxu0
    %v6099 = vadd.f32 0.0, %v6098
    %v6100 = vpop.f32.mrf.mxu0
    %6101 = vmatprep.mubr.f32.mxu0 0.0
    %6102 = vmatmul.mubr.f32.gmra.mxu0 %v6030
    %v6103 = vpop.f32.mrf.mxu0
    %v6104 = vadd.f32 0.0, %v6103
    %v6105 = vpop.f32.mrf.mxu0
    %6106 = vdwg.mxu0
    %6109 = vrot.lane.b32.xlu0 %v6099, 8
    %v6110 = vpop.permute.xlu0 %6109
    %6111 = vrot.lane.b32.xlu0 %v6104, 8
    %v6112 = vpop.permute.xlu0 %6111
    %6115 = vst.msk [vmem:[#allocation3] sm:$0xff] %vm1526, %v6110
    %6116 = vst.msk [vmem:[#allocation3 + $0x8] sm:$0xff] %vm1526, %v6112
    %6117 = vrot.lane.b32.xlu0 %v4979, 112
    %v6118 = vpop.permute.xlu0 %6117
    %6119 = vrot.lane.b32.xlu0 %v4984, 112
    %v6120 = vpop.permute.xlu0 %6119
    %v6124 = vsel %vm484, %v5923, 0
    %v6127 = vsel %vm484, %v5924, 0
    %6129 = vmatprep.subr.mxu0 0.0
    %6130 = vmatpush1.msra.mxu0 0.0
    %6131 = vmatprep.subr.mxu0 0.0
    %6132 = vmatpush1.msra.mxu0 0.0
    %6133 = vmatprep.subr.mxu0 0.0
    %6134 = vmatpush1.msra.mxu0 0.0
    %6135 = vmatprep.subr.mxu0 0.0
    %6136 = vmatpush1.msra.mxu0 0.0
    %6137 = vmatprep.subr.mxu0 0.0
    %6138 = vmatpush1.msra.mxu0 0.0
    %6139 = vmatprep.subr.mxu0 0.0
    %6140 = vmatpush1.msra.mxu0 0.0
    %6141 = vmatprep.subr.mxu0 0.0
    %6142 = vmatpush1.msra.mxu0 0.0
    %6143 = vmatprep.subr.mxu0 0.0
    %6144 = vmatpush1.msra.mxu0 0.0
    %6145 = vmatprep.subr.mxu0 0.0
    %6146 = vmatpush1.msra.mxu0 0.0
    %6147 = vmatprep.subr.mxu0 0.0
    %6148 = vmatpush1.msra.mxu0 0.0
    %6149 = vmatprep.subr.mxu0 0.0
    %6150 = vmatpush1.msra.mxu0 0.0
    %6151 = vmatprep.subr.mxu0 0.0
    %6152 = vmatpush1.msra.mxu0 0.0
    %6153 = vmatprep.subr.mxu0 0.0
    %6154 = vmatpush1.msra.mxu0 0.0
    %6155 = vmatprep.subr.mxu0 0.0
    %6156 = vmatpush1.msra.mxu0 0.0
    %6157 = vmatprep.subr.mxu0 0.0
    %6158 = vmatpush1.msra.mxu0 %v6120
    %6159 = vmatprep.subr.mxu0 0.0
    %6160 = vmatpush1.msra.mxu0 %v6118
    %6161 = vmatprep.subr.mxu0 0.0
    %6162 = vmatpush2.msra.mxu0 0.0
    %6163 = vmatprep.subr.mxu0 0.0
    %6164 = vmatpush2.msra.mxu0 0.0
    %6165 = vmatprep.subr.mxu0 0.0
    %6166 = vmatpush2.msra.mxu0 0.0
    %6167 = vmatprep.subr.mxu0 0.0
    %6168 = vmatpush2.msra.mxu0 0.0
    %6169 = vmatprep.subr.mxu0 0.0
    %6170 = vmatpush2.msra.mxu0 0.0
    %6171 = vmatprep.subr.mxu0 0.0
    %6172 = vmatpush2.msra.mxu0 0.0
    %6173 = vmatprep.subr.mxu0 0.0
    %6174 = vmatpush2.msra.mxu0 0.0
    %6175 = vmatprep.subr.mxu0 0.0
    %6176 = vmatpush2.msra.mxu0 0.0
    %6177 = vmatprep.subr.mxu0 0.0
    %6178 = vmatpush2.msra.mxu0 0.0
    %6179 = vmatprep.subr.mxu0 0.0
    %6180 = vmatpush2.msra.mxu0 0.0
    %6181 = vmatprep.subr.mxu0 0.0
    %6182 = vmatpush2.msra.mxu0 0.0
    %6183 = vmatprep.subr.mxu0 0.0
    %6184 = vmatpush2.msra.mxu0 0.0
    %6185 = vmatprep.subr.mxu0 0.0
    %6186 = vmatpush2.msra.mxu0 0.0
    %6187 = vmatprep.subr.mxu0 0.0
    %6188 = vmatpush2.msra.mxu0 0.0
    %6189 = vmatprep.subr.mxu0 0.0
    %6190 = vmatpush2.msra.mxu0 0.0
    %6191 = vmatprep.subr.mxu0 0.0
    %6192 = vmatpush2.msra.mxu0 0.0
    %6193 = vmatprep.mubr.f32.mxu0 0.0
    %6194 = vmatmul.mubr.f32.gmra.mxu0 %v6124
    %v6195 = vpop.f32.mrf.mxu0
    %v6196 = vadd.f32 0.0, %v6195
    %v6197 = vpop.f32.mrf.mxu0
    %6198 = vmatprep.mubr.f32.mxu0 0.0
    %6199 = vmatmul.mubr.f32.gmra.mxu0 %v6127
    %v6200 = vpop.f32.mrf.mxu0
    %v6201 = vadd.f32 0.0, %v6200
    %v6202 = vpop.f32.mrf.mxu0
    %6203 = vdwg.mxu0
    %6206 = vrot.lane.b32.xlu0 %v6196, 16
    %v6207 = vpop.permute.xlu0 %6206
    %6208 = vrot.lane.b32.xlu0 %v6201, 16
    %v6209 = vpop.permute.xlu0 %6208
    %6212 = vst.msk [vmem:[#allocation3] sm:$0xff] %vm1624, %v6207
    %6213 = vst.msk [vmem:[#allocation3 + $0x8] sm:$0xff] %vm1624, %v6209
    %6214 = vrot.lane.b32.xlu0 %v4979, 104
    %v6215 = vpop.permute.xlu0 %6214
    %6216 = vrot.lane.b32.xlu0 %v4984, 104
    %v6217 = vpop.permute.xlu0 %6216
    %v6221 = vsel %vm484, %v5925, 0
    %v6224 = vsel %vm484, %v5926, 0
    %6226 = vmatprep.subr.mxu0 0.0
    %6227 = vmatpush1.msra.mxu0 0.0
    %6228 = vmatprep.subr.mxu0 0.0
    %6229 = vmatpush1.msra.mxu0 0.0
    %6230 = vmatprep.subr.mxu0 0.0
    %6231 = vmatpush1.msra.mxu0 0.0
    %6232 = vmatprep.subr.mxu0 0.0
    %6233 = vmatpush1.msra.mxu0 0.0
    %6234 = vmatprep.subr.mxu0 0.0
    %6235 = vmatpush1.msra.mxu0 0.0
    %6236 = vmatprep.subr.mxu0 0.0
    %6237 = vmatpush1.msra.mxu0 0.0
    %6238 = vmatprep.subr.mxu0 0.0
    %6239 = vmatpush1.msra.mxu0 0.0
    %6240 = vmatprep.subr.mxu0 0.0
    %6241 = vmatpush1.msra.mxu0 0.0
    %6242 = vmatprep.subr.mxu0 0.0
    %6243 = vmatpush1.msra.mxu0 0.0
    %6244 = vmatprep.subr.mxu0 0.0
    %6245 = vmatpush1.msra.mxu0 0.0
    %6246 = vmatprep.subr.mxu0 0.0
    %6247 = vmatpush1.msra.mxu0 0.0
    %6248 = vmatprep.subr.mxu0 0.0
    %6249 = vmatpush1.msra.mxu0 0.0
    %6250 = vmatprep.subr.mxu0 0.0
    %6251 = vmatpush1.msra.mxu0 0.0
    %6252 = vmatprep.subr.mxu0 0.0
    %6253 = vmatpush1.msra.mxu0 0.0
    %6254 = vmatprep.subr.mxu0 0.0
    %6255 = vmatpush1.msra.mxu0 %v6217
    %6256 = vmatprep.subr.mxu0 0.0
    %6257 = vmatpush1.msra.mxu0 %v6215
    %6258 = vmatprep.subr.mxu0 0.0
    %6259 = vmatpush2.msra.mxu0 0.0
    %6260 = vmatprep.subr.mxu0 0.0
    %6261 = vmatpush2.msra.mxu0 0.0
    %6262 = vmatprep.subr.mxu0 0.0
    %6263 = vmatpush2.msra.mxu0 0.0
    %6264 = vmatprep.subr.mxu0 0.0
    %6265 = vmatpush2.msra.mxu0 0.0
    %6266 = vmatprep.subr.mxu0 0.0
    %6267 = vmatpush2.msra.mxu0 0.0
    %6268 = vmatprep.subr.mxu0 0.0
    %6269 = vmatpush2.msra.mxu0 0.0
    %6270 = vmatprep.subr.mxu0 0.0
    %6271 = vmatpush2.msra.mxu0 0.0
    %6272 = vmatprep.subr.mxu0 0.0
    %6273 = vmatpush2.msra.mxu0 0.0
    %6274 = vmatprep.subr.mxu0 0.0
    %6275 = vmatpush2.msra.mxu0 0.0
    %6276 = vmatprep.subr.mxu0 0.0
    %6277 = vmatpush2.msra.mxu0 0.0
    %6278 = vmatprep.subr.mxu0 0.0
    %6279 = vmatpush2.msra.mxu0 0.0
    %6280 = vmatprep.subr.mxu0 0.0
    %6281 = vmatpush2.msra.mxu0 0.0
    %6282 = vmatprep.subr.mxu0 0.0
    %6283 = vmatpush2.msra.mxu0 0.0
    %6284 = vmatprep.subr.mxu0 0.0
    %6285 = vmatpush2.msra.mxu0 0.0
    %6286 = vmatprep.subr.mxu0 0.0
    %6287 = vmatpush2.msra.mxu0 0.0
    %6288 = vmatprep.subr.mxu0 0.0
    %6289 = vmatpush2.msra.mxu0 0.0
    %6290 = vmatprep.mubr.f32.mxu0 0.0
    %6291 = vmatmul.mubr.f32.gmra.mxu0 %v6221
    %v6292 = vpop.f32.mrf.mxu0
    %v6293 = vadd.f32 0.0, %v6292
    %v6294 = vpop.f32.mrf.mxu0
    %6295 = vmatprep.mubr.f32.mxu0 0.0
    %6296 = vmatmul.mubr.f32.gmra.mxu0 %v6224
    %v6297 = vpop.f32.mrf.mxu0
    %v6298 = vadd.f32 0.0, %v6297
    %v6299 = vpop.f32.mrf.mxu0
    %6300 = vdwg.mxu0
    %6303 = vrot.lane.b32.xlu0 %v6293, 24
    %v6304 = vpop.permute.xlu0 %6303
    %6305 = vrot.lane.b32.xlu0 %v6298, 24
    %v6306 = vpop.permute.xlu0 %6305
    %6309 = vst.msk [vmem:[#allocation3] sm:$0xff] %vm1722, %v6304
    %6310 = vst.msk [vmem:[#allocation3 + $0x8] sm:$0xff] %vm1722, %v6306
    %6311 = vrot.lane.b32.xlu0 %v4979, 96
    %v6312 = vpop.permute.xlu0 %6311
    %6313 = vrot.lane.b32.xlu0 %v4984, 96
    %v6314 = vpop.permute.xlu0 %6313
    %v6318 = vsel %vm484, %v5927, 0
    %v6321 = vsel %vm484, %v5928, 0
    %6323 = vmatprep.subr.mxu0 0.0
    %6324 = vmatpush1.msra.mxu0 0.0
    %6325 = vmatprep.subr.mxu0 0.0
    %6326 = vmatpush1.msra.mxu0 0.0
    %6327 = vmatprep.subr.mxu0 0.0
    %6328 = vmatpush1.msra.mxu0 0.0
    %6329 = vmatprep.subr.mxu0 0.0
    %6330 = vmatpush1.msra.mxu0 0.0
    %6331 = vmatprep.subr.mxu0 0.0
    %6332 = vmatpush1.msra.mxu0 0.0
    %6333 = vmatprep.subr.mxu0 0.0
    %6334 = vmatpush1.msra.mxu0 0.0
    %6335 = vmatprep.subr.mxu0 0.0
    %6336 = vmatpush1.msra.mxu0 0.0
    %6337 = vmatprep.subr.mxu0 0.0
    %6338 = vmatpush1.msra.mxu0 0.0
    %6339 = vmatprep.subr.mxu0 0.0
    %6340 = vmatpush1.msra.mxu0 0.0
    %6341 = vmatprep.subr.mxu0 0.0
    %6342 = vmatpush1.msra.mxu0 0.0
    %6343 = vmatprep.subr.mxu0 0.0
    %6344 = vmatpush1.msra.mxu0 0.0
    %6345 = vmatprep.subr.mxu0 0.0
    %6346 = vmatpush1.msra.mxu0 0.0
    %6347 = vmatprep.subr.mxu0 0.0
    %6348 = vmatpush1.msra.mxu0 0.0
    %6349 = vmatprep.subr.mxu0 0.0
    %6350 = vmatpush1.msra.mxu0 0.0
    %6351 = vmatprep.subr.mxu0 0.0
    %6352 = vmatpush1.msra.mxu0 %v6314
    %6353 = vmatprep.subr.mxu0 0.0
    %6354 = vmatpush1.msra.mxu0 %v6312
    %6355 = vmatprep.subr.mxu0 0.0
    %6356 = vmatpush2.msra.mxu0 0.0
    %6357 = vmatprep.subr.mxu0 0.0
    %6358 = vmatpush2.msra.mxu0 0.0
    %6359 = vmatprep.subr.mxu0 0.0
    %6360 = vmatpush2.msra.mxu0 0.0
    %6361 = vmatprep.subr.mxu0 0.0
    %6362 = vmatpush2.msra.mxu0 0.0
    %6363 = vmatprep.subr.mxu0 0.0
    %6364 = vmatpush2.msra.mxu0 0.0
    %6365 = vmatprep.subr.mxu0 0.0
    %6366 = vmatpush2.msra.mxu0 0.0
    %6367 = vmatprep.subr.mxu0 0.0
    %6368 = vmatpush2.msra.mxu0 0.0
    %6369 = vmatprep.subr.mxu0 0.0
    %6370 = vmatpush2.msra.mxu0 0.0
    %6371 = vmatprep.subr.mxu0 0.0
    %6372 = vmatpush2.msra.mxu0 0.0
    %6373 = vmatprep.subr.mxu0 0.0
    %6374 = vmatpush2.msra.mxu0 0.0
    %6375 = vmatprep.subr.mxu0 0.0
    %6376 = vmatpush2.msra.mxu0 0.0
    %6377 = vmatprep.subr.mxu0 0.0
    %6378 = vmatpush2.msra.mxu0 0.0
    %6379 = vmatprep.subr.mxu0 0.0
    %6380 = vmatpush2.msra.mxu0 0.0
    %6381 = vmatprep.subr.mxu0 0.0
    %6382 = vmatpush2.msra.mxu0 0.0
    %6383 = vmatprep.subr.mxu0 0.0
    %6384 = vmatpush2.msra.mxu0 0.0
    %6385 = vmatprep.subr.mxu0 0.0
    %6386 = vmatpush2.msra.mxu0 0.0
    %6387 = vmatprep.mubr.f32.mxu0 0.0
    %6388 = vmatmul.mubr.f32.gmra.mxu0 %v6318
    %v6389 = vpop.f32.mrf.mxu0
    %v6390 = vadd.f32 0.0, %v6389
    %v6391 = vpop.f32.mrf.mxu0
    %6392 = vmatprep.mubr.f32.mxu0 0.0
    %6393 = vmatmul.mubr.f32.gmra.mxu0 %v6321
    %v6394 = vpop.f32.mrf.mxu0
    %v6395 = vadd.f32 0.0, %v6394
    %v6396 = vpop.f32.mrf.mxu0
    %6397 = vdwg.mxu0
    %6400 = vrot.lane.b32.xlu0 %v6390, 32
    %v6401 = vpop.permute.xlu0 %6400
    %6402 = vrot.lane.b32.xlu0 %v6395, 32
    %v6403 = vpop.permute.xlu0 %6402
    %6406 = vst.msk [vmem:[#allocation3] sm:$0xff] %vm1820, %v6401
    %6407 = vst.msk [vmem:[#allocation3 + $0x8] sm:$0xff] %vm1820, %v6403
    %6408 = vrot.lane.b32.xlu0 %v4979, 88
    %v6409 = vpop.permute.xlu0 %6408
    %6410 = vrot.lane.b32.xlu0 %v4984, 88
    %v6411 = vpop.permute.xlu0 %6410
    %v6415 = vsel %vm484, %v5929, 0
    %v6418 = vsel %vm484, %v5930, 0
    %6420 = vmatprep.subr.mxu0 0.0
    %6421 = vmatpush1.msra.mxu0 0.0
    %6422 = vmatprep.subr.mxu0 0.0
    %6423 = vmatpush1.msra.mxu0 0.0
    %6424 = vmatprep.subr.mxu0 0.0
    %6425 = vmatpush1.msra.mxu0 0.0
    %6426 = vmatprep.subr.mxu0 0.0
    %6427 = vmatpush1.msra.mxu0 0.0
    %6428 = vmatprep.subr.mxu0 0.0
    %6429 = vmatpush1.msra.mxu0 0.0
    %6430 = vmatprep.subr.mxu0 0.0
    %6431 = vmatpush1.msra.mxu0 0.0
    %6432 = vmatprep.subr.mxu0 0.0
    %6433 = vmatpush1.msra.mxu0 0.0
    %6434 = vmatprep.subr.mxu0 0.0
    %6435 = vmatpush1.msra.mxu0 0.0
    %6436 = vmatprep.subr.mxu0 0.0
    %6437 = vmatpush1.msra.mxu0 0.0
    %6438 = vmatprep.subr.mxu0 0.0
    %6439 = vmatpush1.msra.mxu0 0.0
    %6440 = vmatprep.subr.mxu0 0.0
    %6441 = vmatpush1.msra.mxu0 0.0
    %6442 = vmatprep.subr.mxu0 0.0
    %6443 = vmatpush1.msra.mxu0 0.0
    %6444 = vmatprep.subr.mxu0 0.0
    %6445 = vmatpush1.msra.mxu0 0.0
    %6446 = vmatprep.subr.mxu0 0.0
    %6447 = vmatpush1.msra.mxu0 0.0
    %6448 = vmatprep.subr.mxu0 0.0
    %6449 = vmatpush1.msra.mxu0 %v6411
    %6450 = vmatprep.subr.mxu0 0.0
    %6451 = vmatpush1.msra.mxu0 %v6409
    %6452 = vmatprep.subr.mxu0 0.0
    %6453 = vmatpush2.msra.mxu0 0.0
    %6454 = vmatprep.subr.mxu0 0.0
    %6455 = vmatpush2.msra.mxu0 0.0
    %6456 = vmatprep.subr.mxu0 0.0
    %6457 = vmatpush2.msra.mxu0 0.0
    %6458 = vmatprep.subr.mxu0 0.0
    %6459 = vmatpush2.msra.mxu0 0.0
    %6460 = vmatprep.subr.mxu0 0.0
    %6461 = vmatpush2.msra.mxu0 0.0
    %6462 = vmatprep.subr.mxu0 0.0
    %6463 = vmatpush2.msra.mxu0 0.0
    %6464 = vmatprep.subr.mxu0 0.0
    %6465 = vmatpush2.msra.mxu0 0.0
    %6466 = vmatprep.subr.mxu0 0.0
    %6467 = vmatpush2.msra.mxu0 0.0
    %6468 = vmatprep.subr.mxu0 0.0
    %6469 = vmatpush2.msra.mxu0 0.0
    %6470 = vmatprep.subr.mxu0 0.0
    %6471 = vmatpush2.msra.mxu0 0.0
    %6472 = vmatprep.subr.mxu0 0.0
    %6473 = vmatpush2.msra.mxu0 0.0
    %6474 = vmatprep.subr.mxu0 0.0
    %6475 = vmatpush2.msra.mxu0 0.0
    %6476 = vmatprep.subr.mxu0 0.0
    %6477 = vmatpush2.msra.mxu0 0.0
    %6478 = vmatprep.subr.mxu0 0.0
    %6479 = vmatpush2.msra.mxu0 0.0
    %6480 = vmatprep.subr.mxu0 0.0
    %6481 = vmatpush2.msra.mxu0 0.0
    %6482 = vmatprep.subr.mxu0 0.0
    %6483 = vmatpush2.msra.mxu0 0.0
    %6484 = vmatprep.mubr.f32.mxu0 0.0
    %6485 = vmatmul.mubr.f32.gmra.mxu0 %v6415
    %v6486 = vpop.f32.mrf.mxu0
    %v6487 = vadd.f32 0.0, %v6486
    %v6488 = vpop.f32.mrf.mxu0
    %6489 = vmatprep.mubr.f32.mxu0 0.0
    %6490 = vmatmul.mubr.f32.gmra.mxu0 %v6418
    %v6491 = vpop.f32.mrf.mxu0
    %v6492 = vadd.f32 0.0, %v6491
    %v6493 = vpop.f32.mrf.mxu0
    %6494 = vdwg.mxu0
    %6497 = vrot.lane.b32.xlu0 %v6487, 40
    %v6498 = vpop.permute.xlu0 %6497
    %6499 = vrot.lane.b32.xlu0 %v6492, 40
    %v6500 = vpop.permute.xlu0 %6499
    %6503 = vst.msk [vmem:[#allocation3] sm:$0xff] %vm1918, %v6498
    %6504 = vst.msk [vmem:[#allocation3 + $0x8] sm:$0xff] %vm1918, %v6500
    %6505 = vrot.lane.b32.xlu0 %v4979, 80
    %v6506 = vpop.permute.xlu0 %6505
    %6507 = vrot.lane.b32.xlu0 %v4984, 80
    %v6508 = vpop.permute.xlu0 %6507
    %v6512 = vsel %vm484, %v5931, 0
    %v6515 = vsel %vm484, %v5932, 0
    %6517 = vmatprep.subr.mxu0 0.0
    %6518 = vmatpush1.msra.mxu0 0.0
    %6519 = vmatprep.subr.mxu0 0.0
    %6520 = vmatpush1.msra.mxu0 0.0
    %6521 = vmatprep.subr.mxu0 0.0
    %6522 = vmatpush1.msra.mxu0 0.0
    %6523 = vmatprep.subr.mxu0 0.0
    %6524 = vmatpush1.msra.mxu0 0.0
    %6525 = vmatprep.subr.mxu0 0.0
    %6526 = vmatpush1.msra.mxu0 0.0
    %6527 = vmatprep.subr.mxu0 0.0
    %6528 = vmatpush1.msra.mxu0 0.0
    %6529 = vmatprep.subr.mxu0 0.0
    %6530 = vmatpush1.msra.mxu0 0.0
    %6531 = vmatprep.subr.mxu0 0.0
    %6532 = vmatpush1.msra.mxu0 0.0
    %6533 = vmatprep.subr.mxu0 0.0
    %6534 = vmatpush1.msra.mxu0 0.0
    %6535 = vmatprep.subr.mxu0 0.0
    %6536 = vmatpush1.msra.mxu0 0.0
    %6537 = vmatprep.subr.mxu0 0.0
    %6538 = vmatpush1.msra.mxu0 0.0
    %6539 = vmatprep.subr.mxu0 0.0
    %6540 = vmatpush1.msra.mxu0 0.0
    %6541 = vmatprep.subr.mxu0 0.0
    %6542 = vmatpush1.msra.mxu0 0.0
    %6543 = vmatprep.subr.mxu0 0.0
    %6544 = vmatpush1.msra.mxu0 0.0
    %6545 = vmatprep.subr.mxu0 0.0
    %6546 = vmatpush1.msra.mxu0 %v6508
    %6547 = vmatprep.subr.mxu0 0.0
    %6548 = vmatpush1.msra.mxu0 %v6506
    %6549 = vmatprep.subr.mxu0 0.0
    %6550 = vmatpush2.msra.mxu0 0.0
    %6551 = vmatprep.subr.mxu0 0.0
    %6552 = vmatpush2.msra.mxu0 0.0
    %6553 = vmatprep.subr.mxu0 0.0
    %6554 = vmatpush2.msra.mxu0 0.0
    %6555 = vmatprep.subr.mxu0 0.0
    %6556 = vmatpush2.msra.mxu0 0.0
    %6557 = vmatprep.subr.mxu0 0.0
    %6558 = vmatpush2.msra.mxu0 0.0
    %6559 = vmatprep.subr.mxu0 0.0
    %6560 = vmatpush2.msra.mxu0 0.0
    %6561 = vmatprep.subr.mxu0 0.0
    %6562 = vmatpush2.msra.mxu0 0.0
    %6563 = vmatprep.subr.mxu0 0.0
    %6564 = vmatpush2.msra.mxu0 0.0
    %6565 = vmatprep.subr.mxu0 0.0
    %6566 = vmatpush2.msra.mxu0 0.0
    %6567 = vmatprep.subr.mxu0 0.0
    %6568 = vmatpush2.msra.mxu0 0.0
    %6569 = vmatprep.subr.mxu0 0.0
    %6570 = vmatpush2.msra.mxu0 0.0
    %6571 = vmatprep.subr.mxu0 0.0
    %6572 = vmatpush2.msra.mxu0 0.0
    %6573 = vmatprep.subr.mxu0 0.0
    %6574 = vmatpush2.msra.mxu0 0.0
    %6575 = vmatprep.subr.mxu0 0.0
    %6576 = vmatpush2.msra.mxu0 0.0
    %6577 = vmatprep.subr.mxu0 0.0
    %6578 = vmatpush2.msra.mxu0 0.0
    %6579 = vmatprep.subr.mxu0 0.0
    %6580 = vmatpush2.msra.mxu0 0.0
    %6581 = vmatprep.mubr.f32.mxu0 0.0
    %6582 = vmatmul.mubr.f32.gmra.mxu0 %v6512
    %v6583 = vpop.f32.mrf.mxu0
    %v6584 = vadd.f32 0.0, %v6583
    %v6585 = vpop.f32.mrf.mxu0
    %6586 = vmatprep.mubr.f32.mxu0 0.0
    %6587 = vmatmul.mubr.f32.gmra.mxu0 %v6515
    %v6588 = vpop.f32.mrf.mxu0
    %v6589 = vadd.f32 0.0, %v6588
    %v6590 = vpop.f32.mrf.mxu0
    %6591 = vdwg.mxu0
    %6594 = vrot.lane.b32.xlu0 %v6584, 48
    %v6595 = vpop.permute.xlu0 %6594
    %6596 = vrot.lane.b32.xlu0 %v6589, 48
    %v6597 = vpop.permute.xlu0 %6596
    %6600 = vst.msk [vmem:[#allocation3] sm:$0xff] %vm2016, %v6595
    %6601 = vst.msk [vmem:[#allocation3 + $0x8] sm:$0xff] %vm2016, %v6597
    %6602 = vrot.lane.b32.xlu0 %v4979, 72
    %v6603 = vpop.permute.xlu0 %6602
    %6604 = vrot.lane.b32.xlu0 %v4984, 72
    %v6605 = vpop.permute.xlu0 %6604
    %v6609 = vsel %vm484, %v5933, 0
    %v6612 = vsel %vm484, %v5934, 0
    %6614 = vmatprep.subr.mxu0 0.0
    %6615 = vmatpush1.msra.mxu0 0.0
    %6616 = vmatprep.subr.mxu0 0.0
    %6617 = vmatpush1.msra.mxu0 0.0
    %6618 = vmatprep.subr.mxu0 0.0
    %6619 = vmatpush1.msra.mxu0 0.0
    %6620 = vmatprep.subr.mxu0 0.0
    %6621 = vmatpush1.msra.mxu0 0.0
    %6622 = vmatprep.subr.mxu0 0.0
    %6623 = vmatpush1.msra.mxu0 0.0
    %6624 = vmatprep.subr.mxu0 0.0
    %6625 = vmatpush1.msra.mxu0 0.0
    %6626 = vmatprep.subr.mxu0 0.0
    %6627 = vmatpush1.msra.mxu0 0.0
    %6628 = vmatprep.subr.mxu0 0.0
    %6629 = vmatpush1.msra.mxu0 0.0
    %6630 = vmatprep.subr.mxu0 0.0
    %6631 = vmatpush1.msra.mxu0 0.0
    %6632 = vmatprep.subr.mxu0 0.0
    %6633 = vmatpush1.msra.mxu0 0.0
    %6634 = vmatprep.subr.mxu0 0.0
    %6635 = vmatpush1.msra.mxu0 0.0
    %6636 = vmatprep.subr.mxu0 0.0
    %6637 = vmatpush1.msra.mxu0 0.0
    %6638 = vmatprep.subr.mxu0 0.0
    %6639 = vmatpush1.msra.mxu0 0.0
    %6640 = vmatprep.subr.mxu0 0.0
    %6641 = vmatpush1.msra.mxu0 0.0
    %6642 = vmatprep.subr.mxu0 0.0
    %6643 = vmatpush1.msra.mxu0 %v6605
    %6644 = vmatprep.subr.mxu0 0.0
    %6645 = vmatpush1.msra.mxu0 %v6603
    %6646 = vmatprep.subr.mxu0 0.0
    %6647 = vmatpush2.msra.mxu0 0.0
    %6648 = vmatprep.subr.mxu0 0.0
    %6649 = vmatpush2.msra.mxu0 0.0
    %6650 = vmatprep.subr.mxu0 0.0
    %6651 = vmatpush2.msra.mxu0 0.0
    %6652 = vmatprep.subr.mxu0 0.0
    %6653 = vmatpush2.msra.mxu0 0.0
    %6654 = vmatprep.subr.mxu0 0.0
    %6655 = vmatpush2.msra.mxu0 0.0
    %6656 = vmatprep.subr.mxu0 0.0
    %6657 = vmatpush2.msra.mxu0 0.0
    %6658 = vmatprep.subr.mxu0 0.0
    %6659 = vmatpush2.msra.mxu0 0.0
    %6660 = vmatprep.subr.mxu0 0.0
    %6661 = vmatpush2.msra.mxu0 0.0
    %6662 = vmatprep.subr.mxu0 0.0
    %6663 = vmatpush2.msra.mxu0 0.0
    %6664 = vmatprep.subr.mxu0 0.0
    %6665 = vmatpush2.msra.mxu0 0.0
    %6666 = vmatprep.subr.mxu0 0.0
    %6667 = vmatpush2.msra.mxu0 0.0
    %6668 = vmatprep.subr.mxu0 0.0
    %6669 = vmatpush2.msra.mxu0 0.0
    %6670 = vmatprep.subr.mxu0 0.0
    %6671 = vmatpush2.msra.mxu0 0.0
    %6672 = vmatprep.subr.mxu0 0.0
    %6673 = vmatpush2.msra.mxu0 0.0
    %6674 = vmatprep.subr.mxu0 0.0
    %6675 = vmatpush2.msra.mxu0 0.0
    %6676 = vmatprep.subr.mxu0 0.0
    %6677 = vmatpush2.msra.mxu0 0.0
    %6678 = vmatprep.mubr.f32.mxu0 0.0
    %6679 = vmatmul.mubr.f32.gmra.mxu0 %v6609
    %v6680 = vpop.f32.mrf.mxu0
    %v6681 = vadd.f32 0.0, %v6680
    %v6682 = vpop.f32.mrf.mxu0
    %6683 = vmatprep.mubr.f32.mxu0 0.0
    %6684 = vmatmul.mubr.f32.gmra.mxu0 %v6612
    %v6685 = vpop.f32.mrf.mxu0
    %v6686 = vadd.f32 0.0, %v6685
    %v6687 = vpop.f32.mrf.mxu0
    %6688 = vdwg.mxu0
    %6691 = vrot.lane.b32.xlu0 %v6681, 56
    %v6692 = vpop.permute.xlu0 %6691
    %6693 = vrot.lane.b32.xlu0 %v6686, 56
    %v6694 = vpop.permute.xlu0 %6693
    %6697 = vst.msk [vmem:[#allocation3] sm:$0xff] %vm2114, %v6692
    %6698 = vst.msk [vmem:[#allocation3 + $0x8] sm:$0xff] %vm2114, %v6694
    %v6699 = vlaneseq
    %v6700 = vshrl.u32 %v6699, 7
    %v6701 = vsub.s32 6, %v6700
    %v6702 = vrot.slane %v4776, %v6701
    %v6703 = vadd.f32 %v4718, %v6702
    %v6704 = vadd.f32 %v4719, %v6702
    %v6705 = vld [vmem:[#allocation3] sm:$0xff]
    %v6706 = vld [vmem:[#allocation3 + $0x8] sm:$0xff]
    %v6708 = vsel %vm2125, %v6705, 0
    %v6711 = vsel %vm2125, %v6706, 0
    %6713 = vmatprep.subr.mxu0 0.0
    %6714 = vmatpush1.msra.mxu0 0.0
    %6715 = vmatprep.subr.mxu0 0.0
    %6716 = vmatpush1.msra.mxu0 0.0
    %6717 = vmatprep.subr.mxu0 0.0
    %6718 = vmatpush1.msra.mxu0 0.0
    %6719 = vmatprep.subr.mxu0 0.0
    %6720 = vmatpush1.msra.mxu0 0.0
    %6721 = vmatprep.subr.mxu0 0.0
    %6722 = vmatpush1.msra.mxu0 0.0
    %6723 = vmatprep.subr.mxu0 0.0
    %6724 = vmatpush1.msra.mxu0 0.0
    %6725 = vmatprep.subr.mxu0 0.0
    %6726 = vmatpush1.msra.mxu0 0.0
    %6727 = vmatprep.subr.mxu0 0.0
    %6728 = vmatpush1.msra.mxu0 0.0
    %6729 = vmatprep.subr.mxu0 0.0
    %6730 = vmatpush1.msra.mxu0 %v4754
    %6731 = vmatprep.subr.mxu0 0.0
    %6732 = vmatpush1.msra.mxu0 %v4753
    %6733 = vmatprep.subr.mxu0 0.0
    %6734 = vmatpush1.msra.mxu0 %v4752
    %6735 = vmatprep.subr.mxu0 0.0
    %6736 = vmatpush1.msra.mxu0 %v4751
    %6737 = vmatprep.subr.mxu0 0.0
    %6738 = vmatpush1.msra.mxu0 %v4750
    %6739 = vmatprep.subr.mxu0 0.0
    %6740 = vmatpush1.msra.mxu0 %v4749
    %6741 = vmatprep.subr.mxu0 0.0
    %6742 = vmatpush1.msra.mxu0 %v4748
    %6743 = vmatprep.subr.mxu0 0.0
    %6744 = vmatpush1.msra.mxu0 %v4747
    %6745 = vmatprep.subr.mxu0 0.0
    %6746 = vmatpush2.msra.mxu0 0.0
    %6747 = vmatprep.subr.mxu0 0.0
    %6748 = vmatpush2.msra.mxu0 0.0
    %6749 = vmatprep.subr.mxu0 0.0
    %6750 = vmatpush2.msra.mxu0 0.0
    %6751 = vmatprep.subr.mxu0 0.0
    %6752 = vmatpush2.msra.mxu0 0.0
    %6753 = vmatprep.subr.mxu0 0.0
    %6754 = vmatpush2.msra.mxu0 0.0
    %6755 = vmatprep.subr.mxu0 0.0
    %6756 = vmatpush2.msra.mxu0 0.0
    %6757 = vmatprep.subr.mxu0 0.0
    %6758 = vmatpush2.msra.mxu0 0.0
    %6759 = vmatprep.subr.mxu0 0.0
    %6760 = vmatpush2.msra.mxu0 0.0
    %6761 = vmatprep.subr.mxu0 0.0
    %6762 = vmatpush2.msra.mxu0 0.0
    %6763 = vmatprep.subr.mxu0 0.0
    %6764 = vmatpush2.msra.mxu0 0.0
    %6765 = vmatprep.subr.mxu0 0.0
    %6766 = vmatpush2.msra.mxu0 0.0
    %6767 = vmatprep.subr.mxu0 0.0
    %6768 = vmatpush2.msra.mxu0 0.0
    %6769 = vmatprep.subr.mxu0 0.0
    %6770 = vmatpush2.msra.mxu0 0.0
    %6771 = vmatprep.subr.mxu0 0.0
    %6772 = vmatpush2.msra.mxu0 0.0
    %6773 = vmatprep.subr.mxu0 0.0
    %6774 = vmatpush2.msra.mxu0 0.0
    %6775 = vmatprep.subr.mxu0 0.0
    %6776 = vmatpush2.msra.mxu0 0.0
    %6777 = vmatprep.mubr.f32.mxu0 0.0
    %6778 = vmatmul.mubr.f32.gmra.mxu0 %v6708
    %v6779 = vpop.f32.mrf.mxu0
    %v6780 = vadd.f32 0.0, %v6779
    %v6781 = vpop.f32.mrf.mxu0
    %6782 = vmatprep.mubr.f32.mxu0 0.0
    %6783 = vmatmul.mubr.f32.gmra.mxu0 %v6711
    %v6784 = vpop.f32.mrf.mxu0
    %v6785 = vadd.f32 0.0, %v6784
    %v6786 = vpop.f32.mrf.mxu0
    %6787 = vdwg.mxu0
    %v6788 = vadd.f32 %v6703, %v6780
    %v6789 = vadd.f32 %v6704, %v6785
    %v6790 = vsel %vm186, %v6788, 0.0
    %6791 = vadd.xlane.f32.xlu0 %v6790
    %v6792 = vpop.xlane.xlu0 %6791
    %v6793 = vsel %vm186, %v6789, 0.0
    %6794 = vadd.xlane.f32.xlu0 %v6793
    %v6795 = vpop.xlane.xlu0 %6794
    %v6796 = vmul.f32 %v6792, %v193
    %v6797 = vmul.f32 %v6795, %v193
    %v6798 = vsub.f32 %v6788, %v6796
    %v6799 = vsub.f32 %v6789, %v6797
    %v6800 = vmul.f32 %v6798, %v6798
    %v6801 = vmul.f32 %v6799, %v6799
    %v6802 = vsel %vm186, %v6800, 0.0
    %6803 = vadd.xlane.f32.xlu0 %v6802
    %v6804 = vpop.xlane.xlu0 %6803
    %v6805 = vsel %vm186, %v6801, 0.0
    %6806 = vadd.xlane.f32.xlu0 %v6805
    %v6807 = vpop.xlane.xlu0 %6806
    %v6808 = vmul.f32 %v6804, %v193
    %v6809 = vmul.f32 %v6807, %v193
    %v6810 = vadd.f32 %v6808, 1e-05
    %v6811 = vadd.f32 %v6809, 1e-05
    %v6812 = vrsqrt.pop %v6810
    %v6813 = vrsqrt.pop %v6811
    %v6814 = vmul.f32 %v6798, %v6812
    %v6815 = vmul.f32 %v6799, %v6813
    %v6816 = vlaneseq
    %v6817 = vshrl.u32 %v6816, 7
    %v6818 = vsub.s32 4, %v6817
    %v6819 = vrot.slane %v4776, %v6818
    %v6820 = vmul.f32 %v6814, %v6819
    %v6821 = vmul.f32 %v6815, %v6819
    %v6822 = vlaneseq
    %v6823 = vshrl.u32 %v6822, 7
    %v6824 = vsub.s32 5, %v6823
    %v6825 = vrot.slane %v4776, %v6824
    %v6826 = vadd.f32 %v6820, %v6825
    %v6827 = vadd.f32 %v6821, %v6825
    %v6828 = vlaneseq
    %v6829 = vshrl.u32 %v6828, 7
    %v6830 = vsub.s32 1, %v6829
    %v6831 = vrot.slane %v4776, %v6830
    %v6832 = vlaneseq
    %v6833 = vshrl.u32 %v6832, 7
    %v6834 = vsub.s32 1, %v6833
    %v6835 = vrot.slane %v4777, %v6834
    %v6837 = vsel %vm186, %v6826, 0
    %v6840 = vsel %vm186, %v6827, 0
    %6842 = vmatprep.subr.mxu0 0.0
    %6843 = vmatpush1.msra.mxu0 0.0
    %6844 = vmatprep.subr.mxu0 0.0
    %6845 = vmatpush1.msra.mxu0 0.0
    %6846 = vmatprep.subr.mxu0 0.0
    %6847 = vmatpush1.msra.mxu0 0.0
    %6848 = vmatprep.subr.mxu0 0.0
    %6849 = vmatpush1.msra.mxu0 0.0
    %6850 = vmatprep.subr.mxu0 0.0
    %6851 = vmatpush1.msra.mxu0 0.0
    %6852 = vmatprep.subr.mxu0 0.0
    %6853 = vmatpush1.msra.mxu0 0.0
    %6854 = vmatprep.subr.mxu0 0.0
    %6855 = vmatpush1.msra.mxu0 0.0
    %6856 = vmatprep.subr.mxu0 0.0
    %6857 = vmatpush1.msra.mxu0 0.0
    %6858 = vmatprep.subr.mxu0 0.0
    %6859 = vmatpush1.msra.mxu0 0.0
    %6860 = vmatprep.subr.mxu0 0.0
    %6861 = vmatpush1.msra.mxu0 0.0
    %6862 = vmatprep.subr.mxu0 0.0
    %6863 = vmatpush1.msra.mxu0 0.0
    %6864 = vmatprep.subr.mxu0 %v4745
    %6865 = vmatpush1.msra.mxu0 %v4744
    %6866 = vmatprep.subr.mxu0 %v4743
    %6867 = vmatpush1.msra.mxu0 %v4742
    %6868 = vmatprep.subr.mxu0 %v4741
    %6869 = vmatpush1.msra.mxu0 %v4740
    %6870 = vmatprep.subr.mxu0 %v4739
    %6871 = vmatpush1.msra.mxu0 %v4738
    %6872 = vmatprep.subr.mxu0 %v4737
    %6873 = vmatpush1.msra.mxu0 %v4736
    %6874 = vmatprep.subr.mxu0 0.0
    %6875 = vmatpush2.msra.mxu0 0.0
    %6876 = vmatprep.subr.mxu0 0.0
    %6877 = vmatpush2.msra.mxu0 0.0
    %6878 = vmatprep.subr.mxu0 0.0
    %6879 = vmatpush2.msra.mxu0 0.0
    %6880 = vmatprep.subr.mxu0 0.0
    %6881 = vmatpush2.msra.mxu0 0.0
    %6882 = vmatprep.subr.mxu0 0.0
    %6883 = vmatpush2.msra.mxu0 0.0
    %6884 = vmatprep.subr.mxu0 0.0
    %6885 = vmatpush2.msra.mxu0 0.0
    %6886 = vmatprep.subr.mxu0 0.0
    %6887 = vmatpush2.msra.mxu0 0.0
    %6888 = vmatprep.subr.mxu0 0.0
    %6889 = vmatpush2.msra.mxu0 0.0
    %6890 = vmatprep.subr.mxu0 0.0
    %6891 = vmatpush2.msra.mxu0 0.0
    %6892 = vmatprep.subr.mxu0 0.0
    %6893 = vmatpush2.msra.mxu0 0.0
    %6894 = vmatprep.subr.mxu0 0.0
    %6895 = vmatpush2.msra.mxu0 0.0
    %6896 = vmatprep.subr.mxu0 0.0
    %6897 = vmatpush2.msra.mxu0 0.0
    %6898 = vmatprep.subr.mxu0 0.0
    %6899 = vmatpush2.msra.mxu0 0.0
    %6900 = vmatprep.subr.mxu0 0.0
    %6901 = vmatpush2.msra.mxu0 0.0
    %6902 = vmatprep.subr.mxu0 0.0
    %6903 = vmatpush2.msra.mxu0 0.0
    %6904 = vmatprep.subr.mxu0 0.0
    %6905 = vmatpush2.msra.mxu0 0.0
    %6906 = vmatprep.mubr.f32.mxu0 0.0
    %6907 = vmatmul.mubr.f32.gmra.mxu0 %v6837
    %v6908 = vpop.f32.mrf.mxu0
    %v6909 = vadd.f32 %v6831, %v6908
    %v6910 = vpop.f32.mrf.mxu0
    %v6911 = vadd.f32 %v6835, %v6910
    %6912 = vmatprep.mubr.f32.mxu0 0.0
    %6913 = vmatmul.mubr.f32.gmra.mxu0 %v6840
    %v6914 = vpop.f32.mrf.mxu0
    %v6915 = vadd.f32 %v6831, %v6914
    %v6916 = vpop.f32.mrf.mxu0
    %v6917 = vadd.f32 %v6835, %v6916
    %6918 = vdwg.mxu0
    %v6919 = vmax.f32 %v6909, 0.0
    %v6920 = vmax.f32 %v6911, 0.0
    %v6921 = vmax.f32 %v6915, 0.0
    %v6922 = vmax.f32 %v6917, 0.0
    %v6923 = vlaneseq
    %v6924 = vshrl.u32 %v6923, 7
    %v6925 = vsub.s32 7, %v6924
    %v6926 = vrot.slane %v4776, %v6925
    %v6928 = vsel %vm2346, %v6920, 0
    %v6931 = vsel %vm2346, %v6922, 0
    %6933 = vmatprep.subr.mxu0 0.0
    %6934 = vmatpush1.msra.mxu0 %v4770
    %6935 = vmatprep.subr.mxu0 0.0
    %6936 = vmatpush1.msra.mxu0 %v4769
    %6937 = vmatprep.subr.mxu0 0.0
    %6938 = vmatpush1.msra.mxu0 %v4768
    %6939 = vmatprep.subr.mxu0 0.0
    %6940 = vmatpush1.msra.mxu0 %v4767
    %6941 = vmatprep.subr.mxu0 0.0
    %6942 = vmatpush1.msra.mxu0 %v4766
    %6943 = vmatprep.subr.mxu0 0.0
    %6944 = vmatpush1.msra.mxu0 %v4765
    %6945 = vmatprep.subr.mxu0 0.0
    %6946 = vmatpush1.msra.mxu0 %v4764
    %6947 = vmatprep.subr.mxu0 0.0
    %6948 = vmatpush1.msra.mxu0 %v4763
    %6949 = vmatprep.subr.mxu0 0.0
    %6950 = vmatpush1.msra.mxu0 %v4762
    %6951 = vmatprep.subr.mxu0 0.0
    %6952 = vmatpush1.msra.mxu0 %v4761
    %6953 = vmatprep.subr.mxu0 0.0
    %6954 = vmatpush1.msra.mxu0 %v4760
    %6955 = vmatprep.subr.mxu0 0.0
    %6956 = vmatpush1.msra.mxu0 %v4759
    %6957 = vmatprep.subr.mxu0 0.0
    %6958 = vmatpush1.msra.mxu0 %v4758
    %6959 = vmatprep.subr.mxu0 0.0
    %6960 = vmatpush1.msra.mxu0 %v4757
    %6961 = vmatprep.subr.mxu0 0.0
    %6962 = vmatpush1.msra.mxu0 %v4756
    %6963 = vmatprep.subr.mxu0 0.0
    %6964 = vmatpush1.msra.mxu0 %v4755
    %6965 = vmatprep.subr.mxu0 0.0
    %6966 = vmatpush2.msra.mxu0 0.0
    %6967 = vmatprep.subr.mxu0 0.0
    %6968 = vmatpush2.msra.mxu0 0.0
    %6969 = vmatprep.subr.mxu0 0.0
    %6970 = vmatpush2.msra.mxu0 0.0
    %6971 = vmatprep.subr.mxu0 0.0
    %6972 = vmatpush2.msra.mxu0 0.0
    %6973 = vmatprep.subr.mxu0 0.0
    %6974 = vmatpush2.msra.mxu0 0.0
    %6975 = vmatprep.subr.mxu0 0.0
    %6976 = vmatpush2.msra.mxu0 0.0
    %6977 = vmatprep.subr.mxu0 0.0
    %6978 = vmatpush2.msra.mxu0 0.0
    %6979 = vmatprep.subr.mxu0 0.0
    %6980 = vmatpush2.msra.mxu0 0.0
    %6981 = vmatprep.subr.mxu0 0.0
    %6982 = vmatpush2.msra.mxu0 0.0
    %6983 = vmatprep.subr.mxu0 0.0
    %6984 = vmatpush2.msra.mxu0 0.0
    %6985 = vmatprep.subr.mxu0 0.0
    %6986 = vmatpush2.msra.mxu0 0.0
    %6987 = vmatprep.subr.mxu0 0.0
    %6988 = vmatpush2.msra.mxu0 0.0
    %6989 = vmatprep.subr.mxu0 0.0
    %6990 = vmatpush2.msra.mxu0 %v4774
    %6991 = vmatprep.subr.mxu0 0.0
    %6992 = vmatpush2.msra.mxu0 %v4773
    %6993 = vmatprep.subr.mxu0 0.0
    %6994 = vmatpush2.msra.mxu0 %v4772
    %6995 = vmatprep.subr.mxu0 0.0
    %6996 = vmatpush2.msra.mxu0 %v4771
    %6997 = vmatprep.mubr.f32.mxu0 %v6928
    %6998 = vmatmul.mubr.f32.gmra.mxu0 %v6919
    %v6999 = vpop.f32.mrf.mxu0
    %v7000 = vadd.f32 %v6926, %v6999
    %v7001 = vpop.f32.mrf.mxu0
    %7002 = vmatprep.mubr.f32.mxu0 %v6931
    %7003 = vmatmul.mubr.f32.gmra.mxu0 %v6921
    %v7004 = vpop.f32.mrf.mxu0
    %v7005 = vadd.f32 %v6926, %v7004
    %v7006 = vpop.f32.mrf.mxu0
    %7007 = vdwg.mxu0
    %v7008 = vadd.f32 %v7000, %v6788
    %v7009 = vadd.f32 %v7005, %v6789
    %s7010 = scalar_lea.vmem %s1, 600
    %v7011 = vld [vmem:[%s7010] sm:$0xff]
    %v7012 = vld [vmem:[%s7010 + $0x8] sm:$0xff]
    %v7013 = vld [vmem:[%s7010 + $0x10] sm:$0xff]
    %v7014 = vld [vmem:[%s7010 + $0x28] sm:$0xff]
    %v7015 = vld [vmem:[%s7010 + $0x30] sm:$0xff]
    %v7016 = vld [vmem:[%s7010 + $0x38] sm:$0xff]
    %v7017 = vld [vmem:[%s7010 + $0x50] sm:$0xff]
    %v7018 = vld [vmem:[%s7010 + $0x58] sm:$0xff]
    %v7019 = vld [vmem:[%s7010 + $0x60] sm:$0xff]
    %v7020 = vld [vmem:[%s7010 + $0x78] sm:$0xff]
    %v7021 = vld [vmem:[%s7010 + $0x80] sm:$0xff]
    %v7022 = vld [vmem:[%s7010 + $0x88] sm:$0xff]
    %v7023 = vld [vmem:[%s7010 + $0xa0] sm:$0xff]
    %v7024 = vld [vmem:[%s7010 + $0xa8] sm:$0xff]
    %v7025 = vld [vmem:[%s7010 + $0xb0] sm:$0xff]
    %v7026 = vld [vmem:[%s7010 + $0x18] sm:$0xff]
    %v7027 = vld [vmem:[%s7010 + $0x20] sm:$0xff]
    %v7028 = vld [vmem:[%s7010 + $0x40] sm:$0xff]
    %v7029 = vld [vmem:[%s7010 + $0x48] sm:$0xff]
    %v7030 = vld [vmem:[%s7010 + $0x68] sm:$0xff]
    %v7031 = vld [vmem:[%s7010 + $0x70] sm:$0xff]
    %v7032 = vld [vmem:[%s7010 + $0x90] sm:$0xff]
    %v7033 = vld [vmem:[%s7010 + $0x98] sm:$0xff]
    %v7034 = vld [vmem:[%s7010 + $0xb8] sm:$0xff]
    %v7035 = vld [vmem:[%s7010 + $0xc0] sm:$0xff]
    %s7036 = scalar_lea.vmem %s2, 672
    %v7037 = vld [vmem:[%s7036] sm:$0xff]
    %v7038 = vld [vmem:[%s7036 + $0x8] sm:$0xff]
    %v7039 = vld [vmem:[%s7036 + $0x10] sm:$0xff]
    %v7040 = vld [vmem:[%s7036 + $0x18] sm:$0xff]
    %v7041 = vld [vmem:[%s7036 + $0x20] sm:$0xff]
    %v7042 = vld [vmem:[%s7036 + $0x28] sm:$0xff]
    %v7043 = vld [vmem:[%s7036 + $0x30] sm:$0xff]
    %v7044 = vld [vmem:[%s7036 + $0x38] sm:$0xff]
    %v7045 = vld [vmem:[%s7036 + $0x40] sm:$0xff]
    %v7046 = vld [vmem:[%s7036 + $0x48] sm:$0xff]
    %v7047 = vld [vmem:[%s7036 + $0x50] sm:$0xff]
    %v7048 = vld [vmem:[%s7036 + $0x58] sm:$0xff]
    %v7049 = vld [vmem:[%s7036 + $0x60] sm:$0xff]
    %v7050 = vld [vmem:[%s7036 + $0x68] sm:$0xff]
    %v7051 = vld [vmem:[%s7036 + $0x70] sm:$0xff]
    %v7052 = vld [vmem:[%s7036 + $0x78] sm:$0xff]
    %v7053 = vld [vmem:[%s7036 + $0x80] sm:$0xff]
    %v7054 = vld [vmem:[%s7036 + $0x88] sm:$0xff]
    %v7055 = vld [vmem:[%s7036 + $0x90] sm:$0xff]
    %v7056 = vld [vmem:[%s7036 + $0x98] sm:$0xff]
    %v7057 = vld [vmem:[%s7036 + $0xa0] sm:$0xff]
    %v7058 = vld [vmem:[%s7036 + $0xa8] sm:$0xff]
    %v7059 = vld [vmem:[%s7036 + $0xb0] sm:$0xff]
    %v7060 = vld [vmem:[%s7036 + $0xb8] sm:$0xff]
    %v7061 = vld [vmem:[%s7036 + $0xc0] sm:$0xff]
    %v7062 = vld [vmem:[%s7036 + $0xc8] sm:$0xff]
    %v7063 = vld [vmem:[%s7036 + $0xd0] sm:$0xff]
    %v7064 = vld [vmem:[%s7036 + $0xd8] sm:$0xff]
    %s7065 = scalar_lea.vmem %s3, 72
    %v7066 = vld [vmem:[%s7065] sm:$0xff]
    %v7067 = vld [vmem:[%s7065 + $0x8] sm:$0xff]
    %v7068 = vld [vmem:[%s7065 + $0x10] sm:$0xff]
    %v7069 = vsel %vm186, %v7008, 0.0
    %7070 = vadd.xlane.f32.xlu0 %v7069
    %v7071 = vpop.xlane.xlu0 %7070
    %v7072 = vsel %vm186, %v7009, 0.0
    %7073 = vadd.xlane.f32.xlu0 %v7072
    %v7074 = vpop.xlane.xlu0 %7073
    %v7075 = vmul.f32 %v7071, %v193
    %v7076 = vmul.f32 %v7074, %v193
    %v7077 = vsub.f32 %v7008, %v7075
    %v7078 = vsub.f32 %v7009, %v7076
    %v7079 = vmul.f32 %v7077, %v7077
    %v7080 = vmul.f32 %v7078, %v7078
    %v7081 = vsel %vm186, %v7079, 0.0
    %7082 = vadd.xlane.f32.xlu0 %v7081
    %v7083 = vpop.xlane.xlu0 %7082
    %v7084 = vsel %vm186, %v7080, 0.0
    %7085 = vadd.xlane.f32.xlu0 %v7084
    %v7086 = vpop.xlane.xlu0 %7085
    %v7087 = vmul.f32 %v7083, %v193
    %v7088 = vmul.f32 %v7086, %v193
    %v7089 = vadd.f32 %v7087, 1e-05
    %v7090 = vadd.f32 %v7088, 1e-05
    %v7091 = vrsqrt.pop %v7089
    %v7092 = vrsqrt.pop %v7090
    %v7093 = vmul.f32 %v7077, %v7091
    %v7094 = vmul.f32 %v7078, %v7092
    %v7095 = vlaneseq
    %v7096 = vshrl.u32 %v7095, 7
    %v7097 = vsub.s32 2, %v7096
    %v7098 = vrot.slane %v7066, %v7097
    %v7099 = vmul.f32 %v7093, %v7098
    %v7100 = vmul.f32 %v7094, %v7098
    %v7101 = vlaneseq
    %v7102 = vshrl.u32 %v7101, 7
    %v7103 = vsub.s32 3, %v7102
    %v7104 = vrot.slane %v7066, %v7103
    %v7105 = vadd.f32 %v7099, %v7104
    %v7106 = vadd.f32 %v7100, %v7104
    %v7107 = vlaneseq
    %v7108 = vshrl.u32 %v7107, 7
    %v7109 = vsub.s32 0, %v7108
    %v7110 = vrot.slane %v7066, %v7109
    %v7111 = vlaneseq
    %v7112 = vshrl.u32 %v7111, 7
    %v7113 = vsub.s32 0, %v7112
    %v7114 = vrot.slane %v7067, %v7113
    %v7115 = vlaneseq
    %v7116 = vshrl.u32 %v7115, 7
    %v7117 = vsub.s32 0, %v7116
    %v7118 = vrot.slane %v7068, %v7117
    %v7120 = vsel %vm186, %v7105, 0
    %v7123 = vsel %vm186, %v7106, 0
    %7125 = vmatprep.subr.mxu0 0.0
    %7126 = vmatpush1.msra.mxu0 0.0
    %7127 = vmatprep.subr.mxu0 0.0
    %7128 = vmatpush1.msra.mxu0 0.0
    %7129 = vmatprep.subr.mxu0 0.0
    %7130 = vmatpush1.msra.mxu0 0.0
    %7131 = vmatprep.subr.mxu0 0.0
    %7132 = vmatpush1.msra.mxu0 0.0
    %7133 = vmatprep.subr.mxu0 0.0
    %7134 = vmatpush1.msra.mxu0 0.0
    %7135 = vmatprep.subr.mxu0 0.0
    %7136 = vmatpush1.msra.mxu0 0.0
    %7137 = vmatprep.subr.mxu0 0.0
    %7138 = vmatpush1.msra.mxu0 0.0
    %7139 = vmatprep.subr.mxu0 0.0
    %7140 = vmatpush1.msra.mxu0 0.0
    %7141 = vmatprep.subr.mxu0 0.0
    %7142 = vmatpush1.msra.mxu0 0.0
    %7143 = vmatprep.subr.mxu0 0.0
    %7144 = vmatpush1.msra.mxu0 0.0
    %7145 = vmatprep.subr.mxu0 0.0
    %7146 = vmatpush1.msra.mxu0 0.0
    %7147 = vmatprep.subr.mxu0 %v7024
    %7148 = vmatpush1.msra.mxu0 %v7023
    %7149 = vmatprep.subr.mxu0 %v7021
    %7150 = vmatpush1.msra.mxu0 %v7020
    %7151 = vmatprep.subr.mxu0 %v7018
    %7152 = vmatpush1.msra.mxu0 %v7017
    %7153 = vmatprep.subr.mxu0 %v7015
    %7154 = vmatpush1.msra.mxu0 %v7014
    %7155 = vmatprep.subr.mxu0 %v7012
    %7156 = vmatpush1.msra.mxu0 %v7011
    %7157 = vmatprep.subr.mxu0 0.0
    %7158 = vmatpush2.msra.mxu0 0.0
    %7159 = vmatprep.subr.mxu0 0.0
    %7160 = vmatpush2.msra.mxu0 0.0
    %7161 = vmatprep.subr.mxu0 0.0
    %7162 = vmatpush2.msra.mxu0 0.0
    %7163 = vmatprep.subr.mxu0 0.0
    %7164 = vmatpush2.msra.mxu0 0.0
    %7165 = vmatprep.subr.mxu0 0.0
    %7166 = vmatpush2.msra.mxu0 0.0
    %7167 = vmatprep.subr.mxu0 0.0
    %7168 = vmatpush2.msra.mxu0 0.0
    %7169 = vmatprep.subr.mxu0 0.0
    %7170 = vmatpush2.msra.mxu0 0.0
    %7171 = vmatprep.subr.mxu0 0.0
    %7172 = vmatpush2.msra.mxu0 0.0
    %7173 = vmatprep.subr.mxu0 0.0
    %7174 = vmatpush2.msra.mxu0 0.0
    %7175 = vmatprep.subr.mxu0 0.0
    %7176 = vmatpush2.msra.mxu0 0.0
    %7177 = vmatprep.subr.mxu0 0.0
    %7178 = vmatpush2.msra.mxu0 0.0
    %7179 = vmatprep.subr.mxu0 0.0
    %7180 = vmatpush2.msra.mxu0 0.0
    %7181 = vmatprep.subr.mxu0 0.0
    %7182 = vmatpush2.msra.mxu0 0.0
    %7183 = vmatprep.subr.mxu0 0.0
    %7184 = vmatpush2.msra.mxu0 0.0
    %7185 = vmatprep.subr.mxu0 0.0
    %7186 = vmatpush2.msra.mxu0 0.0
    %7187 = vmatprep.subr.mxu0 0.0
    %7188 = vmatpush2.msra.mxu0 0.0
    %7189 = vmatprep.mubr.f32.mxu0 0.0
    %7190 = vmatmul.mubr.f32.gmra.mxu0 %v7120
    %v7191 = vpop.f32.mrf.mxu0
    %v7192 = vadd.f32 %v7110, %v7191
    %v7193 = vpop.f32.mrf.mxu0
    %v7194 = vadd.f32 %v7114, %v7193
    %7195 = vmatprep.mubr.f32.mxu0 0.0
    %7196 = vmatmul.mubr.f32.gmra.mxu0 %v7123
    %v7197 = vpop.f32.mrf.mxu0
    %v7198 = vadd.f32 %v7110, %v7197
    %v7199 = vpop.f32.mrf.mxu0
    %v7200 = vadd.f32 %v7114, %v7199
    %7201 = vdwg.mxu0
    %7202 = vmatprep.subr.mxu0 0.0
    %7203 = vmatpush1.msra.mxu0 0.0
    %7204 = vmatprep.subr.mxu0 0.0
    %7205 = vmatpush1.msra.mxu0 0.0
    %7206 = vmatprep.subr.mxu0 0.0
    %7207 = vmatpush1.msra.mxu0 0.0
    %7208 = vmatprep.subr.mxu0 0.0
    %7209 = vmatpush1.msra.mxu0 0.0
    %7210 = vmatprep.subr.mxu0 0.0
    %7211 = vmatpush1.msra.mxu0 0.0
    %7212 = vmatprep.subr.mxu0 0.0
    %7213 = vmatpush1.msra.mxu0 0.0
    %7214 = vmatprep.subr.mxu0 0.0
    %7215 = vmatpush1.msra.mxu0 0.0
    %7216 = vmatprep.subr.mxu0 0.0
    %7217 = vmatpush1.msra.mxu0 0.0
    %7218 = vmatprep.subr.mxu0 0.0
    %7219 = vmatpush1.msra.mxu0 0.0
    %7220 = vmatprep.subr.mxu0 0.0
    %7221 = vmatpush1.msra.mxu0 0.0
    %7222 = vmatprep.subr.mxu0 0.0
    %7223 = vmatpush1.msra.mxu0 0.0
    %7224 = vmatprep.subr.mxu0 0.0
    %7225 = vmatpush1.msra.mxu0 %v7025
    %7226 = vmatprep.subr.mxu0 0.0
    %7227 = vmatpush1.msra.mxu0 %v7022
    %7228 = vmatprep.subr.mxu0 0.0
    %7229 = vmatpush1.msra.mxu0 %v7019
    %7230 = vmatprep.subr.mxu0 0.0
    %7231 = vmatpush1.msra.mxu0 %v7016
    %7232 = vmatprep.subr.mxu0 0.0
    %7233 = vmatpush1.msra.mxu0 %v7013
    %7234 = vmatprep.subr.mxu0 0.0
    %7235 = vmatpush2.msra.mxu0 0.0
    %7236 = vmatprep.subr.mxu0 0.0
    %7237 = vmatpush2.msra.mxu0 0.0
    %7238 = vmatprep.subr.mxu0 0.0
    %7239 = vmatpush2.msra.mxu0 0.0
    %7240 = vmatprep.subr.mxu0 0.0
    %7241 = vmatpush2.msra.mxu0 0.0
    %7242 = vmatprep.subr.mxu0 0.0
    %7243 = vmatpush2.msra.mxu0 0.0
    %7244 = vmatprep.subr.mxu0 0.0
    %7245 = vmatpush2.msra.mxu0 0.0
    %7246 = vmatprep.subr.mxu0 0.0
    %7247 = vmatpush2.msra.mxu0 0.0
    %7248 = vmatprep.subr.mxu0 0.0
    %7249 = vmatpush2.msra.mxu0 0.0
    %7250 = vmatprep.subr.mxu0 0.0
    %7251 = vmatpush2.msra.mxu0 0.0
    %7252 = vmatprep.subr.mxu0 0.0
    %7253 = vmatpush2.msra.mxu0 0.0
    %7254 = vmatprep.subr.mxu0 0.0
    %7255 = vmatpush2.msra.mxu0 0.0
    %7256 = vmatprep.subr.mxu0 0.0
    %7257 = vmatpush2.msra.mxu0 0.0
    %7258 = vmatprep.subr.mxu0 0.0
    %7259 = vmatpush2.msra.mxu0 0.0
    %7260 = vmatprep.subr.mxu0 0.0
    %7261 = vmatpush2.msra.mxu0 0.0
    %7262 = vmatprep.subr.mxu0 0.0
    %7263 = vmatpush2.msra.mxu0 0.0
    %7264 = vmatprep.subr.mxu0 0.0
    %7265 = vmatpush2.msra.mxu0 0.0
    %7266 = vmatprep.mubr.f32.mxu0 0.0
    %7267 = vmatmul.mubr.f32.gmra.mxu0 %v7120
    %v7268 = vpop.f32.mrf.mxu0
    %v7269 = vadd.f32 %v7118, %v7268
    %v7270 = vpop.f32.mrf.mxu0
    %7271 = vmatprep.mubr.f32.mxu0 0.0
    %7272 = vmatmul.mubr.f32.gmra.mxu0 %v7123
    %v7273 = vpop.f32.mrf.mxu0
    %v7274 = vadd.f32 %v7118, %v7273
    %v7275 = vpop.f32.mrf.mxu0
    %7276 = vdwg.mxu0
    %v7278 = vsel %vm396, %v7192, 0
    %v7281 = vsel %vm396, %v7198, 0
    %v7284 = vsel %vm396, %v7194, 0
    %v7287 = vsel %vm396, %v7200, 0
    %7289 = vmatprep.subr.mxu0 0.0
    %7290 = vmatpush1.xpose.msra.mxu0 0.0
    %7291 = vmatprep.subr.mxu0 0.0
    %7292 = vmatpush1.xpose.msra.mxu0 0.0
    %7293 = vmatprep.subr.mxu0 0.0
    %7294 = vmatpush1.xpose.msra.mxu0 0.0
    %7295 = vmatprep.subr.mxu0 0.0
    %7296 = vmatpush1.xpose.msra.mxu0 0.0
    %7297 = vmatprep.subr.mxu0 0.0
    %7298 = vmatpush1.xpose.msra.mxu0 0.0
    %7299 = vmatprep.subr.mxu0 0.0
    %7300 = vmatpush1.xpose.msra.mxu0 0.0
    %7301 = vmatprep.subr.mxu0 0.0
    %7302 = vmatpush1.xpose.msra.mxu0 0.0
    %7303 = vmatprep.subr.mxu0 0.0
    %7304 = vmatpush1.xpose.msra.mxu0 0.0
    %7305 = vmatprep.subr.mxu0 0.0
    %7306 = vmatpush1.xpose.msra.mxu0 0.0
    %7307 = vmatprep.subr.mxu0 0.0
    %7308 = vmatpush1.xpose.msra.mxu0 0.0
    %7309 = vmatprep.subr.mxu0 0.0
    %7310 = vmatpush1.xpose.msra.mxu0 0.0
    %7311 = vmatprep.subr.mxu0 0.0
    %7312 = vmatpush1.xpose.msra.mxu0 0.0
    %7313 = vmatprep.subr.mxu0 0.0
    %7314 = vmatpush1.xpose.msra.mxu0 0.0
    %7315 = vmatprep.subr.mxu0 0.0
    %7316 = vmatpush1.xpose.msra.mxu0 0.0
    %7317 = vmatprep.subr.mxu0 0.0
    %7318 = vmatpush1.xpose.msra.mxu0 %v7287
    %7319 = vmatprep.subr.mxu0 0.0
    %7320 = vmatpush1.xpose.msra.mxu0 %v7284
    %7321 = vmatprep.subr.mxu0 0.0
    %7322 = vmatpush2.xpose.msra.mxu0 0.0
    %7323 = vmatprep.subr.mxu0 0.0
    %7324 = vmatpush2.xpose.msra.mxu0 0.0
    %7325 = vmatprep.subr.mxu0 0.0
    %7326 = vmatpush2.xpose.msra.mxu0 0.0
    %7327 = vmatprep.subr.mxu0 0.0
    %7328 = vmatpush2.xpose.msra.mxu0 0.0
    %7329 = vmatprep.subr.mxu0 0.0
    %7330 = vmatpush2.xpose.msra.mxu0 0.0
    %7331 = vmatprep.subr.mxu0 0.0
    %7332 = vmatpush2.xpose.msra.mxu0 0.0
    %7333 = vmatprep.subr.mxu0 0.0
    %7334 = vmatpush2.xpose.msra.mxu0 0.0
    %7335 = vmatprep.subr.mxu0 0.0
    %7336 = vmatpush2.xpose.msra.mxu0 0.0
    %7337 = vmatprep.subr.mxu0 0.0
    %7338 = vmatpush2.xpose.msra.mxu0 0.0
    %7339 = vmatprep.subr.mxu0 0.0
    %7340 = vmatpush2.xpose.msra.mxu0 0.0
    %7341 = vmatprep.subr.mxu0 0.0
    %7342 = vmatpush2.xpose.msra.mxu0 0.0
    %7343 = vmatprep.subr.mxu0 0.0
    %7344 = vmatpush2.xpose.msra.mxu0 0.0
    %7345 = vmatprep.subr.mxu0 0.0
    %7346 = vmatpush2.xpose.msra.mxu0 0.0
    %7347 = vmatprep.subr.mxu0 0.0
    %7348 = vmatpush2.xpose.msra.mxu0 0.0
    %7349 = vmatprep.subr.mxu0 0.0
    %7350 = vmatpush2.xpose.msra.mxu0 0.0
    %7351 = vmatprep.subr.mxu0 0.0
    %7352 = vmatpush2.xpose.msra.mxu0 0.0
    %7353 = vmatprep.mubr.f32.mxu0 0.0
    %7354 = vmatmul.mubr.f32.gmra.mxu0 %v7278
    %v7355 = vpop.f32.mrf.mxu0
    %v7356 = vadd.f32 0.0, %v7355
    %v7357 = vpop.f32.mrf.mxu0
    %7358 = vmatprep.mubr.f32.mxu0 0.0
    %7359 = vmatmul.mubr.f32.gmra.mxu0 %v7281
    %v7360 = vpop.f32.mrf.mxu0
    %v7361 = vadd.f32 0.0, %v7360
    %v7362 = vpop.f32.mrf.mxu0
    %7363 = vdwg.mxu0
    %7364 = vst.msk [vmem:[#allocation2] sm:$0xff] %vm484, %v7356
    %7365 = vst.msk [vmem:[#allocation2 + $0x8] sm:$0xff] %vm484, %v7361
    %7366 = vrot.lane.b32.xlu0 %v7192, 120
    %v7367 = vpop.permute.xlu0 %7366
    %7368 = vrot.lane.b32.xlu0 %v7198, 120
    %v7369 = vpop.permute.xlu0 %7368
    %7370 = vrot.lane.b32.xlu0 %v7194, 120
    %v7371 = vpop.permute.xlu0 %7370
    %7372 = vrot.lane.b32.xlu0 %v7200, 120
    %v7373 = vpop.permute.xlu0 %7372
    %v7374 = vsel %vm396, %v7367, 0
    %v7376 = vsel %vm396, %v7369, 0
    %v7378 = vsel %vm396, %v7371, 0
    %v7380 = vsel %vm396, %v7373, 0
    %7382 = vmatprep.subr.mxu0 0.0
    %7383 = vmatpush1.xpose.msra.mxu0 0.0
    %7384 = vmatprep.subr.mxu0 0.0
    %7385 = vmatpush1.xpose.msra.mxu0 0.0
    %7386 = vmatprep.subr.mxu0 0.0
    %7387 = vmatpush1.xpose.msra.mxu0 0.0
    %7388 = vmatprep.subr.mxu0 0.0
    %7389 = vmatpush1.xpose.msra.mxu0 0.0
    %7390 = vmatprep.subr.mxu0 0.0
    %7391 = vmatpush1.xpose.msra.mxu0 0.0
    %7392 = vmatprep.subr.mxu0 0.0
    %7393 = vmatpush1.xpose.msra.mxu0 0.0
    %7394 = vmatprep.subr.mxu0 0.0
    %7395 = vmatpush1.xpose.msra.mxu0 0.0
    %7396 = vmatprep.subr.mxu0 0.0
    %7397 = vmatpush1.xpose.msra.mxu0 0.0
    %7398 = vmatprep.subr.mxu0 0.0
    %7399 = vmatpush1.xpose.msra.mxu0 0.0
    %7400 = vmatprep.subr.mxu0 0.0
    %7401 = vmatpush1.xpose.msra.mxu0 0.0
    %7402 = vmatprep.subr.mxu0 0.0
    %7403 = vmatpush1.xpose.msra.mxu0 0.0
    %7404 = vmatprep.subr.mxu0 0.0
    %7405 = vmatpush1.xpose.msra.mxu0 0.0
    %7406 = vmatprep.subr.mxu0 0.0
    %7407 = vmatpush1.xpose.msra.mxu0 0.0
    %7408 = vmatprep.subr.mxu0 0.0
    %7409 = vmatpush1.xpose.msra.mxu0 0.0
    %7410 = vmatprep.subr.mxu0 0.0
    %7411 = vmatpush1.xpose.msra.mxu0 %v7380
    %7412 = vmatprep.subr.mxu0 0.0
    %7413 = vmatpush1.xpose.msra.mxu0 %v7378
    %7414 = vmatprep.subr.mxu0 0.0
    %7415 = vmatpush2.xpose.msra.mxu0 0.0
    %7416 = vmatprep.subr.mxu0 0.0
    %7417 = vmatpush2.xpose.msra.mxu0 0.0
    %7418 = vmatprep.subr.mxu0 0.0
    %7419 = vmatpush2.xpose.msra.mxu0 0.0
    %7420 = vmatprep.subr.mxu0 0.0
    %7421 = vmatpush2.xpose.msra.mxu0 0.0
    %7422 = vmatprep.subr.mxu0 0.0
    %7423 = vmatpush2.xpose.msra.mxu0 0.0
    %7424 = vmatprep.subr.mxu0 0.0
    %7425 = vmatpush2.xpose.msra.mxu0 0.0
    %7426 = vmatprep.subr.mxu0 0.0
    %7427 = vmatpush2.xpose.msra.mxu0 0.0
    %7428 = vmatprep.subr.mxu0 0.0
    %7429 = vmatpush2.xpose.msra.mxu0 0.0
    %7430 = vmatprep.subr.mxu0 0.0
    %7431 = vmatpush2.xpose.msra.mxu0 0.0
    %7432 = vmatprep.subr.mxu0 0.0
    %7433 = vmatpush2.xpose.msra.mxu0 0.0
    %7434 = vmatprep.subr.mxu0 0.0
    %7435 = vmatpush2.xpose.msra.mxu0 0.0
    %7436 = vmatprep.subr.mxu0 0.0
    %7437 = vmatpush2.xpose.msra.mxu0 0.0
    %7438 = vmatprep.subr.mxu0 0.0
    %7439 = vmatpush2.xpose.msra.mxu0 0.0
    %7440 = vmatprep.subr.mxu0 0.0
    %7441 = vmatpush2.xpose.msra.mxu0 0.0
    %7442 = vmatprep.subr.mxu0 0.0
    %7443 = vmatpush2.xpose.msra.mxu0 0.0
    %7444 = vmatprep.subr.mxu0 0.0
    %7445 = vmatpush2.xpose.msra.mxu0 0.0
    %7446 = vmatprep.mubr.f32.mxu0 0.0
    %7447 = vmatmul.mubr.f32.gmra.mxu0 %v7374
    %v7448 = vpop.f32.mrf.mxu0
    %v7449 = vadd.f32 0.0, %v7448
    %v7450 = vpop.f32.mrf.mxu0
    %7451 = vmatprep.mubr.f32.mxu0 0.0
    %7452 = vmatmul.mubr.f32.gmra.mxu0 %v7376
    %v7453 = vpop.f32.mrf.mxu0
    %v7454 = vadd.f32 0.0, %v7453
    %v7455 = vpop.f32.mrf.mxu0
    %7456 = vdwg.mxu0
    %7457 = vst.msk [vmem:[#allocation2 + $0x10] sm:$0xff] %vm484, %v7449
    %7458 = vst.msk [vmem:[#allocation2 + $0x18] sm:$0xff] %vm484, %v7454
    %7459 = vrot.lane.b32.xlu0 %v7192, 112
    %v7460 = vpop.permute.xlu0 %7459
    %7461 = vrot.lane.b32.xlu0 %v7198, 112
    %v7462 = vpop.permute.xlu0 %7461
    %7463 = vrot.lane.b32.xlu0 %v7194, 112
    %v7464 = vpop.permute.xlu0 %7463
    %7465 = vrot.lane.b32.xlu0 %v7200, 112
    %v7466 = vpop.permute.xlu0 %7465
    %v7467 = vsel %vm396, %v7460, 0
    %v7469 = vsel %vm396, %v7462, 0
    %v7471 = vsel %vm396, %v7464, 0
    %v7473 = vsel %vm396, %v7466, 0
    %7475 = vmatprep.subr.mxu0 0.0
    %7476 = vmatpush1.xpose.msra.mxu0 0.0
    %7477 = vmatprep.subr.mxu0 0.0
    %7478 = vmatpush1.xpose.msra.mxu0 0.0
    %7479 = vmatprep.subr.mxu0 0.0
    %7480 = vmatpush1.xpose.msra.mxu0 0.0
    %7481 = vmatprep.subr.mxu0 0.0
    %7482 = vmatpush1.xpose.msra.mxu0 0.0
    %7483 = vmatprep.subr.mxu0 0.0
    %7484 = vmatpush1.xpose.msra.mxu0 0.0
    %7485 = vmatprep.subr.mxu0 0.0
    %7486 = vmatpush1.xpose.msra.mxu0 0.0
    %7487 = vmatprep.subr.mxu0 0.0
    %7488 = vmatpush1.xpose.msra.mxu0 0.0
    %7489 = vmatprep.subr.mxu0 0.0
    %7490 = vmatpush1.xpose.msra.mxu0 0.0
    %7491 = vmatprep.subr.mxu0 0.0
    %7492 = vmatpush1.xpose.msra.mxu0 0.0
    %7493 = vmatprep.subr.mxu0 0.0
    %7494 = vmatpush1.xpose.msra.mxu0 0.0
    %7495 = vmatprep.subr.mxu0 0.0
    %7496 = vmatpush1.xpose.msra.mxu0 0.0
    %7497 = vmatprep.subr.mxu0 0.0
    %7498 = vmatpush1.xpose.msra.mxu0 0.0
    %7499 = vmatprep.subr.mxu0 0.0
    %7500 = vmatpush1.xpose.msra.mxu0 0.0
    %7501 = vmatprep.subr.mxu0 0.0
    %7502 = vmatpush1.xpose.msra.mxu0 0.0
    %7503 = vmatprep.subr.mxu0 0.0
    %7504 = vmatpush1.xpose.msra.mxu0 %v7473
    %7505 = vmatprep.subr.mxu0 0.0
    %7506 = vmatpush1.xpose.msra.mxu0 %v7471
    %7507 = vmatprep.subr.mxu0 0.0
    %7508 = vmatpush2.xpose.msra.mxu0 0.0
    %7509 = vmatprep.subr.mxu0 0.0
    %7510 = vmatpush2.xpose.msra.mxu0 0.0
    %7511 = vmatprep.subr.mxu0 0.0
    %7512 = vmatpush2.xpose.msra.mxu0 0.0
    %7513 = vmatprep.subr.mxu0 0.0
    %7514 = vmatpush2.xpose.msra.mxu0 0.0
    %7515 = vmatprep.subr.mxu0 0.0
    %7516 = vmatpush2.xpose.msra.mxu0 0.0
    %7517 = vmatprep.subr.mxu0 0.0
    %7518 = vmatpush2.xpose.msra.mxu0 0.0
    %7519 = vmatprep.subr.mxu0 0.0
    %7520 = vmatpush2.xpose.msra.mxu0 0.0
    %7521 = vmatprep.subr.mxu0 0.0
    %7522 = vmatpush2.xpose.msra.mxu0 0.0
    %7523 = vmatprep.subr.mxu0 0.0
    %7524 = vmatpush2.xpose.msra.mxu0 0.0
    %7525 = vmatprep.subr.mxu0 0.0
    %7526 = vmatpush2.xpose.msra.mxu0 0.0
    %7527 = vmatprep.subr.mxu0 0.0
    %7528 = vmatpush2.xpose.msra.mxu0 0.0
    %7529 = vmatprep.subr.mxu0 0.0
    %7530 = vmatpush2.xpose.msra.mxu0 0.0
    %7531 = vmatprep.subr.mxu0 0.0
    %7532 = vmatpush2.xpose.msra.mxu0 0.0
    %7533 = vmatprep.subr.mxu0 0.0
    %7534 = vmatpush2.xpose.msra.mxu0 0.0
    %7535 = vmatprep.subr.mxu0 0.0
    %7536 = vmatpush2.xpose.msra.mxu0 0.0
    %7537 = vmatprep.subr.mxu0 0.0
    %7538 = vmatpush2.xpose.msra.mxu0 0.0
    %7539 = vmatprep.mubr.f32.mxu0 0.0
    %7540 = vmatmul.mubr.f32.gmra.mxu0 %v7467
    %v7541 = vpop.f32.mrf.mxu0
    %v7542 = vadd.f32 0.0, %v7541
    %v7543 = vpop.f32.mrf.mxu0
    %7544 = vmatprep.mubr.f32.mxu0 0.0
    %7545 = vmatmul.mubr.f32.gmra.mxu0 %v7469
    %v7546 = vpop.f32.mrf.mxu0
    %v7547 = vadd.f32 0.0, %v7546
    %v7548 = vpop.f32.mrf.mxu0
    %7549 = vdwg.mxu0
    %7550 = vst.msk [vmem:[#allocation2 + $0x20] sm:$0xff] %vm484, %v7542
    %7551 = vst.msk [vmem:[#allocation2 + $0x28] sm:$0xff] %vm484, %v7547
    %7552 = vrot.lane.b32.xlu0 %v7192, 104
    %v7553 = vpop.permute.xlu0 %7552
    %7554 = vrot.lane.b32.xlu0 %v7198, 104
    %v7555 = vpop.permute.xlu0 %7554
    %7556 = vrot.lane.b32.xlu0 %v7194, 104
    %v7557 = vpop.permute.xlu0 %7556
    %7558 = vrot.lane.b32.xlu0 %v7200, 104
    %v7559 = vpop.permute.xlu0 %7558
    %v7560 = vsel %vm396, %v7553, 0
    %v7562 = vsel %vm396, %v7555, 0
    %v7564 = vsel %vm396, %v7557, 0
    %v7566 = vsel %vm396, %v7559, 0
    %7568 = vmatprep.subr.mxu0 0.0
    %7569 = vmatpush1.xpose.msra.mxu0 0.0
    %7570 = vmatprep.subr.mxu0 0.0
    %7571 = vmatpush1.xpose.msra.mxu0 0.0
    %7572 = vmatprep.subr.mxu0 0.0
    %7573 = vmatpush1.xpose.msra.mxu0 0.0
    %7574 = vmatprep.subr.mxu0 0.0
    %7575 = vmatpush1.xpose.msra.mxu0 0.0
    %7576 = vmatprep.subr.mxu0 0.0
    %7577 = vmatpush1.xpose.msra.mxu0 0.0
    %7578 = vmatprep.subr.mxu0 0.0
    %7579 = vmatpush1.xpose.msra.mxu0 0.0
    %7580 = vmatprep.subr.mxu0 0.0
    %7581 = vmatpush1.xpose.msra.mxu0 0.0
    %7582 = vmatprep.subr.mxu0 0.0
    %7583 = vmatpush1.xpose.msra.mxu0 0.0
    %7584 = vmatprep.subr.mxu0 0.0
    %7585 = vmatpush1.xpose.msra.mxu0 0.0
    %7586 = vmatprep.subr.mxu0 0.0
    %7587 = vmatpush1.xpose.msra.mxu0 0.0
    %7588 = vmatprep.subr.mxu0 0.0
    %7589 = vmatpush1.xpose.msra.mxu0 0.0
    %7590 = vmatprep.subr.mxu0 0.0
    %7591 = vmatpush1.xpose.msra.mxu0 0.0
    %7592 = vmatprep.subr.mxu0 0.0
    %7593 = vmatpush1.xpose.msra.mxu0 0.0
    %7594 = vmatprep.subr.mxu0 0.0
    %7595 = vmatpush1.xpose.msra.mxu0 0.0
    %7596 = vmatprep.subr.mxu0 0.0
    %7597 = vmatpush1.xpose.msra.mxu0 %v7566
    %7598 = vmatprep.subr.mxu0 0.0
    %7599 = vmatpush1.xpose.msra.mxu0 %v7564
    %7600 = vmatprep.subr.mxu0 0.0
    %7601 = vmatpush2.xpose.msra.mxu0 0.0
    %7602 = vmatprep.subr.mxu0 0.0
    %7603 = vmatpush2.xpose.msra.mxu0 0.0
    %7604 = vmatprep.subr.mxu0 0.0
    %7605 = vmatpush2.xpose.msra.mxu0 0.0
    %7606 = vmatprep.subr.mxu0 0.0
    %7607 = vmatpush2.xpose.msra.mxu0 0.0
    %7608 = vmatprep.subr.mxu0 0.0
    %7609 = vmatpush2.xpose.msra.mxu0 0.0
    %7610 = vmatprep.subr.mxu0 0.0
    %7611 = vmatpush2.xpose.msra.mxu0 0.0
    %7612 = vmatprep.subr.mxu0 0.0
    %7613 = vmatpush2.xpose.msra.mxu0 0.0
    %7614 = vmatprep.subr.mxu0 0.0
    %7615 = vmatpush2.xpose.msra.mxu0 0.0
    %7616 = vmatprep.subr.mxu0 0.0
    %7617 = vmatpush2.xpose.msra.mxu0 0.0
    %7618 = vmatprep.subr.mxu0 0.0
    %7619 = vmatpush2.xpose.msra.mxu0 0.0
    %7620 = vmatprep.subr.mxu0 0.0
    %7621 = vmatpush2.xpose.msra.mxu0 0.0
    %7622 = vmatprep.subr.mxu0 0.0
    %7623 = vmatpush2.xpose.msra.mxu0 0.0
    %7624 = vmatprep.subr.mxu0 0.0
    %7625 = vmatpush2.xpose.msra.mxu0 0.0
    %7626 = vmatprep.subr.mxu0 0.0
    %7627 = vmatpush2.xpose.msra.mxu0 0.0
    %7628 = vmatprep.subr.mxu0 0.0
    %7629 = vmatpush2.xpose.msra.mxu0 0.0
    %7630 = vmatprep.subr.mxu0 0.0
    %7631 = vmatpush2.xpose.msra.mxu0 0.0
    %7632 = vmatprep.mubr.f32.mxu0 0.0
    %7633 = vmatmul.mubr.f32.gmra.mxu0 %v7560
    %v7634 = vpop.f32.mrf.mxu0
    %v7635 = vadd.f32 0.0, %v7634
    %v7636 = vpop.f32.mrf.mxu0
    %7637 = vmatprep.mubr.f32.mxu0 0.0
    %7638 = vmatmul.mubr.f32.gmra.mxu0 %v7562
    %v7639 = vpop.f32.mrf.mxu0
    %v7640 = vadd.f32 0.0, %v7639
    %v7641 = vpop.f32.mrf.mxu0
    %7642 = vdwg.mxu0
    %7643 = vst.msk [vmem:[#allocation2 + $0x30] sm:$0xff] %vm484, %v7635
    %7644 = vst.msk [vmem:[#allocation2 + $0x38] sm:$0xff] %vm484, %v7640
    %7645 = vrot.lane.b32.xlu0 %v7192, 96
    %v7646 = vpop.permute.xlu0 %7645
    %7647 = vrot.lane.b32.xlu0 %v7198, 96
    %v7648 = vpop.permute.xlu0 %7647
    %7649 = vrot.lane.b32.xlu0 %v7194, 96
    %v7650 = vpop.permute.xlu0 %7649
    %7651 = vrot.lane.b32.xlu0 %v7200, 96
    %v7652 = vpop.permute.xlu0 %7651
    %v7653 = vsel %vm396, %v7646, 0
    %v7655 = vsel %vm396, %v7648, 0
    %v7657 = vsel %vm396, %v7650, 0
    %v7659 = vsel %vm396, %v7652, 0
    %7661 = vmatprep.subr.mxu0 0.0
    %7662 = vmatpush1.xpose.msra.mxu0 0.0
    %7663 = vmatprep.subr.mxu0 0.0
    %7664 = vmatpush1.xpose.msra.mxu0 0.0
    %7665 = vmatprep.subr.mxu0 0.0
    %7666 = vmatpush1.xpose.msra.mxu0 0.0
    %7667 = vmatprep.subr.mxu0 0.0
    %7668 = vmatpush1.xpose.msra.mxu0 0.0
    %7669 = vmatprep.subr.mxu0 0.0
    %7670 = vmatpush1.xpose.msra.mxu0 0.0
    %7671 = vmatprep.subr.mxu0 0.0
    %7672 = vmatpush1.xpose.msra.mxu0 0.0
    %7673 = vmatprep.subr.mxu0 0.0
    %7674 = vmatpush1.xpose.msra.mxu0 0.0
    %7675 = vmatprep.subr.mxu0 0.0
    %7676 = vmatpush1.xpose.msra.mxu0 0.0
    %7677 = vmatprep.subr.mxu0 0.0
    %7678 = vmatpush1.xpose.msra.mxu0 0.0
    %7679 = vmatprep.subr.mxu0 0.0
    %7680 = vmatpush1.xpose.msra.mxu0 0.0
    %7681 = vmatprep.subr.mxu0 0.0
    %7682 = vmatpush1.xpose.msra.mxu0 0.0
    %7683 = vmatprep.subr.mxu0 0.0
    %7684 = vmatpush1.xpose.msra.mxu0 0.0
    %7685 = vmatprep.subr.mxu0 0.0
    %7686 = vmatpush1.xpose.msra.mxu0 0.0
    %7687 = vmatprep.subr.mxu0 0.0
    %7688 = vmatpush1.xpose.msra.mxu0 0.0
    %7689 = vmatprep.subr.mxu0 0.0
    %7690 = vmatpush1.xpose.msra.mxu0 %v7659
    %7691 = vmatprep.subr.mxu0 0.0
    %7692 = vmatpush1.xpose.msra.mxu0 %v7657
    %7693 = vmatprep.subr.mxu0 0.0
    %7694 = vmatpush2.xpose.msra.mxu0 0.0
    %7695 = vmatprep.subr.mxu0 0.0
    %7696 = vmatpush2.xpose.msra.mxu0 0.0
    %7697 = vmatprep.subr.mxu0 0.0
    %7698 = vmatpush2.xpose.msra.mxu0 0.0
    %7699 = vmatprep.subr.mxu0 0.0
    %7700 = vmatpush2.xpose.msra.mxu0 0.0
    %7701 = vmatprep.subr.mxu0 0.0
    %7702 = vmatpush2.xpose.msra.mxu0 0.0
    %7703 = vmatprep.subr.mxu0 0.0
    %7704 = vmatpush2.xpose.msra.mxu0 0.0
    %7705 = vmatprep.subr.mxu0 0.0
    %7706 = vmatpush2.xpose.msra.mxu0 0.0
    %7707 = vmatprep.subr.mxu0 0.0
    %7708 = vmatpush2.xpose.msra.mxu0 0.0
    %7709 = vmatprep.subr.mxu0 0.0
    %7710 = vmatpush2.xpose.msra.mxu0 0.0
    %7711 = vmatprep.subr.mxu0 0.0
    %7712 = vmatpush2.xpose.msra.mxu0 0.0
    %7713 = vmatprep.subr.mxu0 0.0
    %7714 = vmatpush2.xpose.msra.mxu0 0.0
    %7715 = vmatprep.subr.mxu0 0.0
    %7716 = vmatpush2.xpose.msra.mxu0 0.0
    %7717 = vmatprep.subr.mxu0 0.0
    %7718 = vmatpush2.xpose.msra.mxu0 0.0
    %7719 = vmatprep.subr.mxu0 0.0
    %7720 = vmatpush2.xpose.msra.mxu0 0.0
    %7721 = vmatprep.subr.mxu0 0.0
    %7722 = vmatpush2.xpose.msra.mxu0 0.0
    %7723 = vmatprep.subr.mxu0 0.0
    %7724 = vmatpush2.xpose.msra.mxu0 0.0
    %7725 = vmatprep.mubr.f32.mxu0 0.0
    %7726 = vmatmul.mubr.f32.gmra.mxu0 %v7653
    %v7727 = vpop.f32.mrf.mxu0
    %v7728 = vadd.f32 0.0, %v7727
    %v7729 = vpop.f32.mrf.mxu0
    %7730 = vmatprep.mubr.f32.mxu0 0.0
    %7731 = vmatmul.mubr.f32.gmra.mxu0 %v7655
    %v7732 = vpop.f32.mrf.mxu0
    %v7733 = vadd.f32 0.0, %v7732
    %v7734 = vpop.f32.mrf.mxu0
    %7735 = vdwg.mxu0
    %7736 = vst.msk [vmem:[#allocation2 + $0x40] sm:$0xff] %vm484, %v7728
    %7737 = vst.msk [vmem:[#allocation2 + $0x48] sm:$0xff] %vm484, %v7733
    %7738 = vrot.lane.b32.xlu0 %v7192, 88
    %v7739 = vpop.permute.xlu0 %7738
    %7740 = vrot.lane.b32.xlu0 %v7198, 88
    %v7741 = vpop.permute.xlu0 %7740
    %7742 = vrot.lane.b32.xlu0 %v7194, 88
    %v7743 = vpop.permute.xlu0 %7742
    %7744 = vrot.lane.b32.xlu0 %v7200, 88
    %v7745 = vpop.permute.xlu0 %7744
    %v7746 = vsel %vm396, %v7739, 0
    %v7748 = vsel %vm396, %v7741, 0
    %v7750 = vsel %vm396, %v7743, 0
    %v7752 = vsel %vm396, %v7745, 0
    %7754 = vmatprep.subr.mxu0 0.0
    %7755 = vmatpush1.xpose.msra.mxu0 0.0
    %7756 = vmatprep.subr.mxu0 0.0
    %7757 = vmatpush1.xpose.msra.mxu0 0.0
    %7758 = vmatprep.subr.mxu0 0.0
    %7759 = vmatpush1.xpose.msra.mxu0 0.0
    %7760 = vmatprep.subr.mxu0 0.0
    %7761 = vmatpush1.xpose.msra.mxu0 0.0
    %7762 = vmatprep.subr.mxu0 0.0
    %7763 = vmatpush1.xpose.msra.mxu0 0.0
    %7764 = vmatprep.subr.mxu0 0.0
    %7765 = vmatpush1.xpose.msra.mxu0 0.0
    %7766 = vmatprep.subr.mxu0 0.0
    %7767 = vmatpush1.xpose.msra.mxu0 0.0
    %7768 = vmatprep.subr.mxu0 0.0
    %7769 = vmatpush1.xpose.msra.mxu0 0.0
    %7770 = vmatprep.subr.mxu0 0.0
    %7771 = vmatpush1.xpose.msra.mxu0 0.0
    %7772 = vmatprep.subr.mxu0 0.0
    %7773 = vmatpush1.xpose.msra.mxu0 0.0
    %7774 = vmatprep.subr.mxu0 0.0
    %7775 = vmatpush1.xpose.msra.mxu0 0.0
    %7776 = vmatprep.subr.mxu0 0.0
    %7777 = vmatpush1.xpose.msra.mxu0 0.0
    %7778 = vmatprep.subr.mxu0 0.0
    %7779 = vmatpush1.xpose.msra.mxu0 0.0
    %7780 = vmatprep.subr.mxu0 0.0
    %7781 = vmatpush1.xpose.msra.mxu0 0.0
    %7782 = vmatprep.subr.mxu0 0.0
    %7783 = vmatpush1.xpose.msra.mxu0 %v7752
    %7784 = vmatprep.subr.mxu0 0.0
    %7785 = vmatpush1.xpose.msra.mxu0 %v7750
    %7786 = vmatprep.subr.mxu0 0.0
    %7787 = vmatpush2.xpose.msra.mxu0 0.0
    %7788 = vmatprep.subr.mxu0 0.0
    %7789 = vmatpush2.xpose.msra.mxu0 0.0
    %7790 = vmatprep.subr.mxu0 0.0
    %7791 = vmatpush2.xpose.msra.mxu0 0.0
    %7792 = vmatprep.subr.mxu0 0.0
    %7793 = vmatpush2.xpose.msra.mxu0 0.0
    %7794 = vmatprep.subr.mxu0 0.0
    %7795 = vmatpush2.xpose.msra.mxu0 0.0
    %7796 = vmatprep.subr.mxu0 0.0
    %7797 = vmatpush2.xpose.msra.mxu0 0.0
    %7798 = vmatprep.subr.mxu0 0.0
    %7799 = vmatpush2.xpose.msra.mxu0 0.0
    %7800 = vmatprep.subr.mxu0 0.0
    %7801 = vmatpush2.xpose.msra.mxu0 0.0
    %7802 = vmatprep.subr.mxu0 0.0
    %7803 = vmatpush2.xpose.msra.mxu0 0.0
    %7804 = vmatprep.subr.mxu0 0.0
    %7805 = vmatpush2.xpose.msra.mxu0 0.0
    %7806 = vmatprep.subr.mxu0 0.0
    %7807 = vmatpush2.xpose.msra.mxu0 0.0
    %7808 = vmatprep.subr.mxu0 0.0
    %7809 = vmatpush2.xpose.msra.mxu0 0.0
    %7810 = vmatprep.subr.mxu0 0.0
    %7811 = vmatpush2.xpose.msra.mxu0 0.0
    %7812 = vmatprep.subr.mxu0 0.0
    %7813 = vmatpush2.xpose.msra.mxu0 0.0
    %7814 = vmatprep.subr.mxu0 0.0
    %7815 = vmatpush2.xpose.msra.mxu0 0.0
    %7816 = vmatprep.subr.mxu0 0.0
    %7817 = vmatpush2.xpose.msra.mxu0 0.0
    %7818 = vmatprep.mubr.f32.mxu0 0.0
    %7819 = vmatmul.mubr.f32.gmra.mxu0 %v7746
    %v7820 = vpop.f32.mrf.mxu0
    %v7821 = vadd.f32 0.0, %v7820
    %v7822 = vpop.f32.mrf.mxu0
    %7823 = vmatprep.mubr.f32.mxu0 0.0
    %7824 = vmatmul.mubr.f32.gmra.mxu0 %v7748
    %v7825 = vpop.f32.mrf.mxu0
    %v7826 = vadd.f32 0.0, %v7825
    %v7827 = vpop.f32.mrf.mxu0
    %7828 = vdwg.mxu0
    %7829 = vst.msk [vmem:[#allocation2 + $0x50] sm:$0xff] %vm484, %v7821
    %7830 = vst.msk [vmem:[#allocation2 + $0x58] sm:$0xff] %vm484, %v7826
    %7831 = vrot.lane.b32.xlu0 %v7192, 80
    %v7832 = vpop.permute.xlu0 %7831
    %7833 = vrot.lane.b32.xlu0 %v7198, 80
    %v7834 = vpop.permute.xlu0 %7833
    %7835 = vrot.lane.b32.xlu0 %v7194, 80
    %v7836 = vpop.permute.xlu0 %7835
    %7837 = vrot.lane.b32.xlu0 %v7200, 80
    %v7838 = vpop.permute.xlu0 %7837
    %v7839 = vsel %vm396, %v7832, 0
    %v7841 = vsel %vm396, %v7834, 0
    %v7843 = vsel %vm396, %v7836, 0
    %v7845 = vsel %vm396, %v7838, 0
    %7847 = vmatprep.subr.mxu0 0.0
    %7848 = vmatpush1.xpose.msra.mxu0 0.0
    %7849 = vmatprep.subr.mxu0 0.0
    %7850 = vmatpush1.xpose.msra.mxu0 0.0
    %7851 = vmatprep.subr.mxu0 0.0
    %7852 = vmatpush1.xpose.msra.mxu0 0.0
    %7853 = vmatprep.subr.mxu0 0.0
    %7854 = vmatpush1.xpose.msra.mxu0 0.0
    %7855 = vmatprep.subr.mxu0 0.0
    %7856 = vmatpush1.xpose.msra.mxu0 0.0
    %7857 = vmatprep.subr.mxu0 0.0
    %7858 = vmatpush1.xpose.msra.mxu0 0.0
    %7859 = vmatprep.subr.mxu0 0.0
    %7860 = vmatpush1.xpose.msra.mxu0 0.0
    %7861 = vmatprep.subr.mxu0 0.0
    %7862 = vmatpush1.xpose.msra.mxu0 0.0
    %7863 = vmatprep.subr.mxu0 0.0
    %7864 = vmatpush1.xpose.msra.mxu0 0.0
    %7865 = vmatprep.subr.mxu0 0.0
    %7866 = vmatpush1.xpose.msra.mxu0 0.0
    %7867 = vmatprep.subr.mxu0 0.0
    %7868 = vmatpush1.xpose.msra.mxu0 0.0
    %7869 = vmatprep.subr.mxu0 0.0
    %7870 = vmatpush1.xpose.msra.mxu0 0.0
    %7871 = vmatprep.subr.mxu0 0.0
    %7872 = vmatpush1.xpose.msra.mxu0 0.0
    %7873 = vmatprep.subr.mxu0 0.0
    %7874 = vmatpush1.xpose.msra.mxu0 0.0
    %7875 = vmatprep.subr.mxu0 0.0
    %7876 = vmatpush1.xpose.msra.mxu0 %v7845
    %7877 = vmatprep.subr.mxu0 0.0
    %7878 = vmatpush1.xpose.msra.mxu0 %v7843
    %7879 = vmatprep.subr.mxu0 0.0
    %7880 = vmatpush2.xpose.msra.mxu0 0.0
    %7881 = vmatprep.subr.mxu0 0.0
    %7882 = vmatpush2.xpose.msra.mxu0 0.0
    %7883 = vmatprep.subr.mxu0 0.0
    %7884 = vmatpush2.xpose.msra.mxu0 0.0
    %7885 = vmatprep.subr.mxu0 0.0
    %7886 = vmatpush2.xpose.msra.mxu0 0.0
    %7887 = vmatprep.subr.mxu0 0.0
    %7888 = vmatpush2.xpose.msra.mxu0 0.0
    %7889 = vmatprep.subr.mxu0 0.0
    %7890 = vmatpush2.xpose.msra.mxu0 0.0
    %7891 = vmatprep.subr.mxu0 0.0
    %7892 = vmatpush2.xpose.msra.mxu0 0.0
    %7893 = vmatprep.subr.mxu0 0.0
    %7894 = vmatpush2.xpose.msra.mxu0 0.0
    %7895 = vmatprep.subr.mxu0 0.0
    %7896 = vmatpush2.xpose.msra.mxu0 0.0
    %7897 = vmatprep.subr.mxu0 0.0
    %7898 = vmatpush2.xpose.msra.mxu0 0.0
    %7899 = vmatprep.subr.mxu0 0.0
    %7900 = vmatpush2.xpose.msra.mxu0 0.0
    %7901 = vmatprep.subr.mxu0 0.0
    %7902 = vmatpush2.xpose.msra.mxu0 0.0
    %7903 = vmatprep.subr.mxu0 0.0
    %7904 = vmatpush2.xpose.msra.mxu0 0.0
    %7905 = vmatprep.subr.mxu0 0.0
    %7906 = vmatpush2.xpose.msra.mxu0 0.0
    %7907 = vmatprep.subr.mxu0 0.0
    %7908 = vmatpush2.xpose.msra.mxu0 0.0
    %7909 = vmatprep.subr.mxu0 0.0
    %7910 = vmatpush2.xpose.msra.mxu0 0.0
    %7911 = vmatprep.mubr.f32.mxu0 0.0
    %7912 = vmatmul.mubr.f32.gmra.mxu0 %v7839
    %v7913 = vpop.f32.mrf.mxu0
    %v7914 = vadd.f32 0.0, %v7913
    %v7915 = vpop.f32.mrf.mxu0
    %7916 = vmatprep.mubr.f32.mxu0 0.0
    %7917 = vmatmul.mubr.f32.gmra.mxu0 %v7841
    %v7918 = vpop.f32.mrf.mxu0
    %v7919 = vadd.f32 0.0, %v7918
    %v7920 = vpop.f32.mrf.mxu0
    %7921 = vdwg.mxu0
    %7922 = vst.msk [vmem:[#allocation2 + $0x60] sm:$0xff] %vm484, %v7914
    %7923 = vst.msk [vmem:[#allocation2 + $0x68] sm:$0xff] %vm484, %v7919
    %7924 = vrot.lane.b32.xlu0 %v7192, 72
    %v7925 = vpop.permute.xlu0 %7924
    %7926 = vrot.lane.b32.xlu0 %v7198, 72
    %v7927 = vpop.permute.xlu0 %7926
    %7928 = vrot.lane.b32.xlu0 %v7194, 72
    %v7929 = vpop.permute.xlu0 %7928
    %7930 = vrot.lane.b32.xlu0 %v7200, 72
    %v7931 = vpop.permute.xlu0 %7930
    %v7932 = vsel %vm396, %v7925, 0
    %v7934 = vsel %vm396, %v7927, 0
    %v7936 = vsel %vm396, %v7929, 0
    %v7938 = vsel %vm396, %v7931, 0
    %7940 = vmatprep.subr.mxu0 0.0
    %7941 = vmatpush1.xpose.msra.mxu0 0.0
    %7942 = vmatprep.subr.mxu0 0.0
    %7943 = vmatpush1.xpose.msra.mxu0 0.0
    %7944 = vmatprep.subr.mxu0 0.0
    %7945 = vmatpush1.xpose.msra.mxu0 0.0
    %7946 = vmatprep.subr.mxu0 0.0
    %7947 = vmatpush1.xpose.msra.mxu0 0.0
    %7948 = vmatprep.subr.mxu0 0.0
    %7949 = vmatpush1.xpose.msra.mxu0 0.0
    %7950 = vmatprep.subr.mxu0 0.0
    %7951 = vmatpush1.xpose.msra.mxu0 0.0
    %7952 = vmatprep.subr.mxu0 0.0
    %7953 = vmatpush1.xpose.msra.mxu0 0.0
    %7954 = vmatprep.subr.mxu0 0.0
    %7955 = vmatpush1.xpose.msra.mxu0 0.0
    %7956 = vmatprep.subr.mxu0 0.0
    %7957 = vmatpush1.xpose.msra.mxu0 0.0
    %7958 = vmatprep.subr.mxu0 0.0
    %7959 = vmatpush1.xpose.msra.mxu0 0.0
    %7960 = vmatprep.subr.mxu0 0.0
    %7961 = vmatpush1.xpose.msra.mxu0 0.0
    %7962 = vmatprep.subr.mxu0 0.0
    %7963 = vmatpush1.xpose.msra.mxu0 0.0
    %7964 = vmatprep.subr.mxu0 0.0
    %7965 = vmatpush1.xpose.msra.mxu0 0.0
    %7966 = vmatprep.subr.mxu0 0.0
    %7967 = vmatpush1.xpose.msra.mxu0 0.0
    %7968 = vmatprep.subr.mxu0 0.0
    %7969 = vmatpush1.xpose.msra.mxu0 %v7938
    %7970 = vmatprep.subr.mxu0 0.0
    %7971 = vmatpush1.xpose.msra.mxu0 %v7936
    %7972 = vmatprep.subr.mxu0 0.0
    %7973 = vmatpush2.xpose.msra.mxu0 0.0
    %7974 = vmatprep.subr.mxu0 0.0
    %7975 = vmatpush2.xpose.msra.mxu0 0.0
    %7976 = vmatprep.subr.mxu0 0.0
    %7977 = vmatpush2.xpose.msra.mxu0 0.0
    %7978 = vmatprep.subr.mxu0 0.0
    %7979 = vmatpush2.xpose.msra.mxu0 0.0
    %7980 = vmatprep.subr.mxu0 0.0
    %7981 = vmatpush2.xpose.msra.mxu0 0.0
    %7982 = vmatprep.subr.mxu0 0.0
    %7983 = vmatpush2.xpose.msra.mxu0 0.0
    %7984 = vmatprep.subr.mxu0 0.0
    %7985 = vmatpush2.xpose.msra.mxu0 0.0
    %7986 = vmatprep.subr.mxu0 0.0
    %7987 = vmatpush2.xpose.msra.mxu0 0.0
    %7988 = vmatprep.subr.mxu0 0.0
    %7989 = vmatpush2.xpose.msra.mxu0 0.0
    %7990 = vmatprep.subr.mxu0 0.0
    %7991 = vmatpush2.xpose.msra.mxu0 0.0
    %7992 = vmatprep.subr.mxu0 0.0
    %7993 = vmatpush2.xpose.msra.mxu0 0.0
    %7994 = vmatprep.subr.mxu0 0.0
    %7995 = vmatpush2.xpose.msra.mxu0 0.0
    %7996 = vmatprep.subr.mxu0 0.0
    %7997 = vmatpush2.xpose.msra.mxu0 0.0
    %7998 = vmatprep.subr.mxu0 0.0
    %7999 = vmatpush2.xpose.msra.mxu0 0.0
    %8000 = vmatprep.subr.mxu0 0.0
    %8001 = vmatpush2.xpose.msra.mxu0 0.0
    %8002 = vmatprep.subr.mxu0 0.0
    %8003 = vmatpush2.xpose.msra.mxu0 0.0
    %8004 = vmatprep.mubr.f32.mxu0 0.0
    %8005 = vmatmul.mubr.f32.gmra.mxu0 %v7932
    %v8006 = vpop.f32.mrf.mxu0
    %v8007 = vadd.f32 0.0, %v8006
    %v8008 = vpop.f32.mrf.mxu0
    %8009 = vmatprep.mubr.f32.mxu0 0.0
    %8010 = vmatmul.mubr.f32.gmra.mxu0 %v7934
    %v8011 = vpop.f32.mrf.mxu0
    %v8012 = vadd.f32 0.0, %v8011
    %v8013 = vpop.f32.mrf.mxu0
    %8014 = vdwg.mxu0
    %8015 = vst.msk [vmem:[#allocation2 + $0x70] sm:$0xff] %vm484, %v8007
    %8016 = vst.msk [vmem:[#allocation2 + $0x78] sm:$0xff] %vm484, %v8012
    %v8017 = vld [vmem:[#allocation2] sm:$0xff]
    %v8018 = vld [vmem:[#allocation2 + $0x8] sm:$0xff]
    %v8019 = vld [vmem:[#allocation2 + $0x10] sm:$0xff]
    %v8020 = vld [vmem:[#allocation2 + $0x18] sm:$0xff]
    %v8021 = vld [vmem:[#allocation2 + $0x20] sm:$0xff]
    %v8022 = vld [vmem:[#allocation2 + $0x28] sm:$0xff]
    %v8023 = vld [vmem:[#allocation2 + $0x30] sm:$0xff]
    %v8024 = vld [vmem:[#allocation2 + $0x38] sm:$0xff]
    %v8025 = vld [vmem:[#allocation2 + $0x40] sm:$0xff]
    %v8026 = vld [vmem:[#allocation2 + $0x48] sm:$0xff]
    %v8027 = vld [vmem:[#allocation2 + $0x50] sm:$0xff]
    %v8028 = vld [vmem:[#allocation2 + $0x58] sm:$0xff]
    %v8029 = vld [vmem:[#allocation2 + $0x60] sm:$0xff]
    %v8030 = vld [vmem:[#allocation2 + $0x68] sm:$0xff]
    %v8031 = vld [vmem:[#allocation2 + $0x70] sm:$0xff]
    %v8032 = vld [vmem:[#allocation2 + $0x78] sm:$0xff]
    %v8033 = vadd.f32 %v8017, %v114
    %v8034 = vadd.f32 %v8018, %v115
    %v8035 = vadd.f32 %v8019, %v116
    %v8036 = vadd.f32 %v8020, %v117
    %v8037 = vadd.f32 %v8021, %v118
    %v8038 = vadd.f32 %v8022, %v119
    %v8039 = vadd.f32 %v8023, %v120
    %v8040 = vadd.f32 %v8024, %v121
    %v8041 = vadd.f32 %v8025, %v122
    %v8042 = vadd.f32 %v8026, %v123
    %v8043 = vadd.f32 %v8027, %v124
    %v8044 = vadd.f32 %v8028, %v125
    %v8045 = vadd.f32 %v8029, %v126
    %v8046 = vadd.f32 %v8030, %v127
    %v8047 = vadd.f32 %v8031, %v128
    %v8048 = vadd.f32 %v8032, %v129
    %v8049 = vsel %vm484, %v8033, -inf
    %8050 = vmax.xlane.f32.xlu0 %v8049
    %v8051 = vpop.xlane.xlu0 %8050
    %v8052 = vsel %vm484, %v8034, -inf
    %8053 = vmax.xlane.f32.xlu0 %v8052
    %v8054 = vpop.xlane.xlu0 %8053
    %v8055 = vsel %vm484, %v8035, -inf
    %8056 = vmax.xlane.f32.xlu0 %v8055
    %v8057 = vpop.xlane.xlu0 %8056
    %v8058 = vsel %vm484, %v8036, -inf
    %8059 = vmax.xlane.f32.xlu0 %v8058
    %v8060 = vpop.xlane.xlu0 %8059
    %v8061 = vsel %vm484, %v8037, -inf
    %8062 = vmax.xlane.f32.xlu0 %v8061
    %v8063 = vpop.xlane.xlu0 %8062
    %v8064 = vsel %vm484, %v8038, -inf
    %8065 = vmax.xlane.f32.xlu0 %v8064
    %v8066 = vpop.xlane.xlu0 %8065
    %v8067 = vsel %vm484, %v8039, -inf
    %8068 = vmax.xlane.f32.xlu0 %v8067
    %v8069 = vpop.xlane.xlu0 %8068
    %v8070 = vsel %vm484, %v8040, -inf
    %8071 = vmax.xlane.f32.xlu0 %v8070
    %v8072 = vpop.xlane.xlu0 %8071
    %v8073 = vsel %vm484, %v8041, -inf
    %8074 = vmax.xlane.f32.xlu0 %v8073
    %v8075 = vpop.xlane.xlu0 %8074
    %v8076 = vsel %vm484, %v8042, -inf
    %8077 = vmax.xlane.f32.xlu0 %v8076
    %v8078 = vpop.xlane.xlu0 %8077
    %v8079 = vsel %vm484, %v8043, -inf
    %8080 = vmax.xlane.f32.xlu0 %v8079
    %v8081 = vpop.xlane.xlu0 %8080
    %v8082 = vsel %vm484, %v8044, -inf
    %8083 = vmax.xlane.f32.xlu0 %v8082
    %v8084 = vpop.xlane.xlu0 %8083
    %v8085 = vsel %vm484, %v8045, -inf
    %8086 = vmax.xlane.f32.xlu0 %v8085
    %v8087 = vpop.xlane.xlu0 %8086
    %v8088 = vsel %vm484, %v8046, -inf
    %8089 = vmax.xlane.f32.xlu0 %v8088
    %v8090 = vpop.xlane.xlu0 %8089
    %v8091 = vsel %vm484, %v8047, -inf
    %8092 = vmax.xlane.f32.xlu0 %v8091
    %v8093 = vpop.xlane.xlu0 %8092
    %v8094 = vsel %vm484, %v8048, -inf
    %8095 = vmax.xlane.f32.xlu0 %v8094
    %v8096 = vpop.xlane.xlu0 %8095
    %v8097 = vsub.f32 %v8033, %v8051
    %v8098 = vsub.f32 %v8034, %v8054
    %v8099 = vsub.f32 %v8035, %v8057
    %v8100 = vsub.f32 %v8036, %v8060
    %v8101 = vsub.f32 %v8037, %v8063
    %v8102 = vsub.f32 %v8038, %v8066
    %v8103 = vsub.f32 %v8039, %v8069
    %v8104 = vsub.f32 %v8040, %v8072
    %v8105 = vsub.f32 %v8041, %v8075
    %v8106 = vsub.f32 %v8042, %v8078
    %v8107 = vsub.f32 %v8043, %v8081
    %v8108 = vsub.f32 %v8044, %v8084
    %v8109 = vsub.f32 %v8045, %v8087
    %v8110 = vsub.f32 %v8046, %v8090
    %v8111 = vsub.f32 %v8047, %v8093
    %v8112 = vsub.f32 %v8048, %v8096
    %v8113 = vmul.f32 %v8097, 1.442695
    %v8114 = vpow.pop %v8113
    %v8115 = vmul.f32 %v8098, 1.442695
    %v8116 = vpow.pop %v8115
    %v8117 = vmul.f32 %v8099, 1.442695
    %v8118 = vpow.pop %v8117
    %v8119 = vmul.f32 %v8100, 1.442695
    %v8120 = vpow.pop %v8119
    %v8121 = vmul.f32 %v8101, 1.442695
    %v8122 = vpow.pop %v8121
    %v8123 = vmul.f32 %v8102, 1.442695
    %v8124 = vpow.pop %v8123
    %v8125 = vmul.f32 %v8103, 1.442695
    %v8126 = vpow.pop %v8125
    %v8127 = vmul.f32 %v8104, 1.442695
    %v8128 = vpow.pop %v8127
    %v8129 = vmul.f32 %v8105, 1.442695
    %v8130 = vpow.pop %v8129
    %v8131 = vmul.f32 %v8106, 1.442695
    %v8132 = vpow.pop %v8131
    %v8133 = vmul.f32 %v8107, 1.442695
    %v8134 = vpow.pop %v8133
    %v8135 = vmul.f32 %v8108, 1.442695
    %v8136 = vpow.pop %v8135
    %v8137 = vmul.f32 %v8109, 1.442695
    %v8138 = vpow.pop %v8137
    %v8139 = vmul.f32 %v8110, 1.442695
    %v8140 = vpow.pop %v8139
    %v8141 = vmul.f32 %v8111, 1.442695
    %v8142 = vpow.pop %v8141
    %v8143 = vmul.f32 %v8112, 1.442695
    %v8144 = vpow.pop %v8143
    %v8145 = vsel %vm484, %v8114, 0.0
    %8146 = vadd.xlane.f32.xlu0 %v8145
    %v8147 = vpop.xlane.xlu0 %8146
    %v8148 = vsel %vm484, %v8116, 0.0
    %8149 = vadd.xlane.f32.xlu0 %v8148
    %v8150 = vpop.xlane.xlu0 %8149
    %v8151 = vsel %vm484, %v8118, 0.0
    %8152 = vadd.xlane.f32.xlu0 %v8151
    %v8153 = vpop.xlane.xlu0 %8152
    %v8154 = vsel %vm484, %v8120, 0.0
    %8155 = vadd.xlane.f32.xlu0 %v8154
    %v8156 = vpop.xlane.xlu0 %8155
    %v8157 = vsel %vm484, %v8122, 0.0
    %8158 = vadd.xlane.f32.xlu0 %v8157
    %v8159 = vpop.xlane.xlu0 %8158
    %v8160 = vsel %vm484, %v8124, 0.0
    %8161 = vadd.xlane.f32.xlu0 %v8160
    %v8162 = vpop.xlane.xlu0 %8161
    %v8163 = vsel %vm484, %v8126, 0.0
    %8164 = vadd.xlane.f32.xlu0 %v8163
    %v8165 = vpop.xlane.xlu0 %8164
    %v8166 = vsel %vm484, %v8128, 0.0
    %8167 = vadd.xlane.f32.xlu0 %v8166
    %v8168 = vpop.xlane.xlu0 %8167
    %v8169 = vsel %vm484, %v8130, 0.0
    %8170 = vadd.xlane.f32.xlu0 %v8169
    %v8171 = vpop.xlane.xlu0 %8170
    %v8172 = vsel %vm484, %v8132, 0.0
    %8173 = vadd.xlane.f32.xlu0 %v8172
    %v8174 = vpop.xlane.xlu0 %8173
    %v8175 = vsel %vm484, %v8134, 0.0
    %8176 = vadd.xlane.f32.xlu0 %v8175
    %v8177 = vpop.xlane.xlu0 %8176
    %v8178 = vsel %vm484, %v8136, 0.0
    %8179 = vadd.xlane.f32.xlu0 %v8178
    %v8180 = vpop.xlane.xlu0 %8179
    %v8181 = vsel %vm484, %v8138, 0.0
    %8182 = vadd.xlane.f32.xlu0 %v8181
    %v8183 = vpop.xlane.xlu0 %8182
    %v8184 = vsel %vm484, %v8140, 0.0
    %8185 = vadd.xlane.f32.xlu0 %v8184
    %v8186 = vpop.xlane.xlu0 %8185
    %v8187 = vsel %vm484, %v8142, 0.0
    %8188 = vadd.xlane.f32.xlu0 %v8187
    %v8189 = vpop.xlane.xlu0 %8188
    %v8190 = vsel %vm484, %v8144, 0.0
    %8191 = vadd.xlane.f32.xlu0 %v8190
    %v8192 = vpop.xlane.xlu0 %8191
    %v8193 = vrcp.pop %v8147
    %v8194 = vrcp.pop %v8150
    %v8195 = vrcp.pop %v8153
    %v8196 = vrcp.pop %v8156
    %v8197 = vrcp.pop %v8159
    %v8198 = vrcp.pop %v8162
    %v8199 = vrcp.pop %v8165
    %v8200 = vrcp.pop %v8168
    %v8201 = vrcp.pop %v8171
    %v8202 = vrcp.pop %v8174
    %v8203 = vrcp.pop %v8177
    %v8204 = vrcp.pop %v8180
    %v8205 = vrcp.pop %v8183
    %v8206 = vrcp.pop %v8186
    %v8207 = vrcp.pop %v8189
    %v8208 = vrcp.pop %v8192
    %v8209 = vmul.f32 %v8114, %v8193
    %v8210 = vmul.f32 %v8116, %v8194
    %v8211 = vmul.f32 %v8118, %v8195
    %v8212 = vmul.f32 %v8120, %v8196
    %v8213 = vmul.f32 %v8122, %v8197
    %v8214 = vmul.f32 %v8124, %v8198
    %v8215 = vmul.f32 %v8126, %v8199
    %v8216 = vmul.f32 %v8128, %v8200
    %v8217 = vmul.f32 %v8130, %v8201
    %v8218 = vmul.f32 %v8132, %v8202
    %v8219 = vmul.f32 %v8134, %v8203
    %v8220 = vmul.f32 %v8136, %v8204
    %v8221 = vmul.f32 %v8138, %v8205
    %v8222 = vmul.f32 %v8140, %v8206
    %v8223 = vmul.f32 %v8142, %v8207
    %v8224 = vmul.f32 %v8144, %v8208
    %v8226 = vsel %vm484, %v8209, 0
    %v8229 = vsel %vm484, %v8210, 0
    %8231 = vmatprep.subr.mxu0 0.0
    %8232 = vmatpush1.msra.mxu0 0.0
    %8233 = vmatprep.subr.mxu0 0.0
    %8234 = vmatpush1.msra.mxu0 0.0
    %8235 = vmatprep.subr.mxu0 0.0
    %8236 = vmatpush1.msra.mxu0 0.0
    %8237 = vmatprep.subr.mxu0 0.0
    %8238 = vmatpush1.msra.mxu0 0.0
    %8239 = vmatprep.subr.mxu0 0.0
    %8240 = vmatpush1.msra.mxu0 0.0
    %8241 = vmatprep.subr.mxu0 0.0
    %8242 = vmatpush1.msra.mxu0 0.0
    %8243 = vmatprep.subr.mxu0 0.0
    %8244 = vmatpush1.msra.mxu0 0.0
    %8245 = vmatprep.subr.mxu0 0.0
    %8246 = vmatpush1.msra.mxu0 0.0
    %8247 = vmatprep.subr.mxu0 0.0
    %8248 = vmatpush1.msra.mxu0 0.0
    %8249 = vmatprep.subr.mxu0 0.0
    %8250 = vmatpush1.msra.mxu0 0.0
    %8251 = vmatprep.subr.mxu0 0.0
    %8252 = vmatpush1.msra.mxu0 0.0
    %8253 = vmatprep.subr.mxu0 0.0
    %8254 = vmatpush1.msra.mxu0 0.0
    %8255 = vmatprep.subr.mxu0 0.0
    %8256 = vmatpush1.msra.mxu0 0.0
    %8257 = vmatprep.subr.mxu0 0.0
    %8258 = vmatpush1.msra.mxu0 0.0
    %8259 = vmatprep.subr.mxu0 0.0
    %8260 = vmatpush1.msra.mxu0 %v7274
    %8261 = vmatprep.subr.mxu0 0.0
    %8262 = vmatpush1.msra.mxu0 %v7269
    %8263 = vmatprep.subr.mxu0 0.0
    %8264 = vmatpush2.msra.mxu0 0.0
    %8265 = vmatprep.subr.mxu0 0.0
    %8266 = vmatpush2.msra.mxu0 0.0
    %8267 = vmatprep.subr.mxu0 0.0
    %8268 = vmatpush2.msra.mxu0 0.0
    %8269 = vmatprep.subr.mxu0 0.0
    %8270 = vmatpush2.msra.mxu0 0.0
    %8271 = vmatprep.subr.mxu0 0.0
    %8272 = vmatpush2.msra.mxu0 0.0
    %8273 = vmatprep.subr.mxu0 0.0
    %8274 = vmatpush2.msra.mxu0 0.0
    %8275 = vmatprep.subr.mxu0 0.0
    %8276 = vmatpush2.msra.mxu0 0.0
    %8277 = vmatprep.subr.mxu0 0.0
    %8278 = vmatpush2.msra.mxu0 0.0
    %8279 = vmatprep.subr.mxu0 0.0
    %8280 = vmatpush2.msra.mxu0 0.0
    %8281 = vmatprep.subr.mxu0 0.0
    %8282 = vmatpush2.msra.mxu0 0.0
    %8283 = vmatprep.subr.mxu0 0.0
    %8284 = vmatpush2.msra.mxu0 0.0
    %8285 = vmatprep.subr.mxu0 0.0
    %8286 = vmatpush2.msra.mxu0 0.0
    %8287 = vmatprep.subr.mxu0 0.0
    %8288 = vmatpush2.msra.mxu0 0.0
    %8289 = vmatprep.subr.mxu0 0.0
    %8290 = vmatpush2.msra.mxu0 0.0
    %8291 = vmatprep.subr.mxu0 0.0
    %8292 = vmatpush2.msra.mxu0 0.0
    %8293 = vmatprep.subr.mxu0 0.0
    %8294 = vmatpush2.msra.mxu0 0.0
    %8295 = vmatprep.mubr.f32.mxu0 0.0
    %8296 = vmatmul.mubr.f32.gmra.mxu0 %v8226
    %v8297 = vpop.f32.mrf.mxu0
    %v8298 = vadd.f32 0.0, %v8297
    %v8299 = vpop.f32.mrf.mxu0
    %8300 = vmatprep.mubr.f32.mxu0 0.0
    %8301 = vmatmul.mubr.f32.gmra.mxu0 %v8229
    %v8302 = vpop.f32.mrf.mxu0
    %v8303 = vadd.f32 0.0, %v8302
    %v8304 = vpop.f32.mrf.mxu0
    %8305 = vdwg.mxu0
    %8306 = vst.msk [vmem:[#allocation3] sm:$0xff] %vm396, %v8298
    %8307 = vst.msk [vmem:[#allocation3 + $0x8] sm:$0xff] %vm396, %v8303
    %8310 = vrot.lane.b32.xlu0 %v7269, 120
    %v8311 = vpop.permute.xlu0 %8310
    %8312 = vrot.lane.b32.xlu0 %v7274, 120
    %v8313 = vpop.permute.xlu0 %8312
    %v8317 = vsel %vm484, %v8211, 0
    %v8320 = vsel %vm484, %v8212, 0
    %8322 = vmatprep.subr.mxu0 0.0
    %8323 = vmatpush1.msra.mxu0 0.0
    %8324 = vmatprep.subr.mxu0 0.0
    %8325 = vmatpush1.msra.mxu0 0.0
    %8326 = vmatprep.subr.mxu0 0.0
    %8327 = vmatpush1.msra.mxu0 0.0
    %8328 = vmatprep.subr.mxu0 0.0
    %8329 = vmatpush1.msra.mxu0 0.0
    %8330 = vmatprep.subr.mxu0 0.0
    %8331 = vmatpush1.msra.mxu0 0.0
    %8332 = vmatprep.subr.mxu0 0.0
    %8333 = vmatpush1.msra.mxu0 0.0
    %8334 = vmatprep.subr.mxu0 0.0
    %8335 = vmatpush1.msra.mxu0 0.0
    %8336 = vmatprep.subr.mxu0 0.0
    %8337 = vmatpush1.msra.mxu0 0.0
    %8338 = vmatprep.subr.mxu0 0.0
    %8339 = vmatpush1.msra.mxu0 0.0
    %8340 = vmatprep.subr.mxu0 0.0
    %8341 = vmatpush1.msra.mxu0 0.0
    %8342 = vmatprep.subr.mxu0 0.0
    %8343 = vmatpush1.msra.mxu0 0.0
    %8344 = vmatprep.subr.mxu0 0.0
    %8345 = vmatpush1.msra.mxu0 0.0
    %8346 = vmatprep.subr.mxu0 0.0
    %8347 = vmatpush1.msra.mxu0 0.0
    %8348 = vmatprep.subr.mxu0 0.0
    %8349 = vmatpush1.msra.mxu0 0.0
    %8350 = vmatprep.subr.mxu0 0.0
    %8351 = vmatpush1.msra.mxu0 %v8313
    %8352 = vmatprep.subr.mxu0 0.0
    %8353 = vmatpush1.msra.mxu0 %v8311
    %8354 = vmatprep.subr.mxu0 0.0
    %8355 = vmatpush2.msra.mxu0 0.0
    %8356 = vmatprep.subr.mxu0 0.0
    %8357 = vmatpush2.msra.mxu0 0.0
    %8358 = vmatprep.subr.mxu0 0.0
    %8359 = vmatpush2.msra.mxu0 0.0
    %8360 = vmatprep.subr.mxu0 0.0
    %8361 = vmatpush2.msra.mxu0 0.0
    %8362 = vmatprep.subr.mxu0 0.0
    %8363 = vmatpush2.msra.mxu0 0.0
    %8364 = vmatprep.subr.mxu0 0.0
    %8365 = vmatpush2.msra.mxu0 0.0
    %8366 = vmatprep.subr.mxu0 0.0
    %8367 = vmatpush2.msra.mxu0 0.0
    %8368 = vmatprep.subr.mxu0 0.0
    %8369 = vmatpush2.msra.mxu0 0.0
    %8370 = vmatprep.subr.mxu0 0.0
    %8371 = vmatpush2.msra.mxu0 0.0
    %8372 = vmatprep.subr.mxu0 0.0
    %8373 = vmatpush2.msra.mxu0 0.0
    %8374 = vmatprep.subr.mxu0 0.0
    %8375 = vmatpush2.msra.mxu0 0.0
    %8376 = vmatprep.subr.mxu0 0.0
    %8377 = vmatpush2.msra.mxu0 0.0
    %8378 = vmatprep.subr.mxu0 0.0
    %8379 = vmatpush2.msra.mxu0 0.0
    %8380 = vmatprep.subr.mxu0 0.0
    %8381 = vmatpush2.msra.mxu0 0.0
    %8382 = vmatprep.subr.mxu0 0.0
    %8383 = vmatpush2.msra.mxu0 0.0
    %8384 = vmatprep.subr.mxu0 0.0
    %8385 = vmatpush2.msra.mxu0 0.0
    %8386 = vmatprep.mubr.f32.mxu0 0.0
    %8387 = vmatmul.mubr.f32.gmra.mxu0 %v8317
    %v8388 = vpop.f32.mrf.mxu0
    %v8389 = vadd.f32 0.0, %v8388
    %v8390 = vpop.f32.mrf.mxu0
    %8391 = vmatprep.mubr.f32.mxu0 0.0
    %8392 = vmatmul.mubr.f32.gmra.mxu0 %v8320
    %v8393 = vpop.f32.mrf.mxu0
    %v8394 = vadd.f32 0.0, %v8393
    %v8395 = vpop.f32.mrf.mxu0
    %8396 = vdwg.mxu0
    %8399 = vrot.lane.b32.xlu0 %v8389, 8
    %v8400 = vpop.permute.xlu0 %8399
    %8401 = vrot.lane.b32.xlu0 %v8394, 8
    %v8402 = vpop.permute.xlu0 %8401
    %8405 = vst.msk [vmem:[#allocation3] sm:$0xff] %vm1526, %v8400
    %8406 = vst.msk [vmem:[#allocation3 + $0x8] sm:$0xff] %vm1526, %v8402
    %8407 = vrot.lane.b32.xlu0 %v7269, 112
    %v8408 = vpop.permute.xlu0 %8407
    %8409 = vrot.lane.b32.xlu0 %v7274, 112
    %v8410 = vpop.permute.xlu0 %8409
    %v8414 = vsel %vm484, %v8213, 0
    %v8417 = vsel %vm484, %v8214, 0
    %8419 = vmatprep.subr.mxu0 0.0
    %8420 = vmatpush1.msra.mxu0 0.0
    %8421 = vmatprep.subr.mxu0 0.0
    %8422 = vmatpush1.msra.mxu0 0.0
    %8423 = vmatprep.subr.mxu0 0.0
    %8424 = vmatpush1.msra.mxu0 0.0
    %8425 = vmatprep.subr.mxu0 0.0
    %8426 = vmatpush1.msra.mxu0 0.0
    %8427 = vmatprep.subr.mxu0 0.0
    %8428 = vmatpush1.msra.mxu0 0.0
    %8429 = vmatprep.subr.mxu0 0.0
    %8430 = vmatpush1.msra.mxu0 0.0
    %8431 = vmatprep.subr.mxu0 0.0
    %8432 = vmatpush1.msra.mxu0 0.0
    %8433 = vmatprep.subr.mxu0 0.0
    %8434 = vmatpush1.msra.mxu0 0.0
    %8435 = vmatprep.subr.mxu0 0.0
    %8436 = vmatpush1.msra.mxu0 0.0
    %8437 = vmatprep.subr.mxu0 0.0
    %8438 = vmatpush1.msra.mxu0 0.0
    %8439 = vmatprep.subr.mxu0 0.0
    %8440 = vmatpush1.msra.mxu0 0.0
    %8441 = vmatprep.subr.mxu0 0.0
    %8442 = vmatpush1.msra.mxu0 0.0
    %8443 = vmatprep.subr.mxu0 0.0
    %8444 = vmatpush1.msra.mxu0 0.0
    %8445 = vmatprep.subr.mxu0 0.0
    %8446 = vmatpush1.msra.mxu0 0.0
    %8447 = vmatprep.subr.mxu0 0.0
    %8448 = vmatpush1.msra.mxu0 %v8410
    %8449 = vmatprep.subr.mxu0 0.0
    %8450 = vmatpush1.msra.mxu0 %v8408
    %8451 = vmatprep.subr.mxu0 0.0
    %8452 = vmatpush2.msra.mxu0 0.0
    %8453 = vmatprep.subr.mxu0 0.0
    %8454 = vmatpush2.msra.mxu0 0.0
    %8455 = vmatprep.subr.mxu0 0.0
    %8456 = vmatpush2.msra.mxu0 0.0
    %8457 = vmatprep.subr.mxu0 0.0
    %8458 = vmatpush2.msra.mxu0 0.0
    %8459 = vmatprep.subr.mxu0 0.0
    %8460 = vmatpush2.msra.mxu0 0.0
    %8461 = vmatprep.subr.mxu0 0.0
    %8462 = vmatpush2.msra.mxu0 0.0
    %8463 = vmatprep.subr.mxu0 0.0
    %8464 = vmatpush2.msra.mxu0 0.0
    %8465 = vmatprep.subr.mxu0 0.0
    %8466 = vmatpush2.msra.mxu0 0.0
    %8467 = vmatprep.subr.mxu0 0.0
    %8468 = vmatpush2.msra.mxu0 0.0
    %8469 = vmatprep.subr.mxu0 0.0
    %8470 = vmatpush2.msra.mxu0 0.0
    %8471 = vmatprep.subr.mxu0 0.0
    %8472 = vmatpush2.msra.mxu0 0.0
    %8473 = vmatprep.subr.mxu0 0.0
    %8474 = vmatpush2.msra.mxu0 0.0
    %8475 = vmatprep.subr.mxu0 0.0
    %8476 = vmatpush2.msra.mxu0 0.0
    %8477 = vmatprep.subr.mxu0 0.0
    %8478 = vmatpush2.msra.mxu0 0.0
    %8479 = vmatprep.subr.mxu0 0.0
    %8480 = vmatpush2.msra.mxu0 0.0
    %8481 = vmatprep.subr.mxu0 0.0
    %8482 = vmatpush2.msra.mxu0 0.0
    %8483 = vmatprep.mubr.f32.mxu0 0.0
    %8484 = vmatmul.mubr.f32.gmra.mxu0 %v8414
    %v8485 = vpop.f32.mrf.mxu0
    %v8486 = vadd.f32 0.0, %v8485
    %v8487 = vpop.f32.mrf.mxu0
    %8488 = vmatprep.mubr.f32.mxu0 0.0
    %8489 = vmatmul.mubr.f32.gmra.mxu0 %v8417
    %v8490 = vpop.f32.mrf.mxu0
    %v8491 = vadd.f32 0.0, %v8490
    %v8492 = vpop.f32.mrf.mxu0
    %8493 = vdwg.mxu0
    %8496 = vrot.lane.b32.xlu0 %v8486, 16
    %v8497 = vpop.permute.xlu0 %8496
    %8498 = vrot.lane.b32.xlu0 %v8491, 16
    %v8499 = vpop.permute.xlu0 %8498
    %8502 = vst.msk [vmem:[#allocation3] sm:$0xff] %vm1624, %v8497
    %8503 = vst.msk [vmem:[#allocation3 + $0x8] sm:$0xff] %vm1624, %v8499
    %8504 = vrot.lane.b32.xlu0 %v7269, 104
    %v8505 = vpop.permute.xlu0 %8504
    %8506 = vrot.lane.b32.xlu0 %v7274, 104
    %v8507 = vpop.permute.xlu0 %8506
    %v8511 = vsel %vm484, %v8215, 0
    %v8514 = vsel %vm484, %v8216, 0
    %8516 = vmatprep.subr.mxu0 0.0
    %8517 = vmatpush1.msra.mxu0 0.0
    %8518 = vmatprep.subr.mxu0 0.0
    %8519 = vmatpush1.msra.mxu0 0.0
    %8520 = vmatprep.subr.mxu0 0.0
    %8521 = vmatpush1.msra.mxu0 0.0
    %8522 = vmatprep.subr.mxu0 0.0
    %8523 = vmatpush1.msra.mxu0 0.0
    %8524 = vmatprep.subr.mxu0 0.0
    %8525 = vmatpush1.msra.mxu0 0.0
    %8526 = vmatprep.subr.mxu0 0.0
    %8527 = vmatpush1.msra.mxu0 0.0
    %8528 = vmatprep.subr.mxu0 0.0
    %8529 = vmatpush1.msra.mxu0 0.0
    %8530 = vmatprep.subr.mxu0 0.0
    %8531 = vmatpush1.msra.mxu0 0.0
    %8532 = vmatprep.subr.mxu0 0.0
    %8533 = vmatpush1.msra.mxu0 0.0
    %8534 = vmatprep.subr.mxu0 0.0
    %8535 = vmatpush1.msra.mxu0 0.0
    %8536 = vmatprep.subr.mxu0 0.0
    %8537 = vmatpush1.msra.mxu0 0.0
    %8538 = vmatprep.subr.mxu0 0.0
    %8539 = vmatpush1.msra.mxu0 0.0
    %8540 = vmatprep.subr.mxu0 0.0
    %8541 = vmatpush1.msra.mxu0 0.0
    %8542 = vmatprep.subr.mxu0 0.0
    %8543 = vmatpush1.msra.mxu0 0.0
    %8544 = vmatprep.subr.mxu0 0.0
    %8545 = vmatpush1.msra.mxu0 %v8507
    %8546 = vmatprep.subr.mxu0 0.0
    %8547 = vmatpush1.msra.mxu0 %v8505
    %8548 = vmatprep.subr.mxu0 0.0
    %8549 = vmatpush2.msra.mxu0 0.0
    %8550 = vmatprep.subr.mxu0 0.0
    %8551 = vmatpush2.msra.mxu0 0.0
    %8552 = vmatprep.subr.mxu0 0.0
    %8553 = vmatpush2.msra.mxu0 0.0
    %8554 = vmatprep.subr.mxu0 0.0
    %8555 = vmatpush2.msra.mxu0 0.0
    %8556 = vmatprep.subr.mxu0 0.0
    %8557 = vmatpush2.msra.mxu0 0.0
    %8558 = vmatprep.subr.mxu0 0.0
    %8559 = vmatpush2.msra.mxu0 0.0
    %8560 = vmatprep.subr.mxu0 0.0
    %8561 = vmatpush2.msra.mxu0 0.0
    %8562 = vmatprep.subr.mxu0 0.0
    %8563 = vmatpush2.msra.mxu0 0.0
    %8564 = vmatprep.subr.mxu0 0.0
    %8565 = vmatpush2.msra.mxu0 0.0
    %8566 = vmatprep.subr.mxu0 0.0
    %8567 = vmatpush2.msra.mxu0 0.0
    %8568 = vmatprep.subr.mxu0 0.0
    %8569 = vmatpush2.msra.mxu0 0.0
    %8570 = vmatprep.subr.mxu0 0.0
    %8571 = vmatpush2.msra.mxu0 0.0
    %8572 = vmatprep.subr.mxu0 0.0
    %8573 = vmatpush2.msra.mxu0 0.0
    %8574 = vmatprep.subr.mxu0 0.0
    %8575 = vmatpush2.msra.mxu0 0.0
    %8576 = vmatprep.subr.mxu0 0.0
    %8577 = vmatpush2.msra.mxu0 0.0
    %8578 = vmatprep.subr.mxu0 0.0
    %8579 = vmatpush2.msra.mxu0 0.0
    %8580 = vmatprep.mubr.f32.mxu0 0.0
    %8581 = vmatmul.mubr.f32.gmra.mxu0 %v8511
    %v8582 = vpop.f32.mrf.mxu0
    %v8583 = vadd.f32 0.0, %v8582
    %v8584 = vpop.f32.mrf.mxu0
    %8585 = vmatprep.mubr.f32.mxu0 0.0
    %8586 = vmatmul.mubr.f32.gmra.mxu0 %v8514
    %v8587 = vpop.f32.mrf.mxu0
    %v8588 = vadd.f32 0.0, %v8587
    %v8589 = vpop.f32.mrf.mxu0
    %8590 = vdwg.mxu0
    %8593 = vrot.lane.b32.xlu0 %v8583, 24
    %v8594 = vpop.permute.xlu0 %8593
    %8595 = vrot.lane.b32.xlu0 %v8588, 24
    %v8596 = vpop.permute.xlu0 %8595
    %8599 = vst.msk [vmem:[#allocation3] sm:$0xff] %vm1722, %v8594
    %8600 = vst.msk [vmem:[#allocation3 + $0x8] sm:$0xff] %vm1722, %v8596
    %8601 = vrot.lane.b32.xlu0 %v7269, 96
    %v8602 = vpop.permute.xlu0 %8601
    %8603 = vrot.lane.b32.xlu0 %v7274, 96
    %v8604 = vpop.permute.xlu0 %8603
    %v8608 = vsel %vm484, %v8217, 0
    %v8611 = vsel %vm484, %v8218, 0
    %8613 = vmatprep.subr.mxu0 0.0
    %8614 = vmatpush1.msra.mxu0 0.0
    %8615 = vmatprep.subr.mxu0 0.0
    %8616 = vmatpush1.msra.mxu0 0.0
    %8617 = vmatprep.subr.mxu0 0.0
    %8618 = vmatpush1.msra.mxu0 0.0
    %8619 = vmatprep.subr.mxu0 0.0
    %8620 = vmatpush1.msra.mxu0 0.0
    %8621 = vmatprep.subr.mxu0 0.0
    %8622 = vmatpush1.msra.mxu0 0.0
    %8623 = vmatprep.subr.mxu0 0.0
    %8624 = vmatpush1.msra.mxu0 0.0
    %8625 = vmatprep.subr.mxu0 0.0
    %8626 = vmatpush1.msra.mxu0 0.0
    %8627 = vmatprep.subr.mxu0 0.0
    %8628 = vmatpush1.msra.mxu0 0.0
    %8629 = vmatprep.subr.mxu0 0.0
    %8630 = vmatpush1.msra.mxu0 0.0
    %8631 = vmatprep.subr.mxu0 0.0
    %8632 = vmatpush1.msra.mxu0 0.0
    %8633 = vmatprep.subr.mxu0 0.0
    %8634 = vmatpush1.msra.mxu0 0.0
    %8635 = vmatprep.subr.mxu0 0.0
    %8636 = vmatpush1.msra.mxu0 0.0
    %8637 = vmatprep.subr.mxu0 0.0
    %8638 = vmatpush1.msra.mxu0 0.0
    %8639 = vmatprep.subr.mxu0 0.0
    %8640 = vmatpush1.msra.mxu0 0.0
    %8641 = vmatprep.subr.mxu0 0.0
    %8642 = vmatpush1.msra.mxu0 %v8604
    %8643 = vmatprep.subr.mxu0 0.0
    %8644 = vmatpush1.msra.mxu0 %v8602
    %8645 = vmatprep.subr.mxu0 0.0
    %8646 = vmatpush2.msra.mxu0 0.0
    %8647 = vmatprep.subr.mxu0 0.0
    %8648 = vmatpush2.msra.mxu0 0.0
    %8649 = vmatprep.subr.mxu0 0.0
    %8650 = vmatpush2.msra.mxu0 0.0
    %8651 = vmatprep.subr.mxu0 0.0
    %8652 = vmatpush2.msra.mxu0 0.0
    %8653 = vmatprep.subr.mxu0 0.0
    %8654 = vmatpush2.msra.mxu0 0.0
    %8655 = vmatprep.subr.mxu0 0.0
    %8656 = vmatpush2.msra.mxu0 0.0
    %8657 = vmatprep.subr.mxu0 0.0
    %8658 = vmatpush2.msra.mxu0 0.0
    %8659 = vmatprep.subr.mxu0 0.0
    %8660 = vmatpush2.msra.mxu0 0.0
    %8661 = vmatprep.subr.mxu0 0.0
    %8662 = vmatpush2.msra.mxu0 0.0
    %8663 = vmatprep.subr.mxu0 0.0
    %8664 = vmatpush2.msra.mxu0 0.0
    %8665 = vmatprep.subr.mxu0 0.0
    %8666 = vmatpush2.msra.mxu0 0.0
    %8667 = vmatprep.subr.mxu0 0.0
    %8668 = vmatpush2.msra.mxu0 0.0
    %8669 = vmatprep.subr.mxu0 0.0
    %8670 = vmatpush2.msra.mxu0 0.0
    %8671 = vmatprep.subr.mxu0 0.0
    %8672 = vmatpush2.msra.mxu0 0.0
    %8673 = vmatprep.subr.mxu0 0.0
    %8674 = vmatpush2.msra.mxu0 0.0
    %8675 = vmatprep.subr.mxu0 0.0
    %8676 = vmatpush2.msra.mxu0 0.0
    %8677 = vmatprep.mubr.f32.mxu0 0.0
    %8678 = vmatmul.mubr.f32.gmra.mxu0 %v8608
    %v8679 = vpop.f32.mrf.mxu0
    %v8680 = vadd.f32 0.0, %v8679
    %v8681 = vpop.f32.mrf.mxu0
    %8682 = vmatprep.mubr.f32.mxu0 0.0
    %8683 = vmatmul.mubr.f32.gmra.mxu0 %v8611
    %v8684 = vpop.f32.mrf.mxu0
    %v8685 = vadd.f32 0.0, %v8684
    %v8686 = vpop.f32.mrf.mxu0
    %8687 = vdwg.mxu0
    %8690 = vrot.lane.b32.xlu0 %v8680, 32
    %v8691 = vpop.permute.xlu0 %8690
    %8692 = vrot.lane.b32.xlu0 %v8685, 32
    %v8693 = vpop.permute.xlu0 %8692
    %8696 = vst.msk [vmem:[#allocation3] sm:$0xff] %vm1820, %v8691
    %8697 = vst.msk [vmem:[#allocation3 + $0x8] sm:$0xff] %vm1820, %v8693
    %8698 = vrot.lane.b32.xlu0 %v7269, 88
    %v8699 = vpop.permute.xlu0 %8698
    %8700 = vrot.lane.b32.xlu0 %v7274, 88
    %v8701 = vpop.permute.xlu0 %8700
    %v8705 = vsel %vm484, %v8219, 0
    %v8708 = vsel %vm484, %v8220, 0
    %8710 = vmatprep.subr.mxu0 0.0
    %8711 = vmatpush1.msra.mxu0 0.0
    %8712 = vmatprep.subr.mxu0 0.0
    %8713 = vmatpush1.msra.mxu0 0.0
    %8714 = vmatprep.subr.mxu0 0.0
    %8715 = vmatpush1.msra.mxu0 0.0
    %8716 = vmatprep.subr.mxu0 0.0
    %8717 = vmatpush1.msra.mxu0 0.0
    %8718 = vmatprep.subr.mxu0 0.0
    %8719 = vmatpush1.msra.mxu0 0.0
    %8720 = vmatprep.subr.mxu0 0.0
    %8721 = vmatpush1.msra.mxu0 0.0
    %8722 = vmatprep.subr.mxu0 0.0
    %8723 = vmatpush1.msra.mxu0 0.0
    %8724 = vmatprep.subr.mxu0 0.0
    %8725 = vmatpush1.msra.mxu0 0.0
    %8726 = vmatprep.subr.mxu0 0.0
    %8727 = vmatpush1.msra.mxu0 0.0
    %8728 = vmatprep.subr.mxu0 0.0
    %8729 = vmatpush1.msra.mxu0 0.0
    %8730 = vmatprep.subr.mxu0 0.0
    %8731 = vmatpush1.msra.mxu0 0.0
    %8732 = vmatprep.subr.mxu0 0.0
    %8733 = vmatpush1.msra.mxu0 0.0
    %8734 = vmatprep.subr.mxu0 0.0
    %8735 = vmatpush1.msra.mxu0 0.0
    %8736 = vmatprep.subr.mxu0 0.0
    %8737 = vmatpush1.msra.mxu0 0.0
    %8738 = vmatprep.subr.mxu0 0.0
    %8739 = vmatpush1.msra.mxu0 %v8701
    %8740 = vmatprep.subr.mxu0 0.0
    %8741 = vmatpush1.msra.mxu0 %v8699
    %8742 = vmatprep.subr.mxu0 0.0
    %8743 = vmatpush2.msra.mxu0 0.0
    %8744 = vmatprep.subr.mxu0 0.0
    %8745 = vmatpush2.msra.mxu0 0.0
    %8746 = vmatprep.subr.mxu0 0.0
    %8747 = vmatpush2.msra.mxu0 0.0
    %8748 = vmatprep.subr.mxu0 0.0
    %8749 = vmatpush2.msra.mxu0 0.0
    %8750 = vmatprep.subr.mxu0 0.0
    %8751 = vmatpush2.msra.mxu0 0.0
    %8752 = vmatprep.subr.mxu0 0.0
    %8753 = vmatpush2.msra.mxu0 0.0
    %8754 = vmatprep.subr.mxu0 0.0
    %8755 = vmatpush2.msra.mxu0 0.0
    %8756 = vmatprep.subr.mxu0 0.0
    %8757 = vmatpush2.msra.mxu0 0.0
    %8758 = vmatprep.subr.mxu0 0.0
    %8759 = vmatpush2.msra.mxu0 0.0
    %8760 = vmatprep.subr.mxu0 0.0
    %8761 = vmatpush2.msra.mxu0 0.0
    %8762 = vmatprep.subr.mxu0 0.0
    %8763 = vmatpush2.msra.mxu0 0.0
    %8764 = vmatprep.subr.mxu0 0.0
    %8765 = vmatpush2.msra.mxu0 0.0
    %8766 = vmatprep.subr.mxu0 0.0
    %8767 = vmatpush2.msra.mxu0 0.0
    %8768 = vmatprep.subr.mxu0 0.0
    %8769 = vmatpush2.msra.mxu0 0.0
    %8770 = vmatprep.subr.mxu0 0.0
    %8771 = vmatpush2.msra.mxu0 0.0
    %8772 = vmatprep.subr.mxu0 0.0
    %8773 = vmatpush2.msra.mxu0 0.0
    %8774 = vmatprep.mubr.f32.mxu0 0.0
    %8775 = vmatmul.mubr.f32.gmra.mxu0 %v8705
    %v8776 = vpop.f32.mrf.mxu0
    %v8777 = vadd.f32 0.0, %v8776
    %v8778 = vpop.f32.mrf.mxu0
    %8779 = vmatprep.mubr.f32.mxu0 0.0
    %8780 = vmatmul.mubr.f32.gmra.mxu0 %v8708
    %v8781 = vpop.f32.mrf.mxu0
    %v8782 = vadd.f32 0.0, %v8781
    %v8783 = vpop.f32.mrf.mxu0
    %8784 = vdwg.mxu0
    %8787 = vrot.lane.b32.xlu0 %v8777, 40
    %v8788 = vpop.permute.xlu0 %8787
    %8789 = vrot.lane.b32.xlu0 %v8782, 40
    %v8790 = vpop.permute.xlu0 %8789
    %8793 = vst.msk [vmem:[#allocation3] sm:$0xff] %vm1918, %v8788
    %8794 = vst.msk [vmem:[#allocation3 + $0x8] sm:$0xff] %vm1918, %v8790
    %8795 = vrot.lane.b32.xlu0 %v7269, 80
    %v8796 = vpop.permute.xlu0 %8795
    %8797 = vrot.lane.b32.xlu0 %v7274, 80
    %v8798 = vpop.permute.xlu0 %8797
    %v8802 = vsel %vm484, %v8221, 0
    %v8805 = vsel %vm484, %v8222, 0
    %8807 = vmatprep.subr.mxu0 0.0
    %8808 = vmatpush1.msra.mxu0 0.0
    %8809 = vmatprep.subr.mxu0 0.0
    %8810 = vmatpush1.msra.mxu0 0.0
    %8811 = vmatprep.subr.mxu0 0.0
    %8812 = vmatpush1.msra.mxu0 0.0
    %8813 = vmatprep.subr.mxu0 0.0
    %8814 = vmatpush1.msra.mxu0 0.0
    %8815 = vmatprep.subr.mxu0 0.0
    %8816 = vmatpush1.msra.mxu0 0.0
    %8817 = vmatprep.subr.mxu0 0.0
    %8818 = vmatpush1.msra.mxu0 0.0
    %8819 = vmatprep.subr.mxu0 0.0
    %8820 = vmatpush1.msra.mxu0 0.0
    %8821 = vmatprep.subr.mxu0 0.0
    %8822 = vmatpush1.msra.mxu0 0.0
    %8823 = vmatprep.subr.mxu0 0.0
    %8824 = vmatpush1.msra.mxu0 0.0
    %8825 = vmatprep.subr.mxu0 0.0
    %8826 = vmatpush1.msra.mxu0 0.0
    %8827 = vmatprep.subr.mxu0 0.0
    %8828 = vmatpush1.msra.mxu0 0.0
    %8829 = vmatprep.subr.mxu0 0.0
    %8830 = vmatpush1.msra.mxu0 0.0
    %8831 = vmatprep.subr.mxu0 0.0
    %8832 = vmatpush1.msra.mxu0 0.0
    %8833 = vmatprep.subr.mxu0 0.0
    %8834 = vmatpush1.msra.mxu0 0.0
    %8835 = vmatprep.subr.mxu0 0.0
    %8836 = vmatpush1.msra.mxu0 %v8798
    %8837 = vmatprep.subr.mxu0 0.0
    %8838 = vmatpush1.msra.mxu0 %v8796
    %8839 = vmatprep.subr.mxu0 0.0
    %8840 = vmatpush2.msra.mxu0 0.0
    %8841 = vmatprep.subr.mxu0 0.0
    %8842 = vmatpush2.msra.mxu0 0.0
    %8843 = vmatprep.subr.mxu0 0.0
    %8844 = vmatpush2.msra.mxu0 0.0
    %8845 = vmatprep.subr.mxu0 0.0
    %8846 = vmatpush2.msra.mxu0 0.0
    %8847 = vmatprep.subr.mxu0 0.0
    %8848 = vmatpush2.msra.mxu0 0.0
    %8849 = vmatprep.subr.mxu0 0.0
    %8850 = vmatpush2.msra.mxu0 0.0
    %8851 = vmatprep.subr.mxu0 0.0
    %8852 = vmatpush2.msra.mxu0 0.0
    %8853 = vmatprep.subr.mxu0 0.0
    %8854 = vmatpush2.msra.mxu0 0.0
    %8855 = vmatprep.subr.mxu0 0.0
    %8856 = vmatpush2.msra.mxu0 0.0
    %8857 = vmatprep.subr.mxu0 0.0
    %8858 = vmatpush2.msra.mxu0 0.0
    %8859 = vmatprep.subr.mxu0 0.0
    %8860 = vmatpush2.msra.mxu0 0.0
    %8861 = vmatprep.subr.mxu0 0.0
    %8862 = vmatpush2.msra.mxu0 0.0
    %8863 = vmatprep.subr.mxu0 0.0
    %8864 = vmatpush2.msra.mxu0 0.0
    %8865 = vmatprep.subr.mxu0 0.0
    %8866 = vmatpush2.msra.mxu0 0.0
    %8867 = vmatprep.subr.mxu0 0.0
    %8868 = vmatpush2.msra.mxu0 0.0
    %8869 = vmatprep.subr.mxu0 0.0
    %8870 = vmatpush2.msra.mxu0 0.0
    %8871 = vmatprep.mubr.f32.mxu0 0.0
    %8872 = vmatmul.mubr.f32.gmra.mxu0 %v8802
    %v8873 = vpop.f32.mrf.mxu0
    %v8874 = vadd.f32 0.0, %v8873
    %v8875 = vpop.f32.mrf.mxu0
    %8876 = vmatprep.mubr.f32.mxu0 0.0
    %8877 = vmatmul.mubr.f32.gmra.mxu0 %v8805
    %v8878 = vpop.f32.mrf.mxu0
    %v8879 = vadd.f32 0.0, %v8878
    %v8880 = vpop.f32.mrf.mxu0
    %8881 = vdwg.mxu0
    %8884 = vrot.lane.b32.xlu0 %v8874, 48
    %v8885 = vpop.permute.xlu0 %8884
    %8886 = vrot.lane.b32.xlu0 %v8879, 48
    %v8887 = vpop.permute.xlu0 %8886
    %8890 = vst.msk [vmem:[#allocation3] sm:$0xff] %vm2016, %v8885
    %8891 = vst.msk [vmem:[#allocation3 + $0x8] sm:$0xff] %vm2016, %v8887
    %8892 = vrot.lane.b32.xlu0 %v7269, 72
    %v8893 = vpop.permute.xlu0 %8892
    %8894 = vrot.lane.b32.xlu0 %v7274, 72
    %v8895 = vpop.permute.xlu0 %8894
    %v8899 = vsel %vm484, %v8223, 0
    %v8902 = vsel %vm484, %v8224, 0
    %8904 = vmatprep.subr.mxu0 0.0
    %8905 = vmatpush1.msra.mxu0 0.0
    %8906 = vmatprep.subr.mxu0 0.0
    %8907 = vmatpush1.msra.mxu0 0.0
    %8908 = vmatprep.subr.mxu0 0.0
    %8909 = vmatpush1.msra.mxu0 0.0
    %8910 = vmatprep.subr.mxu0 0.0
    %8911 = vmatpush1.msra.mxu0 0.0
    %8912 = vmatprep.subr.mxu0 0.0
    %8913 = vmatpush1.msra.mxu0 0.0
    %8914 = vmatprep.subr.mxu0 0.0
    %8915 = vmatpush1.msra.mxu0 0.0
    %8916 = vmatprep.subr.mxu0 0.0
    %8917 = vmatpush1.msra.mxu0 0.0
    %8918 = vmatprep.subr.mxu0 0.0
    %8919 = vmatpush1.msra.mxu0 0.0
    %8920 = vmatprep.subr.mxu0 0.0
    %8921 = vmatpush1.msra.mxu0 0.0
    %8922 = vmatprep.subr.mxu0 0.0
    %8923 = vmatpush1.msra.mxu0 0.0
    %8924 = vmatprep.subr.mxu0 0.0
    %8925 = vmatpush1.msra.mxu0 0.0
    %8926 = vmatprep.subr.mxu0 0.0
    %8927 = vmatpush1.msra.mxu0 0.0
    %8928 = vmatprep.subr.mxu0 0.0
    %8929 = vmatpush1.msra.mxu0 0.0
    %8930 = vmatprep.subr.mxu0 0.0
    %8931 = vmatpush1.msra.mxu0 0.0
    %8932 = vmatprep.subr.mxu0 0.0
    %8933 = vmatpush1.msra.mxu0 %v8895
    %8934 = vmatprep.subr.mxu0 0.0
    %8935 = vmatpush1.msra.mxu0 %v8893
    %8936 = vmatprep.subr.mxu0 0.0
    %8937 = vmatpush2.msra.mxu0 0.0
    %8938 = vmatprep.subr.mxu0 0.0
    %8939 = vmatpush2.msra.mxu0 0.0
    %8940 = vmatprep.subr.mxu0 0.0
    %8941 = vmatpush2.msra.mxu0 0.0
    %8942 = vmatprep.subr.mxu0 0.0
    %8943 = vmatpush2.msra.mxu0 0.0
    %8944 = vmatprep.subr.mxu0 0.0
    %8945 = vmatpush2.msra.mxu0 0.0
    %8946 = vmatprep.subr.mxu0 0.0
    %8947 = vmatpush2.msra.mxu0 0.0
    %8948 = vmatprep.subr.mxu0 0.0
    %8949 = vmatpush2.msra.mxu0 0.0
    %8950 = vmatprep.subr.mxu0 0.0
    %8951 = vmatpush2.msra.mxu0 0.0
    %8952 = vmatprep.subr.mxu0 0.0
    %8953 = vmatpush2.msra.mxu0 0.0
    %8954 = vmatprep.subr.mxu0 0.0
    %8955 = vmatpush2.msra.mxu0 0.0
    %8956 = vmatprep.subr.mxu0 0.0
    %8957 = vmatpush2.msra.mxu0 0.0
    %8958 = vmatprep.subr.mxu0 0.0
    %8959 = vmatpush2.msra.mxu0 0.0
    %8960 = vmatprep.subr.mxu0 0.0
    %8961 = vmatpush2.msra.mxu0 0.0
    %8962 = vmatprep.subr.mxu0 0.0
    %8963 = vmatpush2.msra.mxu0 0.0
    %8964 = vmatprep.subr.mxu0 0.0
    %8965 = vmatpush2.msra.mxu0 0.0
    %8966 = vmatprep.subr.mxu0 0.0
    %8967 = vmatpush2.msra.mxu0 0.0
    %8968 = vmatprep.mubr.f32.mxu0 0.0
    %8969 = vmatmul.mubr.f32.gmra.mxu0 %v8899
    %v8970 = vpop.f32.mrf.mxu0
    %v8971 = vadd.f32 0.0, %v8970
    %v8972 = vpop.f32.mrf.mxu0
    %8973 = vmatprep.mubr.f32.mxu0 0.0
    %8974 = vmatmul.mubr.f32.gmra.mxu0 %v8902
    %v8975 = vpop.f32.mrf.mxu0
    %v8976 = vadd.f32 0.0, %v8975
    %v8977 = vpop.f32.mrf.mxu0
    %8978 = vdwg.mxu0
    %8981 = vrot.lane.b32.xlu0 %v8971, 56
    %v8982 = vpop.permute.xlu0 %8981
    %8983 = vrot.lane.b32.xlu0 %v8976, 56
    %v8984 = vpop.permute.xlu0 %8983
    %8987 = vst.msk [vmem:[#allocation3] sm:$0xff] %vm2114, %v8982
    %8988 = vst.msk [vmem:[#allocation3 + $0x8] sm:$0xff] %vm2114, %v8984
    %v8989 = vlaneseq
    %v8990 = vshrl.u32 %v8989, 7
    %v8991 = vsub.s32 6, %v8990
    %v8992 = vrot.slane %v7066, %v8991
    %v8993 = vadd.f32 %v7008, %v8992
    %v8994 = vadd.f32 %v7009, %v8992
    %v8995 = vld [vmem:[#allocation3] sm:$0xff]
    %v8996 = vld [vmem:[#allocation3 + $0x8] sm:$0xff]
    %v8998 = vsel %vm2125, %v8995, 0
    %v9001 = vsel %vm2125, %v8996, 0
    %9003 = vmatprep.subr.mxu0 0.0
    %9004 = vmatpush1.msra.mxu0 0.0
    %9005 = vmatprep.subr.mxu0 0.0
    %9006 = vmatpush1.msra.mxu0 0.0
    %9007 = vmatprep.subr.mxu0 0.0
    %9008 = vmatpush1.msra.mxu0 0.0
    %9009 = vmatprep.subr.mxu0 0.0
    %9010 = vmatpush1.msra.mxu0 0.0
    %9011 = vmatprep.subr.mxu0 0.0
    %9012 = vmatpush1.msra.mxu0 0.0
    %9013 = vmatprep.subr.mxu0 0.0
    %9014 = vmatpush1.msra.mxu0 0.0
    %9015 = vmatprep.subr.mxu0 0.0
    %9016 = vmatpush1.msra.mxu0 0.0
    %9017 = vmatprep.subr.mxu0 0.0
    %9018 = vmatpush1.msra.mxu0 0.0
    %9019 = vmatprep.subr.mxu0 0.0
    %9020 = vmatpush1.msra.mxu0 %v7044
    %9021 = vmatprep.subr.mxu0 0.0
    %9022 = vmatpush1.msra.mxu0 %v7043
    %9023 = vmatprep.subr.mxu0 0.0
    %9024 = vmatpush1.msra.mxu0 %v7042
    %9025 = vmatprep.subr.mxu0 0.0
    %9026 = vmatpush1.msra.mxu0 %v7041
    %9027 = vmatprep.subr.mxu0 0.0
    %9028 = vmatpush1.msra.mxu0 %v7040
    %9029 = vmatprep.subr.mxu0 0.0
    %9030 = vmatpush1.msra.mxu0 %v7039
    %9031 = vmatprep.subr.mxu0 0.0
    %9032 = vmatpush1.msra.mxu0 %v7038
    %9033 = vmatprep.subr.mxu0 0.0
    %9034 = vmatpush1.msra.mxu0 %v7037
    %9035 = vmatprep.subr.mxu0 0.0
    %9036 = vmatpush2.msra.mxu0 0.0
    %9037 = vmatprep.subr.mxu0 0.0
    %9038 = vmatpush2.msra.mxu0 0.0
    %9039 = vmatprep.subr.mxu0 0.0
    %9040 = vmatpush2.msra.mxu0 0.0
    %9041 = vmatprep.subr.mxu0 0.0
    %9042 = vmatpush2.msra.mxu0 0.0
    %9043 = vmatprep.subr.mxu0 0.0
    %9044 = vmatpush2.msra.mxu0 0.0
    %9045 = vmatprep.subr.mxu0 0.0
    %9046 = vmatpush2.msra.mxu0 0.0
    %9047 = vmatprep.subr.mxu0 0.0
    %9048 = vmatpush2.msra.mxu0 0.0
    %9049 = vmatprep.subr.mxu0 0.0
    %9050 = vmatpush2.msra.mxu0 0.0
    %9051 = vmatprep.subr.mxu0 0.0
    %9052 = vmatpush2.msra.mxu0 0.0
    %9053 = vmatprep.subr.mxu0 0.0
    %9054 = vmatpush2.msra.mxu0 0.0
    %9055 = vmatprep.subr.mxu0 0.0
    %9056 = vmatpush2.msra.mxu0 0.0
    %9057 = vmatprep.subr.mxu0 0.0
    %9058 = vmatpush2.msra.mxu0 0.0
    %9059 = vmatprep.subr.mxu0 0.0
    %9060 = vmatpush2.msra.mxu0 0.0
    %9061 = vmatprep.subr.mxu0 0.0
    %9062 = vmatpush2.msra.mxu0 0.0
    %9063 = vmatprep.subr.mxu0 0.0
    %9064 = vmatpush2.msra.mxu0 0.0
    %9065 = vmatprep.subr.mxu0 0.0
    %9066 = vmatpush2.msra.mxu0 0.0
    %9067 = vmatprep.mubr.f32.mxu0 0.0
    %9068 = vmatmul.mubr.f32.gmra.mxu0 %v8998
    %v9069 = vpop.f32.mrf.mxu0
    %v9070 = vadd.f32 0.0, %v9069
    %v9071 = vpop.f32.mrf.mxu0
    %9072 = vmatprep.mubr.f32.mxu0 0.0
    %9073 = vmatmul.mubr.f32.gmra.mxu0 %v9001
    %v9074 = vpop.f32.mrf.mxu0
    %v9075 = vadd.f32 0.0, %v9074
    %v9076 = vpop.f32.mrf.mxu0
    %9077 = vdwg.mxu0
    %v9078 = vadd.f32 %v8993, %v9070
    %v9079 = vadd.f32 %v8994, %v9075
    %v9080 = vsel %vm186, %v9078, 0.0
    %9081 = vadd.xlane.f32.xlu0 %v9080
    %v9082 = vpop.xlane.xlu0 %9081
    %v9083 = vsel %vm186, %v9079, 0.0
    %9084 = vadd.xlane.f32.xlu0 %v9083
    %v9085 = vpop.xlane.xlu0 %9084
    %v9086 = vmul.f32 %v9082, %v193
    %v9087 = vmul.f32 %v9085, %v193
    %v9088 = vsub.f32 %v9078, %v9086
    %v9089 = vsub.f32 %v9079, %v9087
    %v9090 = vmul.f32 %v9088, %v9088
    %v9091 = vmul.f32 %v9089, %v9089
    %v9092 = vsel %vm186, %v9090, 0.0
    %9093 = vadd.xlane.f32.xlu0 %v9092
    %v9094 = vpop.xlane.xlu0 %9093
    %v9095 = vsel %vm186, %v9091, 0.0
    %9096 = vadd.xlane.f32.xlu0 %v9095
    %v9097 = vpop.xlane.xlu0 %9096
    %v9098 = vmul.f32 %v9094, %v193
    %v9099 = vmul.f32 %v9097, %v193
    %v9100 = vadd.f32 %v9098, 1e-05
    %v9101 = vadd.f32 %v9099, 1e-05
    %v9102 = vrsqrt.pop %v9100
    %v9103 = vrsqrt.pop %v9101
    %v9104 = vmul.f32 %v9088, %v9102
    %v9105 = vmul.f32 %v9089, %v9103
    %v9106 = vlaneseq
    %v9107 = vshrl.u32 %v9106, 7
    %v9108 = vsub.s32 4, %v9107
    %v9109 = vrot.slane %v7066, %v9108
    %v9110 = vmul.f32 %v9104, %v9109
    %v9111 = vmul.f32 %v9105, %v9109
    %v9112 = vlaneseq
    %v9113 = vshrl.u32 %v9112, 7
    %v9114 = vsub.s32 5, %v9113
    %v9115 = vrot.slane %v7066, %v9114
    %v9116 = vadd.f32 %v9110, %v9115
    %v9117 = vadd.f32 %v9111, %v9115
    %v9118 = vlaneseq
    %v9119 = vshrl.u32 %v9118, 7
    %v9120 = vsub.s32 1, %v9119
    %v9121 = vrot.slane %v7066, %v9120
    %v9122 = vlaneseq
    %v9123 = vshrl.u32 %v9122, 7
    %v9124 = vsub.s32 1, %v9123
    %v9125 = vrot.slane %v7067, %v9124
    %v9127 = vsel %vm186, %v9116, 0
    %v9130 = vsel %vm186, %v9117, 0
    %9132 = vmatprep.subr.mxu0 0.0
    %9133 = vmatpush1.msra.mxu0 0.0
    %9134 = vmatprep.subr.mxu0 0.0
    %9135 = vmatpush1.msra.mxu0 0.0
    %9136 = vmatprep.subr.mxu0 0.0
    %9137 = vmatpush1.msra.mxu0 0.0
    %9138 = vmatprep.subr.mxu0 0.0
    %9139 = vmatpush1.msra.mxu0 0.0
    %9140 = vmatprep.subr.mxu0 0.0
    %9141 = vmatpush1.msra.mxu0 0.0
    %9142 = vmatprep.subr.mxu0 0.0
    %9143 = vmatpush1.msra.mxu0 0.0
    %9144 = vmatprep.subr.mxu0 0.0
    %9145 = vmatpush1.msra.mxu0 0.0
    %9146 = vmatprep.subr.mxu0 0.0
    %9147 = vmatpush1.msra.mxu0 0.0
    %9148 = vmatprep.subr.mxu0 0.0
    %9149 = vmatpush1.msra.mxu0 0.0
    %9150 = vmatprep.subr.mxu0 0.0
    %9151 = vmatpush1.msra.mxu0 0.0
    %9152 = vmatprep.subr.mxu0 0.0
    %9153 = vmatpush1.msra.mxu0 0.0
    %9154 = vmatprep.subr.mxu0 %v7035
    %9155 = vmatpush1.msra.mxu0 %v7034
    %9156 = vmatprep.subr.mxu0 %v7033
    %9157 = vmatpush1.msra.mxu0 %v7032
    %9158 = vmatprep.subr.mxu0 %v7031
    %9159 = vmatpush1.msra.mxu0 %v7030
    %9160 = vmatprep.subr.mxu0 %v7029
    %9161 = vmatpush1.msra.mxu0 %v7028
    %9162 = vmatprep.subr.mxu0 %v7027
    %9163 = vmatpush1.msra.mxu0 %v7026
    %9164 = vmatprep.subr.mxu0 0.0
    %9165 = vmatpush2.msra.mxu0 0.0
    %9166 = vmatprep.subr.mxu0 0.0
    %9167 = vmatpush2.msra.mxu0 0.0
    %9168 = vmatprep.subr.mxu0 0.0
    %9169 = vmatpush2.msra.mxu0 0.0
    %9170 = vmatprep.subr.mxu0 0.0
    %9171 = vmatpush2.msra.mxu0 0.0
    %9172 = vmatprep.subr.mxu0 0.0
    %9173 = vmatpush2.msra.mxu0 0.0
    %9174 = vmatprep.subr.mxu0 0.0
    %9175 = vmatpush2.msra.mxu0 0.0
    %9176 = vmatprep.subr.mxu0 0.0
    %9177 = vmatpush2.msra.mxu0 0.0
    %9178 = vmatprep.subr.mxu0 0.0
    %9179 = vmatpush2.msra.mxu0 0.0
    %9180 = vmatprep.subr.mxu0 0.0
    %9181 = vmatpush2.msra.mxu0 0.0
    %9182 = vmatprep.subr.mxu0 0.0
    %9183 = vmatpush2.msra.mxu0 0.0
    %9184 = vmatprep.subr.mxu0 0.0
    %9185 = vmatpush2.msra.mxu0 0.0
    %9186 = vmatprep.subr.mxu0 0.0
    %9187 = vmatpush2.msra.mxu0 0.0
    %9188 = vmatprep.subr.mxu0 0.0
    %9189 = vmatpush2.msra.mxu0 0.0
    %9190 = vmatprep.subr.mxu0 0.0
    %9191 = vmatpush2.msra.mxu0 0.0
    %9192 = vmatprep.subr.mxu0 0.0
    %9193 = vmatpush2.msra.mxu0 0.0
    %9194 = vmatprep.subr.mxu0 0.0
    %9195 = vmatpush2.msra.mxu0 0.0
    %9196 = vmatprep.mubr.f32.mxu0 0.0
    %9197 = vmatmul.mubr.f32.gmra.mxu0 %v9127
    %v9198 = vpop.f32.mrf.mxu0
    %v9199 = vadd.f32 %v9121, %v9198
    %v9200 = vpop.f32.mrf.mxu0
    %v9201 = vadd.f32 %v9125, %v9200
    %9202 = vmatprep.mubr.f32.mxu0 0.0
    %9203 = vmatmul.mubr.f32.gmra.mxu0 %v9130
    %v9204 = vpop.f32.mrf.mxu0
    %v9205 = vadd.f32 %v9121, %v9204
    %v9206 = vpop.f32.mrf.mxu0
    %v9207 = vadd.f32 %v9125, %v9206
    %9208 = vdwg.mxu0
    %v9209 = vmax.f32 %v9199, 0.0
    %v9210 = vmax.f32 %v9201, 0.0
    %v9211 = vmax.f32 %v9205, 0.0
    %v9212 = vmax.f32 %v9207, 0.0
    %v9213 = vlaneseq
    %v9214 = vshrl.u32 %v9213, 7
    %v9215 = vsub.s32 7, %v9214
    %v9216 = vrot.slane %v7066, %v9215
    %v9218 = vsel %vm2346, %v9210, 0
    %v9221 = vsel %vm2346, %v9212, 0
    %9223 = vmatprep.subr.mxu0 0.0
    %9224 = vmatpush1.msra.mxu0 %v7060
    %9225 = vmatprep.subr.mxu0 0.0
    %9226 = vmatpush1.msra.mxu0 %v7059
    %9227 = vmatprep.subr.mxu0 0.0
    %9228 = vmatpush1.msra.mxu0 %v7058
    %9229 = vmatprep.subr.mxu0 0.0
    %9230 = vmatpush1.msra.mxu0 %v7057
    %9231 = vmatprep.subr.mxu0 0.0
    %9232 = vmatpush1.msra.mxu0 %v7056
    %9233 = vmatprep.subr.mxu0 0.0
    %9234 = vmatpush1.msra.mxu0 %v7055
    %9235 = vmatprep.subr.mxu0 0.0
    %9236 = vmatpush1.msra.mxu0 %v7054
    %9237 = vmatprep.subr.mxu0 0.0
    %9238 = vmatpush1.msra.mxu0 %v7053
    %9239 = vmatprep.subr.mxu0 0.0
    %9240 = vmatpush1.msra.mxu0 %v7052
    %9241 = vmatprep.subr.mxu0 0.0
    %9242 = vmatpush1.msra.mxu0 %v7051
    %9243 = vmatprep.subr.mxu0 0.0
    %9244 = vmatpush1.msra.mxu0 %v7050
    %9245 = vmatprep.subr.mxu0 0.0
    %9246 = vmatpush1.msra.mxu0 %v7049
    %9247 = vmatprep.subr.mxu0 0.0
    %9248 = vmatpush1.msra.mxu0 %v7048
    %9249 = vmatprep.subr.mxu0 0.0
    %9250 = vmatpush1.msra.mxu0 %v7047
    %9251 = vmatprep.subr.mxu0 0.0
    %9252 = vmatpush1.msra.mxu0 %v7046
    %9253 = vmatprep.subr.mxu0 0.0
    %9254 = vmatpush1.msra.mxu0 %v7045
    %9255 = vmatprep.subr.mxu0 0.0
    %9256 = vmatpush2.msra.mxu0 0.0
    %9257 = vmatprep.subr.mxu0 0.0
    %9258 = vmatpush2.msra.mxu0 0.0
    %9259 = vmatprep.subr.mxu0 0.0
    %9260 = vmatpush2.msra.mxu0 0.0
    %9261 = vmatprep.subr.mxu0 0.0
    %9262 = vmatpush2.msra.mxu0 0.0
    %9263 = vmatprep.subr.mxu0 0.0
    %9264 = vmatpush2.msra.mxu0 0.0
    %9265 = vmatprep.subr.mxu0 0.0
    %9266 = vmatpush2.msra.mxu0 0.0
    %9267 = vmatprep.subr.mxu0 0.0
    %9268 = vmatpush2.msra.mxu0 0.0
    %9269 = vmatprep.subr.mxu0 0.0
    %9270 = vmatpush2.msra.mxu0 0.0
    %9271 = vmatprep.subr.mxu0 0.0
    %9272 = vmatpush2.msra.mxu0 0.0
    %9273 = vmatprep.subr.mxu0 0.0
    %9274 = vmatpush2.msra.mxu0 0.0
    %9275 = vmatprep.subr.mxu0 0.0
    %9276 = vmatpush2.msra.mxu0 0.0
    %9277 = vmatprep.subr.mxu0 0.0
    %9278 = vmatpush2.msra.mxu0 0.0
    %9279 = vmatprep.subr.mxu0 0.0
    %9280 = vmatpush2.msra.mxu0 %v7064
    %9281 = vmatprep.subr.mxu0 0.0
    %9282 = vmatpush2.msra.mxu0 %v7063
    %9283 = vmatprep.subr.mxu0 0.0
    %9284 = vmatpush2.msra.mxu0 %v7062
    %9285 = vmatprep.subr.mxu0 0.0
    %9286 = vmatpush2.msra.mxu0 %v7061
    %9287 = vmatprep.mubr.f32.mxu0 %v9218
    %9288 = vmatmul.mubr.f32.gmra.mxu0 %v9209
    %v9289 = vpop.f32.mrf.mxu0
    %v9290 = vadd.f32 %v9216, %v9289
    %v9291 = vpop.f32.mrf.mxu0
    %9292 = vmatprep.mubr.f32.mxu0 %v9221
    %9293 = vmatmul.mubr.f32.gmra.mxu0 %v9211
    %v9294 = vpop.f32.mrf.mxu0
    %v9295 = vadd.f32 %v9216, %v9294
    %v9296 = vpop.f32.mrf.mxu0
    %9297 = vdwg.mxu0
    %v9298 = vadd.f32 %v9290, %v9078
    %v9299 = vadd.f32 %v9295, %v9079
    %v9300 = vld [vmem:[%s4 + $0xa0] sm:$0x1]
    %v9301 = vld [vmem:[%s4 + $0xa8] sm:$0x1]
    %v9302 = vsel %vm186, %v9298, 0.0
    %9303 = vadd.xlane.f32.xlu0 %v9302
    %v9304 = vpop.xlane.xlu0 %9303
    %v9305 = vsel %vm186, %v9299, 0.0
    %9306 = vadd.xlane.f32.xlu0 %v9305
    %v9307 = vpop.xlane.xlu0 %9306
    %v9308 = vmul.f32 %v9304, %v193
    %v9309 = vmul.f32 %v9307, %v193
    %v9310 = vsub.f32 %v9298, %v9308
    %v9311 = vsub.f32 %v9299, %v9309
    %v9312 = vmul.f32 %v9310, %v9310
    %v9313 = vmul.f32 %v9311, %v9311
    %v9314 = vsel %vm186, %v9312, 0.0
    %9315 = vadd.xlane.f32.xlu0 %v9314
    %v9316 = vpop.xlane.xlu0 %9315
    %v9317 = vsel %vm186, %v9313, 0.0
    %9318 = vadd.xlane.f32.xlu0 %v9317
    %v9319 = vpop.xlane.xlu0 %9318
    %v9320 = vmul.f32 %v9316, %v193
    %v9321 = vmul.f32 %v9319, %v193
    %v9322 = vadd.f32 %v9320, 1e-05
    %v9323 = vadd.f32 %v9321, 1e-05
    %v9324 = vrsqrt.pop %v9322
    %v9325 = vrsqrt.pop %v9323
    %v9326 = vmul.f32 %v9310, %v9324
    %v9327 = vmul.f32 %v9311, %v9325
    %v9328 = vlaneseq
    %v9329 = vshrl.u32 %v9328, 7
    %v9330 = vsub.s32 0, %v9329
    %v9331 = vrot.slane %v9300, %v9330
    %v9332 = vmul.f32 %v9326, %v9331
    %v9333 = vmul.f32 %v9327, %v9331
    %v9334 = vlaneseq
    %v9335 = vshrl.u32 %v9334, 7
    %v9336 = vsub.s32 0, %v9335
    %v9337 = vrot.slane %v9301, %v9336
    %v9338 = vadd.f32 %v9332, %v9337
    %v9339 = vadd.f32 %v9333, %v9337
    %v9340 = vld [vmem:[%s4 + $0x28] sm:$0xff]
    %v9341 = vld [vmem:[%s4 + $0x30] sm:$0xff]
    %v9342 = vld [vmem:[%s4 + $0x38] sm:$0xff]
    %v9343 = vld [vmem:[%s4 + $0x40] sm:$0xff]
    %v9344 = vld [vmem:[%s4 + $0x48] sm:$0xff]
    %v9345 = vld [vmem:[%s4 + $0xb0] sm:$0x1]
    %v9346 = vlaneseq
    %v9347 = vshrl.u32 %v9346, 7
    %v9348 = vsub.s32 0, %v9347
    %v9349 = vrot.slane %v9345, %v9348
    %v9351 = vsel %vm186, %v9338, 0
    %v9354 = vsel %vm186, %v9339, 0
    %9356 = vmatprep.subr.mxu0 0.0
    %9357 = vmatpush1.msra.mxu0 0.0
    %9358 = vmatprep.subr.mxu0 0.0
    %9359 = vmatpush1.msra.mxu0 0.0
    %9360 = vmatprep.subr.mxu0 0.0
    %9361 = vmatpush1.msra.mxu0 0.0
    %9362 = vmatprep.subr.mxu0 0.0
    %9363 = vmatpush1.msra.mxu0 0.0
    %9364 = vmatprep.subr.mxu0 0.0
    %9365 = vmatpush1.msra.mxu0 0.0
    %9366 = vmatprep.subr.mxu0 0.0
    %9367 = vmatpush1.msra.mxu0 0.0
    %9368 = vmatprep.subr.mxu0 0.0
    %9369 = vmatpush1.msra.mxu0 0.0
    %9370 = vmatprep.subr.mxu0 0.0
    %9371 = vmatpush1.msra.mxu0 0.0
    %9372 = vmatprep.subr.mxu0 0.0
    %9373 = vmatpush1.msra.mxu0 0.0
    %9374 = vmatprep.subr.mxu0 0.0
    %9375 = vmatpush1.msra.mxu0 0.0
    %9376 = vmatprep.subr.mxu0 0.0
    %9377 = vmatpush1.msra.mxu0 0.0
    %9378 = vmatprep.subr.mxu0 0.0
    %9379 = vmatpush1.msra.mxu0 %v9344
    %9380 = vmatprep.subr.mxu0 0.0
    %9381 = vmatpush1.msra.mxu0 %v9343
    %9382 = vmatprep.subr.mxu0 0.0
    %9383 = vmatpush1.msra.mxu0 %v9342
    %9384 = vmatprep.subr.mxu0 0.0
    %9385 = vmatpush1.msra.mxu0 %v9341
    %9386 = vmatprep.subr.mxu0 0.0
    %9387 = vmatpush1.msra.mxu0 %v9340
    %9388 = vmatprep.subr.mxu0 0.0
    %9389 = vmatpush2.msra.mxu0 0.0
    %9390 = vmatprep.subr.mxu0 0.0
    %9391 = vmatpush2.msra.mxu0 0.0
    %9392 = vmatprep.subr.mxu0 0.0
    %9393 = vmatpush2.msra.mxu0 0.0
    %9394 = vmatprep.subr.mxu0 0.0
    %9395 = vmatpush2.msra.mxu0 0.0
    %9396 = vmatprep.subr.mxu0 0.0
    %9397 = vmatpush2.msra.mxu0 0.0
    %9398 = vmatprep.subr.mxu0 0.0
    %9399 = vmatpush2.msra.mxu0 0.0
    %9400 = vmatprep.subr.mxu0 0.0
    %9401 = vmatpush2.msra.mxu0 0.0
    %9402 = vmatprep.subr.mxu0 0.0
    %9403 = vmatpush2.msra.mxu0 0.0
    %9404 = vmatprep.subr.mxu0 0.0
    %9405 = vmatpush2.msra.mxu0 0.0
    %9406 = vmatprep.subr.mxu0 0.0
    %9407 = vmatpush2.msra.mxu0 0.0
    %9408 = vmatprep.subr.mxu0 0.0
    %9409 = vmatpush2.msra.mxu0 0.0
    %9410 = vmatprep.subr.mxu0 0.0
    %9411 = vmatpush2.msra.mxu0 0.0
    %9412 = vmatprep.subr.mxu0 0.0
    %9413 = vmatpush2.msra.mxu0 0.0
    %9414 = vmatprep.subr.mxu0 0.0
    %9415 = vmatpush2.msra.mxu0 0.0
    %9416 = vmatprep.subr.mxu0 0.0
    %9417 = vmatpush2.msra.mxu0 0.0
    %9418 = vmatprep.subr.mxu0 0.0
    %9419 = vmatpush2.msra.mxu0 0.0
    %9420 = vmatprep.mubr.f32.mxu0 0.0
    %9421 = vmatmul.mubr.f32.gmra.mxu0 %v9351
    %v9422 = vpop.f32.mrf.mxu0
    %v9423 = vadd.f32 %v9349, %v9422
    %v9424 = vpop.f32.mrf.mxu0
    %9425 = vmatprep.mubr.f32.mxu0 0.0
    %9426 = vmatmul.mubr.f32.gmra.mxu0 %v9354
    %v9427 = vpop.f32.mrf.mxu0
    %v9428 = vadd.f32 %v9349, %v9427
    %v9429 = vpop.f32.mrf.mxu0
    %9430 = vdwg.mxu0
    %v9431 = vmax.f32 %v9423, 0.0
    %v9432 = vmax.f32 %v9428, 0.0
    %v9433 = vld [vmem:[%s4 + $0x50] sm:$0xff]
    %v9434 = vld [vmem:[%s4 + $0x58] sm:$0xff]
    %v9435 = vld [vmem:[%s4 + $0x60] sm:$0xff]
    %v9436 = vld [vmem:[%s4 + $0x68] sm:$0xff]
    %v9437 = vld [vmem:[%s4 + $0x70] sm:$0xff]
    %v9438 = vld [vmem:[%s4 + $0xb8] sm:$0x1]
    %v9439 = vlaneseq
    %v9440 = vshrl.u32 %v9439, 7
    %v9441 = vsub.s32 0, %v9440
    %v9442 = vrot.slane %v9438, %v9441
    %v9444 = vsel %vm186, %v9431, 0
    %v9447 = vsel %vm186, %v9432, 0
    %9449 = vmatprep.subr.mxu0 0.0
    %9450 = vmatpush1.msra.mxu0 0.0
    %9451 = vmatprep.subr.mxu0 0.0
    %9452 = vmatpush1.msra.mxu0 0.0
    %9453 = vmatprep.subr.mxu0 0.0
    %9454 = vmatpush1.msra.mxu0 0.0
    %9455 = vmatprep.subr.mxu0 0.0
    %9456 = vmatpush1.msra.mxu0 0.0
    %9457 = vmatprep.subr.mxu0 0.0
    %9458 = vmatpush1.msra.mxu0 0.0
    %9459 = vmatprep.subr.mxu0 0.0
    %9460 = vmatpush1.msra.mxu0 0.0
    %9461 = vmatprep.subr.mxu0 0.0
    %9462 = vmatpush1.msra.mxu0 0.0
    %9463 = vmatprep.subr.mxu0 0.0
    %9464 = vmatpush1.msra.mxu0 0.0
    %9465 = vmatprep.subr.mxu0 0.0
    %9466 = vmatpush1.msra.mxu0 0.0
    %9467 = vmatprep.subr.mxu0 0.0
    %9468 = vmatpush1.msra.mxu0 0.0
    %9469 = vmatprep.subr.mxu0 0.0
    %9470 = vmatpush1.msra.mxu0 0.0
    %9471 = vmatprep.subr.mxu0 0.0
    %9472 = vmatpush1.msra.mxu0 %v9437
    %9473 = vmatprep.subr.mxu0 0.0
    %9474 = vmatpush1.msra.mxu0 %v9436
    %9475 = vmatprep.subr.mxu0 0.0
    %9476 = vmatpush1.msra.mxu0 %v9435
    %9477 = vmatprep.subr.mxu0 0.0
    %9478 = vmatpush1.msra.mxu0 %v9434
    %9479 = vmatprep.subr.mxu0 0.0
    %9480 = vmatpush1.msra.mxu0 %v9433
    %9481 = vmatprep.subr.mxu0 0.0
    %9482 = vmatpush2.msra.mxu0 0.0
    %9483 = vmatprep.subr.mxu0 0.0
    %9484 = vmatpush2.msra.mxu0 0.0
    %9485 = vmatprep.subr.mxu0 0.0
    %9486 = vmatpush2.msra.mxu0 0.0
    %9487 = vmatprep.subr.mxu0 0.0
    %9488 = vmatpush2.msra.mxu0 0.0
    %9489 = vmatprep.subr.mxu0 0.0
    %9490 = vmatpush2.msra.mxu0 0.0
    %9491 = vmatprep.subr.mxu0 0.0
    %9492 = vmatpush2.msra.mxu0 0.0
    %9493 = vmatprep.subr.mxu0 0.0
    %9494 = vmatpush2.msra.mxu0 0.0
    %9495 = vmatprep.subr.mxu0 0.0
    %9496 = vmatpush2.msra.mxu0 0.0
    %9497 = vmatprep.subr.mxu0 0.0
    %9498 = vmatpush2.msra.mxu0 0.0
    %9499 = vmatprep.subr.mxu0 0.0
    %9500 = vmatpush2.msra.mxu0 0.0
    %9501 = vmatprep.subr.mxu0 0.0
    %9502 = vmatpush2.msra.mxu0 0.0
    %9503 = vmatprep.subr.mxu0 0.0
    %9504 = vmatpush2.msra.mxu0 0.0
    %9505 = vmatprep.subr.mxu0 0.0
    %9506 = vmatpush2.msra.mxu0 0.0
    %9507 = vmatprep.subr.mxu0 0.0
    %9508 = vmatpush2.msra.mxu0 0.0
    %9509 = vmatprep.subr.mxu0 0.0
    %9510 = vmatpush2.msra.mxu0 0.0
    %9511 = vmatprep.subr.mxu0 0.0
    %9512 = vmatpush2.msra.mxu0 0.0
    %9513 = vmatprep.mubr.f32.mxu0 0.0
    %9514 = vmatmul.mubr.f32.gmra.mxu0 %v9444
    %v9515 = vpop.f32.mrf.mxu0
    %v9516 = vadd.f32 %v9442, %v9515
    %v9517 = vpop.f32.mrf.mxu0
    %9518 = vmatprep.mubr.f32.mxu0 0.0
    %9519 = vmatmul.mubr.f32.gmra.mxu0 %v9447
    %v9520 = vpop.f32.mrf.mxu0
    %v9521 = vadd.f32 %v9442, %v9520
    %v9522 = vpop.f32.mrf.mxu0
    %9523 = vdwg.mxu0
    %v9524 = vadd.f32 %v9516, %v9338
    %v9525 = vadd.f32 %v9521, %v9339
    %v9526 = vld [vmem:[%s4 + $0x78] sm:$0xff]
    %v9527 = vld [vmem:[%s4 + $0x80] sm:$0xff]
    %v9528 = vld [vmem:[%s4 + $0x88] sm:$0xff]
    %v9529 = vld [vmem:[%s4 + $0x90] sm:$0xff]
    %v9530 = vld [vmem:[%s4 + $0x98] sm:$0xff]
    %v9531 = vld [vmem:[%s4 + $0xc0] sm:$0x1]
    %v9532 = vlaneseq
    %v9533 = vshrl.u32 %v9532, 7
    %v9534 = vsub.s32 0, %v9533
    %v9535 = vrot.slane %v9531, %v9534
    %v9537 = vsel %vm186, %v9524, 0
    %v9540 = vsel %vm186, %v9525, 0
    %9542 = vmatprep.subr.mxu0 0.0
    %9543 = vmatpush1.msra.mxu0 0.0
    %9544 = vmatprep.subr.mxu0 0.0
    %9545 = vmatpush1.msra.mxu0 0.0
    %9546 = vmatprep.subr.mxu0 0.0
    %9547 = vmatpush1.msra.mxu0 0.0
    %9548 = vmatprep.subr.mxu0 0.0
    %9549 = vmatpush1.msra.mxu0 0.0
    %9550 = vmatprep.subr.mxu0 0.0
    %9551 = vmatpush1.msra.mxu0 0.0
    %9552 = vmatprep.subr.mxu0 0.0
    %9553 = vmatpush1.msra.mxu0 0.0
    %9554 = vmatprep.subr.mxu0 0.0
    %9555 = vmatpush1.msra.mxu0 0.0
    %9556 = vmatprep.subr.mxu0 0.0
    %9557 = vmatpush1.msra.mxu0 0.0
    %9558 = vmatprep.subr.mxu0 0.0
    %9559 = vmatpush1.msra.mxu0 0.0
    %9560 = vmatprep.subr.mxu0 0.0
    %9561 = vmatpush1.msra.mxu0 0.0
    %9562 = vmatprep.subr.mxu0 0.0
    %9563 = vmatpush1.msra.mxu0 0.0
    %9564 = vmatprep.subr.mxu0 0.0
    %9565 = vmatpush1.msra.mxu0 %v9530
    %9566 = vmatprep.subr.mxu0 0.0
    %9567 = vmatpush1.msra.mxu0 %v9529
    %9568 = vmatprep.subr.mxu0 0.0
    %9569 = vmatpush1.msra.mxu0 %v9528
    %9570 = vmatprep.subr.mxu0 0.0
    %9571 = vmatpush1.msra.mxu0 %v9527
    %9572 = vmatprep.subr.mxu0 0.0
    %9573 = vmatpush1.msra.mxu0 %v9526
    %9574 = vmatprep.subr.mxu0 0.0
    %9575 = vmatpush2.msra.mxu0 0.0
    %9576 = vmatprep.subr.mxu0 0.0
    %9577 = vmatpush2.msra.mxu0 0.0
    %9578 = vmatprep.subr.mxu0 0.0
    %9579 = vmatpush2.msra.mxu0 0.0
    %9580 = vmatprep.subr.mxu0 0.0
    %9581 = vmatpush2.msra.mxu0 0.0
    %9582 = vmatprep.subr.mxu0 0.0
    %9583 = vmatpush2.msra.mxu0 0.0
    %9584 = vmatprep.subr.mxu0 0.0
    %9585 = vmatpush2.msra.mxu0 0.0
    %9586 = vmatprep.subr.mxu0 0.0
    %9587 = vmatpush2.msra.mxu0 0.0
    %9588 = vmatprep.subr.mxu0 0.0
    %9589 = vmatpush2.msra.mxu0 0.0
    %9590 = vmatprep.subr.mxu0 0.0
    %9591 = vmatpush2.msra.mxu0 0.0
    %9592 = vmatprep.subr.mxu0 0.0
    %9593 = vmatpush2.msra.mxu0 0.0
    %9594 = vmatprep.subr.mxu0 0.0
    %9595 = vmatpush2.msra.mxu0 0.0
    %9596 = vmatprep.subr.mxu0 0.0
    %9597 = vmatpush2.msra.mxu0 0.0
    %9598 = vmatprep.subr.mxu0 0.0
    %9599 = vmatpush2.msra.mxu0 0.0
    %9600 = vmatprep.subr.mxu0 0.0
    %9601 = vmatpush2.msra.mxu0 0.0
    %9602 = vmatprep.subr.mxu0 0.0
    %9603 = vmatpush2.msra.mxu0 0.0
    %9604 = vmatprep.subr.mxu0 0.0
    %9605 = vmatpush2.msra.mxu0 0.0
    %9606 = vmatprep.mubr.f32.mxu0 0.0
    %9607 = vmatmul.mubr.f32.gmra.mxu0 %v9537
    %v9608 = vpop.f32.mrf.mxu0
    %v9609 = vadd.f32 %v9535, %v9608
    %v9610 = vpop.f32.mrf.mxu0
    %9611 = vmatprep.mubr.f32.mxu0 0.0
    %9612 = vmatmul.mubr.f32.gmra.mxu0 %v9540
    %v9613 = vpop.f32.mrf.mxu0
    %v9614 = vadd.f32 %v9535, %v9613
    %v9615 = vpop.f32.mrf.mxu0
    %9616 = vdwg.mxu0
    %vm9617 = vcmask 64519
    %9618 = vst.msk [vmem:[#allocation4 - $0x7] sm:$0x80] %vm9617, %v9609
    %9619 = vst.msk [vmem:[#allocation4 - $0x6] sm:$0x80] %vm9617, %v9614
    // Predicated region
    $region22: #{forward.1} parent=1 // pred_check
      _
    $region23: #{forward.1} parent=1 // pred_check_branch
      %9621 = sbr.rel (0) target = $region25
    $region24: #{forward.1} parent=1 // pred_region
      %s9623 = ssub.s32 32, 32
      %9624 = vsyncadd [#allocation5], %s9623
      %s9626 = sshll.u32 [#allocation4], 4
      %s9627 = int_to_ptr.vmem [resolvable:$true] %s9626
      %9629 = dma.vmem_to_hbm [thread:$0]  %s9627, 32, %s5, [#allocation5]
    $region25: #{forward.1} parent=1 // pred_fallthru
      _
    // Predicated region
    $region26: #{forward.1} parent=1 // pred_check
      _
    $region27: #{forward.1} parent=1 // pred_check_branch
      %9631 = sbr.rel (0) target = $region29
    $region28: #{forward.1} parent=1 // pred_region
      %9632 = dma.done [#allocation5], 32
    $region29: #{forward.1} parent=1 // pred_fallthru
      _
    %9633 = vsyncpa [#allocation5], 1

</llo_original>
